<compile_context>
chip_gen: v5e
topology: v5e:2x2
jax: 0.10.0
libtpu: 0.0.40
codegen_flags: <defaults>
</compile_context>

<pallas_src>
import functools

import numpy as np
import jax
import jax.numpy as jnp
from jax.experimental import pallas as pl
from jax.experimental.pallas import tpu as pltpu


def _ffn_kernel(x_ref, w1_ref, b1_ref, w2_ref, b2_ref, o_ref, acc_ref):
    # x_ref:  (tm, C)  bf16        w1_ref: (C, tH) bf16    b1_ref: (1, tH) f32
    # w2_ref: (tH, C)  bf16        b2_ref: (1, C)  f32
    # o_ref:  (tm, C)  x.dtype     acc_ref: (tm, C) f32 scratch
    hc = pl.program_id(1)

    @pl.when(hc == 0)
    def _init():
        # Fold b2 into the accumulator init: acc = b2 broadcast over rows.
        acc_ref[...] = jnp.broadcast_to(b2_ref[...], acc_ref.shape).astype(jnp.float32)

    # First matmul chunk on the MXU (f32 accumulation); bias + ReLU on the VPU in f32.
    h = jnp.dot(x_ref[...], w1_ref[...], preferred_element_type=jnp.float32)
    h = jnp.maximum(h + b1_ref[...], 0.0)

    # Second matmul chunk, accumulated into the resident f32 scratch.
    acc_ref[...] += jnp.dot(h.astype(w2_ref.dtype), w2_ref[...],
                            preferred_element_type=jnp.float32)

    @pl.when(hc == pl.num_programs(1) - 1)
    def _finalize():
        o_ref[...] = acc_ref[...].astype(o_ref.dtype)


def _tile_footprint_bytes(tm, C, th, mxu_bytes):
    """Double-buffered streamed blocks + resident accumulator + intermediate."""
    streamed = (tm * C * mxu_bytes      # x tile
                + C * th * mxu_bytes    # W1 chunk
                + th * 4                # b1 chunk
                + th * C * mxu_bytes    # W2 chunk
                + C * 4                 # b2
                + tm * C * 4)           # out tile
    return 2 * streamed + tm * C * 4 + tm * th * 4   # acc scratch + relu intermediate


def _pick_hidden_tile(H, C, tm, mxu_bytes, budget=24 << 20):
    """Largest hidden tile (divisor of H, lane-aligned) that fits the VMEM budget."""
    candidates = sorted({H} | {t for t in (4096, 3072, 2048, 1536, 1024, 768, 512,
                                           384, 256, 128)
                              if H % t == 0}, reverse=True)
    for th in candidates:
        if th != H and th % 128 != 0:
            continue
        if _tile_footprint_bytes(tm, C, th, mxu_bytes) <= budget:
            return th
    return min(candidates)


@functools.partial(jax.jit, static_argnames=("tm",))
def feed_forward(x, w1, b1, w2, b2, *, tm=256):
    """x: [B, T, C]; w1: [C, 4C]; b1: [4C]; w2: [4C, C]; b2: [C] -> [B, T, C]."""
    B, T, C = x.shape
    H = w1.shape[1]
    assert C % 128 == 0, "n_embd must be a multiple of 128 for lane-dense tiles"

    mxu_dtype = jnp.bfloat16
    mxu_bytes = np.dtype(mxu_dtype).itemsize

    th = _pick_hidden_tile(H, C, tm, mxu_bytes)
    grid_h = H // th

    M = B * T
    grid_m = pl.cdiv(M, tm)
    M_pad = grid_m * tm

    x2d = x.reshape(M, C)
    if M_pad != M:
        x2d = jnp.pad(x2d, ((0, M_pad - M), (0, 0)))

    # bf16 MXU inputs, f32 biases / accumulation.
    x2d = x2d.astype(mxu_dtype)
    w1c = w1.astype(mxu_dtype)
    w2c = w2.astype(mxu_dtype)
    b1_2d = b1.reshape(1, H).astype(jnp.float32)
    b2_2d = b2.reshape(1, C).astype(jnp.float32)

    vmem_usage = _tile_footprint_bytes(tm, C, th, mxu_bytes)
    vmem_limit = int(min(max(2 * vmem_usage, 24 << 20), 48 << 20))

    out_dtype = x.dtype
    out_bytes = np.dtype(out_dtype).itemsize
    cost = pl.CostEstimate(
        flops=4 * M_pad * C * H,                          # two matmuls
        transcendentals=0,
        bytes_accessed=(M_pad * C * mxu_bytes             # x in
                        + M_pad * C * out_bytes           # out
                        + 2 * C * H * mxu_bytes           # weights (resident once)
                        + (H + C) * 4),                   # biases
    )

    out2d = pl.pallas_call(
        _ffn_kernel,
        out_shape=jax.ShapeDtypeStruct((M_pad, C), out_dtype),
        grid_spec=pltpu.PrefetchScalarGridSpec(
            num_scalar_prefetch=0,
            grid=(grid_m, grid_h),
            in_specs=[
                pl.BlockSpec((tm, C), lambda i, h: (i, 0)),   # x rows
                pl.BlockSpec((C, th), lambda i, h: (0, h)),   # W1 chunk
                pl.BlockSpec((1, th), lambda i, h: (0, h)),   # b1 chunk
                pl.BlockSpec((th, C), lambda i, h: (h, 0)),   # W2 chunk
                pl.BlockSpec((1, C), lambda i, h: (0, 0)),    # b2
            ],
            out_specs=pl.BlockSpec((tm, C), lambda i, h: (i, 0)),
            scratch_shapes=[pltpu.VMEM((tm, C), jnp.float32)],
        ),
        compiler_params=pltpu.CompilerParams(
            dimension_semantics=("parallel", "arbitrary"),
            vmem_limit_bytes=vmem_limit,
        ),
        cost_estimate=cost,
    )(x2d, w1c, b1_2d, w2c, b2_2d)

    if M_pad != M:
        out2d = out2d[:M]
    return out2d.reshape(B, T, C)


def init_params(key, n_embd):
    """Deterministic init mimicking nn.Linear default (U(-1/sqrt(in), 1/sqrt(in)))."""
    hidden = 4 * n_embd
    k1, k2, k3, k4 = jax.random.split(key, 4)
    bound1 = 1.0 / (n_embd ** 0.5)
    bound2 = 1.0 / (hidden ** 0.5)
    w1 = jax.random.uniform(k1, (n_embd, hidden), jnp.float32, -bound1, bound1)
    b1 = jax.random.uniform(k2, (hidden,), jnp.float32, -bound1, bound1)
    w2 = jax.random.uniform(k3, (hidden, n_embd), jnp.float32, -bound2, bound2)
    b2 = jax.random.uniform(k4, (n_embd,), jnp.float32, -bound2, bound2)
    return w1, b1, w2, b2


if __name__ == "__main__":
    # Small shapes consistent with the module: x is [B, T, C], n_embd = 384.
    # B*T = 512 -> 2 row tiles of 256, so both v7x TensorCores get work.
    B, T, n_embd = 2, 256, 384

    key = jax.random.PRNGKey(0)
    kx, kp = jax.random.split(key)
    x = jax.random.normal(kx, (B, T, n_embd), jnp.float32)
    w1, b1, w2, b2 = init_params(kp, n_embd)

    out = jax.block_until_ready(feed_forward(x, w1, b1, w2, b2))
    assert out.shape == (B, T, n_embd)
    assert out.dtype == x.dtype

    # Reference with matching bf16 MXU-input rounding and f32 accumulation.
    xb = x.reshape(-1, n_embd).astype(jnp.bfloat16)
    h_ref = jnp.dot(xb, w1.astype(jnp.bfloat16), preferred_element_type=jnp.float32) + b1
    h_ref = jnp.maximum(h_ref, 0.0)
    ref = jnp.dot(h_ref.astype(jnp.bfloat16), w2.astype(jnp.bfloat16),
                  preferred_element_type=jnp.float32) + b2
    ref = ref.reshape(B, T, n_embd)
    assert jnp.allclose(out, ref, atol=2e-2, rtol=2e-2), float(jnp.max(jnp.abs(out - ref)))

    # Looser sanity check against the pure-f32 math (bf16 input rounding noise).
    ref32 = (jnp.maximum(x.reshape(-1, n_embd) @ w1 + b1, 0.0) @ w2 + b2).reshape(B, T, n_embd)
    assert jnp.allclose(out, ref32, atol=1e-1, rtol=1e-1)

    print("KERNEL_OK")
</pallas_src>

<mosaic_0001>
module attributes {stable_mosaic.version = 11 : i64} {
  func.func @_ffn_kernel(%arg0: i32, %arg1: i32, %arg2: memref<256x384xbf16, #tpu.memory_space<vmem>>, %arg3: memref<384x1536xbf16, #tpu.memory_space<vmem>>, %arg4: memref<1x1536xf32, #tpu.memory_space<vmem>>, %arg5: memref<1536x384xbf16, #tpu.memory_space<vmem>>, %arg6: memref<1x384xf32, #tpu.memory_space<vmem>>, %arg7: memref<256x384xf32, #tpu.memory_space<vmem>>, %arg8: memref<256x384xf32, #tpu.memory_space<vmem>>) attributes {dimension_semantics = [#tpu.dimension_semantics<parallel>, #tpu.dimension_semantics<arbitrary>], iteration_bounds = array<i64: 2, 1>, scalar_prefetch = 0 : i64, scratch_operands = 1 : i64, tpu.core_type = #tpu.core_type<tc>, window_params = [{transform_indices = @transform_0, window_bounds = array<i64: 256, 384>}, {transform_indices = @transform_1, window_bounds = array<i64: 384, 1536>}, {transform_indices = @transform_2, window_bounds = array<i64: 1, 1536>}, {transform_indices = @transform_3, window_bounds = array<i64: 1536, 384>}, {pipeline_mode = #tpu.pipeline_mode<synchronous>, transform_indices = @transform_4, window_bounds = array<i64: 1, 384>}, {transform_indices = @transform_5, window_bounds = array<i64: 256, 384>}]} {
    %c0_i32 = arith.constant 0 : i32
    %0 = arith.cmpi eq, %arg1, %c0_i32 : i32
    %1 = arith.extui %0 : i1 to i32
    %c0_i32_0 = arith.constant 0 : i32
    %2 = arith.cmpi ne, %1, %c0_i32_0 : i32
    scf.if %2 {
      %c0_16 = arith.constant 0 : index
      %c0_17 = arith.constant 0 : index
      %20 = vector.load %arg6[%c0_16, %c0_17] : memref<1x384xf32, #tpu.memory_space<vmem>>, vector<1x384xf32>
      %21 = vector.shape_cast %20 : vector<1x384xf32> to vector<1x384xf32>
      %22 = vector.broadcast %21 : vector<1x384xf32> to vector<256x384xf32>
      %c0_18 = arith.constant 0 : index
      %c0_19 = arith.constant 0 : index
      %23 = vector.load %arg8[%c0_18, %c0_19] : memref<256x384xf32, #tpu.memory_space<vmem>>, vector<256x384xf32>
      tpu.vector_store %arg8[%c0_18, %c0_19], %22 {strides = array<i32>} : memref<256x384xf32, #tpu.memory_space<vmem>>, vector<256x384xf32>,
    } else {
    }
    %c0 = arith.constant 0 : index
    %c0_1 = arith.constant 0 : index
    %3 = vector.load %arg2[%c0, %c0_1] : memref<256x384xbf16, #tpu.memory_space<vmem>>, vector<256x384xbf16>
    %c0_2 = arith.constant 0 : index
    %c0_3 = arith.constant 0 : index
    %4 = vector.load %arg3[%c0_2, %c0_3] : memref<384x1536xbf16, #tpu.memory_space<vmem>>, vector<384x1536xbf16>
    %cst = arith.constant dense<0.000000e+00> : vector<256x1536xf32>
    %5 = tpu.matmul %3, %4, %cst {dimension_numbers = #tpu.dot_dimension_numbers<[1], [0], [0], [1], [0, 0, 1, 1], [], []>} : vector<256x384xbf16>, vector<384x1536xbf16>, vector<256x1536xf32> -> vector<256x1536xf32>
    %c0_4 = arith.constant 0 : index
    %c0_5 = arith.constant 0 : index
    %6 = vector.load %arg4[%c0_4, %c0_5] : memref<1x1536xf32, #tpu.memory_space<vmem>>, vector<1x1536xf32>
    %7 = vector.broadcast %6 : vector<1x1536xf32> to vector<256x1536xf32>
    %8 = arith.addf %5, %7 : vector<256x1536xf32>
    %cst_6 = arith.constant 0.000000e+00 : f32
    %9 = vector.broadcast %cst_6 : f32 to vector<256x1536xf32>
    %10 = arith.maximumf %8, %9 : vector<256x1536xf32>
    %c0_7 = arith.constant 0 : index
    %c0_8 = arith.constant 0 : index
    %11 = vector.load %arg8[%c0_7, %c0_8] : memref<256x384xf32, #tpu.memory_space<vmem>>, vector<256x384xf32>
    %12 = arith.truncf %10 : vector<256x1536xf32> to vector<256x1536xbf16>
    %c0_9 = arith.constant 0 : index
    %c0_10 = arith.constant 0 : index
    %13 = vector.load %arg5[%c0_9, %c0_10] : memref<1536x384xbf16, #tpu.memory_space<vmem>>, vector<1536x384xbf16>
    %cst_11 = arith.constant dense<0.000000e+00> : vector<256x384xf32>
    %14 = tpu.matmul %12, %13, %cst_11 {dimension_numbers = #tpu.dot_dimension_numbers<[1], [0], [0], [1], [0, 0, 1, 1], [], []>} : vector<256x1536xbf16>, vector<1536x384xbf16>, vector<256x384xf32> -> vector<256x384xf32>
    %15 = arith.addf %11, %14 : vector<256x384xf32>
    %c0_12 = arith.constant 0 : index
    %c0_13 = arith.constant 0 : index
    %16 = vector.load %arg8[%c0_12, %c0_13] : memref<256x384xf32, #tpu.memory_space<vmem>>, vector<256x384xf32>
    tpu.vector_store %arg8[%c0_12, %c0_13], %15 {strides = array<i32>} : memref<256x384xf32, #tpu.memory_space<vmem>>, vector<256x384xf32>,
    %c0_i32_14 = arith.constant 0 : i32
    %17 = arith.cmpi eq, %arg1, %c0_i32_14 : i32
    %18 = arith.extui %17 : i1 to i32
    %c0_i32_15 = arith.constant 0 : i32
    %19 = arith.cmpi ne, %18, %c0_i32_15 : i32
    scf.if %19 {
      %c0_16 = arith.constant 0 : index
      %c0_17 = arith.constant 0 : index
      %20 = vector.load %arg8[%c0_16, %c0_17] : memref<256x384xf32, #tpu.memory_space<vmem>>, vector<256x384xf32>
      %c0_18 = arith.constant 0 : index
      %c0_19 = arith.constant 0 : index
      %21 = vector.load %arg7[%c0_18, %c0_19] : memref<256x384xf32, #tpu.memory_space<vmem>>, vector<256x384xf32>
      tpu.vector_store %arg7[%c0_18, %c0_19], %20 {strides = array<i32>} : memref<256x384xf32, #tpu.memory_space<vmem>>, vector<256x384xf32>,
    } else {
    }
    return
  }
  func.func @transform_0(%arg0: i32, %arg1: i32) -> (i32, i32) {
    %c0_i32 = arith.constant 0 : i32
    %c0_i32_0 = arith.constant 0 : i32
    return %arg0, %c0_i32 : i32, i32
  }
  func.func @transform_1(%arg0: i32, %arg1: i32) -> (i32, i32) {
    %c0_i32 = arith.constant 0 : i32
    %c0_i32_0 = arith.constant 0 : i32
    return %c0_i32, %arg1 : i32, i32
  }
  func.func @transform_2(%arg0: i32, %arg1: i32) -> (i32, i32) {
    %c0_i32 = arith.constant 0 : i32
    %c0_i32_0 = arith.constant 0 : i32
    return %c0_i32, %arg1 : i32, i32
  }
  func.func @transform_3(%arg0: i32, %arg1: i32) -> (i32, i32) {
    %c0_i32 = arith.constant 0 : i32
    %c0_i32_0 = arith.constant 0 : i32
    return %arg1, %c0_i32 : i32, i32
  }
  func.func @transform_4(%arg0: i32, %arg1: i32) -> (i32, i32) {
    %c0_i32 = arith.constant 0 : i32
    %c0_i32_0 = arith.constant 0 : i32
    %c0_i32_1 = arith.constant 0 : i32
    return %c0_i32, %c0_i32_0 : i32, i32
  }
  func.func @transform_5(%arg0: i32, %arg1: i32) -> (i32, i32) {
    %c0_i32 = arith.constant 0 : i32
    %c0_i32_0 = arith.constant 0 : i32
    return %arg0, %c0_i32 : i32, i32
  }
}

</mosaic_0001>

<llo_original>
// kernel: feed_forward.1
$region0: #{feed_forward.1}
  #allocation0 [shape = 'u32[]', space=smem, size = 0x4, offset = 0x4, fixed_abs, tag = 'smem constant byte address 0x4 - core index']
  #allocation1 [shape = 'u32[72,128]{1,0:T(1,128)}', space=vmem, size = 0x9000, scoped, tag = 'internal scratch']
  #allocation2 [shape = 'f32[256,384]{1,0:T(8,128)}', space=vmem, size = 0x60000, scoped, tag = 'scratch operand']
  %s0 = inlined_call_operand.vmem [shape: bf16[512,384], index: 0, kind: input, shape index: {}]
  %s1 = inlined_call_operand.vmem [shape: bf16[384,1536], index: 1, kind: input, shape index: {}]
  %s2 = inlined_call_operand.vmem [shape: f32[1,1536], index: 2, kind: input, shape index: {}]
  %s3 = inlined_call_operand.vmem [shape: bf16[1536,384], index: 3, kind: input, shape index: {}]
  %s4 = inlined_call_operand.vmem [shape: f32[1,384], index: 4, kind: input, shape index: {}]
  %s5 = inlined_call_operand.hbm [shape: f32[512,384], index: 5, kind: output, shape index: {}]
  %s6 = sld [smem:[#allocation0]]
  $region61: #{feed_forward.1} parent=0
    _
  %s8 = ssub.s32 1, %s6
  %s9 = scalar_select 0, %s8, %s6
  $region1: #{feed_forward.1} parent=0
    #allocation3 [shape = 'u8[786432]{0}', space=vmem, size = 0xc0000, scoped, tag = 'output window, operand 0']
    #allocation4 [shape = 's32[2]{0}', space=sflag, size = 0x8, scoped, tag = 'scoped memory for feed_forward.1']
    %10 = vsyncpa [#allocation4], 0
    %s11 = scalar_lea.sflag [#allocation4], 1
    %12 = vsyncpa %s11, 0
    loop: start=0, step=1, limit=4
    $region2: #{feed_forward.1} parent=1 // loop_pre_header
      _
    $region3: #{feed_forward.1} parent=1 // loop_header
      %s14 = sphi 0, %s18
      %p15 = scmp.ge.s32.totalorder %s14, 4
      %s21 = sphi 0, %s33
      %s22 = sphi 0, %s29
      %s23 = sphi 0, %s21
      %s24 = sphi 0, %s22
      %s25 = sphi 0, %s23
      %s26 = sphi 0, %s24
      %s36 = sphi 0, %s38
      %s39 = sphi 0, %s36
      %s40 = sphi 0, %s39
      %s56 = sphi 0, %s40
      %s62 = sphi 0, %s64
      %s65 = sphi 0, %s62
      %s66 = sphi 0, %s65
      %s82 = sphi 0, %s66
      %s88 = sphi 0, %s90
      %s91 = sphi 0, %s88
      %s92 = sphi 0, %s91
      %s108 = sphi 0, %s92
      %s114 = sphi 0, %s116
      %s117 = sphi 0, %s114
      %s118 = sphi 0, %s117
      %s134 = sphi 0, %s118
      %s138 = sphi 0, %s138
      %s140 = sphi 0, %s138
      %s141 = sphi 0, %s140
      %s155 = sphi 0, %s141
      %s161 = sphi 0, %s163
      %s164 = sphi 0, %s161
      %s165 = sphi 0, %s164
      %s181 = sphi 0, %s165
    $region4: #{feed_forward.1} parent=1 // loop_header_branch
      %17 = sbr.rel (%p15) target = $region8
    $region5: #{feed_forward.1} parent=1 // loop_body
      %s19 = ssub.s32 %s14, 1
      %s20 = ssub.s32 %s14, 2
      %s27 = sadd.s32 1, %s22
      %p28 = scmp.ge.s32.totalorder %s27, 1
      %s29 = scalar_select %p28, 0, %s27
      %s30 = sadd.s32 1, %s21
      %s31 = scalar_select %p28, %s30, %s21
      %p32 = scmp.ge.s32.totalorder %s31, 2
      %s33 = scalar_select %p32, 0, %s31
      %s34 = ssub.s32 %s21, %s33
      %p35 = scmp.eq.s32.totalorder %s34, 0
      %s37 = sadd.s32 %s36, 1
      %s38 = scalar_select %p35, %s36, %s37
      %p41 = pneg %p35
      %p42 = scmp.eq.s32.totalorder %s14, 1
      %p43 = por %p41, %p42
      %p44 = scmp.ne.s32.totalorder %s36, %s39
      %p45 = scmp.eq.s32.totalorder %s14, 0
      %p46 = por %p44, %p45
      %p47 = scmp.ne.s32.totalorder %s36, %s39
      %p48 = scmp.eq.s32.totalorder %s19, 1
      %p49 = por %p47, %p48
      %p50 = scmp.ne.s32.totalorder %s39, %s40
      %p51 = scmp.eq.s32.totalorder %s19, 0
      %p52 = por %p50, %p51
      %p53 = scmp.ne.s32.totalorder %s39, %s40
      %p54 = scmp.eq.s32.totalorder %s20, 1
      %p55 = por %p53, %p54
      %p57 = scmp.ne.s32.totalorder %s40, %s56
      %p58 = scmp.eq.s32.totalorder %s20, 0
      %p59 = por %p57, %p58
      %s60 = ssub.s32 %s22, %s29
      %p61 = scmp.eq.s32.totalorder %s60, 0
      %s63 = sadd.s32 %s62, 1
      %s64 = scalar_select %p61, %s62, %s63
      %p67 = pneg %p61
      %p68 = scmp.eq.s32.totalorder %s14, 1
      %p69 = por %p67, %p68
      %p70 = scmp.ne.s32.totalorder %s62, %s65
      %p71 = scmp.eq.s32.totalorder %s14, 0
      %p72 = por %p70, %p71
      %p73 = scmp.ne.s32.totalorder %s62, %s65
      %p74 = scmp.eq.s32.totalorder %s19, 1
      %p75 = por %p73, %p74
      %p76 = scmp.ne.s32.totalorder %s65, %s66
      %p77 = scmp.eq.s32.totalorder %s19, 0
      %p78 = por %p76, %p77
      %p79 = scmp.ne.s32.totalorder %s65, %s66
      %p80 = scmp.eq.s32.totalorder %s20, 1
      %p81 = por %p79, %p80
      %p83 = scmp.ne.s32.totalorder %s66, %s82
      %p84 = scmp.eq.s32.totalorder %s20, 0
      %p85 = por %p83, %p84
      %s86 = ssub.s32 %s22, %s29
      %p87 = scmp.eq.s32.totalorder %s86, 0
      %s89 = sadd.s32 %s88, 1
      %s90 = scalar_select %p87, %s88, %s89
      %p93 = pneg %p87
      %p94 = scmp.eq.s32.totalorder %s14, 1
      %p95 = por %p93, %p94
      %p96 = scmp.ne.s32.totalorder %s88, %s91
      %p97 = scmp.eq.s32.totalorder %s14, 0
      %p98 = por %p96, %p97
      %p99 = scmp.ne.s32.totalorder %s88, %s91
      %p100 = scmp.eq.s32.totalorder %s19, 1
      %p101 = por %p99, %p100
      %p102 = scmp.ne.s32.totalorder %s91, %s92
      %p103 = scmp.eq.s32.totalorder %s19, 0
      %p104 = por %p102, %p103
      %p105 = scmp.ne.s32.totalorder %s91, %s92
      %p106 = scmp.eq.s32.totalorder %s20, 1
      %p107 = por %p105, %p106
      %p109 = scmp.ne.s32.totalorder %s92, %s108
      %p110 = scmp.eq.s32.totalorder %s20, 0
      %p111 = por %p109, %p110
      %s112 = ssub.s32 %s22, %s29
      %p113 = scmp.eq.s32.totalorder %s112, 0
      %s115 = sadd.s32 %s114, 1
      %s116 = scalar_select %p113, %s114, %s115
      %p119 = pneg %p113
      %p120 = scmp.eq.s32.totalorder %s14, 1
      %p121 = por %p119, %p120
      %p122 = scmp.ne.s32.totalorder %s114, %s117
      %p123 = scmp.eq.s32.totalorder %s14, 0
      %p124 = por %p122, %p123
      %p125 = scmp.ne.s32.totalorder %s114, %s117
      %p126 = scmp.eq.s32.totalorder %s19, 1
      %p127 = por %p125, %p126
      %p128 = scmp.ne.s32.totalorder %s117, %s118
      %p129 = scmp.eq.s32.totalorder %s19, 0
      %p130 = por %p128, %p129
      %p131 = scmp.ne.s32.totalorder %s117, %s118
      %p132 = scmp.eq.s32.totalorder %s20, 1
      %p133 = por %p131, %p132
      %p135 = scmp.ne.s32.totalorder %s118, %s134
      %p136 = scmp.eq.s32.totalorder %s20, 0
      %p137 = por %p135, %p136
      %s139 = sadd.s32 %s138, 1
      %p142 = scmp.eq.s32.totalorder %s14, 1
      %p143 = scmp.ne.s32.totalorder %s138, %s140
      %p144 = scmp.eq.s32.totalorder %s14, 0
      %p145 = por %p143, %p144
      %p146 = scmp.ne.s32.totalorder %s138, %s140
      %p147 = scmp.eq.s32.totalorder %s19, 1
      %p148 = por %p146, %p147
      %p149 = scmp.ne.s32.totalorder %s140, %s141
      %p150 = scmp.eq.s32.totalorder %s19, 0
      %p151 = por %p149, %p150
      %p152 = scmp.ne.s32.totalorder %s140, %s141
      %p153 = scmp.eq.s32.totalorder %s20, 1
      %p154 = por %p152, %p153
      %p156 = scmp.ne.s32.totalorder %s141, %s155
      %p157 = scmp.eq.s32.totalorder %s20, 0
      %p158 = por %p156, %p157
      %s159 = ssub.s32 %s21, %s33
      %p160 = scmp.eq.s32.totalorder %s159, 0
      %s162 = sadd.s32 %s161, 1
      %s163 = scalar_select %p160, %s161, %s162
      %p166 = pneg %p160
      %p167 = scmp.eq.s32.totalorder %s14, 1
      %p168 = por %p166, %p167
      %p169 = scmp.ne.s32.totalorder %s161, %s164
      %p170 = scmp.eq.s32.totalorder %s14, 0
      %p171 = por %p169, %p170
      %p172 = scmp.ne.s32.totalorder %s161, %s164
      %p173 = scmp.eq.s32.totalorder %s19, 1
      %p174 = por %p172, %p173
      %p175 = scmp.ne.s32.totalorder %s164, %s165
      %p176 = scmp.eq.s32.totalorder %s19, 0
      %p177 = por %p175, %p176
      %p178 = scmp.ne.s32.totalorder %s164, %s165
      %p179 = scmp.eq.s32.totalorder %s20, 1
      %p180 = por %p178, %p179
      %p182 = scmp.ne.s32.totalorder %s165, %s181
      %p183 = scmp.eq.s32.totalorder %s20, 0
      %p184 = por %p182, %p183
      %p185 = scmp.le.s32.totalorder 1, %s14
      %p186 = scmp.lt.s32.totalorder %s14, 3
      %p187 = pnand %p185, %p186
      %p188 = pneg %p187
      // Predicated region
      $region9: #{feed_forward.1} parent=5 // pred_check
        _
      $region10: #{feed_forward.1} parent=5 // pred_check_branch
        %190 = sbr.rel (%p187) target = $region12
      $region11: #{feed_forward.1} parent=5 // pred_region
        %s191 = ssub.s32 %s14, 1
        // Predicated region
        $region13: #{feed_forward.1} parent=11 // pred_check
          %p192 = pneg %p78
        $region14: #{feed_forward.1} parent=11 // pred_check_branch
          %194 = sbr.rel (%p192) target = $region16
        $region15: #{feed_forward.1} parent=11 // pred_region
          %s195 = smul.u32 12, %s24
          %p196 = scmp.lt.s32.totalorder %s195, 11
          %s197 = scalar_select %p196, %s195, 11
          %s198 = smul.addr %s197, 4
          %s199 = scalar_lea.vmem %s1, %s198
          %s200 = smul.u32 12, %s24
        $region16: #{feed_forward.1} parent=11 // pred_fallthru
          _
        // Predicated region
        $region17: #{feed_forward.1} parent=11 // pred_check
          %p201 = pneg %p104
        $region18: #{feed_forward.1} parent=11 // pred_check_branch
          %203 = sbr.rel (%p201) target = $region20
        $region19: #{feed_forward.1} parent=11 // pred_region
          %s204 = smul.u32 12, %s24
          %p205 = scmp.lt.s32.totalorder %s204, 11
          %s206 = scalar_select %p205, %s204, 11
          %s207 = scalar_lea.vmem %s2, %s206
          %s208 = smul.u32 12, %s24
        $region20: #{feed_forward.1} parent=11 // pred_fallthru
          _
        // Predicated region
        $region21: #{feed_forward.1} parent=11 // pred_check
          %p209 = pneg %p130
        $region22: #{feed_forward.1} parent=11 // pred_check_branch
          %211 = sbr.rel (%p209) target = $region24
        $region23: #{feed_forward.1} parent=11 // pred_region
          %s212 = smul.u32 192, %s24
          %p213 = scmp.lt.s32.totalorder %s212, 191
          %s214 = scalar_select %p213, %s212, 191
          %s215 = smul.addr %s214, 3
          %s216 = smul.addr %s215, 4
          %s217 = scalar_lea.vmem %s3, %s216
          %s218 = smul.u32 192, %s24
        $region24: #{feed_forward.1} parent=11 // pred_fallthru
          _
        // Predicated region
        $region25: #{feed_forward.1} parent=11 // pred_check
          %p219 = pneg %p151
        $region26: #{feed_forward.1} parent=11 // pred_check_branch
          %221 = sbr.rel (%p219) target = $region28
        $region27: #{feed_forward.1} parent=11 // pred_region
          _
        $region28: #{feed_forward.1} parent=11 // pred_fallthru
          _
      $region12: #{feed_forward.1} parent=5 // pred_fallthru
        _
      %p222 = scmp.lt.s32.totalorder %s14, 2
      // Predicated region
      $region29: #{feed_forward.1} parent=5 // pred_check
        %p223 = pneg %p222
      $region30: #{feed_forward.1} parent=5 // pred_check_branch
        %225 = sbr.rel (%p223) target = $region32
      $region31: #{feed_forward.1} parent=5 // pred_region
        // Predicated region
        $region33: #{feed_forward.1} parent=31 // pred_check
          %p226 = pneg %p46
        $region34: #{feed_forward.1} parent=31 // pred_check_branch
          %228 = sbr.rel (%p226) target = $region36
        $region35: #{feed_forward.1} parent=31 // pred_region
          %s229 = smul.u32 32, %s21
          %p230 = scmp.lt.s32.totalorder %s229, 63
          %s231 = scalar_select %p230, %s229, 63
          %s232 = smul.addr %s231, 3
          %s233 = smul.addr %s232, 4
          %s234 = scalar_lea.vmem %s0, %s233
          %s235 = smul.u32 32, %s21
        $region36: #{feed_forward.1} parent=31 // pred_fallthru
          _
      $region32: #{feed_forward.1} parent=5 // pred_fallthru
        _
      %p236 = scmp.le.s32.totalorder 1, %s14
      %p237 = scmp.lt.s32.totalorder %s14, 3
      %p238 = pnand %p236, %p237
      %p239 = pneg %p238
      // Predicated region
      $region37: #{feed_forward.1} parent=5 // pred_check
        _
      $region38: #{feed_forward.1} parent=5 // pred_check_branch
        %241 = sbr.rel (%p238) target = $region40
      $region39: #{feed_forward.1} parent=5 // pred_region
        %s242 = ssub.s32 %s14, 1
        %s243 = smul.u32 32, %s23
        %p244 = scmp.lt.s32.totalorder %s243, 63
        %s245 = scalar_select %p244, %s243, 63
        %s246 = smul.addr %s245, 3
        %s247 = smul.addr %s246, 4
        %s248 = scalar_lea.vmem %s0, %s247
        %p249 = pneg %p52
        %p250 = pneg %p49
        %s251 = smul.u32 12, %s24
        %p252 = scmp.lt.s32.totalorder %s251, 11
        %s253 = scalar_select %p252, %s251, 11
        %s254 = smul.addr %s253, 4
        %s255 = scalar_lea.vmem %s1, %s254
        %p256 = pneg %p78
        %p257 = pneg %p75
        %s258 = smul.u32 12, %s24
        %p259 = scmp.lt.s32.totalorder %s258, 11
        %s260 = scalar_select %p259, %s258, 11
        %s261 = scalar_lea.vmem %s2, %s260
        %p262 = pneg %p104
        %p263 = pneg %p101
        %s264 = smul.u32 192, %s24
        %p265 = scmp.lt.s32.totalorder %s264, 191
        %s266 = scalar_select %p265, %s264, 191
        %s267 = smul.addr %s266, 3
        %s268 = smul.addr %s267, 4
        %s269 = scalar_lea.vmem %s3, %s268
        %p270 = pneg %p130
        %p271 = pneg %p127
        %p272 = pneg %p151
        %p273 = pneg %p148
        %p274 = pneg %p177
        %p275 = pneg %p174
        %s276 = sand.u32 %s164, 1
        %s277 = scalar_lea.sflag [#allocation4], %s276
        %s278 = sand.u32 %s164, 1
        %s279 = smul.addr %s278, 768
        %s280 = scalar_lea.vmem [#allocation3], %s279
        %s281 = smul.u32 32, %s23
        %p282 = scmp.lt.s32.totalorder %s281, 63
        %s283 = scalar_select %p282, %s281, 63
        %s284 = smul.addr %s283, 3
        %s285 = smul.addr %s284, 4
        %s286 = scalar_lea.vmem %s0, %s285
        %s287 = smul.u32 32, %s23
        %s288 = smul.u32 12, %s24
        %p289 = scmp.lt.s32.totalorder %s288, 11
        %s290 = scalar_select %p289, %s288, 11
        %s291 = smul.addr %s290, 4
        %s292 = scalar_lea.vmem %s1, %s291
        %s293 = smul.u32 12, %s24
        %s294 = smul.u32 12, %s24
        %p295 = scmp.lt.s32.totalorder %s294, 11
        %s296 = scalar_select %p295, %s294, 11
        %s297 = scalar_lea.vmem %s2, %s296
        %s298 = smul.u32 12, %s24
        %s299 = smul.u32 192, %s24
        %p300 = scmp.lt.s32.totalorder %s299, 191
        %s301 = scalar_select %p300, %s299, 191
        %s302 = smul.addr %s301, 3
        %s303 = smul.addr %s302, 4
        %s304 = scalar_lea.vmem %s3, %s303
        %s305 = smul.u32 192, %s24
        %s306 = smul.u32 32, %s23
        %p307 = scmp.eq.s32.totalorder %s24, 0
        // Predicated region
        $region41: #{feed_forward.1} parent=39 // pred_check
          %p308 = pneg %p307
        $region42: #{feed_forward.1} parent=39 // pred_check_branch
          %310 = sbr.rel (%p308) target = $region44
        $region43: #{feed_forward.1} parent=39 // pred_region
          %v311 = vld [vmem:[%s4] sm:$0x7]
          %v313 = vperm.slane %v311, 0
          %v314 = vperm.slane %v311, 1
          %v315 = vperm.slane %v311, 2
          %319 = vst [vmem:[#allocation2] sm:$0xff] %v313
          %320 = vst [vmem:[#allocation2 + $0x8] sm:$0xff] %v314
          %321 = vst [vmem:[#allocation2 + $0x10] sm:$0xff] %v315
          %322 = vst [vmem:[#allocation2 + $0x18] sm:$0xff] %v313
          %323 = vst [vmem:[#allocation2 + $0x20] sm:$0xff] %v314
          %324 = vst [vmem:[#allocation2 + $0x28] sm:$0xff] %v315
          %325 = vst [vmem:[#allocation2 + $0x30] sm:$0xff] %v313
          %326 = vst [vmem:[#allocation2 + $0x38] sm:$0xff] %v314
          %327 = vst [vmem:[#allocation2 + $0x40] sm:$0xff] %v315
          %328 = vst [vmem:[#allocation2 + $0x48] sm:$0xff] %v313
          %329 = vst [vmem:[#allocation2 + $0x50] sm:$0xff] %v314
          %330 = vst [vmem:[#allocation2 + $0x58] sm:$0xff] %v315
          %331 = vst [vmem:[#allocation2 + $0x60] sm:$0xff] %v313
          %332 = vst [vmem:[#allocation2 + $0x68] sm:$0xff] %v314
          %333 = vst [vmem:[#allocation2 + $0x70] sm:$0xff] %v315
          %334 = vst [vmem:[#allocation2 + $0x78] sm:$0xff] %v313
          %335 = vst [vmem:[#allocation2 + $0x80] sm:$0xff] %v314
          %336 = vst [vmem:[#allocation2 + $0x88] sm:$0xff] %v315
          %337 = vst [vmem:[#allocation2 + $0x90] sm:$0xff] %v313
          %338 = vst [vmem:[#allocation2 + $0x98] sm:$0xff] %v314
          %339 = vst [vmem:[#allocation2 + $0xa0] sm:$0xff] %v315
          %340 = vst [vmem:[#allocation2 + $0xa8] sm:$0xff] %v313
          %341 = vst [vmem:[#allocation2 + $0xb0] sm:$0xff] %v314
          %342 = vst [vmem:[#allocation2 + $0xb8] sm:$0xff] %v315
          %343 = vst [vmem:[#allocation2 + $0xc0] sm:$0xff] %v313
          %344 = vst [vmem:[#allocation2 + $0xc8] sm:$0xff] %v314
          %345 = vst [vmem:[#allocation2 + $0xd0] sm:$0xff] %v315
          %346 = vst [vmem:[#allocation2 + $0xd8] sm:$0xff] %v313
          %347 = vst [vmem:[#allocation2 + $0xe0] sm:$0xff] %v314
          %348 = vst [vmem:[#allocation2 + $0xe8] sm:$0xff] %v315
          %349 = vst [vmem:[#allocation2 + $0xf0] sm:$0xff] %v313
          %350 = vst [vmem:[#allocation2 + $0xf8] sm:$0xff] %v314
          %351 = vst [vmem:[#allocation2 + $0x100] sm:$0xff] %v315
          %352 = vst [vmem:[#allocation2 + $0x108] sm:$0xff] %v313
          %353 = vst [vmem:[#allocation2 + $0x110] sm:$0xff] %v314
          %354 = vst [vmem:[#allocation2 + $0x118] sm:$0xff] %v315
          %355 = vst [vmem:[#allocation2 + $0x120] sm:$0xff] %v313
          %356 = vst [vmem:[#allocation2 + $0x128] sm:$0xff] %v314
          %357 = vst [vmem:[#allocation2 + $0x130] sm:$0xff] %v315
          %358 = vst [vmem:[#allocation2 + $0x138] sm:$0xff] %v313
          %359 = vst [vmem:[#allocation2 + $0x140] sm:$0xff] %v314
          %360 = vst [vmem:[#allocation2 + $0x148] sm:$0xff] %v315
          %361 = vst [vmem:[#allocation2 + $0x150] sm:$0xff] %v313
          %362 = vst [vmem:[#allocation2 + $0x158] sm:$0xff] %v314
          %363 = vst [vmem:[#allocation2 + $0x160] sm:$0xff] %v315
          %364 = vst [vmem:[#allocation2 + $0x168] sm:$0xff] %v313
          %365 = vst [vmem:[#allocation2 + $0x170] sm:$0xff] %v314
          %366 = vst [vmem:[#allocation2 + $0x178] sm:$0xff] %v315
          %367 = vst [vmem:[#allocation2 + $0x180] sm:$0xff] %v313
          %368 = vst [vmem:[#allocation2 + $0x188] sm:$0xff] %v314
          %369 = vst [vmem:[#allocation2 + $0x190] sm:$0xff] %v315
          %370 = vst [vmem:[#allocation2 + $0x198] sm:$0xff] %v313
          %371 = vst [vmem:[#allocation2 + $0x1a0] sm:$0xff] %v314
          %372 = vst [vmem:[#allocation2 + $0x1a8] sm:$0xff] %v315
          %373 = vst [vmem:[#allocation2 + $0x1b0] sm:$0xff] %v313
          %374 = vst [vmem:[#allocation2 + $0x1b8] sm:$0xff] %v314
          %375 = vst [vmem:[#allocation2 + $0x1c0] sm:$0xff] %v315
          %376 = vst [vmem:[#allocation2 + $0x1c8] sm:$0xff] %v313
          %377 = vst [vmem:[#allocation2 + $0x1d0] sm:$0xff] %v314
          %378 = vst [vmem:[#allocation2 + $0x1d8] sm:$0xff] %v315
          %379 = vst [vmem:[#allocation2 + $0x1e0] sm:$0xff] %v313
          %380 = vst [vmem:[#allocation2 + $0x1e8] sm:$0xff] %v314
          %381 = vst [vmem:[#allocation2 + $0x1f0] sm:$0xff] %v315
          %382 = vst [vmem:[#allocation2 + $0x1f8] sm:$0xff] %v313
          %383 = vst [vmem:[#allocation2 + $0x200] sm:$0xff] %v314
          %384 = vst [vmem:[#allocation2 + $0x208] sm:$0xff] %v315
          %385 = vst [vmem:[#allocation2 + $0x210] sm:$0xff] %v313
          %386 = vst [vmem:[#allocation2 + $0x218] sm:$0xff] %v314
          %387 = vst [vmem:[#allocation2 + $0x220] sm:$0xff] %v315
          %388 = vst [vmem:[#allocation2 + $0x228] sm:$0xff] %v313
          %389 = vst [vmem:[#allocation2 + $0x230] sm:$0xff] %v314
          %390 = vst [vmem:[#allocation2 + $0x238] sm:$0xff] %v315
          %391 = vst [vmem:[#allocation2 + $0x240] sm:$0xff] %v313
          %392 = vst [vmem:[#allocation2 + $0x248] sm:$0xff] %v314
          %393 = vst [vmem:[#allocation2 + $0x250] sm:$0xff] %v315
          %394 = vst [vmem:[#allocation2 + $0x258] sm:$0xff] %v313
          %395 = vst [vmem:[#allocation2 + $0x260] sm:$0xff] %v314
          %396 = vst [vmem:[#allocation2 + $0x268] sm:$0xff] %v315
          %397 = vst [vmem:[#allocation2 + $0x270] sm:$0xff] %v313
          %398 = vst [vmem:[#allocation2 + $0x278] sm:$0xff] %v314
          %399 = vst [vmem:[#allocation2 + $0x280] sm:$0xff] %v315
          %400 = vst [vmem:[#allocation2 + $0x288] sm:$0xff] %v313
          %401 = vst [vmem:[#allocation2 + $0x290] sm:$0xff] %v314
          %402 = vst [vmem:[#allocation2 + $0x298] sm:$0xff] %v315
          %403 = vst [vmem:[#allocation2 + $0x2a0] sm:$0xff] %v313
          %404 = vst [vmem:[#allocation2 + $0x2a8] sm:$0xff] %v314
          %405 = vst [vmem:[#allocation2 + $0x2b0] sm:$0xff] %v315
          %406 = vst [vmem:[#allocation2 + $0x2b8] sm:$0xff] %v313
          %407 = vst [vmem:[#allocation2 + $0x2c0] sm:$0xff] %v314
          %408 = vst [vmem:[#allocation2 + $0x2c8] sm:$0xff] %v315
          %409 = vst [vmem:[#allocation2 + $0x2d0] sm:$0xff] %v313
          %410 = vst [vmem:[#allocation2 + $0x2d8] sm:$0xff] %v314
          %411 = vst [vmem:[#allocation2 + $0x2e0] sm:$0xff] %v315
          %412 = vst [vmem:[#allocation2 + $0x2e8] sm:$0xff] %v313
          %413 = vst [vmem:[#allocation2 + $0x2f0] sm:$0xff] %v314
          %414 = vst [vmem:[#allocation2 + $0x2f8] sm:$0xff] %v315
        $region44: #{feed_forward.1} parent=39 // pred_fallthru
          _
        %v415 = vld [vmem:[%s286] sm:$0xff]
        %v416 = vld [vmem:[%s286 + $0x8] sm:$0xf]
        %v417 = vld [vmem:[%s286 + $0xc] sm:$0xff]
        %v418 = vld [vmem:[%s286 + $0x14] sm:$0xf]
        %v419 = vld [vmem:[%s286 + $0x18] sm:$0xff]
        %v420 = vld [vmem:[%s286 + $0x20] sm:$0xf]
        %v421 = vld [vmem:[%s286 + $0x24] sm:$0xff]
        %v422 = vld [vmem:[%s286 + $0x2c] sm:$0xf]
        %v423 = vld [vmem:[%s286 + $0x30] sm:$0xff]
        %v424 = vld [vmem:[%s286 + $0x38] sm:$0xf]
        %v425 = vld [vmem:[%s286 + $0x3c] sm:$0xff]
        %v426 = vld [vmem:[%s286 + $0x44] sm:$0xf]
        %v427 = vld [vmem:[%s286 + $0x48] sm:$0xff]
        %v428 = vld [vmem:[%s286 + $0x50] sm:$0xf]
        %v429 = vld [vmem:[%s286 + $0x54] sm:$0xff]
        %v430 = vld [vmem:[%s286 + $0x5c] sm:$0xf]
        %v431 = vld [vmem:[%s286 + $0x60] sm:$0xff]
        %v432 = vld [vmem:[%s286 + $0x68] sm:$0xf]
        %v433 = vld [vmem:[%s286 + $0x6c] sm:$0xff]
        %v434 = vld [vmem:[%s286 + $0x74] sm:$0xf]
        %v435 = vld [vmem:[%s286 + $0x78] sm:$0xff]
        %v436 = vld [vmem:[%s286 + $0x80] sm:$0xf]
        %v437 = vld [vmem:[%s286 + $0x84] sm:$0xff]
        %v438 = vld [vmem:[%s286 + $0x8c] sm:$0xf]
        %v439 = vld [vmem:[%s286 + $0x90] sm:$0xff]
        %v440 = vld [vmem:[%s286 + $0x98] sm:$0xf]
        %v441 = vld [vmem:[%s286 + $0x9c] sm:$0xff]
        %v442 = vld [vmem:[%s286 + $0xa4] sm:$0xf]
        %v443 = vld [vmem:[%s286 + $0xa8] sm:$0xff]
        %v444 = vld [vmem:[%s286 + $0xb0] sm:$0xf]
        %v445 = vld [vmem:[%s286 + $0xb4] sm:$0xff]
        %v446 = vld [vmem:[%s286 + $0xbc] sm:$0xf]
        %v447 = vld [vmem:[%s286 + $0xc0] sm:$0xff]
        %v448 = vld [vmem:[%s286 + $0xc8] sm:$0xf]
        %v449 = vld [vmem:[%s286 + $0xcc] sm:$0xff]
        %v450 = vld [vmem:[%s286 + $0xd4] sm:$0xf]
        %v451 = vld [vmem:[%s286 + $0xd8] sm:$0xff]
        %v452 = vld [vmem:[%s286 + $0xe0] sm:$0xf]
        %v453 = vld [vmem:[%s286 + $0xe4] sm:$0xff]
        %v454 = vld [vmem:[%s286 + $0xec] sm:$0xf]
        %v455 = vld [vmem:[%s286 + $0xf0] sm:$0xff]
        %v456 = vld [vmem:[%s286 + $0xf8] sm:$0xf]
        %v457 = vld [vmem:[%s286 + $0xfc] sm:$0xff]
        %v458 = vld [vmem:[%s286 + $0x104] sm:$0xf]
        %v459 = vld [vmem:[%s286 + $0x108] sm:$0xff]
        %v460 = vld [vmem:[%s286 + $0x110] sm:$0xf]
        %v461 = vld [vmem:[%s286 + $0x114] sm:$0xff]
        %v462 = vld [vmem:[%s286 + $0x11c] sm:$0xf]
        %v463 = vld [vmem:[%s286 + $0x120] sm:$0xff]
        %v464 = vld [vmem:[%s286 + $0x128] sm:$0xf]
        %v465 = vld [vmem:[%s286 + $0x12c] sm:$0xff]
        %v466 = vld [vmem:[%s286 + $0x134] sm:$0xf]
        %v467 = vld [vmem:[%s286 + $0x138] sm:$0xff]
        %v468 = vld [vmem:[%s286 + $0x140] sm:$0xf]
        %v469 = vld [vmem:[%s286 + $0x144] sm:$0xff]
        %v470 = vld [vmem:[%s286 + $0x14c] sm:$0xf]
        %v471 = vld [vmem:[%s286 + $0x150] sm:$0xff]
        %v472 = vld [vmem:[%s286 + $0x158] sm:$0xf]
        %v473 = vld [vmem:[%s286 + $0x15c] sm:$0xff]
        %v474 = vld [vmem:[%s286 + $0x164] sm:$0xf]
        %v475 = vld [vmem:[%s286 + $0x168] sm:$0xff]
        %v476 = vld [vmem:[%s286 + $0x170] sm:$0xf]
        %v477 = vld [vmem:[%s286 + $0x174] sm:$0xff]
        %v478 = vld [vmem:[%s286 + $0x17c] sm:$0xf]
        %v479 = vld [vmem:[%s292] sm:$0xff]
        %v480 = vld [vmem:[%s292 + $0x8] sm:$0xff]
        %v481 = vld [vmem:[%s292 + $0x10] sm:$0xff]
        %v482 = vld [vmem:[%s292 + $0x18] sm:$0xff]
        %v483 = vld [vmem:[%s292 + $0x20] sm:$0xff]
        %v484 = vld [vmem:[%s292 + $0x28] sm:$0xff]
        %v485 = vld [vmem:[%s292 + $0x30] sm:$0xff]
        %v486 = vld [vmem:[%s292 + $0x38] sm:$0xff]
        %v487 = vld [vmem:[%s292 + $0x40] sm:$0xff]
        %v488 = vld [vmem:[%s292 + $0x48] sm:$0xff]
        %v489 = vld [vmem:[%s292 + $0x50] sm:$0xff]
        %v490 = vld [vmem:[%s292 + $0x58] sm:$0xff]
        %v491 = vld [vmem:[%s292 + $0x60] sm:$0xff]
        %v492 = vld [vmem:[%s292 + $0x68] sm:$0xff]
        %v493 = vld [vmem:[%s292 + $0x70] sm:$0xff]
        %v494 = vld [vmem:[%s292 + $0x78] sm:$0xff]
        %v495 = vld [vmem:[%s292 + $0x80] sm:$0xff]
        %v496 = vld [vmem:[%s292 + $0x88] sm:$0xff]
        %v497 = vld [vmem:[%s292 + $0x90] sm:$0xff]
        %v498 = vld [vmem:[%s292 + $0x98] sm:$0xff]
        %v499 = vld [vmem:[%s292 + $0xa0] sm:$0xff]
        %v500 = vld [vmem:[%s292 + $0xa8] sm:$0xff]
        %v501 = vld [vmem:[%s292 + $0xb0] sm:$0xff]
        %v502 = vld [vmem:[%s292 + $0xb8] sm:$0xff]
        %v503 = vld [vmem:[%s292 + $0xc0] sm:$0xff]
        %v504 = vld [vmem:[%s292 + $0xc8] sm:$0xff]
        %v505 = vld [vmem:[%s292 + $0xd0] sm:$0xff]
        %v506 = vld [vmem:[%s292 + $0xd8] sm:$0xff]
        %v507 = vld [vmem:[%s292 + $0xe0] sm:$0xff]
        %v508 = vld [vmem:[%s292 + $0xe8] sm:$0xff]
        %v509 = vld [vmem:[%s292 + $0xf0] sm:$0xff]
        %v510 = vld [vmem:[%s292 + $0xf8] sm:$0xff]
        %v511 = vld [vmem:[%s292 + $0x100] sm:$0xff]
        %v512 = vld [vmem:[%s292 + $0x108] sm:$0xff]
        %v513 = vld [vmem:[%s292 + $0x110] sm:$0xff]
        %v514 = vld [vmem:[%s292 + $0x118] sm:$0xff]
        %v515 = vld [vmem:[%s292 + $0x120] sm:$0xff]
        %v516 = vld [vmem:[%s292 + $0x128] sm:$0xff]
        %v517 = vld [vmem:[%s292 + $0x130] sm:$0xff]
        %v518 = vld [vmem:[%s292 + $0x138] sm:$0xff]
        %v519 = vld [vmem:[%s292 + $0x140] sm:$0xff]
        %v520 = vld [vmem:[%s292 + $0x148] sm:$0xff]
        %v521 = vld [vmem:[%s292 + $0x150] sm:$0xff]
        %v522 = vld [vmem:[%s292 + $0x158] sm:$0xff]
        %v523 = vld [vmem:[%s292 + $0x160] sm:$0xff]
        %v524 = vld [vmem:[%s292 + $0x168] sm:$0xff]
        %v525 = vld [vmem:[%s292 + $0x170] sm:$0xff]
        %v526 = vld [vmem:[%s292 + $0x178] sm:$0xff]
        %v527 = vld [vmem:[%s292 + $0x180] sm:$0xff]
        %v528 = vld [vmem:[%s292 + $0x188] sm:$0xff]
        %v529 = vld [vmem:[%s292 + $0x190] sm:$0xff]
        %v530 = vld [vmem:[%s292 + $0x198] sm:$0xff]
        %v531 = vld [vmem:[%s292 + $0x1a0] sm:$0xff]
        %v532 = vld [vmem:[%s292 + $0x1a8] sm:$0xff]
        %v533 = vld [vmem:[%s292 + $0x1b0] sm:$0xff]
        %v534 = vld [vmem:[%s292 + $0x1b8] sm:$0xff]
        %v535 = vld [vmem:[%s292 + $0x1c0] sm:$0xff]
        %v536 = vld [vmem:[%s292 + $0x1c8] sm:$0xff]
        %v537 = vld [vmem:[%s292 + $0x1d0] sm:$0xff]
        %v538 = vld [vmem:[%s292 + $0x1d8] sm:$0xff]
        %v539 = vld [vmem:[%s292 + $0x1e0] sm:$0xff]
        %v540 = vld [vmem:[%s292 + $0x1e8] sm:$0xff]
        %v541 = vld [vmem:[%s292 + $0x1f0] sm:$0xff]
        %v542 = vld [vmem:[%s292 + $0x1f8] sm:$0xff]
        %v543 = vld [vmem:[%s292 + $0x200] sm:$0xff]
        %v544 = vld [vmem:[%s292 + $0x208] sm:$0xff]
        %v545 = vld [vmem:[%s292 + $0x210] sm:$0xff]
        %v546 = vld [vmem:[%s292 + $0x218] sm:$0xff]
        %v547 = vld [vmem:[%s292 + $0x220] sm:$0xff]
        %v548 = vld [vmem:[%s292 + $0x228] sm:$0xff]
        %v549 = vld [vmem:[%s292 + $0x230] sm:$0xff]
        %v550 = vld [vmem:[%s292 + $0x238] sm:$0xff]
        %v551 = vld [vmem:[%s292 + $0x240] sm:$0xff]
        %v552 = vld [vmem:[%s292 + $0x248] sm:$0xff]
        %v553 = vld [vmem:[%s292 + $0x250] sm:$0xff]
        %v554 = vld [vmem:[%s292 + $0x258] sm:$0xff]
        %v555 = vld [vmem:[%s292 + $0x260] sm:$0xff]
        %v556 = vld [vmem:[%s292 + $0x268] sm:$0xff]
        %v557 = vld [vmem:[%s292 + $0x270] sm:$0xff]
        %v558 = vld [vmem:[%s292 + $0x278] sm:$0xff]
        %v559 = vld [vmem:[%s292 + $0x280] sm:$0xff]
        %v560 = vld [vmem:[%s292 + $0x288] sm:$0xff]
        %v561 = vld [vmem:[%s292 + $0x290] sm:$0xff]
        %v562 = vld [vmem:[%s292 + $0x298] sm:$0xff]
        %v563 = vld [vmem:[%s292 + $0x2a0] sm:$0xff]
        %v564 = vld [vmem:[%s292 + $0x2a8] sm:$0xff]
        %v565 = vld [vmem:[%s292 + $0x2b0] sm:$0xff]
        %v566 = vld [vmem:[%s292 + $0x2b8] sm:$0xff]
        %v567 = vld [vmem:[%s292 + $0x2c0] sm:$0xff]
        %v568 = vld [vmem:[%s292 + $0x2c8] sm:$0xff]
        %v569 = vld [vmem:[%s292 + $0x2d0] sm:$0xff]
        %v570 = vld [vmem:[%s292 + $0x2d8] sm:$0xff]
        %v571 = vld [vmem:[%s292 + $0x2e0] sm:$0xff]
        %v572 = vld [vmem:[%s292 + $0x2e8] sm:$0xff]
        %v573 = vld [vmem:[%s292 + $0x2f0] sm:$0xff]
        %v574 = vld [vmem:[%s292 + $0x2f8] sm:$0xff]
        %v575 = vld [vmem:[%s292 + $0x300] sm:$0xff]
        %v576 = vld [vmem:[%s292 + $0x308] sm:$0xff]
        %v577 = vld [vmem:[%s292 + $0x310] sm:$0xff]
        %v578 = vld [vmem:[%s292 + $0x318] sm:$0xff]
        %v579 = vld [vmem:[%s292 + $0x320] sm:$0xff]
        %v580 = vld [vmem:[%s292 + $0x328] sm:$0xff]
        %v581 = vld [vmem:[%s292 + $0x330] sm:$0xff]
        %v582 = vld [vmem:[%s292 + $0x338] sm:$0xff]
        %v583 = vld [vmem:[%s292 + $0x340] sm:$0xff]
        %v584 = vld [vmem:[%s292 + $0x348] sm:$0xff]
        %v585 = vld [vmem:[%s292 + $0x350] sm:$0xff]
        %v586 = vld [vmem:[%s292 + $0x358] sm:$0xff]
        %v587 = vld [vmem:[%s292 + $0x360] sm:$0xff]
        %v588 = vld [vmem:[%s292 + $0x368] sm:$0xff]
        %v589 = vld [vmem:[%s292 + $0x370] sm:$0xff]
        %v590 = vld [vmem:[%s292 + $0x378] sm:$0xff]
        %v591 = vld [vmem:[%s292 + $0x380] sm:$0xff]
        %v592 = vld [vmem:[%s292 + $0x388] sm:$0xff]
        %v593 = vld [vmem:[%s292 + $0x390] sm:$0xff]
        %v594 = vld [vmem:[%s292 + $0x398] sm:$0xff]
        %v595 = vld [vmem:[%s292 + $0x3a0] sm:$0xff]
        %v596 = vld [vmem:[%s292 + $0x3a8] sm:$0xff]
        %v597 = vld [vmem:[%s292 + $0x3b0] sm:$0xff]
        %v598 = vld [vmem:[%s292 + $0x3b8] sm:$0xff]
        %v599 = vld [vmem:[%s292 + $0x3c0] sm:$0xff]
        %v600 = vld [vmem:[%s292 + $0x3c8] sm:$0xff]
        %v601 = vld [vmem:[%s292 + $0x3d0] sm:$0xff]
        %v602 = vld [vmem:[%s292 + $0x3d8] sm:$0xff]
        %v603 = vld [vmem:[%s292 + $0x3e0] sm:$0xff]
        %v604 = vld [vmem:[%s292 + $0x3e8] sm:$0xff]
        %v605 = vld [vmem:[%s292 + $0x3f0] sm:$0xff]
        %v606 = vld [vmem:[%s292 + $0x3f8] sm:$0xff]
        %v607 = vld [vmem:[%s292 + $0x400] sm:$0xff]
        %v608 = vld [vmem:[%s292 + $0x408] sm:$0xff]
        %v609 = vld [vmem:[%s292 + $0x410] sm:$0xff]
        %v610 = vld [vmem:[%s292 + $0x418] sm:$0xff]
        %v611 = vld [vmem:[%s292 + $0x420] sm:$0xff]
        %v612 = vld [vmem:[%s292 + $0x428] sm:$0xff]
        %v613 = vld [vmem:[%s292 + $0x430] sm:$0xff]
        %v614 = vld [vmem:[%s292 + $0x438] sm:$0xff]
        %v615 = vld [vmem:[%s292 + $0x440] sm:$0xff]
        %v616 = vld [vmem:[%s292 + $0x448] sm:$0xff]
        %v617 = vld [vmem:[%s292 + $0x450] sm:$0xff]
        %v618 = vld [vmem:[%s292 + $0x458] sm:$0xff]
        %v619 = vld [vmem:[%s292 + $0x460] sm:$0xff]
        %v620 = vld [vmem:[%s292 + $0x468] sm:$0xff]
        %v621 = vld [vmem:[%s292 + $0x470] sm:$0xff]
        %v622 = vld [vmem:[%s292 + $0x478] sm:$0xff]
        %v623 = vld [vmem:[%s292 + $0x480] sm:$0xff]
        %v624 = vld [vmem:[%s292 + $0x488] sm:$0xff]
        %v625 = vld [vmem:[%s292 + $0x490] sm:$0xff]
        %v626 = vld [vmem:[%s292 + $0x498] sm:$0xff]
        %v627 = vld [vmem:[%s292 + $0x4a0] sm:$0xff]
        %v628 = vld [vmem:[%s292 + $0x4a8] sm:$0xff]
        %v629 = vld [vmem:[%s292 + $0x4b0] sm:$0xff]
        %v630 = vld [vmem:[%s292 + $0x4b8] sm:$0xff]
        %v631 = vld [vmem:[%s292 + $0x4c0] sm:$0xff]
        %v632 = vld [vmem:[%s292 + $0x4c8] sm:$0xff]
        %v633 = vld [vmem:[%s292 + $0x4d0] sm:$0xff]
        %v634 = vld [vmem:[%s292 + $0x4d8] sm:$0xff]
        %v635 = vld [vmem:[%s292 + $0x4e0] sm:$0xff]
        %v636 = vld [vmem:[%s292 + $0x4e8] sm:$0xff]
        %v637 = vld [vmem:[%s292 + $0x4f0] sm:$0xff]
        %v638 = vld [vmem:[%s292 + $0x4f8] sm:$0xff]
        %v639 = vld [vmem:[%s292 + $0x500] sm:$0xff]
        %v640 = vld [vmem:[%s292 + $0x508] sm:$0xff]
        %v641 = vld [vmem:[%s292 + $0x510] sm:$0xff]
        %v642 = vld [vmem:[%s292 + $0x518] sm:$0xff]
        %v643 = vld [vmem:[%s292 + $0x520] sm:$0xff]
        %v644 = vld [vmem:[%s292 + $0x528] sm:$0xff]
        %v645 = vld [vmem:[%s292 + $0x530] sm:$0xff]
        %v646 = vld [vmem:[%s292 + $0x538] sm:$0xff]
        %v647 = vld [vmem:[%s292 + $0x540] sm:$0xff]
        %v648 = vld [vmem:[%s292 + $0x548] sm:$0xff]
        %v649 = vld [vmem:[%s292 + $0x550] sm:$0xff]
        %v650 = vld [vmem:[%s292 + $0x558] sm:$0xff]
        %v651 = vld [vmem:[%s292 + $0x560] sm:$0xff]
        %v652 = vld [vmem:[%s292 + $0x568] sm:$0xff]
        %v653 = vld [vmem:[%s292 + $0x570] sm:$0xff]
        %v654 = vld [vmem:[%s292 + $0x578] sm:$0xff]
        %v655 = vld [vmem:[%s292 + $0x580] sm:$0xff]
        %v656 = vld [vmem:[%s292 + $0x588] sm:$0xff]
        %v657 = vld [vmem:[%s292 + $0x590] sm:$0xff]
        %v658 = vld [vmem:[%s292 + $0x598] sm:$0xff]
        %v659 = vld [vmem:[%s292 + $0x5a0] sm:$0xff]
        %v660 = vld [vmem:[%s292 + $0x5a8] sm:$0xff]
        %v661 = vld [vmem:[%s292 + $0x5b0] sm:$0xff]
        %v662 = vld [vmem:[%s292 + $0x5b8] sm:$0xff]
        %v663 = vld [vmem:[%s292 + $0x5c0] sm:$0xff]
        %v664 = vld [vmem:[%s292 + $0x5c8] sm:$0xff]
        %v665 = vld [vmem:[%s292 + $0x5d0] sm:$0xff]
        %v666 = vld [vmem:[%s292 + $0x5d8] sm:$0xff]
        %v667 = vld [vmem:[%s292 + $0x5e0] sm:$0xff]
        %v668 = vld [vmem:[%s292 + $0x5e8] sm:$0xff]
        %v669 = vld [vmem:[%s292 + $0x5f0] sm:$0xff]
        %v670 = vld [vmem:[%s292 + $0x5f8] sm:$0xff]
        %v671 = vld [vmem:[%s292 + $0x600] sm:$0xff]
        %v672 = vld [vmem:[%s292 + $0x608] sm:$0xff]
        %v673 = vld [vmem:[%s292 + $0x610] sm:$0xff]
        %v674 = vld [vmem:[%s292 + $0x618] sm:$0xff]
        %v675 = vld [vmem:[%s292 + $0x620] sm:$0xff]
        %v676 = vld [vmem:[%s292 + $0x628] sm:$0xff]
        %v677 = vld [vmem:[%s292 + $0x630] sm:$0xff]
        %v678 = vld [vmem:[%s292 + $0x638] sm:$0xff]
        %v679 = vld [vmem:[%s292 + $0x640] sm:$0xff]
        %v680 = vld [vmem:[%s292 + $0x648] sm:$0xff]
        %v681 = vld [vmem:[%s292 + $0x650] sm:$0xff]
        %v682 = vld [vmem:[%s292 + $0x658] sm:$0xff]
        %v683 = vld [vmem:[%s292 + $0x660] sm:$0xff]
        %v684 = vld [vmem:[%s292 + $0x668] sm:$0xff]
        %v685 = vld [vmem:[%s292 + $0x670] sm:$0xff]
        %v686 = vld [vmem:[%s292 + $0x678] sm:$0xff]
        %v687 = vld [vmem:[%s292 + $0x680] sm:$0xff]
        %v688 = vld [vmem:[%s292 + $0x688] sm:$0xff]
        %v689 = vld [vmem:[%s292 + $0x690] sm:$0xff]
        %v690 = vld [vmem:[%s292 + $0x698] sm:$0xff]
        %v691 = vld [vmem:[%s292 + $0x6a0] sm:$0xff]
        %v692 = vld [vmem:[%s292 + $0x6a8] sm:$0xff]
        %v693 = vld [vmem:[%s292 + $0x6b0] sm:$0xff]
        %v694 = vld [vmem:[%s292 + $0x6b8] sm:$0xff]
        %v695 = vld [vmem:[%s292 + $0x6c0] sm:$0xff]
        %v696 = vld [vmem:[%s292 + $0x6c8] sm:$0xff]
        %v697 = vld [vmem:[%s292 + $0x6d0] sm:$0xff]
        %v698 = vld [vmem:[%s292 + $0x6d8] sm:$0xff]
        %v699 = vld [vmem:[%s292 + $0x6e0] sm:$0xff]
        %v700 = vld [vmem:[%s292 + $0x6e8] sm:$0xff]
        %v701 = vld [vmem:[%s292 + $0x6f0] sm:$0xff]
        %v702 = vld [vmem:[%s292 + $0x6f8] sm:$0xff]
        %v703 = vld [vmem:[%s292 + $0x700] sm:$0xff]
        %v704 = vld [vmem:[%s292 + $0x708] sm:$0xff]
        %v705 = vld [vmem:[%s292 + $0x710] sm:$0xff]
        %v706 = vld [vmem:[%s292 + $0x718] sm:$0xff]
        %v707 = vld [vmem:[%s292 + $0x720] sm:$0xff]
        %v708 = vld [vmem:[%s292 + $0x728] sm:$0xff]
        %v709 = vld [vmem:[%s292 + $0x730] sm:$0xff]
        %v710 = vld [vmem:[%s292 + $0x738] sm:$0xff]
        %v711 = vld [vmem:[%s292 + $0x740] sm:$0xff]
        %v712 = vld [vmem:[%s292 + $0x748] sm:$0xff]
        %v713 = vld [vmem:[%s292 + $0x750] sm:$0xff]
        %v714 = vld [vmem:[%s292 + $0x758] sm:$0xff]
        %v715 = vld [vmem:[%s292 + $0x760] sm:$0xff]
        %v716 = vld [vmem:[%s292 + $0x768] sm:$0xff]
        %v717 = vld [vmem:[%s292 + $0x770] sm:$0xff]
        %v718 = vld [vmem:[%s292 + $0x778] sm:$0xff]
        %v719 = vld [vmem:[%s292 + $0x780] sm:$0xff]
        %v720 = vld [vmem:[%s292 + $0x788] sm:$0xff]
        %v721 = vld [vmem:[%s292 + $0x790] sm:$0xff]
        %v722 = vld [vmem:[%s292 + $0x798] sm:$0xff]
        %v723 = vld [vmem:[%s292 + $0x7a0] sm:$0xff]
        %v724 = vld [vmem:[%s292 + $0x7a8] sm:$0xff]
        %v725 = vld [vmem:[%s292 + $0x7b0] sm:$0xff]
        %v726 = vld [vmem:[%s292 + $0x7b8] sm:$0xff]
        %v727 = vld [vmem:[%s292 + $0x7c0] sm:$0xff]
        %v728 = vld [vmem:[%s292 + $0x7c8] sm:$0xff]
        %v729 = vld [vmem:[%s292 + $0x7d0] sm:$0xff]
        %v730 = vld [vmem:[%s292 + $0x7d8] sm:$0xff]
        %v731 = vld [vmem:[%s292 + $0x7e0] sm:$0xff]
        %v732 = vld [vmem:[%s292 + $0x7e8] sm:$0xff]
        %v733 = vld [vmem:[%s292 + $0x7f0] sm:$0xff]
        %v734 = vld [vmem:[%s292 + $0x7f8] sm:$0xff]
        %v735 = vld [vmem:[%s292 + $0x800] sm:$0xff]
        %v736 = vld [vmem:[%s292 + $0x808] sm:$0xff]
        %v737 = vld [vmem:[%s292 + $0x810] sm:$0xff]
        %v738 = vld [vmem:[%s292 + $0x818] sm:$0xff]
        %v739 = vld [vmem:[%s292 + $0x820] sm:$0xff]
        %v740 = vld [vmem:[%s292 + $0x828] sm:$0xff]
        %v741 = vld [vmem:[%s292 + $0x830] sm:$0xff]
        %v742 = vld [vmem:[%s292 + $0x838] sm:$0xff]
        %v743 = vld [vmem:[%s292 + $0x840] sm:$0xff]
        %v744 = vld [vmem:[%s292 + $0x848] sm:$0xff]
        %v745 = vld [vmem:[%s292 + $0x850] sm:$0xff]
        %v746 = vld [vmem:[%s292 + $0x858] sm:$0xff]
        %v747 = vld [vmem:[%s292 + $0x860] sm:$0xff]
        %v748 = vld [vmem:[%s292 + $0x868] sm:$0xff]
        %v749 = vld [vmem:[%s292 + $0x870] sm:$0xff]
        %v750 = vld [vmem:[%s292 + $0x878] sm:$0xff]
        %v751 = vld [vmem:[%s292 + $0x880] sm:$0xff]
        %v752 = vld [vmem:[%s292 + $0x888] sm:$0xff]
        %v753 = vld [vmem:[%s292 + $0x890] sm:$0xff]
        %v754 = vld [vmem:[%s292 + $0x898] sm:$0xff]
        %v755 = vld [vmem:[%s292 + $0x8a0] sm:$0xff]
        %v756 = vld [vmem:[%s292 + $0x8a8] sm:$0xff]
        %v757 = vld [vmem:[%s292 + $0x8b0] sm:$0xff]
        %v758 = vld [vmem:[%s292 + $0x8b8] sm:$0xff]
        %v759 = vld [vmem:[%s292 + $0x8c0] sm:$0xff]
        %v760 = vld [vmem:[%s292 + $0x8c8] sm:$0xff]
        %v761 = vld [vmem:[%s292 + $0x8d0] sm:$0xff]
        %v762 = vld [vmem:[%s292 + $0x8d8] sm:$0xff]
        %v763 = vld [vmem:[%s292 + $0x8e0] sm:$0xff]
        %v764 = vld [vmem:[%s292 + $0x8e8] sm:$0xff]
        %v765 = vld [vmem:[%s292 + $0x8f0] sm:$0xff]
        %v766 = vld [vmem:[%s292 + $0x8f8] sm:$0xff]
        %v767 = vld [vmem:[%s297] sm:$0xff]
        %v768 = vld [vmem:[%s297 + $0x8] sm:$0xf]
        %v771 = vperm.slane %v767, 0
        %v772 = vperm.slane %v767, 1
        %v773 = vperm.slane %v767, 2
        %v774 = vperm.slane %v767, 3
        %v775 = vperm.slane %v767, 4
        %v776 = vperm.slane %v767, 5
        %v777 = vperm.slane %v767, 6
        %v778 = vperm.slane %v767, 7
        %v779 = vperm.slane %v768, 0
        %v780 = vperm.slane %v768, 1
        %v781 = vperm.slane %v768, 2
        %v782 = vperm.slane %v768, 3
        %v859 = vunpack.c.l.b16 %v415
        %v860 = vunpack.c.h.b16 %v415
        %v861 = vunpack.c.l.b16 %v416
        %v862 = vunpack.c.l.b16 %v417
        %v863 = vunpack.c.h.b16 %v417
        %v864 = vunpack.c.l.b16 %v418
        %v865 = vunpack.c.l.b16 %v419
        %v866 = vunpack.c.h.b16 %v419
        %v867 = vunpack.c.l.b16 %v420
        %v868 = vunpack.c.l.b16 %v421
        %v869 = vunpack.c.h.b16 %v421
        %v870 = vunpack.c.l.b16 %v422
        %v871 = vunpack.c.l.b16 %v423
        %v872 = vunpack.c.h.b16 %v423
        %v873 = vunpack.c.l.b16 %v424
        %v874 = vunpack.c.l.b16 %v425
        %v875 = vunpack.c.h.b16 %v425
        %v876 = vunpack.c.l.b16 %v426
        %v877 = vunpack.c.l.b16 %v427
        %v878 = vunpack.c.h.b16 %v427
        %v879 = vunpack.c.l.b16 %v428
        %v880 = vunpack.c.l.b16 %v429
        %v881 = vunpack.c.h.b16 %v429
        %v882 = vunpack.c.l.b16 %v430
        %v883 = vunpack.c.l.b16 %v431
        %v884 = vunpack.c.h.b16 %v431
        %v885 = vunpack.c.l.b16 %v432
        %v886 = vunpack.c.l.b16 %v433
        %v887 = vunpack.c.h.b16 %v433
        %v888 = vunpack.c.l.b16 %v434
        %v889 = vunpack.c.l.b16 %v435
        %v890 = vunpack.c.h.b16 %v435
        %v891 = vunpack.c.l.b16 %v436
        %v892 = vunpack.c.l.b16 %v437
        %v893 = vunpack.c.h.b16 %v437
        %v894 = vunpack.c.l.b16 %v438
        %v895 = vunpack.c.l.b16 %v439
        %v896 = vunpack.c.h.b16 %v439
        %v897 = vunpack.c.l.b16 %v440
        %v898 = vunpack.c.l.b16 %v441
        %v899 = vunpack.c.h.b16 %v441
        %v900 = vunpack.c.l.b16 %v442
        %v901 = vunpack.c.l.b16 %v443
        %v902 = vunpack.c.h.b16 %v443
        %v903 = vunpack.c.l.b16 %v444
        %v904 = vunpack.c.l.b16 %v445
        %v905 = vunpack.c.h.b16 %v445
        %v906 = vunpack.c.l.b16 %v446
        %v907 = vunpack.c.l.b16 %v447
        %v908 = vunpack.c.h.b16 %v447
        %v909 = vunpack.c.l.b16 %v448
        %v910 = vunpack.c.l.b16 %v449
        %v911 = vunpack.c.h.b16 %v449
        %v912 = vunpack.c.l.b16 %v450
        %v913 = vunpack.c.l.b16 %v451
        %v914 = vunpack.c.h.b16 %v451
        %v915 = vunpack.c.l.b16 %v452
        %v916 = vunpack.c.l.b16 %v453
        %v917 = vunpack.c.h.b16 %v453
        %v918 = vunpack.c.l.b16 %v454
        %v919 = vunpack.c.l.b16 %v455
        %v920 = vunpack.c.h.b16 %v455
        %v921 = vunpack.c.l.b16 %v456
        %v922 = vunpack.c.l.b16 %v457
        %v923 = vunpack.c.h.b16 %v457
        %v924 = vunpack.c.l.b16 %v458
        %v925 = vunpack.c.l.b16 %v459
        %v926 = vunpack.c.h.b16 %v459
        %v927 = vunpack.c.l.b16 %v460
        %v928 = vunpack.c.l.b16 %v461
        %v929 = vunpack.c.h.b16 %v461
        %v930 = vunpack.c.l.b16 %v462
        %v931 = vunpack.c.l.b16 %v463
        %v932 = vunpack.c.h.b16 %v463
        %v933 = vunpack.c.l.b16 %v464
        %v934 = vunpack.c.l.b16 %v465
        %v935 = vunpack.c.h.b16 %v465
        %v936 = vunpack.c.l.b16 %v466
        %v937 = vunpack.c.l.b16 %v467
        %v938 = vunpack.c.h.b16 %v467
        %v939 = vunpack.c.l.b16 %v468
        %v940 = vunpack.c.l.b16 %v469
        %v941 = vunpack.c.h.b16 %v469
        %v942 = vunpack.c.l.b16 %v470
        %v943 = vunpack.c.l.b16 %v471
        %v944 = vunpack.c.h.b16 %v471
        %v945 = vunpack.c.l.b16 %v472
        %v946 = vunpack.c.l.b16 %v473
        %v947 = vunpack.c.h.b16 %v473
        %v948 = vunpack.c.l.b16 %v474
        %v949 = vunpack.c.l.b16 %v475
        %v950 = vunpack.c.h.b16 %v475
        %v951 = vunpack.c.l.b16 %v476
        %v952 = vunpack.c.l.b16 %v477
        %v953 = vunpack.c.h.b16 %v477
        %v954 = vunpack.c.l.b16 %v478
        %v955 = vpack.c.b16 %v862, %v859
        %v956 = vpack.c.b16 %v863, %v860
        %v957 = vpack.c.b16 %v864, %v861
        %v958 = vpack.c.b16 %v868, %v865
        %v959 = vpack.c.b16 %v869, %v866
        %v960 = vpack.c.b16 %v870, %v867
        %v961 = vpack.c.b16 %v874, %v871
        %v962 = vpack.c.b16 %v875, %v872
        %v963 = vpack.c.b16 %v876, %v873
        %v964 = vpack.c.b16 %v880, %v877
        %v965 = vpack.c.b16 %v881, %v878
        %v966 = vpack.c.b16 %v882, %v879
        %v967 = vpack.c.b16 %v886, %v883
        %v968 = vpack.c.b16 %v887, %v884
        %v969 = vpack.c.b16 %v888, %v885
        %v970 = vpack.c.b16 %v892, %v889
        %v971 = vpack.c.b16 %v893, %v890
        %v972 = vpack.c.b16 %v894, %v891
        %v973 = vpack.c.b16 %v898, %v895
        %v974 = vpack.c.b16 %v899, %v896
        %v975 = vpack.c.b16 %v900, %v897
        %v976 = vpack.c.b16 %v904, %v901
        %v977 = vpack.c.b16 %v905, %v902
        %v978 = vpack.c.b16 %v906, %v903
        %v979 = vpack.c.b16 %v910, %v907
        %v980 = vpack.c.b16 %v911, %v908
        %v981 = vpack.c.b16 %v912, %v909
        %v982 = vpack.c.b16 %v916, %v913
        %v983 = vpack.c.b16 %v917, %v914
        %v984 = vpack.c.b16 %v918, %v915
        %v985 = vpack.c.b16 %v922, %v919
        %v986 = vpack.c.b16 %v923, %v920
        %v987 = vpack.c.b16 %v924, %v921
        %v988 = vpack.c.b16 %v928, %v925
        %v989 = vpack.c.b16 %v929, %v926
        %v990 = vpack.c.b16 %v930, %v927
        %v991 = vpack.c.b16 %v934, %v931
        %v992 = vpack.c.b16 %v935, %v932
        %v993 = vpack.c.b16 %v936, %v933
        %v994 = vpack.c.b16 %v940, %v937
        %v995 = vpack.c.b16 %v941, %v938
        %v996 = vpack.c.b16 %v942, %v939
        %v997 = vpack.c.b16 %v946, %v943
        %v998 = vpack.c.b16 %v947, %v944
        %v999 = vpack.c.b16 %v948, %v945
        %v1000 = vpack.c.b16 %v952, %v949
        %v1001 = vpack.c.b16 %v953, %v950
        %v1002 = vpack.c.b16 %v954, %v951
        %v1339 = vunpack.c.l.b16 %v479
        %v1340 = vunpack.c.h.b16 %v479
        %v1341 = vunpack.c.l.b16 %v480
        %v1342 = vunpack.c.h.b16 %v480
        %v1343 = vunpack.c.l.b16 %v481
        %v1344 = vunpack.c.h.b16 %v481
        %v1345 = vunpack.c.l.b16 %v482
        %v1346 = vunpack.c.h.b16 %v482
        %v1347 = vunpack.c.l.b16 %v483
        %v1348 = vunpack.c.h.b16 %v483
        %v1349 = vunpack.c.l.b16 %v484
        %v1350 = vunpack.c.h.b16 %v484
        %v1351 = vunpack.c.l.b16 %v485
        %v1352 = vunpack.c.h.b16 %v485
        %v1353 = vunpack.c.l.b16 %v486
        %v1354 = vunpack.c.h.b16 %v486
        %v1355 = vunpack.c.l.b16 %v487
        %v1356 = vunpack.c.h.b16 %v487
        %v1357 = vunpack.c.l.b16 %v488
        %v1358 = vunpack.c.h.b16 %v488
        %v1359 = vunpack.c.l.b16 %v489
        %v1360 = vunpack.c.h.b16 %v489
        %v1361 = vunpack.c.l.b16 %v490
        %v1362 = vunpack.c.h.b16 %v490
        %v1363 = vunpack.c.l.b16 %v491
        %v1364 = vunpack.c.h.b16 %v491
        %v1365 = vunpack.c.l.b16 %v492
        %v1366 = vunpack.c.h.b16 %v492
        %v1367 = vunpack.c.l.b16 %v493
        %v1368 = vunpack.c.h.b16 %v493
        %v1369 = vunpack.c.l.b16 %v494
        %v1370 = vunpack.c.h.b16 %v494
        %v1371 = vunpack.c.l.b16 %v495
        %v1372 = vunpack.c.h.b16 %v495
        %v1373 = vunpack.c.l.b16 %v496
        %v1374 = vunpack.c.h.b16 %v496
        %v1375 = vunpack.c.l.b16 %v497
        %v1376 = vunpack.c.h.b16 %v497
        %v1377 = vunpack.c.l.b16 %v498
        %v1378 = vunpack.c.h.b16 %v498
        %v1379 = vunpack.c.l.b16 %v499
        %v1380 = vunpack.c.h.b16 %v499
        %v1381 = vunpack.c.l.b16 %v500
        %v1382 = vunpack.c.h.b16 %v500
        %v1383 = vunpack.c.l.b16 %v501
        %v1384 = vunpack.c.h.b16 %v501
        %v1385 = vunpack.c.l.b16 %v502
        %v1386 = vunpack.c.h.b16 %v502
        %v1387 = vunpack.c.l.b16 %v503
        %v1388 = vunpack.c.h.b16 %v503
        %v1389 = vunpack.c.l.b16 %v504
        %v1390 = vunpack.c.h.b16 %v504
        %v1391 = vunpack.c.l.b16 %v505
        %v1392 = vunpack.c.h.b16 %v505
        %v1393 = vunpack.c.l.b16 %v506
        %v1394 = vunpack.c.h.b16 %v506
        %v1395 = vunpack.c.l.b16 %v507
        %v1396 = vunpack.c.h.b16 %v507
        %v1397 = vunpack.c.l.b16 %v508
        %v1398 = vunpack.c.h.b16 %v508
        %v1399 = vunpack.c.l.b16 %v509
        %v1400 = vunpack.c.h.b16 %v509
        %v1401 = vunpack.c.l.b16 %v510
        %v1402 = vunpack.c.h.b16 %v510
        %v1403 = vunpack.c.l.b16 %v511
        %v1404 = vunpack.c.h.b16 %v511
        %v1405 = vunpack.c.l.b16 %v512
        %v1406 = vunpack.c.h.b16 %v512
        %v1407 = vunpack.c.l.b16 %v513
        %v1408 = vunpack.c.h.b16 %v513
        %v1409 = vunpack.c.l.b16 %v514
        %v1410 = vunpack.c.h.b16 %v514
        %v1411 = vunpack.c.l.b16 %v515
        %v1412 = vunpack.c.h.b16 %v515
        %v1413 = vunpack.c.l.b16 %v516
        %v1414 = vunpack.c.h.b16 %v516
        %v1415 = vunpack.c.l.b16 %v517
        %v1416 = vunpack.c.h.b16 %v517
        %v1417 = vunpack.c.l.b16 %v518
        %v1418 = vunpack.c.h.b16 %v518
        %v1419 = vunpack.c.l.b16 %v519
        %v1420 = vunpack.c.h.b16 %v519
        %v1421 = vunpack.c.l.b16 %v520
        %v1422 = vunpack.c.h.b16 %v520
        %v1423 = vunpack.c.l.b16 %v521
        %v1424 = vunpack.c.h.b16 %v521
        %v1425 = vunpack.c.l.b16 %v522
        %v1426 = vunpack.c.h.b16 %v522
        %v1427 = vunpack.c.l.b16 %v523
        %v1428 = vunpack.c.h.b16 %v523
        %v1429 = vunpack.c.l.b16 %v524
        %v1430 = vunpack.c.h.b16 %v524
        %v1431 = vunpack.c.l.b16 %v525
        %v1432 = vunpack.c.h.b16 %v525
        %v1433 = vunpack.c.l.b16 %v526
        %v1434 = vunpack.c.h.b16 %v526
        %v1435 = vunpack.c.l.b16 %v527
        %v1436 = vunpack.c.h.b16 %v527
        %v1437 = vunpack.c.l.b16 %v528
        %v1438 = vunpack.c.h.b16 %v528
        %v1439 = vunpack.c.l.b16 %v529
        %v1440 = vunpack.c.h.b16 %v529
        %v1441 = vunpack.c.l.b16 %v530
        %v1442 = vunpack.c.h.b16 %v530
        %v1443 = vunpack.c.l.b16 %v531
        %v1444 = vunpack.c.h.b16 %v531
        %v1445 = vunpack.c.l.b16 %v532
        %v1446 = vunpack.c.h.b16 %v532
        %v1447 = vunpack.c.l.b16 %v533
        %v1448 = vunpack.c.h.b16 %v533
        %v1449 = vunpack.c.l.b16 %v534
        %v1450 = vunpack.c.h.b16 %v534
        %v1451 = vunpack.c.l.b16 %v535
        %v1452 = vunpack.c.h.b16 %v535
        %v1453 = vunpack.c.l.b16 %v536
        %v1454 = vunpack.c.h.b16 %v536
        %v1455 = vunpack.c.l.b16 %v537
        %v1456 = vunpack.c.h.b16 %v537
        %v1457 = vunpack.c.l.b16 %v538
        %v1458 = vunpack.c.h.b16 %v538
        %v1459 = vunpack.c.l.b16 %v539
        %v1460 = vunpack.c.h.b16 %v539
        %v1461 = vunpack.c.l.b16 %v540
        %v1462 = vunpack.c.h.b16 %v540
        %v1463 = vunpack.c.l.b16 %v541
        %v1464 = vunpack.c.h.b16 %v541
        %v1465 = vunpack.c.l.b16 %v542
        %v1466 = vunpack.c.h.b16 %v542
        %v1467 = vunpack.c.l.b16 %v543
        %v1468 = vunpack.c.h.b16 %v543
        %v1469 = vunpack.c.l.b16 %v544
        %v1470 = vunpack.c.h.b16 %v544
        %v1471 = vunpack.c.l.b16 %v545
        %v1472 = vunpack.c.h.b16 %v545
        %v1473 = vunpack.c.l.b16 %v546
        %v1474 = vunpack.c.h.b16 %v546
        %v1475 = vunpack.c.l.b16 %v547
        %v1476 = vunpack.c.h.b16 %v547
        %v1477 = vunpack.c.l.b16 %v548
        %v1478 = vunpack.c.h.b16 %v548
        %v1479 = vunpack.c.l.b16 %v549
        %v1480 = vunpack.c.h.b16 %v549
        %v1481 = vunpack.c.l.b16 %v550
        %v1482 = vunpack.c.h.b16 %v550
        %v1483 = vunpack.c.l.b16 %v551
        %v1484 = vunpack.c.h.b16 %v551
        %v1485 = vunpack.c.l.b16 %v552
        %v1486 = vunpack.c.h.b16 %v552
        %v1487 = vunpack.c.l.b16 %v553
        %v1488 = vunpack.c.h.b16 %v553
        %v1489 = vunpack.c.l.b16 %v554
        %v1490 = vunpack.c.h.b16 %v554
        %v1491 = vunpack.c.l.b16 %v555
        %v1492 = vunpack.c.h.b16 %v555
        %v1493 = vunpack.c.l.b16 %v556
        %v1494 = vunpack.c.h.b16 %v556
        %v1495 = vunpack.c.l.b16 %v557
        %v1496 = vunpack.c.h.b16 %v557
        %v1497 = vunpack.c.l.b16 %v558
        %v1498 = vunpack.c.h.b16 %v558
        %v1499 = vunpack.c.l.b16 %v559
        %v1500 = vunpack.c.h.b16 %v559
        %v1501 = vunpack.c.l.b16 %v560
        %v1502 = vunpack.c.h.b16 %v560
        %v1503 = vunpack.c.l.b16 %v561
        %v1504 = vunpack.c.h.b16 %v561
        %v1505 = vunpack.c.l.b16 %v562
        %v1506 = vunpack.c.h.b16 %v562
        %v1507 = vunpack.c.l.b16 %v563
        %v1508 = vunpack.c.h.b16 %v563
        %v1509 = vunpack.c.l.b16 %v564
        %v1510 = vunpack.c.h.b16 %v564
        %v1511 = vunpack.c.l.b16 %v565
        %v1512 = vunpack.c.h.b16 %v565
        %v1513 = vunpack.c.l.b16 %v566
        %v1514 = vunpack.c.h.b16 %v566
        %v1515 = vunpack.c.l.b16 %v567
        %v1516 = vunpack.c.h.b16 %v567
        %v1517 = vunpack.c.l.b16 %v568
        %v1518 = vunpack.c.h.b16 %v568
        %v1519 = vunpack.c.l.b16 %v569
        %v1520 = vunpack.c.h.b16 %v569
        %v1521 = vunpack.c.l.b16 %v570
        %v1522 = vunpack.c.h.b16 %v570
        %v1523 = vunpack.c.l.b16 %v571
        %v1524 = vunpack.c.h.b16 %v571
        %v1525 = vunpack.c.l.b16 %v572
        %v1526 = vunpack.c.h.b16 %v572
        %v1527 = vunpack.c.l.b16 %v573
        %v1528 = vunpack.c.h.b16 %v573
        %v1529 = vunpack.c.l.b16 %v574
        %v1530 = vunpack.c.h.b16 %v574
        %v1531 = vunpack.c.l.b16 %v575
        %v1532 = vunpack.c.h.b16 %v575
        %v1533 = vunpack.c.l.b16 %v576
        %v1534 = vunpack.c.h.b16 %v576
        %v1535 = vunpack.c.l.b16 %v577
        %v1536 = vunpack.c.h.b16 %v577
        %v1537 = vunpack.c.l.b16 %v578
        %v1538 = vunpack.c.h.b16 %v578
        %v1539 = vunpack.c.l.b16 %v579
        %v1540 = vunpack.c.h.b16 %v579
        %v1541 = vunpack.c.l.b16 %v580
        %v1542 = vunpack.c.h.b16 %v580
        %v1543 = vunpack.c.l.b16 %v581
        %v1544 = vunpack.c.h.b16 %v581
        %v1545 = vunpack.c.l.b16 %v582
        %v1546 = vunpack.c.h.b16 %v582
        %v1547 = vunpack.c.l.b16 %v583
        %v1548 = vunpack.c.h.b16 %v583
        %v1549 = vunpack.c.l.b16 %v584
        %v1550 = vunpack.c.h.b16 %v584
        %v1551 = vunpack.c.l.b16 %v585
        %v1552 = vunpack.c.h.b16 %v585
        %v1553 = vunpack.c.l.b16 %v586
        %v1554 = vunpack.c.h.b16 %v586
        %v1555 = vunpack.c.l.b16 %v587
        %v1556 = vunpack.c.h.b16 %v587
        %v1557 = vunpack.c.l.b16 %v588
        %v1558 = vunpack.c.h.b16 %v588
        %v1559 = vunpack.c.l.b16 %v589
        %v1560 = vunpack.c.h.b16 %v589
        %v1561 = vunpack.c.l.b16 %v590
        %v1562 = vunpack.c.h.b16 %v590
        %v1563 = vunpack.c.l.b16 %v591
        %v1564 = vunpack.c.h.b16 %v591
        %v1565 = vunpack.c.l.b16 %v592
        %v1566 = vunpack.c.h.b16 %v592
        %v1567 = vunpack.c.l.b16 %v593
        %v1568 = vunpack.c.h.b16 %v593
        %v1569 = vunpack.c.l.b16 %v594
        %v1570 = vunpack.c.h.b16 %v594
        %v1571 = vunpack.c.l.b16 %v595
        %v1572 = vunpack.c.h.b16 %v595
        %v1573 = vunpack.c.l.b16 %v596
        %v1574 = vunpack.c.h.b16 %v596
        %v1575 = vunpack.c.l.b16 %v597
        %v1576 = vunpack.c.h.b16 %v597
        %v1577 = vunpack.c.l.b16 %v598
        %v1578 = vunpack.c.h.b16 %v598
        %v1579 = vunpack.c.l.b16 %v599
        %v1580 = vunpack.c.h.b16 %v599
        %v1581 = vunpack.c.l.b16 %v600
        %v1582 = vunpack.c.h.b16 %v600
        %v1583 = vunpack.c.l.b16 %v601
        %v1584 = vunpack.c.h.b16 %v601
        %v1585 = vunpack.c.l.b16 %v602
        %v1586 = vunpack.c.h.b16 %v602
        %v1587 = vunpack.c.l.b16 %v603
        %v1588 = vunpack.c.h.b16 %v603
        %v1589 = vunpack.c.l.b16 %v604
        %v1590 = vunpack.c.h.b16 %v604
        %v1591 = vunpack.c.l.b16 %v605
        %v1592 = vunpack.c.h.b16 %v605
        %v1593 = vunpack.c.l.b16 %v606
        %v1594 = vunpack.c.h.b16 %v606
        %v1595 = vunpack.c.l.b16 %v607
        %v1596 = vunpack.c.h.b16 %v607
        %v1597 = vunpack.c.l.b16 %v608
        %v1598 = vunpack.c.h.b16 %v608
        %v1599 = vunpack.c.l.b16 %v609
        %v1600 = vunpack.c.h.b16 %v609
        %v1601 = vunpack.c.l.b16 %v610
        %v1602 = vunpack.c.h.b16 %v610
        %v1603 = vunpack.c.l.b16 %v611
        %v1604 = vunpack.c.h.b16 %v611
        %v1605 = vunpack.c.l.b16 %v612
        %v1606 = vunpack.c.h.b16 %v612
        %v1607 = vunpack.c.l.b16 %v613
        %v1608 = vunpack.c.h.b16 %v613
        %v1609 = vunpack.c.l.b16 %v614
        %v1610 = vunpack.c.h.b16 %v614
        %v1611 = vunpack.c.l.b16 %v615
        %v1612 = vunpack.c.h.b16 %v615
        %v1613 = vunpack.c.l.b16 %v616
        %v1614 = vunpack.c.h.b16 %v616
        %v1615 = vunpack.c.l.b16 %v617
        %v1616 = vunpack.c.h.b16 %v617
        %v1617 = vunpack.c.l.b16 %v618
        %v1618 = vunpack.c.h.b16 %v618
        %v1619 = vunpack.c.l.b16 %v619
        %v1620 = vunpack.c.h.b16 %v619
        %v1621 = vunpack.c.l.b16 %v620
        %v1622 = vunpack.c.h.b16 %v620
        %v1623 = vunpack.c.l.b16 %v621
        %v1624 = vunpack.c.h.b16 %v621
        %v1625 = vunpack.c.l.b16 %v622
        %v1626 = vunpack.c.h.b16 %v622
        %v1627 = vunpack.c.l.b16 %v623
        %v1628 = vunpack.c.h.b16 %v623
        %v1629 = vunpack.c.l.b16 %v624
        %v1630 = vunpack.c.h.b16 %v624
        %v1631 = vunpack.c.l.b16 %v625
        %v1632 = vunpack.c.h.b16 %v625
        %v1633 = vunpack.c.l.b16 %v626
        %v1634 = vunpack.c.h.b16 %v626
        %v1635 = vunpack.c.l.b16 %v627
        %v1636 = vunpack.c.h.b16 %v627
        %v1637 = vunpack.c.l.b16 %v628
        %v1638 = vunpack.c.h.b16 %v628
        %v1639 = vunpack.c.l.b16 %v629
        %v1640 = vunpack.c.h.b16 %v629
        %v1641 = vunpack.c.l.b16 %v630
        %v1642 = vunpack.c.h.b16 %v630
        %v1643 = vunpack.c.l.b16 %v631
        %v1644 = vunpack.c.h.b16 %v631
        %v1645 = vunpack.c.l.b16 %v632
        %v1646 = vunpack.c.h.b16 %v632
        %v1647 = vunpack.c.l.b16 %v633
        %v1648 = vunpack.c.h.b16 %v633
        %v1649 = vunpack.c.l.b16 %v634
        %v1650 = vunpack.c.h.b16 %v634
        %v1651 = vunpack.c.l.b16 %v635
        %v1652 = vunpack.c.h.b16 %v635
        %v1653 = vunpack.c.l.b16 %v636
        %v1654 = vunpack.c.h.b16 %v636
        %v1655 = vunpack.c.l.b16 %v637
        %v1656 = vunpack.c.h.b16 %v637
        %v1657 = vunpack.c.l.b16 %v638
        %v1658 = vunpack.c.h.b16 %v638
        %v1659 = vunpack.c.l.b16 %v639
        %v1660 = vunpack.c.h.b16 %v639
        %v1661 = vunpack.c.l.b16 %v640
        %v1662 = vunpack.c.h.b16 %v640
        %v1663 = vunpack.c.l.b16 %v641
        %v1664 = vunpack.c.h.b16 %v641
        %v1665 = vunpack.c.l.b16 %v642
        %v1666 = vunpack.c.h.b16 %v642
        %v1667 = vunpack.c.l.b16 %v643
        %v1668 = vunpack.c.h.b16 %v643
        %v1669 = vunpack.c.l.b16 %v644
        %v1670 = vunpack.c.h.b16 %v644
        %v1671 = vunpack.c.l.b16 %v645
        %v1672 = vunpack.c.h.b16 %v645
        %v1673 = vunpack.c.l.b16 %v646
        %v1674 = vunpack.c.h.b16 %v646
        %v1675 = vunpack.c.l.b16 %v647
        %v1676 = vunpack.c.h.b16 %v647
        %v1677 = vunpack.c.l.b16 %v648
        %v1678 = vunpack.c.h.b16 %v648
        %v1679 = vunpack.c.l.b16 %v649
        %v1680 = vunpack.c.h.b16 %v649
        %v1681 = vunpack.c.l.b16 %v650
        %v1682 = vunpack.c.h.b16 %v650
        %v1683 = vunpack.c.l.b16 %v651
        %v1684 = vunpack.c.h.b16 %v651
        %v1685 = vunpack.c.l.b16 %v652
        %v1686 = vunpack.c.h.b16 %v652
        %v1687 = vunpack.c.l.b16 %v653
        %v1688 = vunpack.c.h.b16 %v653
        %v1689 = vunpack.c.l.b16 %v654
        %v1690 = vunpack.c.h.b16 %v654
        %v1691 = vunpack.c.l.b16 %v655
        %v1692 = vunpack.c.h.b16 %v655
        %v1693 = vunpack.c.l.b16 %v656
        %v1694 = vunpack.c.h.b16 %v656
        %v1695 = vunpack.c.l.b16 %v657
        %v1696 = vunpack.c.h.b16 %v657
        %v1697 = vunpack.c.l.b16 %v658
        %v1698 = vunpack.c.h.b16 %v658
        %v1699 = vunpack.c.l.b16 %v659
        %v1700 = vunpack.c.h.b16 %v659
        %v1701 = vunpack.c.l.b16 %v660
        %v1702 = vunpack.c.h.b16 %v660
        %v1703 = vunpack.c.l.b16 %v661
        %v1704 = vunpack.c.h.b16 %v661
        %v1705 = vunpack.c.l.b16 %v662
        %v1706 = vunpack.c.h.b16 %v662
        %v1707 = vunpack.c.l.b16 %v663
        %v1708 = vunpack.c.h.b16 %v663
        %v1709 = vunpack.c.l.b16 %v664
        %v1710 = vunpack.c.h.b16 %v664
        %v1711 = vunpack.c.l.b16 %v665
        %v1712 = vunpack.c.h.b16 %v665
        %v1713 = vunpack.c.l.b16 %v666
        %v1714 = vunpack.c.h.b16 %v666
        %v1715 = vunpack.c.l.b16 %v667
        %v1716 = vunpack.c.h.b16 %v667
        %v1717 = vunpack.c.l.b16 %v668
        %v1718 = vunpack.c.h.b16 %v668
        %v1719 = vunpack.c.l.b16 %v669
        %v1720 = vunpack.c.h.b16 %v669
        %v1721 = vunpack.c.l.b16 %v670
        %v1722 = vunpack.c.h.b16 %v670
        %v1723 = vunpack.c.l.b16 %v671
        %v1724 = vunpack.c.h.b16 %v671
        %v1725 = vunpack.c.l.b16 %v672
        %v1726 = vunpack.c.h.b16 %v672
        %v1727 = vunpack.c.l.b16 %v673
        %v1728 = vunpack.c.h.b16 %v673
        %v1729 = vunpack.c.l.b16 %v674
        %v1730 = vunpack.c.h.b16 %v674
        %v1731 = vunpack.c.l.b16 %v675
        %v1732 = vunpack.c.h.b16 %v675
        %v1733 = vunpack.c.l.b16 %v676
        %v1734 = vunpack.c.h.b16 %v676
        %v1735 = vunpack.c.l.b16 %v677
        %v1736 = vunpack.c.h.b16 %v677
        %v1737 = vunpack.c.l.b16 %v678
        %v1738 = vunpack.c.h.b16 %v678
        %v1739 = vunpack.c.l.b16 %v679
        %v1740 = vunpack.c.h.b16 %v679
        %v1741 = vunpack.c.l.b16 %v680
        %v1742 = vunpack.c.h.b16 %v680
        %v1743 = vunpack.c.l.b16 %v681
        %v1744 = vunpack.c.h.b16 %v681
        %v1745 = vunpack.c.l.b16 %v682
        %v1746 = vunpack.c.h.b16 %v682
        %v1747 = vunpack.c.l.b16 %v683
        %v1748 = vunpack.c.h.b16 %v683
        %v1749 = vunpack.c.l.b16 %v684
        %v1750 = vunpack.c.h.b16 %v684
        %v1751 = vunpack.c.l.b16 %v685
        %v1752 = vunpack.c.h.b16 %v685
        %v1753 = vunpack.c.l.b16 %v686
        %v1754 = vunpack.c.h.b16 %v686
        %v1755 = vunpack.c.l.b16 %v687
        %v1756 = vunpack.c.h.b16 %v687
        %v1757 = vunpack.c.l.b16 %v688
        %v1758 = vunpack.c.h.b16 %v688
        %v1759 = vunpack.c.l.b16 %v689
        %v1760 = vunpack.c.h.b16 %v689
        %v1761 = vunpack.c.l.b16 %v690
        %v1762 = vunpack.c.h.b16 %v690
        %v1763 = vunpack.c.l.b16 %v691
        %v1764 = vunpack.c.h.b16 %v691
        %v1765 = vunpack.c.l.b16 %v692
        %v1766 = vunpack.c.h.b16 %v692
        %v1767 = vunpack.c.l.b16 %v693
        %v1768 = vunpack.c.h.b16 %v693
        %v1769 = vunpack.c.l.b16 %v694
        %v1770 = vunpack.c.h.b16 %v694
        %v1771 = vunpack.c.l.b16 %v695
        %v1772 = vunpack.c.h.b16 %v695
        %v1773 = vunpack.c.l.b16 %v696
        %v1774 = vunpack.c.h.b16 %v696
        %v1775 = vunpack.c.l.b16 %v697
        %v1776 = vunpack.c.h.b16 %v697
        %v1777 = vunpack.c.l.b16 %v698
        %v1778 = vunpack.c.h.b16 %v698
        %v1779 = vunpack.c.l.b16 %v699
        %v1780 = vunpack.c.h.b16 %v699
        %v1781 = vunpack.c.l.b16 %v700
        %v1782 = vunpack.c.h.b16 %v700
        %v1783 = vunpack.c.l.b16 %v701
        %v1784 = vunpack.c.h.b16 %v701
        %v1785 = vunpack.c.l.b16 %v702
        %v1786 = vunpack.c.h.b16 %v702
        %v1787 = vunpack.c.l.b16 %v703
        %v1788 = vunpack.c.h.b16 %v703
        %v1789 = vunpack.c.l.b16 %v704
        %v1790 = vunpack.c.h.b16 %v704
        %v1791 = vunpack.c.l.b16 %v705
        %v1792 = vunpack.c.h.b16 %v705
        %v1793 = vunpack.c.l.b16 %v706
        %v1794 = vunpack.c.h.b16 %v706
        %v1795 = vunpack.c.l.b16 %v707
        %v1796 = vunpack.c.h.b16 %v707
        %v1797 = vunpack.c.l.b16 %v708
        %v1798 = vunpack.c.h.b16 %v708
        %v1799 = vunpack.c.l.b16 %v709
        %v1800 = vunpack.c.h.b16 %v709
        %v1801 = vunpack.c.l.b16 %v710
        %v1802 = vunpack.c.h.b16 %v710
        %v1803 = vunpack.c.l.b16 %v711
        %v1804 = vunpack.c.h.b16 %v711
        %v1805 = vunpack.c.l.b16 %v712
        %v1806 = vunpack.c.h.b16 %v712
        %v1807 = vunpack.c.l.b16 %v713
        %v1808 = vunpack.c.h.b16 %v713
        %v1809 = vunpack.c.l.b16 %v714
        %v1810 = vunpack.c.h.b16 %v714
        %v1811 = vunpack.c.l.b16 %v715
        %v1812 = vunpack.c.h.b16 %v715
        %v1813 = vunpack.c.l.b16 %v716
        %v1814 = vunpack.c.h.b16 %v716
        %v1815 = vunpack.c.l.b16 %v717
        %v1816 = vunpack.c.h.b16 %v717
        %v1817 = vunpack.c.l.b16 %v718
        %v1818 = vunpack.c.h.b16 %v718
        %v1819 = vunpack.c.l.b16 %v719
        %v1820 = vunpack.c.h.b16 %v719
        %v1821 = vunpack.c.l.b16 %v720
        %v1822 = vunpack.c.h.b16 %v720
        %v1823 = vunpack.c.l.b16 %v721
        %v1824 = vunpack.c.h.b16 %v721
        %v1825 = vunpack.c.l.b16 %v722
        %v1826 = vunpack.c.h.b16 %v722
        %v1827 = vunpack.c.l.b16 %v723
        %v1828 = vunpack.c.h.b16 %v723
        %v1829 = vunpack.c.l.b16 %v724
        %v1830 = vunpack.c.h.b16 %v724
        %v1831 = vunpack.c.l.b16 %v725
        %v1832 = vunpack.c.h.b16 %v725
        %v1833 = vunpack.c.l.b16 %v726
        %v1834 = vunpack.c.h.b16 %v726
        %v1835 = vunpack.c.l.b16 %v727
        %v1836 = vunpack.c.h.b16 %v727
        %v1837 = vunpack.c.l.b16 %v728
        %v1838 = vunpack.c.h.b16 %v728
        %v1839 = vunpack.c.l.b16 %v729
        %v1840 = vunpack.c.h.b16 %v729
        %v1841 = vunpack.c.l.b16 %v730
        %v1842 = vunpack.c.h.b16 %v730
        %v1843 = vunpack.c.l.b16 %v731
        %v1844 = vunpack.c.h.b16 %v731
        %v1845 = vunpack.c.l.b16 %v732
        %v1846 = vunpack.c.h.b16 %v732
        %v1847 = vunpack.c.l.b16 %v733
        %v1848 = vunpack.c.h.b16 %v733
        %v1849 = vunpack.c.l.b16 %v734
        %v1850 = vunpack.c.h.b16 %v734
        %v1851 = vunpack.c.l.b16 %v735
        %v1852 = vunpack.c.h.b16 %v735
        %v1853 = vunpack.c.l.b16 %v736
        %v1854 = vunpack.c.h.b16 %v736
        %v1855 = vunpack.c.l.b16 %v737
        %v1856 = vunpack.c.h.b16 %v737
        %v1857 = vunpack.c.l.b16 %v738
        %v1858 = vunpack.c.h.b16 %v738
        %v1859 = vunpack.c.l.b16 %v739
        %v1860 = vunpack.c.h.b16 %v739
        %v1861 = vunpack.c.l.b16 %v740
        %v1862 = vunpack.c.h.b16 %v740
        %v1863 = vunpack.c.l.b16 %v741
        %v1864 = vunpack.c.h.b16 %v741
        %v1865 = vunpack.c.l.b16 %v742
        %v1866 = vunpack.c.h.b16 %v742
        %v1867 = vunpack.c.l.b16 %v743
        %v1868 = vunpack.c.h.b16 %v743
        %v1869 = vunpack.c.l.b16 %v744
        %v1870 = vunpack.c.h.b16 %v744
        %v1871 = vunpack.c.l.b16 %v745
        %v1872 = vunpack.c.h.b16 %v745
        %v1873 = vunpack.c.l.b16 %v746
        %v1874 = vunpack.c.h.b16 %v746
        %v1875 = vunpack.c.l.b16 %v747
        %v1876 = vunpack.c.h.b16 %v747
        %v1877 = vunpack.c.l.b16 %v748
        %v1878 = vunpack.c.h.b16 %v748
        %v1879 = vunpack.c.l.b16 %v749
        %v1880 = vunpack.c.h.b16 %v749
        %v1881 = vunpack.c.l.b16 %v750
        %v1882 = vunpack.c.h.b16 %v750
        %v1883 = vunpack.c.l.b16 %v751
        %v1884 = vunpack.c.h.b16 %v751
        %v1885 = vunpack.c.l.b16 %v752
        %v1886 = vunpack.c.h.b16 %v752
        %v1887 = vunpack.c.l.b16 %v753
        %v1888 = vunpack.c.h.b16 %v753
        %v1889 = vunpack.c.l.b16 %v754
        %v1890 = vunpack.c.h.b16 %v754
        %v1891 = vunpack.c.l.b16 %v755
        %v1892 = vunpack.c.h.b16 %v755
        %v1893 = vunpack.c.l.b16 %v756
        %v1894 = vunpack.c.h.b16 %v756
        %v1895 = vunpack.c.l.b16 %v757
        %v1896 = vunpack.c.h.b16 %v757
        %v1897 = vunpack.c.l.b16 %v758
        %v1898 = vunpack.c.h.b16 %v758
        %v1899 = vunpack.c.l.b16 %v759
        %v1900 = vunpack.c.h.b16 %v759
        %v1901 = vunpack.c.l.b16 %v760
        %v1902 = vunpack.c.h.b16 %v760
        %v1903 = vunpack.c.l.b16 %v761
        %v1904 = vunpack.c.h.b16 %v761
        %v1905 = vunpack.c.l.b16 %v762
        %v1906 = vunpack.c.h.b16 %v762
        %v1907 = vunpack.c.l.b16 %v763
        %v1908 = vunpack.c.h.b16 %v763
        %v1909 = vunpack.c.l.b16 %v764
        %v1910 = vunpack.c.h.b16 %v764
        %v1911 = vunpack.c.l.b16 %v765
        %v1912 = vunpack.c.h.b16 %v765
        %v1913 = vunpack.c.l.b16 %v766
        %v1914 = vunpack.c.h.b16 %v766
        %v1915 = vpack.c.b16 %v1351, %v1339
        %v1916 = vpack.c.b16 %v1352, %v1340
        %v1917 = vpack.c.b16 %v1353, %v1341
        %v1918 = vpack.c.b16 %v1354, %v1342
        %v1919 = vpack.c.b16 %v1355, %v1343
        %v1920 = vpack.c.b16 %v1356, %v1344
        %v1921 = vpack.c.b16 %v1357, %v1345
        %v1922 = vpack.c.b16 %v1358, %v1346
        %v1923 = vpack.c.b16 %v1359, %v1347
        %v1924 = vpack.c.b16 %v1360, %v1348
        %v1925 = vpack.c.b16 %v1361, %v1349
        %v1926 = vpack.c.b16 %v1362, %v1350
        %v1927 = vpack.c.b16 %v1375, %v1363
        %v1928 = vpack.c.b16 %v1376, %v1364
        %v1929 = vpack.c.b16 %v1377, %v1365
        %v1930 = vpack.c.b16 %v1378, %v1366
        %v1931 = vpack.c.b16 %v1379, %v1367
        %v1932 = vpack.c.b16 %v1380, %v1368
        %v1933 = vpack.c.b16 %v1381, %v1369
        %v1934 = vpack.c.b16 %v1382, %v1370
        %v1935 = vpack.c.b16 %v1383, %v1371
        %v1936 = vpack.c.b16 %v1384, %v1372
        %v1937 = vpack.c.b16 %v1385, %v1373
        %v1938 = vpack.c.b16 %v1386, %v1374
        %v1939 = vpack.c.b16 %v1399, %v1387
        %v1940 = vpack.c.b16 %v1400, %v1388
        %v1941 = vpack.c.b16 %v1401, %v1389
        %v1942 = vpack.c.b16 %v1402, %v1390
        %v1943 = vpack.c.b16 %v1403, %v1391
        %v1944 = vpack.c.b16 %v1404, %v1392
        %v1945 = vpack.c.b16 %v1405, %v1393
        %v1946 = vpack.c.b16 %v1406, %v1394
        %v1947 = vpack.c.b16 %v1407, %v1395
        %v1948 = vpack.c.b16 %v1408, %v1396
        %v1949 = vpack.c.b16 %v1409, %v1397
        %v1950 = vpack.c.b16 %v1410, %v1398
        %v1951 = vpack.c.b16 %v1423, %v1411
        %v1952 = vpack.c.b16 %v1424, %v1412
        %v1953 = vpack.c.b16 %v1425, %v1413
        %v1954 = vpack.c.b16 %v1426, %v1414
        %v1955 = vpack.c.b16 %v1427, %v1415
        %v1956 = vpack.c.b16 %v1428, %v1416
        %v1957 = vpack.c.b16 %v1429, %v1417
        %v1958 = vpack.c.b16 %v1430, %v1418
        %v1959 = vpack.c.b16 %v1431, %v1419
        %v1960 = vpack.c.b16 %v1432, %v1420
        %v1961 = vpack.c.b16 %v1433, %v1421
        %v1962 = vpack.c.b16 %v1434, %v1422
        %v1963 = vpack.c.b16 %v1447, %v1435
        %v1964 = vpack.c.b16 %v1448, %v1436
        %v1965 = vpack.c.b16 %v1449, %v1437
        %v1966 = vpack.c.b16 %v1450, %v1438
        %v1967 = vpack.c.b16 %v1451, %v1439
        %v1968 = vpack.c.b16 %v1452, %v1440
        %v1969 = vpack.c.b16 %v1453, %v1441
        %v1970 = vpack.c.b16 %v1454, %v1442
        %v1971 = vpack.c.b16 %v1455, %v1443
        %v1972 = vpack.c.b16 %v1456, %v1444
        %v1973 = vpack.c.b16 %v1457, %v1445
        %v1974 = vpack.c.b16 %v1458, %v1446
        %v1975 = vpack.c.b16 %v1471, %v1459
        %v1976 = vpack.c.b16 %v1472, %v1460
        %v1977 = vpack.c.b16 %v1473, %v1461
        %v1978 = vpack.c.b16 %v1474, %v1462
        %v1979 = vpack.c.b16 %v1475, %v1463
        %v1980 = vpack.c.b16 %v1476, %v1464
        %v1981 = vpack.c.b16 %v1477, %v1465
        %v1982 = vpack.c.b16 %v1478, %v1466
        %v1983 = vpack.c.b16 %v1479, %v1467
        %v1984 = vpack.c.b16 %v1480, %v1468
        %v1985 = vpack.c.b16 %v1481, %v1469
        %v1986 = vpack.c.b16 %v1482, %v1470
        %v1987 = vpack.c.b16 %v1495, %v1483
        %v1988 = vpack.c.b16 %v1496, %v1484
        %v1989 = vpack.c.b16 %v1497, %v1485
        %v1990 = vpack.c.b16 %v1498, %v1486
        %v1991 = vpack.c.b16 %v1499, %v1487
        %v1992 = vpack.c.b16 %v1500, %v1488
        %v1993 = vpack.c.b16 %v1501, %v1489
        %v1994 = vpack.c.b16 %v1502, %v1490
        %v1995 = vpack.c.b16 %v1503, %v1491
        %v1996 = vpack.c.b16 %v1504, %v1492
        %v1997 = vpack.c.b16 %v1505, %v1493
        %v1998 = vpack.c.b16 %v1506, %v1494
        %v1999 = vpack.c.b16 %v1519, %v1507
        %v2000 = vpack.c.b16 %v1520, %v1508
        %v2001 = vpack.c.b16 %v1521, %v1509
        %v2002 = vpack.c.b16 %v1522, %v1510
        %v2003 = vpack.c.b16 %v1523, %v1511
        %v2004 = vpack.c.b16 %v1524, %v1512
        %v2005 = vpack.c.b16 %v1525, %v1513
        %v2006 = vpack.c.b16 %v1526, %v1514
        %v2007 = vpack.c.b16 %v1527, %v1515
        %v2008 = vpack.c.b16 %v1528, %v1516
        %v2009 = vpack.c.b16 %v1529, %v1517
        %v2010 = vpack.c.b16 %v1530, %v1518
        %v2011 = vpack.c.b16 %v1543, %v1531
        %v2012 = vpack.c.b16 %v1544, %v1532
        %v2013 = vpack.c.b16 %v1545, %v1533
        %v2014 = vpack.c.b16 %v1546, %v1534
        %v2015 = vpack.c.b16 %v1547, %v1535
        %v2016 = vpack.c.b16 %v1548, %v1536
        %v2017 = vpack.c.b16 %v1549, %v1537
        %v2018 = vpack.c.b16 %v1550, %v1538
        %v2019 = vpack.c.b16 %v1551, %v1539
        %v2020 = vpack.c.b16 %v1552, %v1540
        %v2021 = vpack.c.b16 %v1553, %v1541
        %v2022 = vpack.c.b16 %v1554, %v1542
        %v2023 = vpack.c.b16 %v1567, %v1555
        %v2024 = vpack.c.b16 %v1568, %v1556
        %v2025 = vpack.c.b16 %v1569, %v1557
        %v2026 = vpack.c.b16 %v1570, %v1558
        %v2027 = vpack.c.b16 %v1571, %v1559
        %v2028 = vpack.c.b16 %v1572, %v1560
        %v2029 = vpack.c.b16 %v1573, %v1561
        %v2030 = vpack.c.b16 %v1574, %v1562
        %v2031 = vpack.c.b16 %v1575, %v1563
        %v2032 = vpack.c.b16 %v1576, %v1564
        %v2033 = vpack.c.b16 %v1577, %v1565
        %v2034 = vpack.c.b16 %v1578, %v1566
        %v2035 = vpack.c.b16 %v1591, %v1579
        %v2036 = vpack.c.b16 %v1592, %v1580
        %v2037 = vpack.c.b16 %v1593, %v1581
        %v2038 = vpack.c.b16 %v1594, %v1582
        %v2039 = vpack.c.b16 %v1595, %v1583
        %v2040 = vpack.c.b16 %v1596, %v1584
        %v2041 = vpack.c.b16 %v1597, %v1585
        %v2042 = vpack.c.b16 %v1598, %v1586
        %v2043 = vpack.c.b16 %v1599, %v1587
        %v2044 = vpack.c.b16 %v1600, %v1588
        %v2045 = vpack.c.b16 %v1601, %v1589
        %v2046 = vpack.c.b16 %v1602, %v1590
        %v2047 = vpack.c.b16 %v1615, %v1603
        %v2048 = vpack.c.b16 %v1616, %v1604
        %v2049 = vpack.c.b16 %v1617, %v1605
        %v2050 = vpack.c.b16 %v1618, %v1606
        %v2051 = vpack.c.b16 %v1619, %v1607
        %v2052 = vpack.c.b16 %v1620, %v1608
        %v2053 = vpack.c.b16 %v1621, %v1609
        %v2054 = vpack.c.b16 %v1622, %v1610
        %v2055 = vpack.c.b16 %v1623, %v1611
        %v2056 = vpack.c.b16 %v1624, %v1612
        %v2057 = vpack.c.b16 %v1625, %v1613
        %v2058 = vpack.c.b16 %v1626, %v1614
        %v2059 = vpack.c.b16 %v1639, %v1627
        %v2060 = vpack.c.b16 %v1640, %v1628
        %v2061 = vpack.c.b16 %v1641, %v1629
        %v2062 = vpack.c.b16 %v1642, %v1630
        %v2063 = vpack.c.b16 %v1643, %v1631
        %v2064 = vpack.c.b16 %v1644, %v1632
        %v2065 = vpack.c.b16 %v1645, %v1633
        %v2066 = vpack.c.b16 %v1646, %v1634
        %v2067 = vpack.c.b16 %v1647, %v1635
        %v2068 = vpack.c.b16 %v1648, %v1636
        %v2069 = vpack.c.b16 %v1649, %v1637
        %v2070 = vpack.c.b16 %v1650, %v1638
        %v2071 = vpack.c.b16 %v1663, %v1651
        %v2072 = vpack.c.b16 %v1664, %v1652
        %v2073 = vpack.c.b16 %v1665, %v1653
        %v2074 = vpack.c.b16 %v1666, %v1654
        %v2075 = vpack.c.b16 %v1667, %v1655
        %v2076 = vpack.c.b16 %v1668, %v1656
        %v2077 = vpack.c.b16 %v1669, %v1657
        %v2078 = vpack.c.b16 %v1670, %v1658
        %v2079 = vpack.c.b16 %v1671, %v1659
        %v2080 = vpack.c.b16 %v1672, %v1660
        %v2081 = vpack.c.b16 %v1673, %v1661
        %v2082 = vpack.c.b16 %v1674, %v1662
        %v2083 = vpack.c.b16 %v1687, %v1675
        %v2084 = vpack.c.b16 %v1688, %v1676
        %v2085 = vpack.c.b16 %v1689, %v1677
        %v2086 = vpack.c.b16 %v1690, %v1678
        %v2087 = vpack.c.b16 %v1691, %v1679
        %v2088 = vpack.c.b16 %v1692, %v1680
        %v2089 = vpack.c.b16 %v1693, %v1681
        %v2090 = vpack.c.b16 %v1694, %v1682
        %v2091 = vpack.c.b16 %v1695, %v1683
        %v2092 = vpack.c.b16 %v1696, %v1684
        %v2093 = vpack.c.b16 %v1697, %v1685
        %v2094 = vpack.c.b16 %v1698, %v1686
        %v2095 = vpack.c.b16 %v1711, %v1699
        %v2096 = vpack.c.b16 %v1712, %v1700
        %v2097 = vpack.c.b16 %v1713, %v1701
        %v2098 = vpack.c.b16 %v1714, %v1702
        %v2099 = vpack.c.b16 %v1715, %v1703
        %v2100 = vpack.c.b16 %v1716, %v1704
        %v2101 = vpack.c.b16 %v1717, %v1705
        %v2102 = vpack.c.b16 %v1718, %v1706
        %v2103 = vpack.c.b16 %v1719, %v1707
        %v2104 = vpack.c.b16 %v1720, %v1708
        %v2105 = vpack.c.b16 %v1721, %v1709
        %v2106 = vpack.c.b16 %v1722, %v1710
        %v2107 = vpack.c.b16 %v1735, %v1723
        %v2108 = vpack.c.b16 %v1736, %v1724
        %v2109 = vpack.c.b16 %v1737, %v1725
        %v2110 = vpack.c.b16 %v1738, %v1726
        %v2111 = vpack.c.b16 %v1739, %v1727
        %v2112 = vpack.c.b16 %v1740, %v1728
        %v2113 = vpack.c.b16 %v1741, %v1729
        %v2114 = vpack.c.b16 %v1742, %v1730
        %v2115 = vpack.c.b16 %v1743, %v1731
        %v2116 = vpack.c.b16 %v1744, %v1732
        %v2117 = vpack.c.b16 %v1745, %v1733
        %v2118 = vpack.c.b16 %v1746, %v1734
        %v2119 = vpack.c.b16 %v1759, %v1747
        %v2120 = vpack.c.b16 %v1760, %v1748
        %v2121 = vpack.c.b16 %v1761, %v1749
        %v2122 = vpack.c.b16 %v1762, %v1750
        %v2123 = vpack.c.b16 %v1763, %v1751
        %v2124 = vpack.c.b16 %v1764, %v1752
        %v2125 = vpack.c.b16 %v1765, %v1753
        %v2126 = vpack.c.b16 %v1766, %v1754
        %v2127 = vpack.c.b16 %v1767, %v1755
        %v2128 = vpack.c.b16 %v1768, %v1756
        %v2129 = vpack.c.b16 %v1769, %v1757
        %v2130 = vpack.c.b16 %v1770, %v1758
        %v2131 = vpack.c.b16 %v1783, %v1771
        %v2132 = vpack.c.b16 %v1784, %v1772
        %v2133 = vpack.c.b16 %v1785, %v1773
        %v2134 = vpack.c.b16 %v1786, %v1774
        %v2135 = vpack.c.b16 %v1787, %v1775
        %v2136 = vpack.c.b16 %v1788, %v1776
        %v2137 = vpack.c.b16 %v1789, %v1777
        %v2138 = vpack.c.b16 %v1790, %v1778
        %v2139 = vpack.c.b16 %v1791, %v1779
        %v2140 = vpack.c.b16 %v1792, %v1780
        %v2141 = vpack.c.b16 %v1793, %v1781
        %v2142 = vpack.c.b16 %v1794, %v1782
        %v2143 = vpack.c.b16 %v1807, %v1795
        %v2144 = vpack.c.b16 %v1808, %v1796
        %v2145 = vpack.c.b16 %v1809, %v1797
        %v2146 = vpack.c.b16 %v1810, %v1798
        %v2147 = vpack.c.b16 %v1811, %v1799
        %v2148 = vpack.c.b16 %v1812, %v1800
        %v2149 = vpack.c.b16 %v1813, %v1801
        %v2150 = vpack.c.b16 %v1814, %v1802
        %v2151 = vpack.c.b16 %v1815, %v1803
        %v2152 = vpack.c.b16 %v1816, %v1804
        %v2153 = vpack.c.b16 %v1817, %v1805
        %v2154 = vpack.c.b16 %v1818, %v1806
        %v2155 = vpack.c.b16 %v1831, %v1819
        %v2156 = vpack.c.b16 %v1832, %v1820
        %v2157 = vpack.c.b16 %v1833, %v1821
        %v2158 = vpack.c.b16 %v1834, %v1822
        %v2159 = vpack.c.b16 %v1835, %v1823
        %v2160 = vpack.c.b16 %v1836, %v1824
        %v2161 = vpack.c.b16 %v1837, %v1825
        %v2162 = vpack.c.b16 %v1838, %v1826
        %v2163 = vpack.c.b16 %v1839, %v1827
        %v2164 = vpack.c.b16 %v1840, %v1828
        %v2165 = vpack.c.b16 %v1841, %v1829
        %v2166 = vpack.c.b16 %v1842, %v1830
        %v2167 = vpack.c.b16 %v1855, %v1843
        %v2168 = vpack.c.b16 %v1856, %v1844
        %v2169 = vpack.c.b16 %v1857, %v1845
        %v2170 = vpack.c.b16 %v1858, %v1846
        %v2171 = vpack.c.b16 %v1859, %v1847
        %v2172 = vpack.c.b16 %v1860, %v1848
        %v2173 = vpack.c.b16 %v1861, %v1849
        %v2174 = vpack.c.b16 %v1862, %v1850
        %v2175 = vpack.c.b16 %v1863, %v1851
        %v2176 = vpack.c.b16 %v1864, %v1852
        %v2177 = vpack.c.b16 %v1865, %v1853
        %v2178 = vpack.c.b16 %v1866, %v1854
        %v2179 = vpack.c.b16 %v1879, %v1867
        %v2180 = vpack.c.b16 %v1880, %v1868
        %v2181 = vpack.c.b16 %v1881, %v1869
        %v2182 = vpack.c.b16 %v1882, %v1870
        %v2183 = vpack.c.b16 %v1883, %v1871
        %v2184 = vpack.c.b16 %v1884, %v1872
        %v2185 = vpack.c.b16 %v1885, %v1873
        %v2186 = vpack.c.b16 %v1886, %v1874
        %v2187 = vpack.c.b16 %v1887, %v1875
        %v2188 = vpack.c.b16 %v1888, %v1876
        %v2189 = vpack.c.b16 %v1889, %v1877
        %v2190 = vpack.c.b16 %v1890, %v1878
        %v2191 = vpack.c.b16 %v1903, %v1891
        %v2192 = vpack.c.b16 %v1904, %v1892
        %v2193 = vpack.c.b16 %v1905, %v1893
        %v2194 = vpack.c.b16 %v1906, %v1894
        %v2195 = vpack.c.b16 %v1907, %v1895
        %v2196 = vpack.c.b16 %v1908, %v1896
        %v2197 = vpack.c.b16 %v1909, %v1897
        %v2198 = vpack.c.b16 %v1910, %v1898
        %v2199 = vpack.c.b16 %v1911, %v1899
        %v2200 = vpack.c.b16 %v1912, %v1900
        %v2201 = vpack.c.b16 %v1913, %v1901
        %v2202 = vpack.c.b16 %v1914, %v1902
        %2491 = vmatpush.bf16.msra.mxu0 %v1999
        %2492 = vmatpush.bf16.msra.mxu0 %v1987
        %2493 = vmatpush.bf16.msra.mxu0 %v1975
        %2494 = vmatpush.bf16.msra.mxu0 %v1963
        %2495 = vmatpush.bf16.msra.mxu0 %v1951
        %2496 = vmatpush.bf16.msra.mxu0 %v1939
        %2497 = vmatpush.bf16.msra.mxu0 %v1927
        %2498 = vmatpush.bf16.msra.mxu0 %v1915
        %2499 = vmatmul.bf16.gmra.mxu0 %v955
        %v2500 = vpop.f32.mrf.mxu0
        %v2501 = vadd.f32 %v771, %v2500
        %v2502 = vpop.f32.mrf.mxu0
        %v2503 = vadd.f32 %v771, %v2502
        %2504 = vmatmul.bf16.gmra.mxu0 %v958
        %v2505 = vpop.f32.mrf.mxu0
        %v2506 = vadd.f32 %v771, %v2505
        %v2507 = vpop.f32.mrf.mxu0
        %v2508 = vadd.f32 %v771, %v2507
        %2509 = vmatmul.bf16.gmra.mxu0 %v961
        %v2510 = vpop.f32.mrf.mxu0
        %v2511 = vadd.f32 %v771, %v2510
        %v2512 = vpop.f32.mrf.mxu0
        %v2513 = vadd.f32 %v771, %v2512
        %2514 = vmatmul.bf16.gmra.mxu0 %v964
        %v2515 = vpop.f32.mrf.mxu0
        %v2516 = vadd.f32 %v771, %v2515
        %v2517 = vpop.f32.mrf.mxu0
        %v2518 = vadd.f32 %v771, %v2517
        %2519 = vmatmul.bf16.gmra.mxu0 %v967
        %v2520 = vpop.f32.mrf.mxu0
        %v2521 = vadd.f32 %v771, %v2520
        %v2522 = vpop.f32.mrf.mxu0
        %v2523 = vadd.f32 %v771, %v2522
        %2524 = vmatmul.bf16.gmra.mxu0 %v970
        %v2525 = vpop.f32.mrf.mxu0
        %v2526 = vadd.f32 %v771, %v2525
        %v2527 = vpop.f32.mrf.mxu0
        %v2528 = vadd.f32 %v771, %v2527
        %2529 = vmatmul.bf16.gmra.mxu0 %v973
        %v2530 = vpop.f32.mrf.mxu0
        %v2531 = vadd.f32 %v771, %v2530
        %v2532 = vpop.f32.mrf.mxu0
        %v2533 = vadd.f32 %v771, %v2532
        %2534 = vmatmul.bf16.gmra.mxu0 %v976
        %v2535 = vpop.f32.mrf.mxu0
        %v2536 = vadd.f32 %v771, %v2535
        %v2537 = vpop.f32.mrf.mxu0
        %v2538 = vadd.f32 %v771, %v2537
        %2539 = vmatmul.bf16.gmra.mxu0 %v979
        %v2540 = vpop.f32.mrf.mxu0
        %v2541 = vadd.f32 %v771, %v2540
        %v2542 = vpop.f32.mrf.mxu0
        %v2543 = vadd.f32 %v771, %v2542
        %2544 = vmatmul.bf16.gmra.mxu0 %v982
        %v2545 = vpop.f32.mrf.mxu0
        %v2546 = vadd.f32 %v771, %v2545
        %v2547 = vpop.f32.mrf.mxu0
        %v2548 = vadd.f32 %v771, %v2547
        %2549 = vmatmul.bf16.gmra.mxu0 %v985
        %v2550 = vpop.f32.mrf.mxu0
        %v2551 = vadd.f32 %v771, %v2550
        %v2552 = vpop.f32.mrf.mxu0
        %v2553 = vadd.f32 %v771, %v2552
        %2554 = vmatmul.bf16.gmra.mxu0 %v988
        %v2555 = vpop.f32.mrf.mxu0
        %v2556 = vadd.f32 %v771, %v2555
        %v2557 = vpop.f32.mrf.mxu0
        %v2558 = vadd.f32 %v771, %v2557
        %2559 = vmatmul.bf16.gmra.mxu0 %v991
        %v2560 = vpop.f32.mrf.mxu0
        %v2561 = vadd.f32 %v771, %v2560
        %v2562 = vpop.f32.mrf.mxu0
        %v2563 = vadd.f32 %v771, %v2562
        %2564 = vmatmul.bf16.gmra.mxu0 %v994
        %v2565 = vpop.f32.mrf.mxu0
        %v2566 = vadd.f32 %v771, %v2565
        %v2567 = vpop.f32.mrf.mxu0
        %v2568 = vadd.f32 %v771, %v2567
        %2569 = vmatmul.bf16.gmra.mxu0 %v997
        %v2570 = vpop.f32.mrf.mxu0
        %v2571 = vadd.f32 %v771, %v2570
        %v2572 = vpop.f32.mrf.mxu0
        %v2573 = vadd.f32 %v771, %v2572
        %2574 = vmatmul.bf16.gmra.mxu0 %v1000
        %v2575 = vpop.f32.mrf.mxu0
        %v2576 = vadd.f32 %v771, %v2575
        %v2577 = vpop.f32.mrf.mxu0
        %v2578 = vadd.f32 %v771, %v2577
        %2579 = vdwg.mxu0
        %2580 = vmatpush.bf16.msra.mxu0 %v2095
        %2581 = vmatpush.bf16.msra.mxu0 %v2083
        %2582 = vmatpush.bf16.msra.mxu0 %v2071
        %2583 = vmatpush.bf16.msra.mxu0 %v2059
        %2584 = vmatpush.bf16.msra.mxu0 %v2047
        %2585 = vmatpush.bf16.msra.mxu0 %v2035
        %2586 = vmatpush.bf16.msra.mxu0 %v2023
        %2587 = vmatpush.bf16.msra.mxu0 %v2011
        %2588 = vmatmul.bf16.gmra.mxu0 %v956
        %v2589 = vpop.f32.mrf.mxu0
        %v2590 = vadd.f32 %v2501, %v2589
        %v2591 = vpop.f32.mrf.mxu0
        %v2592 = vadd.f32 %v2503, %v2591
        %2593 = vmatmul.bf16.gmra.mxu0 %v959
        %v2594 = vpop.f32.mrf.mxu0
        %v2595 = vadd.f32 %v2506, %v2594
        %v2596 = vpop.f32.mrf.mxu0
        %v2597 = vadd.f32 %v2508, %v2596
        %2598 = vmatmul.bf16.gmra.mxu0 %v962
        %v2599 = vpop.f32.mrf.mxu0
        %v2600 = vadd.f32 %v2511, %v2599
        %v2601 = vpop.f32.mrf.mxu0
        %v2602 = vadd.f32 %v2513, %v2601
        %2603 = vmatmul.bf16.gmra.mxu0 %v965
        %v2604 = vpop.f32.mrf.mxu0
        %v2605 = vadd.f32 %v2516, %v2604
        %v2606 = vpop.f32.mrf.mxu0
        %v2607 = vadd.f32 %v2518, %v2606
        %2608 = vmatmul.bf16.gmra.mxu0 %v968
        %v2609 = vpop.f32.mrf.mxu0
        %v2610 = vadd.f32 %v2521, %v2609
        %v2611 = vpop.f32.mrf.mxu0
        %v2612 = vadd.f32 %v2523, %v2611
        %2613 = vmatmul.bf16.gmra.mxu0 %v971
        %v2614 = vpop.f32.mrf.mxu0
        %v2615 = vadd.f32 %v2526, %v2614
        %v2616 = vpop.f32.mrf.mxu0
        %v2617 = vadd.f32 %v2528, %v2616
        %2618 = vmatmul.bf16.gmra.mxu0 %v974
        %v2619 = vpop.f32.mrf.mxu0
        %v2620 = vadd.f32 %v2531, %v2619
        %v2621 = vpop.f32.mrf.mxu0
        %v2622 = vadd.f32 %v2533, %v2621
        %2623 = vmatmul.bf16.gmra.mxu0 %v977
        %v2624 = vpop.f32.mrf.mxu0
        %v2625 = vadd.f32 %v2536, %v2624
        %v2626 = vpop.f32.mrf.mxu0
        %v2627 = vadd.f32 %v2538, %v2626
        %2628 = vmatmul.bf16.gmra.mxu0 %v980
        %v2629 = vpop.f32.mrf.mxu0
        %v2630 = vadd.f32 %v2541, %v2629
        %v2631 = vpop.f32.mrf.mxu0
        %v2632 = vadd.f32 %v2543, %v2631
        %2633 = vmatmul.bf16.gmra.mxu0 %v983
        %v2634 = vpop.f32.mrf.mxu0
        %v2635 = vadd.f32 %v2546, %v2634
        %v2636 = vpop.f32.mrf.mxu0
        %v2637 = vadd.f32 %v2548, %v2636
        %2638 = vmatmul.bf16.gmra.mxu0 %v986
        %v2639 = vpop.f32.mrf.mxu0
        %v2640 = vadd.f32 %v2551, %v2639
        %v2641 = vpop.f32.mrf.mxu0
        %v2642 = vadd.f32 %v2553, %v2641
        %2643 = vmatmul.bf16.gmra.mxu0 %v989
        %v2644 = vpop.f32.mrf.mxu0
        %v2645 = vadd.f32 %v2556, %v2644
        %v2646 = vpop.f32.mrf.mxu0
        %v2647 = vadd.f32 %v2558, %v2646
        %2648 = vmatmul.bf16.gmra.mxu0 %v992
        %v2649 = vpop.f32.mrf.mxu0
        %v2650 = vadd.f32 %v2561, %v2649
        %v2651 = vpop.f32.mrf.mxu0
        %v2652 = vadd.f32 %v2563, %v2651
        %2653 = vmatmul.bf16.gmra.mxu0 %v995
        %v2654 = vpop.f32.mrf.mxu0
        %v2655 = vadd.f32 %v2566, %v2654
        %v2656 = vpop.f32.mrf.mxu0
        %v2657 = vadd.f32 %v2568, %v2656
        %2658 = vmatmul.bf16.gmra.mxu0 %v998
        %v2659 = vpop.f32.mrf.mxu0
        %v2660 = vadd.f32 %v2571, %v2659
        %v2661 = vpop.f32.mrf.mxu0
        %v2662 = vadd.f32 %v2573, %v2661
        %2663 = vmatmul.bf16.gmra.mxu0 %v1001
        %v2664 = vpop.f32.mrf.mxu0
        %v2665 = vadd.f32 %v2576, %v2664
        %v2666 = vpop.f32.mrf.mxu0
        %v2667 = vadd.f32 %v2578, %v2666
        %2668 = vdwg.mxu0
        %2669 = vmatpush.bf16.msra.mxu0 %v2191
        %2670 = vmatpush.bf16.msra.mxu0 %v2179
        %2671 = vmatpush.bf16.msra.mxu0 %v2167
        %2672 = vmatpush.bf16.msra.mxu0 %v2155
        %2673 = vmatpush.bf16.msra.mxu0 %v2143
        %2674 = vmatpush.bf16.msra.mxu0 %v2131
        %2675 = vmatpush.bf16.msra.mxu0 %v2119
        %2676 = vmatpush.bf16.msra.mxu0 %v2107
        %2677 = vmatmul.bf16.gmra.mxu0 %v957
        %v2678 = vpop.f32.mrf.mxu0
        %v2679 = vadd.f32 %v2590, %v2678
        %v2680 = vpop.f32.mrf.mxu0
        %v2681 = vadd.f32 %v2592, %v2680
        %2682 = vmatmul.bf16.gmra.mxu0 %v960
        %v2683 = vpop.f32.mrf.mxu0
        %v2684 = vadd.f32 %v2595, %v2683
        %v2685 = vpop.f32.mrf.mxu0
        %v2686 = vadd.f32 %v2597, %v2685
        %2687 = vmatmul.bf16.gmra.mxu0 %v963
        %v2688 = vpop.f32.mrf.mxu0
        %v2689 = vadd.f32 %v2600, %v2688
        %v2690 = vpop.f32.mrf.mxu0
        %v2691 = vadd.f32 %v2602, %v2690
        %2692 = vmatmul.bf16.gmra.mxu0 %v966
        %v2693 = vpop.f32.mrf.mxu0
        %v2694 = vadd.f32 %v2605, %v2693
        %v2695 = vpop.f32.mrf.mxu0
        %v2696 = vadd.f32 %v2607, %v2695
        %2697 = vmatmul.bf16.gmra.mxu0 %v969
        %v2698 = vpop.f32.mrf.mxu0
        %v2699 = vadd.f32 %v2610, %v2698
        %v2700 = vpop.f32.mrf.mxu0
        %v2701 = vadd.f32 %v2612, %v2700
        %2702 = vmatmul.bf16.gmra.mxu0 %v972
        %v2703 = vpop.f32.mrf.mxu0
        %v2704 = vadd.f32 %v2615, %v2703
        %v2705 = vpop.f32.mrf.mxu0
        %v2706 = vadd.f32 %v2617, %v2705
        %2707 = vmatmul.bf16.gmra.mxu0 %v975
        %v2708 = vpop.f32.mrf.mxu0
        %v2709 = vadd.f32 %v2620, %v2708
        %v2710 = vpop.f32.mrf.mxu0
        %v2711 = vadd.f32 %v2622, %v2710
        %2712 = vmatmul.bf16.gmra.mxu0 %v978
        %v2713 = vpop.f32.mrf.mxu0
        %v2714 = vadd.f32 %v2625, %v2713
        %v2715 = vpop.f32.mrf.mxu0
        %v2716 = vadd.f32 %v2627, %v2715
        %2717 = vmatmul.bf16.gmra.mxu0 %v981
        %v2718 = vpop.f32.mrf.mxu0
        %v2719 = vadd.f32 %v2630, %v2718
        %v2720 = vpop.f32.mrf.mxu0
        %v2721 = vadd.f32 %v2632, %v2720
        %2722 = vmatmul.bf16.gmra.mxu0 %v984
        %v2723 = vpop.f32.mrf.mxu0
        %v2724 = vadd.f32 %v2635, %v2723
        %v2725 = vpop.f32.mrf.mxu0
        %v2726 = vadd.f32 %v2637, %v2725
        %2727 = vmatmul.bf16.gmra.mxu0 %v987
        %v2728 = vpop.f32.mrf.mxu0
        %v2729 = vadd.f32 %v2640, %v2728
        %v2730 = vpop.f32.mrf.mxu0
        %v2731 = vadd.f32 %v2642, %v2730
        %2732 = vmatmul.bf16.gmra.mxu0 %v990
        %v2733 = vpop.f32.mrf.mxu0
        %v2734 = vadd.f32 %v2645, %v2733
        %v2735 = vpop.f32.mrf.mxu0
        %v2736 = vadd.f32 %v2647, %v2735
        %2737 = vmatmul.bf16.gmra.mxu0 %v993
        %v2738 = vpop.f32.mrf.mxu0
        %v2739 = vadd.f32 %v2650, %v2738
        %v2740 = vpop.f32.mrf.mxu0
        %v2741 = vadd.f32 %v2652, %v2740
        %2742 = vmatmul.bf16.gmra.mxu0 %v996
        %v2743 = vpop.f32.mrf.mxu0
        %v2744 = vadd.f32 %v2655, %v2743
        %v2745 = vpop.f32.mrf.mxu0
        %v2746 = vadd.f32 %v2657, %v2745
        %2747 = vmatmul.bf16.gmra.mxu0 %v999
        %v2748 = vpop.f32.mrf.mxu0
        %v2749 = vadd.f32 %v2660, %v2748
        %v2750 = vpop.f32.mrf.mxu0
        %v2751 = vadd.f32 %v2662, %v2750
        %2752 = vmatmul.bf16.gmra.mxu0 %v1002
        %v2753 = vpop.f32.mrf.mxu0
        %v2754 = vadd.f32 %v2665, %v2753
        %v2755 = vpop.f32.mrf.mxu0
        %v2756 = vadd.f32 %v2667, %v2755
        %2757 = vdwg.mxu0
        %2758 = vmatpush.bf16.msra.mxu0 %v2000
        %2759 = vmatpush.bf16.msra.mxu0 %v1988
        %2760 = vmatpush.bf16.msra.mxu0 %v1976
        %2761 = vmatpush.bf16.msra.mxu0 %v1964
        %2762 = vmatpush.bf16.msra.mxu0 %v1952
        %2763 = vmatpush.bf16.msra.mxu0 %v1940
        %2764 = vmatpush.bf16.msra.mxu0 %v1928
        %2765 = vmatpush.bf16.msra.mxu0 %v1916
        %2766 = vmatmul.bf16.gmra.mxu0 %v955
        %v2767 = vpop.f32.mrf.mxu0
        %v2768 = vadd.f32 %v772, %v2767
        %v2769 = vpop.f32.mrf.mxu0
        %v2770 = vadd.f32 %v772, %v2769
        %2771 = vmatmul.bf16.gmra.mxu0 %v958
        %v2772 = vpop.f32.mrf.mxu0
        %v2773 = vadd.f32 %v772, %v2772
        %v2774 = vpop.f32.mrf.mxu0
        %v2775 = vadd.f32 %v772, %v2774
        %2776 = vmatmul.bf16.gmra.mxu0 %v961
        %v2777 = vpop.f32.mrf.mxu0
        %v2778 = vadd.f32 %v772, %v2777
        %v2779 = vpop.f32.mrf.mxu0
        %v2780 = vadd.f32 %v772, %v2779
        %2781 = vmatmul.bf16.gmra.mxu0 %v964
        %v2782 = vpop.f32.mrf.mxu0
        %v2783 = vadd.f32 %v772, %v2782
        %v2784 = vpop.f32.mrf.mxu0
        %v2785 = vadd.f32 %v772, %v2784
        %2786 = vmatmul.bf16.gmra.mxu0 %v967
        %v2787 = vpop.f32.mrf.mxu0
        %v2788 = vadd.f32 %v772, %v2787
        %v2789 = vpop.f32.mrf.mxu0
        %v2790 = vadd.f32 %v772, %v2789
        %2791 = vmatmul.bf16.gmra.mxu0 %v970
        %v2792 = vpop.f32.mrf.mxu0
        %v2793 = vadd.f32 %v772, %v2792
        %v2794 = vpop.f32.mrf.mxu0
        %v2795 = vadd.f32 %v772, %v2794
        %2796 = vmatmul.bf16.gmra.mxu0 %v973
        %v2797 = vpop.f32.mrf.mxu0
        %v2798 = vadd.f32 %v772, %v2797
        %v2799 = vpop.f32.mrf.mxu0
        %v2800 = vadd.f32 %v772, %v2799
        %2801 = vmatmul.bf16.gmra.mxu0 %v976
        %v2802 = vpop.f32.mrf.mxu0
        %v2803 = vadd.f32 %v772, %v2802
        %v2804 = vpop.f32.mrf.mxu0
        %v2805 = vadd.f32 %v772, %v2804
        %2806 = vmatmul.bf16.gmra.mxu0 %v979
        %v2807 = vpop.f32.mrf.mxu0
        %v2808 = vadd.f32 %v772, %v2807
        %v2809 = vpop.f32.mrf.mxu0
        %v2810 = vadd.f32 %v772, %v2809
        %2811 = vmatmul.bf16.gmra.mxu0 %v982
        %v2812 = vpop.f32.mrf.mxu0
        %v2813 = vadd.f32 %v772, %v2812
        %v2814 = vpop.f32.mrf.mxu0
        %v2815 = vadd.f32 %v772, %v2814
        %2816 = vmatmul.bf16.gmra.mxu0 %v985
        %v2817 = vpop.f32.mrf.mxu0
        %v2818 = vadd.f32 %v772, %v2817
        %v2819 = vpop.f32.mrf.mxu0
        %v2820 = vadd.f32 %v772, %v2819
        %2821 = vmatmul.bf16.gmra.mxu0 %v988
        %v2822 = vpop.f32.mrf.mxu0
        %v2823 = vadd.f32 %v772, %v2822
        %v2824 = vpop.f32.mrf.mxu0
        %v2825 = vadd.f32 %v772, %v2824
        %2826 = vmatmul.bf16.gmra.mxu0 %v991
        %v2827 = vpop.f32.mrf.mxu0
        %v2828 = vadd.f32 %v772, %v2827
        %v2829 = vpop.f32.mrf.mxu0
        %v2830 = vadd.f32 %v772, %v2829
        %2831 = vmatmul.bf16.gmra.mxu0 %v994
        %v2832 = vpop.f32.mrf.mxu0
        %v2833 = vadd.f32 %v772, %v2832
        %v2834 = vpop.f32.mrf.mxu0
        %v2835 = vadd.f32 %v772, %v2834
        %2836 = vmatmul.bf16.gmra.mxu0 %v997
        %v2837 = vpop.f32.mrf.mxu0
        %v2838 = vadd.f32 %v772, %v2837
        %v2839 = vpop.f32.mrf.mxu0
        %v2840 = vadd.f32 %v772, %v2839
        %2841 = vmatmul.bf16.gmra.mxu0 %v1000
        %v2842 = vpop.f32.mrf.mxu0
        %v2843 = vadd.f32 %v772, %v2842
        %v2844 = vpop.f32.mrf.mxu0
        %v2845 = vadd.f32 %v772, %v2844
        %2846 = vdwg.mxu0
        %2847 = vmatpush.bf16.msra.mxu0 %v2096
        %2848 = vmatpush.bf16.msra.mxu0 %v2084
        %2849 = vmatpush.bf16.msra.mxu0 %v2072
        %2850 = vmatpush.bf16.msra.mxu0 %v2060
        %2851 = vmatpush.bf16.msra.mxu0 %v2048
        %2852 = vmatpush.bf16.msra.mxu0 %v2036
        %2853 = vmatpush.bf16.msra.mxu0 %v2024
        %2854 = vmatpush.bf16.msra.mxu0 %v2012
        %2855 = vmatmul.bf16.gmra.mxu0 %v956
        %v2856 = vpop.f32.mrf.mxu0
        %v2857 = vadd.f32 %v2768, %v2856
        %v2858 = vpop.f32.mrf.mxu0
        %v2859 = vadd.f32 %v2770, %v2858
        %2860 = vmatmul.bf16.gmra.mxu0 %v959
        %v2861 = vpop.f32.mrf.mxu0
        %v2862 = vadd.f32 %v2773, %v2861
        %v2863 = vpop.f32.mrf.mxu0
        %v2864 = vadd.f32 %v2775, %v2863
        %2865 = vmatmul.bf16.gmra.mxu0 %v962
        %v2866 = vpop.f32.mrf.mxu0
        %v2867 = vadd.f32 %v2778, %v2866
        %v2868 = vpop.f32.mrf.mxu0
        %v2869 = vadd.f32 %v2780, %v2868
        %2870 = vmatmul.bf16.gmra.mxu0 %v965
        %v2871 = vpop.f32.mrf.mxu0
        %v2872 = vadd.f32 %v2783, %v2871
        %v2873 = vpop.f32.mrf.mxu0
        %v2874 = vadd.f32 %v2785, %v2873
        %2875 = vmatmul.bf16.gmra.mxu0 %v968
        %v2876 = vpop.f32.mrf.mxu0
        %v2877 = vadd.f32 %v2788, %v2876
        %v2878 = vpop.f32.mrf.mxu0
        %v2879 = vadd.f32 %v2790, %v2878
        %2880 = vmatmul.bf16.gmra.mxu0 %v971
        %v2881 = vpop.f32.mrf.mxu0
        %v2882 = vadd.f32 %v2793, %v2881
        %v2883 = vpop.f32.mrf.mxu0
        %v2884 = vadd.f32 %v2795, %v2883
        %2885 = vmatmul.bf16.gmra.mxu0 %v974
        %v2886 = vpop.f32.mrf.mxu0
        %v2887 = vadd.f32 %v2798, %v2886
        %v2888 = vpop.f32.mrf.mxu0
        %v2889 = vadd.f32 %v2800, %v2888
        %2890 = vmatmul.bf16.gmra.mxu0 %v977
        %v2891 = vpop.f32.mrf.mxu0
        %v2892 = vadd.f32 %v2803, %v2891
        %v2893 = vpop.f32.mrf.mxu0
        %v2894 = vadd.f32 %v2805, %v2893
        %2895 = vmatmul.bf16.gmra.mxu0 %v980
        %v2896 = vpop.f32.mrf.mxu0
        %v2897 = vadd.f32 %v2808, %v2896
        %v2898 = vpop.f32.mrf.mxu0
        %v2899 = vadd.f32 %v2810, %v2898
        %2900 = vmatmul.bf16.gmra.mxu0 %v983
        %v2901 = vpop.f32.mrf.mxu0
        %v2902 = vadd.f32 %v2813, %v2901
        %v2903 = vpop.f32.mrf.mxu0
        %v2904 = vadd.f32 %v2815, %v2903
        %2905 = vmatmul.bf16.gmra.mxu0 %v986
        %v2906 = vpop.f32.mrf.mxu0
        %v2907 = vadd.f32 %v2818, %v2906
        %v2908 = vpop.f32.mrf.mxu0
        %v2909 = vadd.f32 %v2820, %v2908
        %2910 = vmatmul.bf16.gmra.mxu0 %v989
        %v2911 = vpop.f32.mrf.mxu0
        %v2912 = vadd.f32 %v2823, %v2911
        %v2913 = vpop.f32.mrf.mxu0
        %v2914 = vadd.f32 %v2825, %v2913
        %2915 = vmatmul.bf16.gmra.mxu0 %v992
        %v2916 = vpop.f32.mrf.mxu0
        %v2917 = vadd.f32 %v2828, %v2916
        %v2918 = vpop.f32.mrf.mxu0
        %v2919 = vadd.f32 %v2830, %v2918
        %2920 = vmatmul.bf16.gmra.mxu0 %v995
        %v2921 = vpop.f32.mrf.mxu0
        %v2922 = vadd.f32 %v2833, %v2921
        %v2923 = vpop.f32.mrf.mxu0
        %v2924 = vadd.f32 %v2835, %v2923
        %2925 = vmatmul.bf16.gmra.mxu0 %v998
        %v2926 = vpop.f32.mrf.mxu0
        %v2927 = vadd.f32 %v2838, %v2926
        %v2928 = vpop.f32.mrf.mxu0
        %v2929 = vadd.f32 %v2840, %v2928
        %2930 = vmatmul.bf16.gmra.mxu0 %v1001
        %v2931 = vpop.f32.mrf.mxu0
        %v2932 = vadd.f32 %v2843, %v2931
        %v2933 = vpop.f32.mrf.mxu0
        %v2934 = vadd.f32 %v2845, %v2933
        %2935 = vdwg.mxu0
        %2936 = vmatpush.bf16.msra.mxu0 %v2192
        %2937 = vmatpush.bf16.msra.mxu0 %v2180
        %2938 = vmatpush.bf16.msra.mxu0 %v2168
        %2939 = vmatpush.bf16.msra.mxu0 %v2156
        %2940 = vmatpush.bf16.msra.mxu0 %v2144
        %2941 = vmatpush.bf16.msra.mxu0 %v2132
        %2942 = vmatpush.bf16.msra.mxu0 %v2120
        %2943 = vmatpush.bf16.msra.mxu0 %v2108
        %2944 = vmatmul.bf16.gmra.mxu0 %v957
        %v2945 = vpop.f32.mrf.mxu0
        %v2946 = vadd.f32 %v2857, %v2945
        %v2947 = vpop.f32.mrf.mxu0
        %v2948 = vadd.f32 %v2859, %v2947
        %2949 = vmatmul.bf16.gmra.mxu0 %v960
        %v2950 = vpop.f32.mrf.mxu0
        %v2951 = vadd.f32 %v2862, %v2950
        %v2952 = vpop.f32.mrf.mxu0
        %v2953 = vadd.f32 %v2864, %v2952
        %2954 = vmatmul.bf16.gmra.mxu0 %v963
        %v2955 = vpop.f32.mrf.mxu0
        %v2956 = vadd.f32 %v2867, %v2955
        %v2957 = vpop.f32.mrf.mxu0
        %v2958 = vadd.f32 %v2869, %v2957
        %2959 = vmatmul.bf16.gmra.mxu0 %v966
        %v2960 = vpop.f32.mrf.mxu0
        %v2961 = vadd.f32 %v2872, %v2960
        %v2962 = vpop.f32.mrf.mxu0
        %v2963 = vadd.f32 %v2874, %v2962
        %2964 = vmatmul.bf16.gmra.mxu0 %v969
        %v2965 = vpop.f32.mrf.mxu0
        %v2966 = vadd.f32 %v2877, %v2965
        %v2967 = vpop.f32.mrf.mxu0
        %v2968 = vadd.f32 %v2879, %v2967
        %2969 = vmatmul.bf16.gmra.mxu0 %v972
        %v2970 = vpop.f32.mrf.mxu0
        %v2971 = vadd.f32 %v2882, %v2970
        %v2972 = vpop.f32.mrf.mxu0
        %v2973 = vadd.f32 %v2884, %v2972
        %2974 = vmatmul.bf16.gmra.mxu0 %v975
        %v2975 = vpop.f32.mrf.mxu0
        %v2976 = vadd.f32 %v2887, %v2975
        %v2977 = vpop.f32.mrf.mxu0
        %v2978 = vadd.f32 %v2889, %v2977
        %2979 = vmatmul.bf16.gmra.mxu0 %v978
        %v2980 = vpop.f32.mrf.mxu0
        %v2981 = vadd.f32 %v2892, %v2980
        %v2982 = vpop.f32.mrf.mxu0
        %v2983 = vadd.f32 %v2894, %v2982
        %2984 = vmatmul.bf16.gmra.mxu0 %v981
        %v2985 = vpop.f32.mrf.mxu0
        %v2986 = vadd.f32 %v2897, %v2985
        %v2987 = vpop.f32.mrf.mxu0
        %v2988 = vadd.f32 %v2899, %v2987
        %2989 = vmatmul.bf16.gmra.mxu0 %v984
        %v2990 = vpop.f32.mrf.mxu0
        %v2991 = vadd.f32 %v2902, %v2990
        %v2992 = vpop.f32.mrf.mxu0
        %v2993 = vadd.f32 %v2904, %v2992
        %2994 = vmatmul.bf16.gmra.mxu0 %v987
        %v2995 = vpop.f32.mrf.mxu0
        %v2996 = vadd.f32 %v2907, %v2995
        %v2997 = vpop.f32.mrf.mxu0
        %v2998 = vadd.f32 %v2909, %v2997
        %2999 = vmatmul.bf16.gmra.mxu0 %v990
        %v3000 = vpop.f32.mrf.mxu0
        %v3001 = vadd.f32 %v2912, %v3000
        %v3002 = vpop.f32.mrf.mxu0
        %v3003 = vadd.f32 %v2914, %v3002
        %3004 = vmatmul.bf16.gmra.mxu0 %v993
        %v3005 = vpop.f32.mrf.mxu0
        %v3006 = vadd.f32 %v2917, %v3005
        %v3007 = vpop.f32.mrf.mxu0
        %v3008 = vadd.f32 %v2919, %v3007
        %3009 = vmatmul.bf16.gmra.mxu0 %v996
        %v3010 = vpop.f32.mrf.mxu0
        %v3011 = vadd.f32 %v2922, %v3010
        %v3012 = vpop.f32.mrf.mxu0
        %v3013 = vadd.f32 %v2924, %v3012
        %3014 = vmatmul.bf16.gmra.mxu0 %v999
        %v3015 = vpop.f32.mrf.mxu0
        %v3016 = vadd.f32 %v2927, %v3015
        %v3017 = vpop.f32.mrf.mxu0
        %v3018 = vadd.f32 %v2929, %v3017
        %3019 = vmatmul.bf16.gmra.mxu0 %v1002
        %v3020 = vpop.f32.mrf.mxu0
        %v3021 = vadd.f32 %v2932, %v3020
        %v3022 = vpop.f32.mrf.mxu0
        %v3023 = vadd.f32 %v2934, %v3022
        %3024 = vdwg.mxu0
        %3025 = vmatpush.bf16.msra.mxu0 %v2001
        %3026 = vmatpush.bf16.msra.mxu0 %v1989
        %3027 = vmatpush.bf16.msra.mxu0 %v1977
        %3028 = vmatpush.bf16.msra.mxu0 %v1965
        %3029 = vmatpush.bf16.msra.mxu0 %v1953
        %3030 = vmatpush.bf16.msra.mxu0 %v1941
        %3031 = vmatpush.bf16.msra.mxu0 %v1929
        %3032 = vmatpush.bf16.msra.mxu0 %v1917
        %3033 = vmatmul.bf16.gmra.mxu0 %v955
        %v3034 = vpop.f32.mrf.mxu0
        %v3035 = vadd.f32 %v773, %v3034
        %v3036 = vpop.f32.mrf.mxu0
        %v3037 = vadd.f32 %v773, %v3036
        %3038 = vmatmul.bf16.gmra.mxu0 %v958
        %v3039 = vpop.f32.mrf.mxu0
        %v3040 = vadd.f32 %v773, %v3039
        %v3041 = vpop.f32.mrf.mxu0
        %v3042 = vadd.f32 %v773, %v3041
        %3043 = vmatmul.bf16.gmra.mxu0 %v961
        %v3044 = vpop.f32.mrf.mxu0
        %v3045 = vadd.f32 %v773, %v3044
        %v3046 = vpop.f32.mrf.mxu0
        %v3047 = vadd.f32 %v773, %v3046
        %3048 = vmatmul.bf16.gmra.mxu0 %v964
        %v3049 = vpop.f32.mrf.mxu0
        %v3050 = vadd.f32 %v773, %v3049
        %v3051 = vpop.f32.mrf.mxu0
        %v3052 = vadd.f32 %v773, %v3051
        %3053 = vmatmul.bf16.gmra.mxu0 %v967
        %v3054 = vpop.f32.mrf.mxu0
        %v3055 = vadd.f32 %v773, %v3054
        %v3056 = vpop.f32.mrf.mxu0
        %v3057 = vadd.f32 %v773, %v3056
        %3058 = vmatmul.bf16.gmra.mxu0 %v970
        %v3059 = vpop.f32.mrf.mxu0
        %v3060 = vadd.f32 %v773, %v3059
        %v3061 = vpop.f32.mrf.mxu0
        %v3062 = vadd.f32 %v773, %v3061
        %3063 = vmatmul.bf16.gmra.mxu0 %v973
        %v3064 = vpop.f32.mrf.mxu0
        %v3065 = vadd.f32 %v773, %v3064
        %v3066 = vpop.f32.mrf.mxu0
        %v3067 = vadd.f32 %v773, %v3066
        %3068 = vmatmul.bf16.gmra.mxu0 %v976
        %v3069 = vpop.f32.mrf.mxu0
        %v3070 = vadd.f32 %v773, %v3069
        %v3071 = vpop.f32.mrf.mxu0
        %v3072 = vadd.f32 %v773, %v3071
        %3073 = vmatmul.bf16.gmra.mxu0 %v979
        %v3074 = vpop.f32.mrf.mxu0
        %v3075 = vadd.f32 %v773, %v3074
        %v3076 = vpop.f32.mrf.mxu0
        %v3077 = vadd.f32 %v773, %v3076
        %3078 = vmatmul.bf16.gmra.mxu0 %v982
        %v3079 = vpop.f32.mrf.mxu0
        %v3080 = vadd.f32 %v773, %v3079
        %v3081 = vpop.f32.mrf.mxu0
        %v3082 = vadd.f32 %v773, %v3081
        %3083 = vmatmul.bf16.gmra.mxu0 %v985
        %v3084 = vpop.f32.mrf.mxu0
        %v3085 = vadd.f32 %v773, %v3084
        %v3086 = vpop.f32.mrf.mxu0
        %v3087 = vadd.f32 %v773, %v3086
        %3088 = vmatmul.bf16.gmra.mxu0 %v988
        %v3089 = vpop.f32.mrf.mxu0
        %v3090 = vadd.f32 %v773, %v3089
        %v3091 = vpop.f32.mrf.mxu0
        %v3092 = vadd.f32 %v773, %v3091
        %3093 = vmatmul.bf16.gmra.mxu0 %v991
        %v3094 = vpop.f32.mrf.mxu0
        %v3095 = vadd.f32 %v773, %v3094
        %v3096 = vpop.f32.mrf.mxu0
        %v3097 = vadd.f32 %v773, %v3096
        %3098 = vmatmul.bf16.gmra.mxu0 %v994
        %v3099 = vpop.f32.mrf.mxu0
        %v3100 = vadd.f32 %v773, %v3099
        %v3101 = vpop.f32.mrf.mxu0
        %v3102 = vadd.f32 %v773, %v3101
        %3103 = vmatmul.bf16.gmra.mxu0 %v997
        %v3104 = vpop.f32.mrf.mxu0
        %v3105 = vadd.f32 %v773, %v3104
        %v3106 = vpop.f32.mrf.mxu0
        %v3107 = vadd.f32 %v773, %v3106
        %3108 = vmatmul.bf16.gmra.mxu0 %v1000
        %v3109 = vpop.f32.mrf.mxu0
        %v3110 = vadd.f32 %v773, %v3109
        %v3111 = vpop.f32.mrf.mxu0
        %v3112 = vadd.f32 %v773, %v3111
        %3113 = vdwg.mxu0
        %3114 = vmatpush.bf16.msra.mxu0 %v2097
        %3115 = vmatpush.bf16.msra.mxu0 %v2085
        %3116 = vmatpush.bf16.msra.mxu0 %v2073
        %3117 = vmatpush.bf16.msra.mxu0 %v2061
        %3118 = vmatpush.bf16.msra.mxu0 %v2049
        %3119 = vmatpush.bf16.msra.mxu0 %v2037
        %3120 = vmatpush.bf16.msra.mxu0 %v2025
        %3121 = vmatpush.bf16.msra.mxu0 %v2013
        %3122 = vmatmul.bf16.gmra.mxu0 %v956
        %v3123 = vpop.f32.mrf.mxu0
        %v3124 = vadd.f32 %v3035, %v3123
        %v3125 = vpop.f32.mrf.mxu0
        %v3126 = vadd.f32 %v3037, %v3125
        %3127 = vmatmul.bf16.gmra.mxu0 %v959
        %v3128 = vpop.f32.mrf.mxu0
        %v3129 = vadd.f32 %v3040, %v3128
        %v3130 = vpop.f32.mrf.mxu0
        %v3131 = vadd.f32 %v3042, %v3130
        %3132 = vmatmul.bf16.gmra.mxu0 %v962
        %v3133 = vpop.f32.mrf.mxu0
        %v3134 = vadd.f32 %v3045, %v3133
        %v3135 = vpop.f32.mrf.mxu0
        %v3136 = vadd.f32 %v3047, %v3135
        %3137 = vmatmul.bf16.gmra.mxu0 %v965
        %v3138 = vpop.f32.mrf.mxu0
        %v3139 = vadd.f32 %v3050, %v3138
        %v3140 = vpop.f32.mrf.mxu0
        %v3141 = vadd.f32 %v3052, %v3140
        %3142 = vmatmul.bf16.gmra.mxu0 %v968
        %v3143 = vpop.f32.mrf.mxu0
        %v3144 = vadd.f32 %v3055, %v3143
        %v3145 = vpop.f32.mrf.mxu0
        %v3146 = vadd.f32 %v3057, %v3145
        %3147 = vmatmul.bf16.gmra.mxu0 %v971
        %v3148 = vpop.f32.mrf.mxu0
        %v3149 = vadd.f32 %v3060, %v3148
        %v3150 = vpop.f32.mrf.mxu0
        %v3151 = vadd.f32 %v3062, %v3150
        %3152 = vmatmul.bf16.gmra.mxu0 %v974
        %v3153 = vpop.f32.mrf.mxu0
        %v3154 = vadd.f32 %v3065, %v3153
        %v3155 = vpop.f32.mrf.mxu0
        %v3156 = vadd.f32 %v3067, %v3155
        %3157 = vmatmul.bf16.gmra.mxu0 %v977
        %v3158 = vpop.f32.mrf.mxu0
        %v3159 = vadd.f32 %v3070, %v3158
        %v3160 = vpop.f32.mrf.mxu0
        %v3161 = vadd.f32 %v3072, %v3160
        %3162 = vmatmul.bf16.gmra.mxu0 %v980
        %v3163 = vpop.f32.mrf.mxu0
        %v3164 = vadd.f32 %v3075, %v3163
        %v3165 = vpop.f32.mrf.mxu0
        %v3166 = vadd.f32 %v3077, %v3165
        %3167 = vmatmul.bf16.gmra.mxu0 %v983
        %v3168 = vpop.f32.mrf.mxu0
        %v3169 = vadd.f32 %v3080, %v3168
        %v3170 = vpop.f32.mrf.mxu0
        %v3171 = vadd.f32 %v3082, %v3170
        %3172 = vmatmul.bf16.gmra.mxu0 %v986
        %v3173 = vpop.f32.mrf.mxu0
        %v3174 = vadd.f32 %v3085, %v3173
        %v3175 = vpop.f32.mrf.mxu0
        %v3176 = vadd.f32 %v3087, %v3175
        %3177 = vmatmul.bf16.gmra.mxu0 %v989
        %v3178 = vpop.f32.mrf.mxu0
        %v3179 = vadd.f32 %v3090, %v3178
        %v3180 = vpop.f32.mrf.mxu0
        %v3181 = vadd.f32 %v3092, %v3180
        %3182 = vmatmul.bf16.gmra.mxu0 %v992
        %v3183 = vpop.f32.mrf.mxu0
        %v3184 = vadd.f32 %v3095, %v3183
        %v3185 = vpop.f32.mrf.mxu0
        %v3186 = vadd.f32 %v3097, %v3185
        %3187 = vmatmul.bf16.gmra.mxu0 %v995
        %v3188 = vpop.f32.mrf.mxu0
        %v3189 = vadd.f32 %v3100, %v3188
        %v3190 = vpop.f32.mrf.mxu0
        %v3191 = vadd.f32 %v3102, %v3190
        %3192 = vmatmul.bf16.gmra.mxu0 %v998
        %v3193 = vpop.f32.mrf.mxu0
        %v3194 = vadd.f32 %v3105, %v3193
        %v3195 = vpop.f32.mrf.mxu0
        %v3196 = vadd.f32 %v3107, %v3195
        %3197 = vmatmul.bf16.gmra.mxu0 %v1001
        %v3198 = vpop.f32.mrf.mxu0
        %v3199 = vadd.f32 %v3110, %v3198
        %v3200 = vpop.f32.mrf.mxu0
        %v3201 = vadd.f32 %v3112, %v3200
        %3202 = vdwg.mxu0
        %3203 = vmatpush.bf16.msra.mxu0 %v2193
        %3204 = vmatpush.bf16.msra.mxu0 %v2181
        %3205 = vmatpush.bf16.msra.mxu0 %v2169
        %3206 = vmatpush.bf16.msra.mxu0 %v2157
        %3207 = vmatpush.bf16.msra.mxu0 %v2145
        %3208 = vmatpush.bf16.msra.mxu0 %v2133
        %3209 = vmatpush.bf16.msra.mxu0 %v2121
        %3210 = vmatpush.bf16.msra.mxu0 %v2109
        %3211 = vmatmul.bf16.gmra.mxu0 %v957
        %v3212 = vpop.f32.mrf.mxu0
        %v3213 = vadd.f32 %v3124, %v3212
        %v3214 = vpop.f32.mrf.mxu0
        %v3215 = vadd.f32 %v3126, %v3214
        %3216 = vmatmul.bf16.gmra.mxu0 %v960
        %v3217 = vpop.f32.mrf.mxu0
        %v3218 = vadd.f32 %v3129, %v3217
        %v3219 = vpop.f32.mrf.mxu0
        %v3220 = vadd.f32 %v3131, %v3219
        %3221 = vmatmul.bf16.gmra.mxu0 %v963
        %v3222 = vpop.f32.mrf.mxu0
        %v3223 = vadd.f32 %v3134, %v3222
        %v3224 = vpop.f32.mrf.mxu0
        %v3225 = vadd.f32 %v3136, %v3224
        %3226 = vmatmul.bf16.gmra.mxu0 %v966
        %v3227 = vpop.f32.mrf.mxu0
        %v3228 = vadd.f32 %v3139, %v3227
        %v3229 = vpop.f32.mrf.mxu0
        %v3230 = vadd.f32 %v3141, %v3229
        %3231 = vmatmul.bf16.gmra.mxu0 %v969
        %v3232 = vpop.f32.mrf.mxu0
        %v3233 = vadd.f32 %v3144, %v3232
        %v3234 = vpop.f32.mrf.mxu0
        %v3235 = vadd.f32 %v3146, %v3234
        %3236 = vmatmul.bf16.gmra.mxu0 %v972
        %v3237 = vpop.f32.mrf.mxu0
        %v3238 = vadd.f32 %v3149, %v3237
        %v3239 = vpop.f32.mrf.mxu0
        %v3240 = vadd.f32 %v3151, %v3239
        %3241 = vmatmul.bf16.gmra.mxu0 %v975
        %v3242 = vpop.f32.mrf.mxu0
        %v3243 = vadd.f32 %v3154, %v3242
        %v3244 = vpop.f32.mrf.mxu0
        %v3245 = vadd.f32 %v3156, %v3244
        %3246 = vmatmul.bf16.gmra.mxu0 %v978
        %v3247 = vpop.f32.mrf.mxu0
        %v3248 = vadd.f32 %v3159, %v3247
        %v3249 = vpop.f32.mrf.mxu0
        %v3250 = vadd.f32 %v3161, %v3249
        %3251 = vmatmul.bf16.gmra.mxu0 %v981
        %v3252 = vpop.f32.mrf.mxu0
        %v3253 = vadd.f32 %v3164, %v3252
        %v3254 = vpop.f32.mrf.mxu0
        %v3255 = vadd.f32 %v3166, %v3254
        %3256 = vmatmul.bf16.gmra.mxu0 %v984
        %v3257 = vpop.f32.mrf.mxu0
        %v3258 = vadd.f32 %v3169, %v3257
        %v3259 = vpop.f32.mrf.mxu0
        %v3260 = vadd.f32 %v3171, %v3259
        %3261 = vmatmul.bf16.gmra.mxu0 %v987
        %v3262 = vpop.f32.mrf.mxu0
        %v3263 = vadd.f32 %v3174, %v3262
        %v3264 = vpop.f32.mrf.mxu0
        %v3265 = vadd.f32 %v3176, %v3264
        %3266 = vmatmul.bf16.gmra.mxu0 %v990
        %v3267 = vpop.f32.mrf.mxu0
        %v3268 = vadd.f32 %v3179, %v3267
        %v3269 = vpop.f32.mrf.mxu0
        %v3270 = vadd.f32 %v3181, %v3269
        %3271 = vmatmul.bf16.gmra.mxu0 %v993
        %v3272 = vpop.f32.mrf.mxu0
        %v3273 = vadd.f32 %v3184, %v3272
        %v3274 = vpop.f32.mrf.mxu0
        %v3275 = vadd.f32 %v3186, %v3274
        %3276 = vmatmul.bf16.gmra.mxu0 %v996
        %v3277 = vpop.f32.mrf.mxu0
        %v3278 = vadd.f32 %v3189, %v3277
        %v3279 = vpop.f32.mrf.mxu0
        %v3280 = vadd.f32 %v3191, %v3279
        %3281 = vmatmul.bf16.gmra.mxu0 %v999
        %v3282 = vpop.f32.mrf.mxu0
        %v3283 = vadd.f32 %v3194, %v3282
        %v3284 = vpop.f32.mrf.mxu0
        %v3285 = vadd.f32 %v3196, %v3284
        %3286 = vmatmul.bf16.gmra.mxu0 %v1002
        %v3287 = vpop.f32.mrf.mxu0
        %v3288 = vadd.f32 %v3199, %v3287
        %v3289 = vpop.f32.mrf.mxu0
        %v3290 = vadd.f32 %v3201, %v3289
        %3291 = vdwg.mxu0
        %3292 = vmatpush.bf16.msra.mxu0 %v2002
        %3293 = vmatpush.bf16.msra.mxu0 %v1990
        %3294 = vmatpush.bf16.msra.mxu0 %v1978
        %3295 = vmatpush.bf16.msra.mxu0 %v1966
        %3296 = vmatpush.bf16.msra.mxu0 %v1954
        %3297 = vmatpush.bf16.msra.mxu0 %v1942
        %3298 = vmatpush.bf16.msra.mxu0 %v1930
        %3299 = vmatpush.bf16.msra.mxu0 %v1918
        %3300 = vmatmul.bf16.gmra.mxu0 %v955
        %v3301 = vpop.f32.mrf.mxu0
        %v3302 = vadd.f32 %v774, %v3301
        %v3303 = vpop.f32.mrf.mxu0
        %v3304 = vadd.f32 %v774, %v3303
        %3305 = vmatmul.bf16.gmra.mxu0 %v958
        %v3306 = vpop.f32.mrf.mxu0
        %v3307 = vadd.f32 %v774, %v3306
        %v3308 = vpop.f32.mrf.mxu0
        %v3309 = vadd.f32 %v774, %v3308
        %3310 = vmatmul.bf16.gmra.mxu0 %v961
        %v3311 = vpop.f32.mrf.mxu0
        %v3312 = vadd.f32 %v774, %v3311
        %v3313 = vpop.f32.mrf.mxu0
        %v3314 = vadd.f32 %v774, %v3313
        %3315 = vmatmul.bf16.gmra.mxu0 %v964
        %v3316 = vpop.f32.mrf.mxu0
        %v3317 = vadd.f32 %v774, %v3316
        %v3318 = vpop.f32.mrf.mxu0
        %v3319 = vadd.f32 %v774, %v3318
        %3320 = vmatmul.bf16.gmra.mxu0 %v967
        %v3321 = vpop.f32.mrf.mxu0
        %v3322 = vadd.f32 %v774, %v3321
        %v3323 = vpop.f32.mrf.mxu0
        %v3324 = vadd.f32 %v774, %v3323
        %3325 = vmatmul.bf16.gmra.mxu0 %v970
        %v3326 = vpop.f32.mrf.mxu0
        %v3327 = vadd.f32 %v774, %v3326
        %v3328 = vpop.f32.mrf.mxu0
        %v3329 = vadd.f32 %v774, %v3328
        %3330 = vmatmul.bf16.gmra.mxu0 %v973
        %v3331 = vpop.f32.mrf.mxu0
        %v3332 = vadd.f32 %v774, %v3331
        %v3333 = vpop.f32.mrf.mxu0
        %v3334 = vadd.f32 %v774, %v3333
        %3335 = vmatmul.bf16.gmra.mxu0 %v976
        %v3336 = vpop.f32.mrf.mxu0
        %v3337 = vadd.f32 %v774, %v3336
        %v3338 = vpop.f32.mrf.mxu0
        %v3339 = vadd.f32 %v774, %v3338
        %3340 = vmatmul.bf16.gmra.mxu0 %v979
        %v3341 = vpop.f32.mrf.mxu0
        %v3342 = vadd.f32 %v774, %v3341
        %v3343 = vpop.f32.mrf.mxu0
        %v3344 = vadd.f32 %v774, %v3343
        %3345 = vmatmul.bf16.gmra.mxu0 %v982
        %v3346 = vpop.f32.mrf.mxu0
        %v3347 = vadd.f32 %v774, %v3346
        %v3348 = vpop.f32.mrf.mxu0
        %v3349 = vadd.f32 %v774, %v3348
        %3350 = vmatmul.bf16.gmra.mxu0 %v985
        %v3351 = vpop.f32.mrf.mxu0
        %v3352 = vadd.f32 %v774, %v3351
        %v3353 = vpop.f32.mrf.mxu0
        %v3354 = vadd.f32 %v774, %v3353
        %3355 = vmatmul.bf16.gmra.mxu0 %v988
        %v3356 = vpop.f32.mrf.mxu0
        %v3357 = vadd.f32 %v774, %v3356
        %v3358 = vpop.f32.mrf.mxu0
        %v3359 = vadd.f32 %v774, %v3358
        %3360 = vmatmul.bf16.gmra.mxu0 %v991
        %v3361 = vpop.f32.mrf.mxu0
        %v3362 = vadd.f32 %v774, %v3361
        %v3363 = vpop.f32.mrf.mxu0
        %v3364 = vadd.f32 %v774, %v3363
        %3365 = vmatmul.bf16.gmra.mxu0 %v994
        %v3366 = vpop.f32.mrf.mxu0
        %v3367 = vadd.f32 %v774, %v3366
        %v3368 = vpop.f32.mrf.mxu0
        %v3369 = vadd.f32 %v774, %v3368
        %3370 = vmatmul.bf16.gmra.mxu0 %v997
        %v3371 = vpop.f32.mrf.mxu0
        %v3372 = vadd.f32 %v774, %v3371
        %v3373 = vpop.f32.mrf.mxu0
        %v3374 = vadd.f32 %v774, %v3373
        %3375 = vmatmul.bf16.gmra.mxu0 %v1000
        %v3376 = vpop.f32.mrf.mxu0
        %v3377 = vadd.f32 %v774, %v3376
        %v3378 = vpop.f32.mrf.mxu0
        %v3379 = vadd.f32 %v774, %v3378
        %3380 = vdwg.mxu0
        %3381 = vmatpush.bf16.msra.mxu0 %v2098
        %3382 = vmatpush.bf16.msra.mxu0 %v2086
        %3383 = vmatpush.bf16.msra.mxu0 %v2074
        %3384 = vmatpush.bf16.msra.mxu0 %v2062
        %3385 = vmatpush.bf16.msra.mxu0 %v2050
        %3386 = vmatpush.bf16.msra.mxu0 %v2038
        %3387 = vmatpush.bf16.msra.mxu0 %v2026
        %3388 = vmatpush.bf16.msra.mxu0 %v2014
        %3389 = vmatmul.bf16.gmra.mxu0 %v956
        %v3390 = vpop.f32.mrf.mxu0
        %v3391 = vadd.f32 %v3302, %v3390
        %v3392 = vpop.f32.mrf.mxu0
        %v3393 = vadd.f32 %v3304, %v3392
        %3394 = vmatmul.bf16.gmra.mxu0 %v959
        %v3395 = vpop.f32.mrf.mxu0
        %v3396 = vadd.f32 %v3307, %v3395
        %v3397 = vpop.f32.mrf.mxu0
        %v3398 = vadd.f32 %v3309, %v3397
        %3399 = vmatmul.bf16.gmra.mxu0 %v962
        %v3400 = vpop.f32.mrf.mxu0
        %v3401 = vadd.f32 %v3312, %v3400
        %v3402 = vpop.f32.mrf.mxu0
        %v3403 = vadd.f32 %v3314, %v3402
        %3404 = vmatmul.bf16.gmra.mxu0 %v965
        %v3405 = vpop.f32.mrf.mxu0
        %v3406 = vadd.f32 %v3317, %v3405
        %v3407 = vpop.f32.mrf.mxu0
        %v3408 = vadd.f32 %v3319, %v3407
        %3409 = vmatmul.bf16.gmra.mxu0 %v968
        %v3410 = vpop.f32.mrf.mxu0
        %v3411 = vadd.f32 %v3322, %v3410
        %v3412 = vpop.f32.mrf.mxu0
        %v3413 = vadd.f32 %v3324, %v3412
        %3414 = vmatmul.bf16.gmra.mxu0 %v971
        %v3415 = vpop.f32.mrf.mxu0
        %v3416 = vadd.f32 %v3327, %v3415
        %v3417 = vpop.f32.mrf.mxu0
        %v3418 = vadd.f32 %v3329, %v3417
        %3419 = vmatmul.bf16.gmra.mxu0 %v974
        %v3420 = vpop.f32.mrf.mxu0
        %v3421 = vadd.f32 %v3332, %v3420
        %v3422 = vpop.f32.mrf.mxu0
        %v3423 = vadd.f32 %v3334, %v3422
        %3424 = vmatmul.bf16.gmra.mxu0 %v977
        %v3425 = vpop.f32.mrf.mxu0
        %v3426 = vadd.f32 %v3337, %v3425
        %v3427 = vpop.f32.mrf.mxu0
        %v3428 = vadd.f32 %v3339, %v3427
        %3429 = vmatmul.bf16.gmra.mxu0 %v980
        %v3430 = vpop.f32.mrf.mxu0
        %v3431 = vadd.f32 %v3342, %v3430
        %v3432 = vpop.f32.mrf.mxu0
        %v3433 = vadd.f32 %v3344, %v3432
        %3434 = vmatmul.bf16.gmra.mxu0 %v983
        %v3435 = vpop.f32.mrf.mxu0
        %v3436 = vadd.f32 %v3347, %v3435
        %v3437 = vpop.f32.mrf.mxu0
        %v3438 = vadd.f32 %v3349, %v3437
        %3439 = vmatmul.bf16.gmra.mxu0 %v986
        %v3440 = vpop.f32.mrf.mxu0
        %v3441 = vadd.f32 %v3352, %v3440
        %v3442 = vpop.f32.mrf.mxu0
        %v3443 = vadd.f32 %v3354, %v3442
        %3444 = vmatmul.bf16.gmra.mxu0 %v989
        %v3445 = vpop.f32.mrf.mxu0
        %v3446 = vadd.f32 %v3357, %v3445
        %v3447 = vpop.f32.mrf.mxu0
        %v3448 = vadd.f32 %v3359, %v3447
        %3449 = vmatmul.bf16.gmra.mxu0 %v992
        %v3450 = vpop.f32.mrf.mxu0
        %v3451 = vadd.f32 %v3362, %v3450
        %v3452 = vpop.f32.mrf.mxu0
        %v3453 = vadd.f32 %v3364, %v3452
        %3454 = vmatmul.bf16.gmra.mxu0 %v995
        %v3455 = vpop.f32.mrf.mxu0
        %v3456 = vadd.f32 %v3367, %v3455
        %v3457 = vpop.f32.mrf.mxu0
        %v3458 = vadd.f32 %v3369, %v3457
        %3459 = vmatmul.bf16.gmra.mxu0 %v998
        %v3460 = vpop.f32.mrf.mxu0
        %v3461 = vadd.f32 %v3372, %v3460
        %v3462 = vpop.f32.mrf.mxu0
        %v3463 = vadd.f32 %v3374, %v3462
        %3464 = vmatmul.bf16.gmra.mxu0 %v1001
        %v3465 = vpop.f32.mrf.mxu0
        %v3466 = vadd.f32 %v3377, %v3465
        %v3467 = vpop.f32.mrf.mxu0
        %v3468 = vadd.f32 %v3379, %v3467
        %3469 = vdwg.mxu0
        %3470 = vmatpush.bf16.msra.mxu0 %v2194
        %3471 = vmatpush.bf16.msra.mxu0 %v2182
        %3472 = vmatpush.bf16.msra.mxu0 %v2170
        %3473 = vmatpush.bf16.msra.mxu0 %v2158
        %3474 = vmatpush.bf16.msra.mxu0 %v2146
        %3475 = vmatpush.bf16.msra.mxu0 %v2134
        %3476 = vmatpush.bf16.msra.mxu0 %v2122
        %3477 = vmatpush.bf16.msra.mxu0 %v2110
        %3478 = vmatmul.bf16.gmra.mxu0 %v957
        %v3479 = vpop.f32.mrf.mxu0
        %v3480 = vadd.f32 %v3391, %v3479
        %v3481 = vpop.f32.mrf.mxu0
        %v3482 = vadd.f32 %v3393, %v3481
        %3483 = vmatmul.bf16.gmra.mxu0 %v960
        %v3484 = vpop.f32.mrf.mxu0
        %v3485 = vadd.f32 %v3396, %v3484
        %v3486 = vpop.f32.mrf.mxu0
        %v3487 = vadd.f32 %v3398, %v3486
        %3488 = vmatmul.bf16.gmra.mxu0 %v963
        %v3489 = vpop.f32.mrf.mxu0
        %v3490 = vadd.f32 %v3401, %v3489
        %v3491 = vpop.f32.mrf.mxu0
        %v3492 = vadd.f32 %v3403, %v3491
        %3493 = vmatmul.bf16.gmra.mxu0 %v966
        %v3494 = vpop.f32.mrf.mxu0
        %v3495 = vadd.f32 %v3406, %v3494
        %v3496 = vpop.f32.mrf.mxu0
        %v3497 = vadd.f32 %v3408, %v3496
        %3498 = vmatmul.bf16.gmra.mxu0 %v969
        %v3499 = vpop.f32.mrf.mxu0
        %v3500 = vadd.f32 %v3411, %v3499
        %v3501 = vpop.f32.mrf.mxu0
        %v3502 = vadd.f32 %v3413, %v3501
        %3503 = vmatmul.bf16.gmra.mxu0 %v972
        %v3504 = vpop.f32.mrf.mxu0
        %v3505 = vadd.f32 %v3416, %v3504
        %v3506 = vpop.f32.mrf.mxu0
        %v3507 = vadd.f32 %v3418, %v3506
        %3508 = vmatmul.bf16.gmra.mxu0 %v975
        %v3509 = vpop.f32.mrf.mxu0
        %v3510 = vadd.f32 %v3421, %v3509
        %v3511 = vpop.f32.mrf.mxu0
        %v3512 = vadd.f32 %v3423, %v3511
        %3513 = vmatmul.bf16.gmra.mxu0 %v978
        %v3514 = vpop.f32.mrf.mxu0
        %v3515 = vadd.f32 %v3426, %v3514
        %v3516 = vpop.f32.mrf.mxu0
        %v3517 = vadd.f32 %v3428, %v3516
        %3518 = vmatmul.bf16.gmra.mxu0 %v981
        %v3519 = vpop.f32.mrf.mxu0
        %v3520 = vadd.f32 %v3431, %v3519
        %v3521 = vpop.f32.mrf.mxu0
        %v3522 = vadd.f32 %v3433, %v3521
        %3523 = vmatmul.bf16.gmra.mxu0 %v984
        %v3524 = vpop.f32.mrf.mxu0
        %v3525 = vadd.f32 %v3436, %v3524
        %v3526 = vpop.f32.mrf.mxu0
        %v3527 = vadd.f32 %v3438, %v3526
        %3528 = vmatmul.bf16.gmra.mxu0 %v987
        %v3529 = vpop.f32.mrf.mxu0
        %v3530 = vadd.f32 %v3441, %v3529
        %v3531 = vpop.f32.mrf.mxu0
        %v3532 = vadd.f32 %v3443, %v3531
        %3533 = vmatmul.bf16.gmra.mxu0 %v990
        %v3534 = vpop.f32.mrf.mxu0
        %v3535 = vadd.f32 %v3446, %v3534
        %v3536 = vpop.f32.mrf.mxu0
        %v3537 = vadd.f32 %v3448, %v3536
        %3538 = vmatmul.bf16.gmra.mxu0 %v993
        %v3539 = vpop.f32.mrf.mxu0
        %v3540 = vadd.f32 %v3451, %v3539
        %v3541 = vpop.f32.mrf.mxu0
        %v3542 = vadd.f32 %v3453, %v3541
        %3543 = vmatmul.bf16.gmra.mxu0 %v996
        %v3544 = vpop.f32.mrf.mxu0
        %v3545 = vadd.f32 %v3456, %v3544
        %v3546 = vpop.f32.mrf.mxu0
        %v3547 = vadd.f32 %v3458, %v3546
        %3548 = vmatmul.bf16.gmra.mxu0 %v999
        %v3549 = vpop.f32.mrf.mxu0
        %v3550 = vadd.f32 %v3461, %v3549
        %v3551 = vpop.f32.mrf.mxu0
        %v3552 = vadd.f32 %v3463, %v3551
        %3553 = vmatmul.bf16.gmra.mxu0 %v1002
        %v3554 = vpop.f32.mrf.mxu0
        %v3555 = vadd.f32 %v3466, %v3554
        %v3556 = vpop.f32.mrf.mxu0
        %v3557 = vadd.f32 %v3468, %v3556
        %3558 = vdwg.mxu0
        %3559 = vmatpush.bf16.msra.mxu0 %v2003
        %3560 = vmatpush.bf16.msra.mxu0 %v1991
        %3561 = vmatpush.bf16.msra.mxu0 %v1979
        %3562 = vmatpush.bf16.msra.mxu0 %v1967
        %3563 = vmatpush.bf16.msra.mxu0 %v1955
        %3564 = vmatpush.bf16.msra.mxu0 %v1943
        %3565 = vmatpush.bf16.msra.mxu0 %v1931
        %3566 = vmatpush.bf16.msra.mxu0 %v1919
        %3567 = vmatmul.bf16.gmra.mxu0 %v955
        %v3568 = vpop.f32.mrf.mxu0
        %v3569 = vadd.f32 %v775, %v3568
        %v3570 = vpop.f32.mrf.mxu0
        %v3571 = vadd.f32 %v775, %v3570
        %3572 = vmatmul.bf16.gmra.mxu0 %v958
        %v3573 = vpop.f32.mrf.mxu0
        %v3574 = vadd.f32 %v775, %v3573
        %v3575 = vpop.f32.mrf.mxu0
        %v3576 = vadd.f32 %v775, %v3575
        %3577 = vmatmul.bf16.gmra.mxu0 %v961
        %v3578 = vpop.f32.mrf.mxu0
        %v3579 = vadd.f32 %v775, %v3578
        %v3580 = vpop.f32.mrf.mxu0
        %v3581 = vadd.f32 %v775, %v3580
        %3582 = vmatmul.bf16.gmra.mxu0 %v964
        %v3583 = vpop.f32.mrf.mxu0
        %v3584 = vadd.f32 %v775, %v3583
        %v3585 = vpop.f32.mrf.mxu0
        %v3586 = vadd.f32 %v775, %v3585
        %3587 = vmatmul.bf16.gmra.mxu0 %v967
        %v3588 = vpop.f32.mrf.mxu0
        %v3589 = vadd.f32 %v775, %v3588
        %v3590 = vpop.f32.mrf.mxu0
        %v3591 = vadd.f32 %v775, %v3590
        %3592 = vmatmul.bf16.gmra.mxu0 %v970
        %v3593 = vpop.f32.mrf.mxu0
        %v3594 = vadd.f32 %v775, %v3593
        %v3595 = vpop.f32.mrf.mxu0
        %v3596 = vadd.f32 %v775, %v3595
        %3597 = vmatmul.bf16.gmra.mxu0 %v973
        %v3598 = vpop.f32.mrf.mxu0
        %v3599 = vadd.f32 %v775, %v3598
        %v3600 = vpop.f32.mrf.mxu0
        %v3601 = vadd.f32 %v775, %v3600
        %3602 = vmatmul.bf16.gmra.mxu0 %v976
        %v3603 = vpop.f32.mrf.mxu0
        %v3604 = vadd.f32 %v775, %v3603
        %v3605 = vpop.f32.mrf.mxu0
        %v3606 = vadd.f32 %v775, %v3605
        %3607 = vmatmul.bf16.gmra.mxu0 %v979
        %v3608 = vpop.f32.mrf.mxu0
        %v3609 = vadd.f32 %v775, %v3608
        %v3610 = vpop.f32.mrf.mxu0
        %v3611 = vadd.f32 %v775, %v3610
        %3612 = vmatmul.bf16.gmra.mxu0 %v982
        %v3613 = vpop.f32.mrf.mxu0
        %v3614 = vadd.f32 %v775, %v3613
        %v3615 = vpop.f32.mrf.mxu0
        %v3616 = vadd.f32 %v775, %v3615
        %3617 = vmatmul.bf16.gmra.mxu0 %v985
        %v3618 = vpop.f32.mrf.mxu0
        %v3619 = vadd.f32 %v775, %v3618
        %v3620 = vpop.f32.mrf.mxu0
        %v3621 = vadd.f32 %v775, %v3620
        %3622 = vmatmul.bf16.gmra.mxu0 %v988
        %v3623 = vpop.f32.mrf.mxu0
        %v3624 = vadd.f32 %v775, %v3623
        %v3625 = vpop.f32.mrf.mxu0
        %v3626 = vadd.f32 %v775, %v3625
        %3627 = vmatmul.bf16.gmra.mxu0 %v991
        %v3628 = vpop.f32.mrf.mxu0
        %v3629 = vadd.f32 %v775, %v3628
        %v3630 = vpop.f32.mrf.mxu0
        %v3631 = vadd.f32 %v775, %v3630
        %3632 = vmatmul.bf16.gmra.mxu0 %v994
        %v3633 = vpop.f32.mrf.mxu0
        %v3634 = vadd.f32 %v775, %v3633
        %v3635 = vpop.f32.mrf.mxu0
        %v3636 = vadd.f32 %v775, %v3635
        %3637 = vmatmul.bf16.gmra.mxu0 %v997
        %v3638 = vpop.f32.mrf.mxu0
        %v3639 = vadd.f32 %v775, %v3638
        %v3640 = vpop.f32.mrf.mxu0
        %v3641 = vadd.f32 %v775, %v3640
        %3642 = vmatmul.bf16.gmra.mxu0 %v1000
        %v3643 = vpop.f32.mrf.mxu0
        %v3644 = vadd.f32 %v775, %v3643
        %v3645 = vpop.f32.mrf.mxu0
        %v3646 = vadd.f32 %v775, %v3645
        %3647 = vdwg.mxu0
        %3648 = vmatpush.bf16.msra.mxu0 %v2099
        %3649 = vmatpush.bf16.msra.mxu0 %v2087
        %3650 = vmatpush.bf16.msra.mxu0 %v2075
        %3651 = vmatpush.bf16.msra.mxu0 %v2063
        %3652 = vmatpush.bf16.msra.mxu0 %v2051
        %3653 = vmatpush.bf16.msra.mxu0 %v2039
        %3654 = vmatpush.bf16.msra.mxu0 %v2027
        %3655 = vmatpush.bf16.msra.mxu0 %v2015
        %3656 = vmatmul.bf16.gmra.mxu0 %v956
        %v3657 = vpop.f32.mrf.mxu0
        %v3658 = vadd.f32 %v3569, %v3657
        %v3659 = vpop.f32.mrf.mxu0
        %v3660 = vadd.f32 %v3571, %v3659
        %3661 = vmatmul.bf16.gmra.mxu0 %v959
        %v3662 = vpop.f32.mrf.mxu0
        %v3663 = vadd.f32 %v3574, %v3662
        %v3664 = vpop.f32.mrf.mxu0
        %v3665 = vadd.f32 %v3576, %v3664
        %3666 = vmatmul.bf16.gmra.mxu0 %v962
        %v3667 = vpop.f32.mrf.mxu0
        %v3668 = vadd.f32 %v3579, %v3667
        %v3669 = vpop.f32.mrf.mxu0
        %v3670 = vadd.f32 %v3581, %v3669
        %3671 = vmatmul.bf16.gmra.mxu0 %v965
        %v3672 = vpop.f32.mrf.mxu0
        %v3673 = vadd.f32 %v3584, %v3672
        %v3674 = vpop.f32.mrf.mxu0
        %v3675 = vadd.f32 %v3586, %v3674
        %3676 = vmatmul.bf16.gmra.mxu0 %v968
        %v3677 = vpop.f32.mrf.mxu0
        %v3678 = vadd.f32 %v3589, %v3677
        %v3679 = vpop.f32.mrf.mxu0
        %v3680 = vadd.f32 %v3591, %v3679
        %3681 = vmatmul.bf16.gmra.mxu0 %v971
        %v3682 = vpop.f32.mrf.mxu0
        %v3683 = vadd.f32 %v3594, %v3682
        %v3684 = vpop.f32.mrf.mxu0
        %v3685 = vadd.f32 %v3596, %v3684
        %3686 = vmatmul.bf16.gmra.mxu0 %v974
        %v3687 = vpop.f32.mrf.mxu0
        %v3688 = vadd.f32 %v3599, %v3687
        %v3689 = vpop.f32.mrf.mxu0
        %v3690 = vadd.f32 %v3601, %v3689
        %3691 = vmatmul.bf16.gmra.mxu0 %v977
        %v3692 = vpop.f32.mrf.mxu0
        %v3693 = vadd.f32 %v3604, %v3692
        %v3694 = vpop.f32.mrf.mxu0
        %v3695 = vadd.f32 %v3606, %v3694
        %3696 = vmatmul.bf16.gmra.mxu0 %v980
        %v3697 = vpop.f32.mrf.mxu0
        %v3698 = vadd.f32 %v3609, %v3697
        %v3699 = vpop.f32.mrf.mxu0
        %v3700 = vadd.f32 %v3611, %v3699
        %3701 = vmatmul.bf16.gmra.mxu0 %v983
        %v3702 = vpop.f32.mrf.mxu0
        %v3703 = vadd.f32 %v3614, %v3702
        %v3704 = vpop.f32.mrf.mxu0
        %v3705 = vadd.f32 %v3616, %v3704
        %3706 = vmatmul.bf16.gmra.mxu0 %v986
        %v3707 = vpop.f32.mrf.mxu0
        %v3708 = vadd.f32 %v3619, %v3707
        %v3709 = vpop.f32.mrf.mxu0
        %v3710 = vadd.f32 %v3621, %v3709
        %3711 = vmatmul.bf16.gmra.mxu0 %v989
        %v3712 = vpop.f32.mrf.mxu0
        %v3713 = vadd.f32 %v3624, %v3712
        %v3714 = vpop.f32.mrf.mxu0
        %v3715 = vadd.f32 %v3626, %v3714
        %3716 = vmatmul.bf16.gmra.mxu0 %v992
        %v3717 = vpop.f32.mrf.mxu0
        %v3718 = vadd.f32 %v3629, %v3717
        %v3719 = vpop.f32.mrf.mxu0
        %v3720 = vadd.f32 %v3631, %v3719
        %3721 = vmatmul.bf16.gmra.mxu0 %v995
        %v3722 = vpop.f32.mrf.mxu0
        %v3723 = vadd.f32 %v3634, %v3722
        %v3724 = vpop.f32.mrf.mxu0
        %v3725 = vadd.f32 %v3636, %v3724
        %3726 = vmatmul.bf16.gmra.mxu0 %v998
        %v3727 = vpop.f32.mrf.mxu0
        %v3728 = vadd.f32 %v3639, %v3727
        %v3729 = vpop.f32.mrf.mxu0
        %v3730 = vadd.f32 %v3641, %v3729
        %3731 = vmatmul.bf16.gmra.mxu0 %v1001
        %v3732 = vpop.f32.mrf.mxu0
        %v3733 = vadd.f32 %v3644, %v3732
        %v3734 = vpop.f32.mrf.mxu0
        %v3735 = vadd.f32 %v3646, %v3734
        %3736 = vdwg.mxu0
        %3737 = vmatpush.bf16.msra.mxu0 %v2195
        %3738 = vmatpush.bf16.msra.mxu0 %v2183
        %3739 = vmatpush.bf16.msra.mxu0 %v2171
        %3740 = vmatpush.bf16.msra.mxu0 %v2159
        %3741 = vmatpush.bf16.msra.mxu0 %v2147
        %3742 = vmatpush.bf16.msra.mxu0 %v2135
        %3743 = vmatpush.bf16.msra.mxu0 %v2123
        %3744 = vmatpush.bf16.msra.mxu0 %v2111
        %3745 = vmatmul.bf16.gmra.mxu0 %v957
        %v3746 = vpop.f32.mrf.mxu0
        %v3747 = vadd.f32 %v3658, %v3746
        %v3748 = vpop.f32.mrf.mxu0
        %v3749 = vadd.f32 %v3660, %v3748
        %3750 = vmatmul.bf16.gmra.mxu0 %v960
        %v3751 = vpop.f32.mrf.mxu0
        %v3752 = vadd.f32 %v3663, %v3751
        %v3753 = vpop.f32.mrf.mxu0
        %v3754 = vadd.f32 %v3665, %v3753
        %3755 = vmatmul.bf16.gmra.mxu0 %v963
        %v3756 = vpop.f32.mrf.mxu0
        %v3757 = vadd.f32 %v3668, %v3756
        %v3758 = vpop.f32.mrf.mxu0
        %v3759 = vadd.f32 %v3670, %v3758
        %3760 = vmatmul.bf16.gmra.mxu0 %v966
        %v3761 = vpop.f32.mrf.mxu0
        %v3762 = vadd.f32 %v3673, %v3761
        %v3763 = vpop.f32.mrf.mxu0
        %v3764 = vadd.f32 %v3675, %v3763
        %3765 = vmatmul.bf16.gmra.mxu0 %v969
        %v3766 = vpop.f32.mrf.mxu0
        %v3767 = vadd.f32 %v3678, %v3766
        %v3768 = vpop.f32.mrf.mxu0
        %v3769 = vadd.f32 %v3680, %v3768
        %3770 = vmatmul.bf16.gmra.mxu0 %v972
        %v3771 = vpop.f32.mrf.mxu0
        %v3772 = vadd.f32 %v3683, %v3771
        %v3773 = vpop.f32.mrf.mxu0
        %v3774 = vadd.f32 %v3685, %v3773
        %3775 = vmatmul.bf16.gmra.mxu0 %v975
        %v3776 = vpop.f32.mrf.mxu0
        %v3777 = vadd.f32 %v3688, %v3776
        %v3778 = vpop.f32.mrf.mxu0
        %v3779 = vadd.f32 %v3690, %v3778
        %3780 = vmatmul.bf16.gmra.mxu0 %v978
        %v3781 = vpop.f32.mrf.mxu0
        %v3782 = vadd.f32 %v3693, %v3781
        %v3783 = vpop.f32.mrf.mxu0
        %v3784 = vadd.f32 %v3695, %v3783
        %3785 = vmatmul.bf16.gmra.mxu0 %v981
        %v3786 = vpop.f32.mrf.mxu0
        %v3787 = vadd.f32 %v3698, %v3786
        %v3788 = vpop.f32.mrf.mxu0
        %v3789 = vadd.f32 %v3700, %v3788
        %3790 = vmatmul.bf16.gmra.mxu0 %v984
        %v3791 = vpop.f32.mrf.mxu0
        %v3792 = vadd.f32 %v3703, %v3791
        %v3793 = vpop.f32.mrf.mxu0
        %v3794 = vadd.f32 %v3705, %v3793
        %3795 = vmatmul.bf16.gmra.mxu0 %v987
        %v3796 = vpop.f32.mrf.mxu0
        %v3797 = vadd.f32 %v3708, %v3796
        %v3798 = vpop.f32.mrf.mxu0
        %v3799 = vadd.f32 %v3710, %v3798
        %3800 = vmatmul.bf16.gmra.mxu0 %v990
        %v3801 = vpop.f32.mrf.mxu0
        %v3802 = vadd.f32 %v3713, %v3801
        %v3803 = vpop.f32.mrf.mxu0
        %v3804 = vadd.f32 %v3715, %v3803
        %3805 = vmatmul.bf16.gmra.mxu0 %v993
        %v3806 = vpop.f32.mrf.mxu0
        %v3807 = vadd.f32 %v3718, %v3806
        %v3808 = vpop.f32.mrf.mxu0
        %v3809 = vadd.f32 %v3720, %v3808
        %3810 = vmatmul.bf16.gmra.mxu0 %v996
        %v3811 = vpop.f32.mrf.mxu0
        %v3812 = vadd.f32 %v3723, %v3811
        %v3813 = vpop.f32.mrf.mxu0
        %v3814 = vadd.f32 %v3725, %v3813
        %3815 = vmatmul.bf16.gmra.mxu0 %v999
        %v3816 = vpop.f32.mrf.mxu0
        %v3817 = vadd.f32 %v3728, %v3816
        %v3818 = vpop.f32.mrf.mxu0
        %v3819 = vadd.f32 %v3730, %v3818
        %3820 = vmatmul.bf16.gmra.mxu0 %v1002
        %v3821 = vpop.f32.mrf.mxu0
        %v3822 = vadd.f32 %v3733, %v3821
        %v3823 = vpop.f32.mrf.mxu0
        %v3824 = vadd.f32 %v3735, %v3823
        %3825 = vdwg.mxu0
        %3826 = vmatpush.bf16.msra.mxu0 %v2004
        %3827 = vmatpush.bf16.msra.mxu0 %v1992
        %3828 = vmatpush.bf16.msra.mxu0 %v1980
        %3829 = vmatpush.bf16.msra.mxu0 %v1968
        %3830 = vmatpush.bf16.msra.mxu0 %v1956
        %3831 = vmatpush.bf16.msra.mxu0 %v1944
        %3832 = vmatpush.bf16.msra.mxu0 %v1932
        %3833 = vmatpush.bf16.msra.mxu0 %v1920
        %3834 = vmatmul.bf16.gmra.mxu0 %v955
        %v3835 = vpop.f32.mrf.mxu0
        %v3836 = vadd.f32 %v776, %v3835
        %v3837 = vpop.f32.mrf.mxu0
        %v3838 = vadd.f32 %v776, %v3837
        %3839 = vmatmul.bf16.gmra.mxu0 %v958
        %v3840 = vpop.f32.mrf.mxu0
        %v3841 = vadd.f32 %v776, %v3840
        %v3842 = vpop.f32.mrf.mxu0
        %v3843 = vadd.f32 %v776, %v3842
        %3844 = vmatmul.bf16.gmra.mxu0 %v961
        %v3845 = vpop.f32.mrf.mxu0
        %v3846 = vadd.f32 %v776, %v3845
        %v3847 = vpop.f32.mrf.mxu0
        %v3848 = vadd.f32 %v776, %v3847
        %3849 = vmatmul.bf16.gmra.mxu0 %v964
        %v3850 = vpop.f32.mrf.mxu0
        %v3851 = vadd.f32 %v776, %v3850
        %v3852 = vpop.f32.mrf.mxu0
        %v3853 = vadd.f32 %v776, %v3852
        %3854 = vmatmul.bf16.gmra.mxu0 %v967
        %v3855 = vpop.f32.mrf.mxu0
        %v3856 = vadd.f32 %v776, %v3855
        %v3857 = vpop.f32.mrf.mxu0
        %v3858 = vadd.f32 %v776, %v3857
        %3859 = vmatmul.bf16.gmra.mxu0 %v970
        %v3860 = vpop.f32.mrf.mxu0
        %v3861 = vadd.f32 %v776, %v3860
        %v3862 = vpop.f32.mrf.mxu0
        %v3863 = vadd.f32 %v776, %v3862
        %3864 = vmatmul.bf16.gmra.mxu0 %v973
        %v3865 = vpop.f32.mrf.mxu0
        %v3866 = vadd.f32 %v776, %v3865
        %v3867 = vpop.f32.mrf.mxu0
        %v3868 = vadd.f32 %v776, %v3867
        %3869 = vmatmul.bf16.gmra.mxu0 %v976
        %v3870 = vpop.f32.mrf.mxu0
        %v3871 = vadd.f32 %v776, %v3870
        %v3872 = vpop.f32.mrf.mxu0
        %v3873 = vadd.f32 %v776, %v3872
        %3874 = vmatmul.bf16.gmra.mxu0 %v979
        %v3875 = vpop.f32.mrf.mxu0
        %v3876 = vadd.f32 %v776, %v3875
        %v3877 = vpop.f32.mrf.mxu0
        %v3878 = vadd.f32 %v776, %v3877
        %3879 = vmatmul.bf16.gmra.mxu0 %v982
        %v3880 = vpop.f32.mrf.mxu0
        %v3881 = vadd.f32 %v776, %v3880
        %v3882 = vpop.f32.mrf.mxu0
        %v3883 = vadd.f32 %v776, %v3882
        %3884 = vmatmul.bf16.gmra.mxu0 %v985
        %v3885 = vpop.f32.mrf.mxu0
        %v3886 = vadd.f32 %v776, %v3885
        %v3887 = vpop.f32.mrf.mxu0
        %v3888 = vadd.f32 %v776, %v3887
        %3889 = vmatmul.bf16.gmra.mxu0 %v988
        %v3890 = vpop.f32.mrf.mxu0
        %v3891 = vadd.f32 %v776, %v3890
        %v3892 = vpop.f32.mrf.mxu0
        %v3893 = vadd.f32 %v776, %v3892
        %3894 = vmatmul.bf16.gmra.mxu0 %v991
        %v3895 = vpop.f32.mrf.mxu0
        %v3896 = vadd.f32 %v776, %v3895
        %v3897 = vpop.f32.mrf.mxu0
        %v3898 = vadd.f32 %v776, %v3897
        %3899 = vmatmul.bf16.gmra.mxu0 %v994
        %v3900 = vpop.f32.mrf.mxu0
        %v3901 = vadd.f32 %v776, %v3900
        %v3902 = vpop.f32.mrf.mxu0
        %v3903 = vadd.f32 %v776, %v3902
        %3904 = vmatmul.bf16.gmra.mxu0 %v997
        %v3905 = vpop.f32.mrf.mxu0
        %v3906 = vadd.f32 %v776, %v3905
        %v3907 = vpop.f32.mrf.mxu0
        %v3908 = vadd.f32 %v776, %v3907
        %3909 = vmatmul.bf16.gmra.mxu0 %v1000
        %v3910 = vpop.f32.mrf.mxu0
        %v3911 = vadd.f32 %v776, %v3910
        %v3912 = vpop.f32.mrf.mxu0
        %v3913 = vadd.f32 %v776, %v3912
        %3914 = vdwg.mxu0
        %3915 = vmatpush.bf16.msra.mxu0 %v2100
        %3916 = vmatpush.bf16.msra.mxu0 %v2088
        %3917 = vmatpush.bf16.msra.mxu0 %v2076
        %3918 = vmatpush.bf16.msra.mxu0 %v2064
        %3919 = vmatpush.bf16.msra.mxu0 %v2052
        %3920 = vmatpush.bf16.msra.mxu0 %v2040
        %3921 = vmatpush.bf16.msra.mxu0 %v2028
        %3922 = vmatpush.bf16.msra.mxu0 %v2016
        %3923 = vmatmul.bf16.gmra.mxu0 %v956
        %v3924 = vpop.f32.mrf.mxu0
        %v3925 = vadd.f32 %v3836, %v3924
        %v3926 = vpop.f32.mrf.mxu0
        %v3927 = vadd.f32 %v3838, %v3926
        %3928 = vmatmul.bf16.gmra.mxu0 %v959
        %v3929 = vpop.f32.mrf.mxu0
        %v3930 = vadd.f32 %v3841, %v3929
        %v3931 = vpop.f32.mrf.mxu0
        %v3932 = vadd.f32 %v3843, %v3931
        %3933 = vmatmul.bf16.gmra.mxu0 %v962
        %v3934 = vpop.f32.mrf.mxu0
        %v3935 = vadd.f32 %v3846, %v3934
        %v3936 = vpop.f32.mrf.mxu0
        %v3937 = vadd.f32 %v3848, %v3936
        %3938 = vmatmul.bf16.gmra.mxu0 %v965
        %v3939 = vpop.f32.mrf.mxu0
        %v3940 = vadd.f32 %v3851, %v3939
        %v3941 = vpop.f32.mrf.mxu0
        %v3942 = vadd.f32 %v3853, %v3941
        %3943 = vmatmul.bf16.gmra.mxu0 %v968
        %v3944 = vpop.f32.mrf.mxu0
        %v3945 = vadd.f32 %v3856, %v3944
        %v3946 = vpop.f32.mrf.mxu0
        %v3947 = vadd.f32 %v3858, %v3946
        %3948 = vmatmul.bf16.gmra.mxu0 %v971
        %v3949 = vpop.f32.mrf.mxu0
        %v3950 = vadd.f32 %v3861, %v3949
        %v3951 = vpop.f32.mrf.mxu0
        %v3952 = vadd.f32 %v3863, %v3951
        %3953 = vmatmul.bf16.gmra.mxu0 %v974
        %v3954 = vpop.f32.mrf.mxu0
        %v3955 = vadd.f32 %v3866, %v3954
        %v3956 = vpop.f32.mrf.mxu0
        %v3957 = vadd.f32 %v3868, %v3956
        %3958 = vmatmul.bf16.gmra.mxu0 %v977
        %v3959 = vpop.f32.mrf.mxu0
        %v3960 = vadd.f32 %v3871, %v3959
        %v3961 = vpop.f32.mrf.mxu0
        %v3962 = vadd.f32 %v3873, %v3961
        %3963 = vmatmul.bf16.gmra.mxu0 %v980
        %v3964 = vpop.f32.mrf.mxu0
        %v3965 = vadd.f32 %v3876, %v3964
        %v3966 = vpop.f32.mrf.mxu0
        %v3967 = vadd.f32 %v3878, %v3966
        %3968 = vmatmul.bf16.gmra.mxu0 %v983
        %v3969 = vpop.f32.mrf.mxu0
        %v3970 = vadd.f32 %v3881, %v3969
        %v3971 = vpop.f32.mrf.mxu0
        %v3972 = vadd.f32 %v3883, %v3971
        %3973 = vmatmul.bf16.gmra.mxu0 %v986
        %v3974 = vpop.f32.mrf.mxu0
        %v3975 = vadd.f32 %v3886, %v3974
        %v3976 = vpop.f32.mrf.mxu0
        %v3977 = vadd.f32 %v3888, %v3976
        %3978 = vmatmul.bf16.gmra.mxu0 %v989
        %v3979 = vpop.f32.mrf.mxu0
        %v3980 = vadd.f32 %v3891, %v3979
        %v3981 = vpop.f32.mrf.mxu0
        %v3982 = vadd.f32 %v3893, %v3981
        %3983 = vmatmul.bf16.gmra.mxu0 %v992
        %v3984 = vpop.f32.mrf.mxu0
        %v3985 = vadd.f32 %v3896, %v3984
        %v3986 = vpop.f32.mrf.mxu0
        %v3987 = vadd.f32 %v3898, %v3986
        %3988 = vmatmul.bf16.gmra.mxu0 %v995
        %v3989 = vpop.f32.mrf.mxu0
        %v3990 = vadd.f32 %v3901, %v3989
        %v3991 = vpop.f32.mrf.mxu0
        %v3992 = vadd.f32 %v3903, %v3991
        %3993 = vmatmul.bf16.gmra.mxu0 %v998
        %v3994 = vpop.f32.mrf.mxu0
        %v3995 = vadd.f32 %v3906, %v3994
        %v3996 = vpop.f32.mrf.mxu0
        %v3997 = vadd.f32 %v3908, %v3996
        %3998 = vmatmul.bf16.gmra.mxu0 %v1001
        %v3999 = vpop.f32.mrf.mxu0
        %v4000 = vadd.f32 %v3911, %v3999
        %v4001 = vpop.f32.mrf.mxu0
        %v4002 = vadd.f32 %v3913, %v4001
        %4003 = vdwg.mxu0
        %4004 = vmatpush.bf16.msra.mxu0 %v2196
        %4005 = vmatpush.bf16.msra.mxu0 %v2184
        %4006 = vmatpush.bf16.msra.mxu0 %v2172
        %4007 = vmatpush.bf16.msra.mxu0 %v2160
        %4008 = vmatpush.bf16.msra.mxu0 %v2148
        %4009 = vmatpush.bf16.msra.mxu0 %v2136
        %4010 = vmatpush.bf16.msra.mxu0 %v2124
        %4011 = vmatpush.bf16.msra.mxu0 %v2112
        %4012 = vmatmul.bf16.gmra.mxu0 %v957
        %v4013 = vpop.f32.mrf.mxu0
        %v4014 = vadd.f32 %v3925, %v4013
        %v4015 = vpop.f32.mrf.mxu0
        %v4016 = vadd.f32 %v3927, %v4015
        %4017 = vmatmul.bf16.gmra.mxu0 %v960
        %v4018 = vpop.f32.mrf.mxu0
        %v4019 = vadd.f32 %v3930, %v4018
        %v4020 = vpop.f32.mrf.mxu0
        %v4021 = vadd.f32 %v3932, %v4020
        %4022 = vmatmul.bf16.gmra.mxu0 %v963
        %v4023 = vpop.f32.mrf.mxu0
        %v4024 = vadd.f32 %v3935, %v4023
        %v4025 = vpop.f32.mrf.mxu0
        %v4026 = vadd.f32 %v3937, %v4025
        %4027 = vmatmul.bf16.gmra.mxu0 %v966
        %v4028 = vpop.f32.mrf.mxu0
        %v4029 = vadd.f32 %v3940, %v4028
        %v4030 = vpop.f32.mrf.mxu0
        %v4031 = vadd.f32 %v3942, %v4030
        %4032 = vmatmul.bf16.gmra.mxu0 %v969
        %v4033 = vpop.f32.mrf.mxu0
        %v4034 = vadd.f32 %v3945, %v4033
        %v4035 = vpop.f32.mrf.mxu0
        %v4036 = vadd.f32 %v3947, %v4035
        %4037 = vmatmul.bf16.gmra.mxu0 %v972
        %v4038 = vpop.f32.mrf.mxu0
        %v4039 = vadd.f32 %v3950, %v4038
        %v4040 = vpop.f32.mrf.mxu0
        %v4041 = vadd.f32 %v3952, %v4040
        %4042 = vmatmul.bf16.gmra.mxu0 %v975
        %v4043 = vpop.f32.mrf.mxu0
        %v4044 = vadd.f32 %v3955, %v4043
        %v4045 = vpop.f32.mrf.mxu0
        %v4046 = vadd.f32 %v3957, %v4045
        %4047 = vmatmul.bf16.gmra.mxu0 %v978
        %v4048 = vpop.f32.mrf.mxu0
        %v4049 = vadd.f32 %v3960, %v4048
        %v4050 = vpop.f32.mrf.mxu0
        %v4051 = vadd.f32 %v3962, %v4050
        %4052 = vmatmul.bf16.gmra.mxu0 %v981
        %v4053 = vpop.f32.mrf.mxu0
        %v4054 = vadd.f32 %v3965, %v4053
        %v4055 = vpop.f32.mrf.mxu0
        %v4056 = vadd.f32 %v3967, %v4055
        %4057 = vmatmul.bf16.gmra.mxu0 %v984
        %v4058 = vpop.f32.mrf.mxu0
        %v4059 = vadd.f32 %v3970, %v4058
        %v4060 = vpop.f32.mrf.mxu0
        %v4061 = vadd.f32 %v3972, %v4060
        %4062 = vmatmul.bf16.gmra.mxu0 %v987
        %v4063 = vpop.f32.mrf.mxu0
        %v4064 = vadd.f32 %v3975, %v4063
        %v4065 = vpop.f32.mrf.mxu0
        %v4066 = vadd.f32 %v3977, %v4065
        %4067 = vmatmul.bf16.gmra.mxu0 %v990
        %v4068 = vpop.f32.mrf.mxu0
        %v4069 = vadd.f32 %v3980, %v4068
        %v4070 = vpop.f32.mrf.mxu0
        %v4071 = vadd.f32 %v3982, %v4070
        %4072 = vmatmul.bf16.gmra.mxu0 %v993
        %v4073 = vpop.f32.mrf.mxu0
        %v4074 = vadd.f32 %v3985, %v4073
        %v4075 = vpop.f32.mrf.mxu0
        %v4076 = vadd.f32 %v3987, %v4075
        %4077 = vmatmul.bf16.gmra.mxu0 %v996
        %v4078 = vpop.f32.mrf.mxu0
        %v4079 = vadd.f32 %v3990, %v4078
        %v4080 = vpop.f32.mrf.mxu0
        %v4081 = vadd.f32 %v3992, %v4080
        %4082 = vmatmul.bf16.gmra.mxu0 %v999
        %v4083 = vpop.f32.mrf.mxu0
        %v4084 = vadd.f32 %v3995, %v4083
        %v4085 = vpop.f32.mrf.mxu0
        %v4086 = vadd.f32 %v3997, %v4085
        %4087 = vmatmul.bf16.gmra.mxu0 %v1002
        %v4088 = vpop.f32.mrf.mxu0
        %v4089 = vadd.f32 %v4000, %v4088
        %v4090 = vpop.f32.mrf.mxu0
        %v4091 = vadd.f32 %v4002, %v4090
        %4092 = vdwg.mxu0
        %4093 = vmatpush.bf16.msra.mxu0 %v2005
        %4094 = vmatpush.bf16.msra.mxu0 %v1993
        %4095 = vmatpush.bf16.msra.mxu0 %v1981
        %4096 = vmatpush.bf16.msra.mxu0 %v1969
        %4097 = vmatpush.bf16.msra.mxu0 %v1957
        %4098 = vmatpush.bf16.msra.mxu0 %v1945
        %4099 = vmatpush.bf16.msra.mxu0 %v1933
        %4100 = vmatpush.bf16.msra.mxu0 %v1921
        %4101 = vmatmul.bf16.gmra.mxu0 %v955
        %v4102 = vpop.f32.mrf.mxu0
        %v4103 = vadd.f32 %v777, %v4102
        %v4104 = vpop.f32.mrf.mxu0
        %v4105 = vadd.f32 %v777, %v4104
        %4106 = vmatmul.bf16.gmra.mxu0 %v958
        %v4107 = vpop.f32.mrf.mxu0
        %v4108 = vadd.f32 %v777, %v4107
        %v4109 = vpop.f32.mrf.mxu0
        %v4110 = vadd.f32 %v777, %v4109
        %4111 = vmatmul.bf16.gmra.mxu0 %v961
        %v4112 = vpop.f32.mrf.mxu0
        %v4113 = vadd.f32 %v777, %v4112
        %v4114 = vpop.f32.mrf.mxu0
        %v4115 = vadd.f32 %v777, %v4114
        %4116 = vmatmul.bf16.gmra.mxu0 %v964
        %v4117 = vpop.f32.mrf.mxu0
        %v4118 = vadd.f32 %v777, %v4117
        %v4119 = vpop.f32.mrf.mxu0
        %v4120 = vadd.f32 %v777, %v4119
        %4121 = vmatmul.bf16.gmra.mxu0 %v967
        %v4122 = vpop.f32.mrf.mxu0
        %v4123 = vadd.f32 %v777, %v4122
        %v4124 = vpop.f32.mrf.mxu0
        %v4125 = vadd.f32 %v777, %v4124
        %4126 = vmatmul.bf16.gmra.mxu0 %v970
        %v4127 = vpop.f32.mrf.mxu0
        %v4128 = vadd.f32 %v777, %v4127
        %v4129 = vpop.f32.mrf.mxu0
        %v4130 = vadd.f32 %v777, %v4129
        %4131 = vmatmul.bf16.gmra.mxu0 %v973
        %v4132 = vpop.f32.mrf.mxu0
        %v4133 = vadd.f32 %v777, %v4132
        %v4134 = vpop.f32.mrf.mxu0
        %v4135 = vadd.f32 %v777, %v4134
        %4136 = vmatmul.bf16.gmra.mxu0 %v976
        %v4137 = vpop.f32.mrf.mxu0
        %v4138 = vadd.f32 %v777, %v4137
        %v4139 = vpop.f32.mrf.mxu0
        %v4140 = vadd.f32 %v777, %v4139
        %4141 = vmatmul.bf16.gmra.mxu0 %v979
        %v4142 = vpop.f32.mrf.mxu0
        %v4143 = vadd.f32 %v777, %v4142
        %v4144 = vpop.f32.mrf.mxu0
        %v4145 = vadd.f32 %v777, %v4144
        %4146 = vmatmul.bf16.gmra.mxu0 %v982
        %v4147 = vpop.f32.mrf.mxu0
        %v4148 = vadd.f32 %v777, %v4147
        %v4149 = vpop.f32.mrf.mxu0
        %v4150 = vadd.f32 %v777, %v4149
        %4151 = vmatmul.bf16.gmra.mxu0 %v985
        %v4152 = vpop.f32.mrf.mxu0
        %v4153 = vadd.f32 %v777, %v4152
        %v4154 = vpop.f32.mrf.mxu0
        %v4155 = vadd.f32 %v777, %v4154
        %4156 = vmatmul.bf16.gmra.mxu0 %v988
        %v4157 = vpop.f32.mrf.mxu0
        %v4158 = vadd.f32 %v777, %v4157
        %v4159 = vpop.f32.mrf.mxu0
        %v4160 = vadd.f32 %v777, %v4159
        %4161 = vmatmul.bf16.gmra.mxu0 %v991
        %v4162 = vpop.f32.mrf.mxu0
        %v4163 = vadd.f32 %v777, %v4162
        %v4164 = vpop.f32.mrf.mxu0
        %v4165 = vadd.f32 %v777, %v4164
        %4166 = vmatmul.bf16.gmra.mxu0 %v994
        %v4167 = vpop.f32.mrf.mxu0
        %v4168 = vadd.f32 %v777, %v4167
        %v4169 = vpop.f32.mrf.mxu0
        %v4170 = vadd.f32 %v777, %v4169
        %4171 = vmatmul.bf16.gmra.mxu0 %v997
        %v4172 = vpop.f32.mrf.mxu0
        %v4173 = vadd.f32 %v777, %v4172
        %v4174 = vpop.f32.mrf.mxu0
        %v4175 = vadd.f32 %v777, %v4174
        %4176 = vmatmul.bf16.gmra.mxu0 %v1000
        %v4177 = vpop.f32.mrf.mxu0
        %v4178 = vadd.f32 %v777, %v4177
        %v4179 = vpop.f32.mrf.mxu0
        %v4180 = vadd.f32 %v777, %v4179
        %4181 = vdwg.mxu0
        %4182 = vmatpush.bf16.msra.mxu0 %v2101
        %4183 = vmatpush.bf16.msra.mxu0 %v2089
        %4184 = vmatpush.bf16.msra.mxu0 %v2077
        %4185 = vmatpush.bf16.msra.mxu0 %v2065
        %4186 = vmatpush.bf16.msra.mxu0 %v2053
        %4187 = vmatpush.bf16.msra.mxu0 %v2041
        %4188 = vmatpush.bf16.msra.mxu0 %v2029
        %4189 = vmatpush.bf16.msra.mxu0 %v2017
        %4190 = vmatmul.bf16.gmra.mxu0 %v956
        %v4191 = vpop.f32.mrf.mxu0
        %v4192 = vadd.f32 %v4103, %v4191
        %v4193 = vpop.f32.mrf.mxu0
        %v4194 = vadd.f32 %v4105, %v4193
        %4195 = vmatmul.bf16.gmra.mxu0 %v959
        %v4196 = vpop.f32.mrf.mxu0
        %v4197 = vadd.f32 %v4108, %v4196
        %v4198 = vpop.f32.mrf.mxu0
        %v4199 = vadd.f32 %v4110, %v4198
        %4200 = vmatmul.bf16.gmra.mxu0 %v962
        %v4201 = vpop.f32.mrf.mxu0
        %v4202 = vadd.f32 %v4113, %v4201
        %v4203 = vpop.f32.mrf.mxu0
        %v4204 = vadd.f32 %v4115, %v4203
        %4205 = vmatmul.bf16.gmra.mxu0 %v965
        %v4206 = vpop.f32.mrf.mxu0
        %v4207 = vadd.f32 %v4118, %v4206
        %v4208 = vpop.f32.mrf.mxu0
        %v4209 = vadd.f32 %v4120, %v4208
        %4210 = vmatmul.bf16.gmra.mxu0 %v968
        %v4211 = vpop.f32.mrf.mxu0
        %v4212 = vadd.f32 %v4123, %v4211
        %v4213 = vpop.f32.mrf.mxu0
        %v4214 = vadd.f32 %v4125, %v4213
        %4215 = vmatmul.bf16.gmra.mxu0 %v971
        %v4216 = vpop.f32.mrf.mxu0
        %v4217 = vadd.f32 %v4128, %v4216
        %v4218 = vpop.f32.mrf.mxu0
        %v4219 = vadd.f32 %v4130, %v4218
        %4220 = vmatmul.bf16.gmra.mxu0 %v974
        %v4221 = vpop.f32.mrf.mxu0
        %v4222 = vadd.f32 %v4133, %v4221
        %v4223 = vpop.f32.mrf.mxu0
        %v4224 = vadd.f32 %v4135, %v4223
        %4225 = vmatmul.bf16.gmra.mxu0 %v977
        %v4226 = vpop.f32.mrf.mxu0
        %v4227 = vadd.f32 %v4138, %v4226
        %v4228 = vpop.f32.mrf.mxu0
        %v4229 = vadd.f32 %v4140, %v4228
        %4230 = vmatmul.bf16.gmra.mxu0 %v980
        %v4231 = vpop.f32.mrf.mxu0
        %v4232 = vadd.f32 %v4143, %v4231
        %v4233 = vpop.f32.mrf.mxu0
        %v4234 = vadd.f32 %v4145, %v4233
        %4235 = vmatmul.bf16.gmra.mxu0 %v983
        %v4236 = vpop.f32.mrf.mxu0
        %v4237 = vadd.f32 %v4148, %v4236
        %v4238 = vpop.f32.mrf.mxu0
        %v4239 = vadd.f32 %v4150, %v4238
        %4240 = vmatmul.bf16.gmra.mxu0 %v986
        %v4241 = vpop.f32.mrf.mxu0
        %v4242 = vadd.f32 %v4153, %v4241
        %v4243 = vpop.f32.mrf.mxu0
        %v4244 = vadd.f32 %v4155, %v4243
        %4245 = vmatmul.bf16.gmra.mxu0 %v989
        %v4246 = vpop.f32.mrf.mxu0
        %v4247 = vadd.f32 %v4158, %v4246
        %v4248 = vpop.f32.mrf.mxu0
        %v4249 = vadd.f32 %v4160, %v4248
        %4250 = vmatmul.bf16.gmra.mxu0 %v992
        %v4251 = vpop.f32.mrf.mxu0
        %v4252 = vadd.f32 %v4163, %v4251
        %v4253 = vpop.f32.mrf.mxu0
        %v4254 = vadd.f32 %v4165, %v4253
        %4255 = vmatmul.bf16.gmra.mxu0 %v995
        %v4256 = vpop.f32.mrf.mxu0
        %v4257 = vadd.f32 %v4168, %v4256
        %v4258 = vpop.f32.mrf.mxu0
        %v4259 = vadd.f32 %v4170, %v4258
        %4260 = vmatmul.bf16.gmra.mxu0 %v998
        %v4261 = vpop.f32.mrf.mxu0
        %v4262 = vadd.f32 %v4173, %v4261
        %v4263 = vpop.f32.mrf.mxu0
        %v4264 = vadd.f32 %v4175, %v4263
        %4265 = vmatmul.bf16.gmra.mxu0 %v1001
        %v4266 = vpop.f32.mrf.mxu0
        %v4267 = vadd.f32 %v4178, %v4266
        %v4268 = vpop.f32.mrf.mxu0
        %v4269 = vadd.f32 %v4180, %v4268
        %4270 = vdwg.mxu0
        %4271 = vmatpush.bf16.msra.mxu0 %v2197
        %4272 = vmatpush.bf16.msra.mxu0 %v2185
        %4273 = vmatpush.bf16.msra.mxu0 %v2173
        %4274 = vmatpush.bf16.msra.mxu0 %v2161
        %4275 = vmatpush.bf16.msra.mxu0 %v2149
        %4276 = vmatpush.bf16.msra.mxu0 %v2137
        %4277 = vmatpush.bf16.msra.mxu0 %v2125
        %4278 = vmatpush.bf16.msra.mxu0 %v2113
        %4279 = vmatmul.bf16.gmra.mxu0 %v957
        %v4280 = vpop.f32.mrf.mxu0
        %v4281 = vadd.f32 %v4192, %v4280
        %v4282 = vpop.f32.mrf.mxu0
        %v4283 = vadd.f32 %v4194, %v4282
        %4284 = vmatmul.bf16.gmra.mxu0 %v960
        %v4285 = vpop.f32.mrf.mxu0
        %v4286 = vadd.f32 %v4197, %v4285
        %v4287 = vpop.f32.mrf.mxu0
        %v4288 = vadd.f32 %v4199, %v4287
        %4289 = vmatmul.bf16.gmra.mxu0 %v963
        %v4290 = vpop.f32.mrf.mxu0
        %v4291 = vadd.f32 %v4202, %v4290
        %v4292 = vpop.f32.mrf.mxu0
        %v4293 = vadd.f32 %v4204, %v4292
        %4294 = vmatmul.bf16.gmra.mxu0 %v966
        %v4295 = vpop.f32.mrf.mxu0
        %v4296 = vadd.f32 %v4207, %v4295
        %v4297 = vpop.f32.mrf.mxu0
        %v4298 = vadd.f32 %v4209, %v4297
        %4299 = vmatmul.bf16.gmra.mxu0 %v969
        %v4300 = vpop.f32.mrf.mxu0
        %v4301 = vadd.f32 %v4212, %v4300
        %v4302 = vpop.f32.mrf.mxu0
        %v4303 = vadd.f32 %v4214, %v4302
        %4304 = vmatmul.bf16.gmra.mxu0 %v972
        %v4305 = vpop.f32.mrf.mxu0
        %v4306 = vadd.f32 %v4217, %v4305
        %v4307 = vpop.f32.mrf.mxu0
        %v4308 = vadd.f32 %v4219, %v4307
        %4309 = vmatmul.bf16.gmra.mxu0 %v975
        %v4310 = vpop.f32.mrf.mxu0
        %v4311 = vadd.f32 %v4222, %v4310
        %v4312 = vpop.f32.mrf.mxu0
        %v4313 = vadd.f32 %v4224, %v4312
        %4314 = vmatmul.bf16.gmra.mxu0 %v978
        %v4315 = vpop.f32.mrf.mxu0
        %v4316 = vadd.f32 %v4227, %v4315
        %v4317 = vpop.f32.mrf.mxu0
        %v4318 = vadd.f32 %v4229, %v4317
        %4319 = vmatmul.bf16.gmra.mxu0 %v981
        %v4320 = vpop.f32.mrf.mxu0
        %v4321 = vadd.f32 %v4232, %v4320
        %v4322 = vpop.f32.mrf.mxu0
        %v4323 = vadd.f32 %v4234, %v4322
        %4324 = vmatmul.bf16.gmra.mxu0 %v984
        %v4325 = vpop.f32.mrf.mxu0
        %v4326 = vadd.f32 %v4237, %v4325
        %v4327 = vpop.f32.mrf.mxu0
        %v4328 = vadd.f32 %v4239, %v4327
        %4329 = vmatmul.bf16.gmra.mxu0 %v987
        %v4330 = vpop.f32.mrf.mxu0
        %v4331 = vadd.f32 %v4242, %v4330
        %v4332 = vpop.f32.mrf.mxu0
        %v4333 = vadd.f32 %v4244, %v4332
        %4334 = vmatmul.bf16.gmra.mxu0 %v990
        %v4335 = vpop.f32.mrf.mxu0
        %v4336 = vadd.f32 %v4247, %v4335
        %v4337 = vpop.f32.mrf.mxu0
        %v4338 = vadd.f32 %v4249, %v4337
        %4339 = vmatmul.bf16.gmra.mxu0 %v993
        %v4340 = vpop.f32.mrf.mxu0
        %v4341 = vadd.f32 %v4252, %v4340
        %v4342 = vpop.f32.mrf.mxu0
        %v4343 = vadd.f32 %v4254, %v4342
        %4344 = vmatmul.bf16.gmra.mxu0 %v996
        %v4345 = vpop.f32.mrf.mxu0
        %v4346 = vadd.f32 %v4257, %v4345
        %v4347 = vpop.f32.mrf.mxu0
        %v4348 = vadd.f32 %v4259, %v4347
        %4349 = vmatmul.bf16.gmra.mxu0 %v999
        %v4350 = vpop.f32.mrf.mxu0
        %v4351 = vadd.f32 %v4262, %v4350
        %v4352 = vpop.f32.mrf.mxu0
        %v4353 = vadd.f32 %v4264, %v4352
        %4354 = vmatmul.bf16.gmra.mxu0 %v1002
        %v4355 = vpop.f32.mrf.mxu0
        %v4356 = vadd.f32 %v4267, %v4355
        %v4357 = vpop.f32.mrf.mxu0
        %v4358 = vadd.f32 %v4269, %v4357
        %4359 = vdwg.mxu0
        %4360 = vmatpush.bf16.msra.mxu0 %v2006
        %4361 = vmatpush.bf16.msra.mxu0 %v1994
        %4362 = vmatpush.bf16.msra.mxu0 %v1982
        %4363 = vmatpush.bf16.msra.mxu0 %v1970
        %4364 = vmatpush.bf16.msra.mxu0 %v1958
        %4365 = vmatpush.bf16.msra.mxu0 %v1946
        %4366 = vmatpush.bf16.msra.mxu0 %v1934
        %4367 = vmatpush.bf16.msra.mxu0 %v1922
        %4368 = vmatmul.bf16.gmra.mxu0 %v955
        %v4369 = vpop.f32.mrf.mxu0
        %v4370 = vadd.f32 %v778, %v4369
        %v4371 = vpop.f32.mrf.mxu0
        %v4372 = vadd.f32 %v778, %v4371
        %4373 = vmatmul.bf16.gmra.mxu0 %v958
        %v4374 = vpop.f32.mrf.mxu0
        %v4375 = vadd.f32 %v778, %v4374
        %v4376 = vpop.f32.mrf.mxu0
        %v4377 = vadd.f32 %v778, %v4376
        %4378 = vmatmul.bf16.gmra.mxu0 %v961
        %v4379 = vpop.f32.mrf.mxu0
        %v4380 = vadd.f32 %v778, %v4379
        %v4381 = vpop.f32.mrf.mxu0
        %v4382 = vadd.f32 %v778, %v4381
        %4383 = vmatmul.bf16.gmra.mxu0 %v964
        %v4384 = vpop.f32.mrf.mxu0
        %v4385 = vadd.f32 %v778, %v4384
        %v4386 = vpop.f32.mrf.mxu0
        %v4387 = vadd.f32 %v778, %v4386
        %4388 = vmatmul.bf16.gmra.mxu0 %v967
        %v4389 = vpop.f32.mrf.mxu0
        %v4390 = vadd.f32 %v778, %v4389
        %v4391 = vpop.f32.mrf.mxu0
        %v4392 = vadd.f32 %v778, %v4391
        %4393 = vmatmul.bf16.gmra.mxu0 %v970
        %v4394 = vpop.f32.mrf.mxu0
        %v4395 = vadd.f32 %v778, %v4394
        %v4396 = vpop.f32.mrf.mxu0
        %v4397 = vadd.f32 %v778, %v4396
        %4398 = vmatmul.bf16.gmra.mxu0 %v973
        %v4399 = vpop.f32.mrf.mxu0
        %v4400 = vadd.f32 %v778, %v4399
        %v4401 = vpop.f32.mrf.mxu0
        %v4402 = vadd.f32 %v778, %v4401
        %4403 = vmatmul.bf16.gmra.mxu0 %v976
        %v4404 = vpop.f32.mrf.mxu0
        %v4405 = vadd.f32 %v778, %v4404
        %v4406 = vpop.f32.mrf.mxu0
        %v4407 = vadd.f32 %v778, %v4406
        %4408 = vmatmul.bf16.gmra.mxu0 %v979
        %v4409 = vpop.f32.mrf.mxu0
        %v4410 = vadd.f32 %v778, %v4409
        %v4411 = vpop.f32.mrf.mxu0
        %v4412 = vadd.f32 %v778, %v4411
        %4413 = vmatmul.bf16.gmra.mxu0 %v982
        %v4414 = vpop.f32.mrf.mxu0
        %v4415 = vadd.f32 %v778, %v4414
        %v4416 = vpop.f32.mrf.mxu0
        %v4417 = vadd.f32 %v778, %v4416
        %4418 = vmatmul.bf16.gmra.mxu0 %v985
        %v4419 = vpop.f32.mrf.mxu0
        %v4420 = vadd.f32 %v778, %v4419
        %v4421 = vpop.f32.mrf.mxu0
        %v4422 = vadd.f32 %v778, %v4421
        %4423 = vmatmul.bf16.gmra.mxu0 %v988
        %v4424 = vpop.f32.mrf.mxu0
        %v4425 = vadd.f32 %v778, %v4424
        %v4426 = vpop.f32.mrf.mxu0
        %v4427 = vadd.f32 %v778, %v4426
        %4428 = vmatmul.bf16.gmra.mxu0 %v991
        %v4429 = vpop.f32.mrf.mxu0
        %v4430 = vadd.f32 %v778, %v4429
        %v4431 = vpop.f32.mrf.mxu0
        %v4432 = vadd.f32 %v778, %v4431
        %4433 = vmatmul.bf16.gmra.mxu0 %v994
        %v4434 = vpop.f32.mrf.mxu0
        %v4435 = vadd.f32 %v778, %v4434
        %v4436 = vpop.f32.mrf.mxu0
        %v4437 = vadd.f32 %v778, %v4436
        %4438 = vmatmul.bf16.gmra.mxu0 %v997
        %v4439 = vpop.f32.mrf.mxu0
        %v4440 = vadd.f32 %v778, %v4439
        %v4441 = vpop.f32.mrf.mxu0
        %v4442 = vadd.f32 %v778, %v4441
        %4443 = vmatmul.bf16.gmra.mxu0 %v1000
        %v4444 = vpop.f32.mrf.mxu0
        %v4445 = vadd.f32 %v778, %v4444
        %v4446 = vpop.f32.mrf.mxu0
        %v4447 = vadd.f32 %v778, %v4446
        %4448 = vdwg.mxu0
        %4449 = vmatpush.bf16.msra.mxu0 %v2102
        %4450 = vmatpush.bf16.msra.mxu0 %v2090
        %4451 = vmatpush.bf16.msra.mxu0 %v2078
        %4452 = vmatpush.bf16.msra.mxu0 %v2066
        %4453 = vmatpush.bf16.msra.mxu0 %v2054
        %4454 = vmatpush.bf16.msra.mxu0 %v2042
        %4455 = vmatpush.bf16.msra.mxu0 %v2030
        %4456 = vmatpush.bf16.msra.mxu0 %v2018
        %4457 = vmatmul.bf16.gmra.mxu0 %v956
        %v4458 = vpop.f32.mrf.mxu0
        %v4459 = vadd.f32 %v4370, %v4458
        %v4460 = vpop.f32.mrf.mxu0
        %v4461 = vadd.f32 %v4372, %v4460
        %4462 = vmatmul.bf16.gmra.mxu0 %v959
        %v4463 = vpop.f32.mrf.mxu0
        %v4464 = vadd.f32 %v4375, %v4463
        %v4465 = vpop.f32.mrf.mxu0
        %v4466 = vadd.f32 %v4377, %v4465
        %4467 = vmatmul.bf16.gmra.mxu0 %v962
        %v4468 = vpop.f32.mrf.mxu0
        %v4469 = vadd.f32 %v4380, %v4468
        %v4470 = vpop.f32.mrf.mxu0
        %v4471 = vadd.f32 %v4382, %v4470
        %4472 = vmatmul.bf16.gmra.mxu0 %v965
        %v4473 = vpop.f32.mrf.mxu0
        %v4474 = vadd.f32 %v4385, %v4473
        %v4475 = vpop.f32.mrf.mxu0
        %v4476 = vadd.f32 %v4387, %v4475
        %4477 = vmatmul.bf16.gmra.mxu0 %v968
        %v4478 = vpop.f32.mrf.mxu0
        %v4479 = vadd.f32 %v4390, %v4478
        %v4480 = vpop.f32.mrf.mxu0
        %v4481 = vadd.f32 %v4392, %v4480
        %4482 = vmatmul.bf16.gmra.mxu0 %v971
        %v4483 = vpop.f32.mrf.mxu0
        %v4484 = vadd.f32 %v4395, %v4483
        %v4485 = vpop.f32.mrf.mxu0
        %v4486 = vadd.f32 %v4397, %v4485
        %4487 = vmatmul.bf16.gmra.mxu0 %v974
        %v4488 = vpop.f32.mrf.mxu0
        %v4489 = vadd.f32 %v4400, %v4488
        %v4490 = vpop.f32.mrf.mxu0
        %v4491 = vadd.f32 %v4402, %v4490
        %4492 = vmatmul.bf16.gmra.mxu0 %v977
        %v4493 = vpop.f32.mrf.mxu0
        %v4494 = vadd.f32 %v4405, %v4493
        %v4495 = vpop.f32.mrf.mxu0
        %v4496 = vadd.f32 %v4407, %v4495
        %4497 = vmatmul.bf16.gmra.mxu0 %v980
        %v4498 = vpop.f32.mrf.mxu0
        %v4499 = vadd.f32 %v4410, %v4498
        %v4500 = vpop.f32.mrf.mxu0
        %v4501 = vadd.f32 %v4412, %v4500
        %4502 = vmatmul.bf16.gmra.mxu0 %v983
        %v4503 = vpop.f32.mrf.mxu0
        %v4504 = vadd.f32 %v4415, %v4503
        %v4505 = vpop.f32.mrf.mxu0
        %v4506 = vadd.f32 %v4417, %v4505
        %4507 = vmatmul.bf16.gmra.mxu0 %v986
        %v4508 = vpop.f32.mrf.mxu0
        %v4509 = vadd.f32 %v4420, %v4508
        %v4510 = vpop.f32.mrf.mxu0
        %v4511 = vadd.f32 %v4422, %v4510
        %4512 = vmatmul.bf16.gmra.mxu0 %v989
        %v4513 = vpop.f32.mrf.mxu0
        %v4514 = vadd.f32 %v4425, %v4513
        %v4515 = vpop.f32.mrf.mxu0
        %v4516 = vadd.f32 %v4427, %v4515
        %4517 = vmatmul.bf16.gmra.mxu0 %v992
        %v4518 = vpop.f32.mrf.mxu0
        %v4519 = vadd.f32 %v4430, %v4518
        %v4520 = vpop.f32.mrf.mxu0
        %v4521 = vadd.f32 %v4432, %v4520
        %4522 = vmatmul.bf16.gmra.mxu0 %v995
        %v4523 = vpop.f32.mrf.mxu0
        %v4524 = vadd.f32 %v4435, %v4523
        %v4525 = vpop.f32.mrf.mxu0
        %v4526 = vadd.f32 %v4437, %v4525
        %4527 = vmatmul.bf16.gmra.mxu0 %v998
        %v4528 = vpop.f32.mrf.mxu0
        %v4529 = vadd.f32 %v4440, %v4528
        %v4530 = vpop.f32.mrf.mxu0
        %v4531 = vadd.f32 %v4442, %v4530
        %4532 = vmatmul.bf16.gmra.mxu0 %v1001
        %v4533 = vpop.f32.mrf.mxu0
        %v4534 = vadd.f32 %v4445, %v4533
        %v4535 = vpop.f32.mrf.mxu0
        %v4536 = vadd.f32 %v4447, %v4535
        %4537 = vdwg.mxu0
        %4538 = vmatpush.bf16.msra.mxu0 %v2198
        %4539 = vmatpush.bf16.msra.mxu0 %v2186
        %4540 = vmatpush.bf16.msra.mxu0 %v2174
        %4541 = vmatpush.bf16.msra.mxu0 %v2162
        %4542 = vmatpush.bf16.msra.mxu0 %v2150
        %4543 = vmatpush.bf16.msra.mxu0 %v2138
        %4544 = vmatpush.bf16.msra.mxu0 %v2126
        %4545 = vmatpush.bf16.msra.mxu0 %v2114
        %4546 = vmatmul.bf16.gmra.mxu0 %v957
        %v4547 = vpop.f32.mrf.mxu0
        %v4548 = vadd.f32 %v4459, %v4547
        %v4549 = vpop.f32.mrf.mxu0
        %v4550 = vadd.f32 %v4461, %v4549
        %4551 = vmatmul.bf16.gmra.mxu0 %v960
        %v4552 = vpop.f32.mrf.mxu0
        %v4553 = vadd.f32 %v4464, %v4552
        %v4554 = vpop.f32.mrf.mxu0
        %v4555 = vadd.f32 %v4466, %v4554
        %4556 = vmatmul.bf16.gmra.mxu0 %v963
        %v4557 = vpop.f32.mrf.mxu0
        %v4558 = vadd.f32 %v4469, %v4557
        %v4559 = vpop.f32.mrf.mxu0
        %v4560 = vadd.f32 %v4471, %v4559
        %4561 = vmatmul.bf16.gmra.mxu0 %v966
        %v4562 = vpop.f32.mrf.mxu0
        %v4563 = vadd.f32 %v4474, %v4562
        %v4564 = vpop.f32.mrf.mxu0
        %v4565 = vadd.f32 %v4476, %v4564
        %4566 = vmatmul.bf16.gmra.mxu0 %v969
        %v4567 = vpop.f32.mrf.mxu0
        %v4568 = vadd.f32 %v4479, %v4567
        %v4569 = vpop.f32.mrf.mxu0
        %v4570 = vadd.f32 %v4481, %v4569
        %4571 = vmatmul.bf16.gmra.mxu0 %v972
        %v4572 = vpop.f32.mrf.mxu0
        %v4573 = vadd.f32 %v4484, %v4572
        %v4574 = vpop.f32.mrf.mxu0
        %v4575 = vadd.f32 %v4486, %v4574
        %4576 = vmatmul.bf16.gmra.mxu0 %v975
        %v4577 = vpop.f32.mrf.mxu0
        %v4578 = vadd.f32 %v4489, %v4577
        %v4579 = vpop.f32.mrf.mxu0
        %v4580 = vadd.f32 %v4491, %v4579
        %4581 = vmatmul.bf16.gmra.mxu0 %v978
        %v4582 = vpop.f32.mrf.mxu0
        %v4583 = vadd.f32 %v4494, %v4582
        %v4584 = vpop.f32.mrf.mxu0
        %v4585 = vadd.f32 %v4496, %v4584
        %4586 = vmatmul.bf16.gmra.mxu0 %v981
        %v4587 = vpop.f32.mrf.mxu0
        %v4588 = vadd.f32 %v4499, %v4587
        %v4589 = vpop.f32.mrf.mxu0
        %v4590 = vadd.f32 %v4501, %v4589
        %4591 = vmatmul.bf16.gmra.mxu0 %v984
        %v4592 = vpop.f32.mrf.mxu0
        %v4593 = vadd.f32 %v4504, %v4592
        %v4594 = vpop.f32.mrf.mxu0
        %v4595 = vadd.f32 %v4506, %v4594
        %4596 = vmatmul.bf16.gmra.mxu0 %v987
        %v4597 = vpop.f32.mrf.mxu0
        %v4598 = vadd.f32 %v4509, %v4597
        %v4599 = vpop.f32.mrf.mxu0
        %v4600 = vadd.f32 %v4511, %v4599
        %4601 = vmatmul.bf16.gmra.mxu0 %v990
        %v4602 = vpop.f32.mrf.mxu0
        %v4603 = vadd.f32 %v4514, %v4602
        %v4604 = vpop.f32.mrf.mxu0
        %v4605 = vadd.f32 %v4516, %v4604
        %4606 = vmatmul.bf16.gmra.mxu0 %v993
        %v4607 = vpop.f32.mrf.mxu0
        %v4608 = vadd.f32 %v4519, %v4607
        %v4609 = vpop.f32.mrf.mxu0
        %v4610 = vadd.f32 %v4521, %v4609
        %4611 = vmatmul.bf16.gmra.mxu0 %v996
        %v4612 = vpop.f32.mrf.mxu0
        %v4613 = vadd.f32 %v4524, %v4612
        %v4614 = vpop.f32.mrf.mxu0
        %v4615 = vadd.f32 %v4526, %v4614
        %4616 = vmatmul.bf16.gmra.mxu0 %v999
        %v4617 = vpop.f32.mrf.mxu0
        %v4618 = vadd.f32 %v4529, %v4617
        %v4619 = vpop.f32.mrf.mxu0
        %v4620 = vadd.f32 %v4531, %v4619
        %4621 = vmatmul.bf16.gmra.mxu0 %v1002
        %v4622 = vpop.f32.mrf.mxu0
        %v4623 = vadd.f32 %v4534, %v4622
        %v4624 = vpop.f32.mrf.mxu0
        %v4625 = vadd.f32 %v4536, %v4624
        %4626 = vdwg.mxu0
        %4627 = vmatpush.bf16.msra.mxu0 %v2007
        %4628 = vmatpush.bf16.msra.mxu0 %v1995
        %4629 = vmatpush.bf16.msra.mxu0 %v1983
        %4630 = vmatpush.bf16.msra.mxu0 %v1971
        %4631 = vmatpush.bf16.msra.mxu0 %v1959
        %4632 = vmatpush.bf16.msra.mxu0 %v1947
        %4633 = vmatpush.bf16.msra.mxu0 %v1935
        %4634 = vmatpush.bf16.msra.mxu0 %v1923
        %4635 = vmatmul.bf16.gmra.mxu0 %v955
        %v4636 = vpop.f32.mrf.mxu0
        %v4637 = vadd.f32 %v779, %v4636
        %v4638 = vpop.f32.mrf.mxu0
        %v4639 = vadd.f32 %v779, %v4638
        %4640 = vmatmul.bf16.gmra.mxu0 %v958
        %v4641 = vpop.f32.mrf.mxu0
        %v4642 = vadd.f32 %v779, %v4641
        %v4643 = vpop.f32.mrf.mxu0
        %v4644 = vadd.f32 %v779, %v4643
        %4645 = vmatmul.bf16.gmra.mxu0 %v961
        %v4646 = vpop.f32.mrf.mxu0
        %v4647 = vadd.f32 %v779, %v4646
        %v4648 = vpop.f32.mrf.mxu0
        %v4649 = vadd.f32 %v779, %v4648
        %4650 = vmatmul.bf16.gmra.mxu0 %v964
        %v4651 = vpop.f32.mrf.mxu0
        %v4652 = vadd.f32 %v779, %v4651
        %v4653 = vpop.f32.mrf.mxu0
        %v4654 = vadd.f32 %v779, %v4653
        %4655 = vmatmul.bf16.gmra.mxu0 %v967
        %v4656 = vpop.f32.mrf.mxu0
        %v4657 = vadd.f32 %v779, %v4656
        %v4658 = vpop.f32.mrf.mxu0
        %v4659 = vadd.f32 %v779, %v4658
        %4660 = vmatmul.bf16.gmra.mxu0 %v970
        %v4661 = vpop.f32.mrf.mxu0
        %v4662 = vadd.f32 %v779, %v4661
        %v4663 = vpop.f32.mrf.mxu0
        %v4664 = vadd.f32 %v779, %v4663
        %4665 = vmatmul.bf16.gmra.mxu0 %v973
        %v4666 = vpop.f32.mrf.mxu0
        %v4667 = vadd.f32 %v779, %v4666
        %v4668 = vpop.f32.mrf.mxu0
        %v4669 = vadd.f32 %v779, %v4668
        %4670 = vmatmul.bf16.gmra.mxu0 %v976
        %v4671 = vpop.f32.mrf.mxu0
        %v4672 = vadd.f32 %v779, %v4671
        %v4673 = vpop.f32.mrf.mxu0
        %v4674 = vadd.f32 %v779, %v4673
        %4675 = vmatmul.bf16.gmra.mxu0 %v979
        %v4676 = vpop.f32.mrf.mxu0
        %v4677 = vadd.f32 %v779, %v4676
        %v4678 = vpop.f32.mrf.mxu0
        %v4679 = vadd.f32 %v779, %v4678
        %4680 = vmatmul.bf16.gmra.mxu0 %v982
        %v4681 = vpop.f32.mrf.mxu0
        %v4682 = vadd.f32 %v779, %v4681
        %v4683 = vpop.f32.mrf.mxu0
        %v4684 = vadd.f32 %v779, %v4683
        %4685 = vmatmul.bf16.gmra.mxu0 %v985
        %v4686 = vpop.f32.mrf.mxu0
        %v4687 = vadd.f32 %v779, %v4686
        %v4688 = vpop.f32.mrf.mxu0
        %v4689 = vadd.f32 %v779, %v4688
        %4690 = vmatmul.bf16.gmra.mxu0 %v988
        %v4691 = vpop.f32.mrf.mxu0
        %v4692 = vadd.f32 %v779, %v4691
        %v4693 = vpop.f32.mrf.mxu0
        %v4694 = vadd.f32 %v779, %v4693
        %4695 = vmatmul.bf16.gmra.mxu0 %v991
        %v4696 = vpop.f32.mrf.mxu0
        %v4697 = vadd.f32 %v779, %v4696
        %v4698 = vpop.f32.mrf.mxu0
        %v4699 = vadd.f32 %v779, %v4698
        %4700 = vmatmul.bf16.gmra.mxu0 %v994
        %v4701 = vpop.f32.mrf.mxu0
        %v4702 = vadd.f32 %v779, %v4701
        %v4703 = vpop.f32.mrf.mxu0
        %v4704 = vadd.f32 %v779, %v4703
        %4705 = vmatmul.bf16.gmra.mxu0 %v997
        %v4706 = vpop.f32.mrf.mxu0
        %v4707 = vadd.f32 %v779, %v4706
        %v4708 = vpop.f32.mrf.mxu0
        %v4709 = vadd.f32 %v779, %v4708
        %4710 = vmatmul.bf16.gmra.mxu0 %v1000
        %v4711 = vpop.f32.mrf.mxu0
        %v4712 = vadd.f32 %v779, %v4711
        %v4713 = vpop.f32.mrf.mxu0
        %v4714 = vadd.f32 %v779, %v4713
        %4715 = vdwg.mxu0
        %4716 = vmatpush.bf16.msra.mxu0 %v2103
        %4717 = vmatpush.bf16.msra.mxu0 %v2091
        %4718 = vmatpush.bf16.msra.mxu0 %v2079
        %4719 = vmatpush.bf16.msra.mxu0 %v2067
        %4720 = vmatpush.bf16.msra.mxu0 %v2055
        %4721 = vmatpush.bf16.msra.mxu0 %v2043
        %4722 = vmatpush.bf16.msra.mxu0 %v2031
        %4723 = vmatpush.bf16.msra.mxu0 %v2019
        %4724 = vmatmul.bf16.gmra.mxu0 %v956
        %v4725 = vpop.f32.mrf.mxu0
        %v4726 = vadd.f32 %v4637, %v4725
        %v4727 = vpop.f32.mrf.mxu0
        %v4728 = vadd.f32 %v4639, %v4727
        %4729 = vmatmul.bf16.gmra.mxu0 %v959
        %v4730 = vpop.f32.mrf.mxu0
        %v4731 = vadd.f32 %v4642, %v4730
        %v4732 = vpop.f32.mrf.mxu0
        %v4733 = vadd.f32 %v4644, %v4732
        %4734 = vmatmul.bf16.gmra.mxu0 %v962
        %v4735 = vpop.f32.mrf.mxu0
        %v4736 = vadd.f32 %v4647, %v4735
        %v4737 = vpop.f32.mrf.mxu0
        %v4738 = vadd.f32 %v4649, %v4737
        %4739 = vmatmul.bf16.gmra.mxu0 %v965
        %v4740 = vpop.f32.mrf.mxu0
        %v4741 = vadd.f32 %v4652, %v4740
        %v4742 = vpop.f32.mrf.mxu0
        %v4743 = vadd.f32 %v4654, %v4742
        %4744 = vmatmul.bf16.gmra.mxu0 %v968
        %v4745 = vpop.f32.mrf.mxu0
        %v4746 = vadd.f32 %v4657, %v4745
        %v4747 = vpop.f32.mrf.mxu0
        %v4748 = vadd.f32 %v4659, %v4747
        %4749 = vmatmul.bf16.gmra.mxu0 %v971
        %v4750 = vpop.f32.mrf.mxu0
        %v4751 = vadd.f32 %v4662, %v4750
        %v4752 = vpop.f32.mrf.mxu0
        %v4753 = vadd.f32 %v4664, %v4752
        %4754 = vmatmul.bf16.gmra.mxu0 %v974
        %v4755 = vpop.f32.mrf.mxu0
        %v4756 = vadd.f32 %v4667, %v4755
        %v4757 = vpop.f32.mrf.mxu0
        %v4758 = vadd.f32 %v4669, %v4757
        %4759 = vmatmul.bf16.gmra.mxu0 %v977
        %v4760 = vpop.f32.mrf.mxu0
        %v4761 = vadd.f32 %v4672, %v4760
        %v4762 = vpop.f32.mrf.mxu0
        %v4763 = vadd.f32 %v4674, %v4762
        %4764 = vmatmul.bf16.gmra.mxu0 %v980
        %v4765 = vpop.f32.mrf.mxu0
        %v4766 = vadd.f32 %v4677, %v4765
        %v4767 = vpop.f32.mrf.mxu0
        %v4768 = vadd.f32 %v4679, %v4767
        %4769 = vmatmul.bf16.gmra.mxu0 %v983
        %v4770 = vpop.f32.mrf.mxu0
        %v4771 = vadd.f32 %v4682, %v4770
        %v4772 = vpop.f32.mrf.mxu0
        %v4773 = vadd.f32 %v4684, %v4772
        %4774 = vmatmul.bf16.gmra.mxu0 %v986
        %v4775 = vpop.f32.mrf.mxu0
        %v4776 = vadd.f32 %v4687, %v4775
        %v4777 = vpop.f32.mrf.mxu0
        %v4778 = vadd.f32 %v4689, %v4777
        %4779 = vmatmul.bf16.gmra.mxu0 %v989
        %v4780 = vpop.f32.mrf.mxu0
        %v4781 = vadd.f32 %v4692, %v4780
        %v4782 = vpop.f32.mrf.mxu0
        %v4783 = vadd.f32 %v4694, %v4782
        %4784 = vmatmul.bf16.gmra.mxu0 %v992
        %v4785 = vpop.f32.mrf.mxu0
        %v4786 = vadd.f32 %v4697, %v4785
        %v4787 = vpop.f32.mrf.mxu0
        %v4788 = vadd.f32 %v4699, %v4787
        %4789 = vmatmul.bf16.gmra.mxu0 %v995
        %v4790 = vpop.f32.mrf.mxu0
        %v4791 = vadd.f32 %v4702, %v4790
        %v4792 = vpop.f32.mrf.mxu0
        %v4793 = vadd.f32 %v4704, %v4792
        %4794 = vmatmul.bf16.gmra.mxu0 %v998
        %v4795 = vpop.f32.mrf.mxu0
        %v4796 = vadd.f32 %v4707, %v4795
        %v4797 = vpop.f32.mrf.mxu0
        %v4798 = vadd.f32 %v4709, %v4797
        %4799 = vmatmul.bf16.gmra.mxu0 %v1001
        %v4800 = vpop.f32.mrf.mxu0
        %v4801 = vadd.f32 %v4712, %v4800
        %v4802 = vpop.f32.mrf.mxu0
        %v4803 = vadd.f32 %v4714, %v4802
        %4804 = vdwg.mxu0
        %4805 = vmatpush.bf16.msra.mxu0 %v2199
        %4806 = vmatpush.bf16.msra.mxu0 %v2187
        %4807 = vmatpush.bf16.msra.mxu0 %v2175
        %4808 = vmatpush.bf16.msra.mxu0 %v2163
        %4809 = vmatpush.bf16.msra.mxu0 %v2151
        %4810 = vmatpush.bf16.msra.mxu0 %v2139
        %4811 = vmatpush.bf16.msra.mxu0 %v2127
        %4812 = vmatpush.bf16.msra.mxu0 %v2115
        %4813 = vmatmul.bf16.gmra.mxu0 %v957
        %v4814 = vpop.f32.mrf.mxu0
        %v4815 = vadd.f32 %v4726, %v4814
        %v4816 = vpop.f32.mrf.mxu0
        %v4817 = vadd.f32 %v4728, %v4816
        %4818 = vmatmul.bf16.gmra.mxu0 %v960
        %v4819 = vpop.f32.mrf.mxu0
        %v4820 = vadd.f32 %v4731, %v4819
        %v4821 = vpop.f32.mrf.mxu0
        %v4822 = vadd.f32 %v4733, %v4821
        %4823 = vmatmul.bf16.gmra.mxu0 %v963
        %v4824 = vpop.f32.mrf.mxu0
        %v4825 = vadd.f32 %v4736, %v4824
        %v4826 = vpop.f32.mrf.mxu0
        %v4827 = vadd.f32 %v4738, %v4826
        %4828 = vmatmul.bf16.gmra.mxu0 %v966
        %v4829 = vpop.f32.mrf.mxu0
        %v4830 = vadd.f32 %v4741, %v4829
        %v4831 = vpop.f32.mrf.mxu0
        %v4832 = vadd.f32 %v4743, %v4831
        %4833 = vmatmul.bf16.gmra.mxu0 %v969
        %v4834 = vpop.f32.mrf.mxu0
        %v4835 = vadd.f32 %v4746, %v4834
        %v4836 = vpop.f32.mrf.mxu0
        %v4837 = vadd.f32 %v4748, %v4836
        %4838 = vmatmul.bf16.gmra.mxu0 %v972
        %v4839 = vpop.f32.mrf.mxu0
        %v4840 = vadd.f32 %v4751, %v4839
        %v4841 = vpop.f32.mrf.mxu0
        %v4842 = vadd.f32 %v4753, %v4841
        %4843 = vmatmul.bf16.gmra.mxu0 %v975
        %v4844 = vpop.f32.mrf.mxu0
        %v4845 = vadd.f32 %v4756, %v4844
        %v4846 = vpop.f32.mrf.mxu0
        %v4847 = vadd.f32 %v4758, %v4846
        %4848 = vmatmul.bf16.gmra.mxu0 %v978
        %v4849 = vpop.f32.mrf.mxu0
        %v4850 = vadd.f32 %v4761, %v4849
        %v4851 = vpop.f32.mrf.mxu0
        %v4852 = vadd.f32 %v4763, %v4851
        %4853 = vmatmul.bf16.gmra.mxu0 %v981
        %v4854 = vpop.f32.mrf.mxu0
        %v4855 = vadd.f32 %v4766, %v4854
        %v4856 = vpop.f32.mrf.mxu0
        %v4857 = vadd.f32 %v4768, %v4856
        %4858 = vmatmul.bf16.gmra.mxu0 %v984
        %v4859 = vpop.f32.mrf.mxu0
        %v4860 = vadd.f32 %v4771, %v4859
        %v4861 = vpop.f32.mrf.mxu0
        %v4862 = vadd.f32 %v4773, %v4861
        %4863 = vmatmul.bf16.gmra.mxu0 %v987
        %v4864 = vpop.f32.mrf.mxu0
        %v4865 = vadd.f32 %v4776, %v4864
        %v4866 = vpop.f32.mrf.mxu0
        %v4867 = vadd.f32 %v4778, %v4866
        %4868 = vmatmul.bf16.gmra.mxu0 %v990
        %v4869 = vpop.f32.mrf.mxu0
        %v4870 = vadd.f32 %v4781, %v4869
        %v4871 = vpop.f32.mrf.mxu0
        %v4872 = vadd.f32 %v4783, %v4871
        %4873 = vmatmul.bf16.gmra.mxu0 %v993
        %v4874 = vpop.f32.mrf.mxu0
        %v4875 = vadd.f32 %v4786, %v4874
        %v4876 = vpop.f32.mrf.mxu0
        %v4877 = vadd.f32 %v4788, %v4876
        %4878 = vmatmul.bf16.gmra.mxu0 %v996
        %v4879 = vpop.f32.mrf.mxu0
        %v4880 = vadd.f32 %v4791, %v4879
        %v4881 = vpop.f32.mrf.mxu0
        %v4882 = vadd.f32 %v4793, %v4881
        %4883 = vmatmul.bf16.gmra.mxu0 %v999
        %v4884 = vpop.f32.mrf.mxu0
        %v4885 = vadd.f32 %v4796, %v4884
        %v4886 = vpop.f32.mrf.mxu0
        %v4887 = vadd.f32 %v4798, %v4886
        %4888 = vmatmul.bf16.gmra.mxu0 %v1002
        %v4889 = vpop.f32.mrf.mxu0
        %v4890 = vadd.f32 %v4801, %v4889
        %v4891 = vpop.f32.mrf.mxu0
        %v4892 = vadd.f32 %v4803, %v4891
        %4893 = vdwg.mxu0
        %4894 = vmatpush.bf16.msra.mxu0 %v2008
        %4895 = vmatpush.bf16.msra.mxu0 %v1996
        %4896 = vmatpush.bf16.msra.mxu0 %v1984
        %4897 = vmatpush.bf16.msra.mxu0 %v1972
        %4898 = vmatpush.bf16.msra.mxu0 %v1960
        %4899 = vmatpush.bf16.msra.mxu0 %v1948
        %4900 = vmatpush.bf16.msra.mxu0 %v1936
        %4901 = vmatpush.bf16.msra.mxu0 %v1924
        %4902 = vmatmul.bf16.gmra.mxu0 %v955
        %v4903 = vpop.f32.mrf.mxu0
        %v4904 = vadd.f32 %v780, %v4903
        %v4905 = vpop.f32.mrf.mxu0
        %v4906 = vadd.f32 %v780, %v4905
        %4907 = vmatmul.bf16.gmra.mxu0 %v958
        %v4908 = vpop.f32.mrf.mxu0
        %v4909 = vadd.f32 %v780, %v4908
        %v4910 = vpop.f32.mrf.mxu0
        %v4911 = vadd.f32 %v780, %v4910
        %4912 = vmatmul.bf16.gmra.mxu0 %v961
        %v4913 = vpop.f32.mrf.mxu0
        %v4914 = vadd.f32 %v780, %v4913
        %v4915 = vpop.f32.mrf.mxu0
        %v4916 = vadd.f32 %v780, %v4915
        %4917 = vmatmul.bf16.gmra.mxu0 %v964
        %v4918 = vpop.f32.mrf.mxu0
        %v4919 = vadd.f32 %v780, %v4918
        %v4920 = vpop.f32.mrf.mxu0
        %v4921 = vadd.f32 %v780, %v4920
        %4922 = vmatmul.bf16.gmra.mxu0 %v967
        %v4923 = vpop.f32.mrf.mxu0
        %v4924 = vadd.f32 %v780, %v4923
        %v4925 = vpop.f32.mrf.mxu0
        %v4926 = vadd.f32 %v780, %v4925
        %4927 = vmatmul.bf16.gmra.mxu0 %v970
        %v4928 = vpop.f32.mrf.mxu0
        %v4929 = vadd.f32 %v780, %v4928
        %v4930 = vpop.f32.mrf.mxu0
        %v4931 = vadd.f32 %v780, %v4930
        %4932 = vmatmul.bf16.gmra.mxu0 %v973
        %v4933 = vpop.f32.mrf.mxu0
        %v4934 = vadd.f32 %v780, %v4933
        %v4935 = vpop.f32.mrf.mxu0
        %v4936 = vadd.f32 %v780, %v4935
        %4937 = vmatmul.bf16.gmra.mxu0 %v976
        %v4938 = vpop.f32.mrf.mxu0
        %v4939 = vadd.f32 %v780, %v4938
        %v4940 = vpop.f32.mrf.mxu0
        %v4941 = vadd.f32 %v780, %v4940
        %4942 = vmatmul.bf16.gmra.mxu0 %v979
        %v4943 = vpop.f32.mrf.mxu0
        %v4944 = vadd.f32 %v780, %v4943
        %v4945 = vpop.f32.mrf.mxu0
        %v4946 = vadd.f32 %v780, %v4945
        %4947 = vmatmul.bf16.gmra.mxu0 %v982
        %v4948 = vpop.f32.mrf.mxu0
        %v4949 = vadd.f32 %v780, %v4948
        %v4950 = vpop.f32.mrf.mxu0
        %v4951 = vadd.f32 %v780, %v4950
        %4952 = vmatmul.bf16.gmra.mxu0 %v985
        %v4953 = vpop.f32.mrf.mxu0
        %v4954 = vadd.f32 %v780, %v4953
        %v4955 = vpop.f32.mrf.mxu0
        %v4956 = vadd.f32 %v780, %v4955
        %4957 = vmatmul.bf16.gmra.mxu0 %v988
        %v4958 = vpop.f32.mrf.mxu0
        %v4959 = vadd.f32 %v780, %v4958
        %v4960 = vpop.f32.mrf.mxu0
        %v4961 = vadd.f32 %v780, %v4960
        %4962 = vmatmul.bf16.gmra.mxu0 %v991
        %v4963 = vpop.f32.mrf.mxu0
        %v4964 = vadd.f32 %v780, %v4963
        %v4965 = vpop.f32.mrf.mxu0
        %v4966 = vadd.f32 %v780, %v4965
        %4967 = vmatmul.bf16.gmra.mxu0 %v994
        %v4968 = vpop.f32.mrf.mxu0
        %v4969 = vadd.f32 %v780, %v4968
        %v4970 = vpop.f32.mrf.mxu0
        %v4971 = vadd.f32 %v780, %v4970
        %4972 = vmatmul.bf16.gmra.mxu0 %v997
        %v4973 = vpop.f32.mrf.mxu0
        %v4974 = vadd.f32 %v780, %v4973
        %v4975 = vpop.f32.mrf.mxu0
        %v4976 = vadd.f32 %v780, %v4975
        %4977 = vmatmul.bf16.gmra.mxu0 %v1000
        %v4978 = vpop.f32.mrf.mxu0
        %v4979 = vadd.f32 %v780, %v4978
        %v4980 = vpop.f32.mrf.mxu0
        %v4981 = vadd.f32 %v780, %v4980
        %4982 = vdwg.mxu0
        %4983 = vmatpush.bf16.msra.mxu0 %v2104
        %4984 = vmatpush.bf16.msra.mxu0 %v2092
        %4985 = vmatpush.bf16.msra.mxu0 %v2080
        %4986 = vmatpush.bf16.msra.mxu0 %v2068
        %4987 = vmatpush.bf16.msra.mxu0 %v2056
        %4988 = vmatpush.bf16.msra.mxu0 %v2044
        %4989 = vmatpush.bf16.msra.mxu0 %v2032
        %4990 = vmatpush.bf16.msra.mxu0 %v2020
        %4991 = vmatmul.bf16.gmra.mxu0 %v956
        %v4992 = vpop.f32.mrf.mxu0
        %v4993 = vadd.f32 %v4904, %v4992
        %v4994 = vpop.f32.mrf.mxu0
        %v4995 = vadd.f32 %v4906, %v4994
        %4996 = vmatmul.bf16.gmra.mxu0 %v959
        %v4997 = vpop.f32.mrf.mxu0
        %v4998 = vadd.f32 %v4909, %v4997
        %v4999 = vpop.f32.mrf.mxu0
        %v5000 = vadd.f32 %v4911, %v4999
        %5001 = vmatmul.bf16.gmra.mxu0 %v962
        %v5002 = vpop.f32.mrf.mxu0
        %v5003 = vadd.f32 %v4914, %v5002
        %v5004 = vpop.f32.mrf.mxu0
        %v5005 = vadd.f32 %v4916, %v5004
        %5006 = vmatmul.bf16.gmra.mxu0 %v965
        %v5007 = vpop.f32.mrf.mxu0
        %v5008 = vadd.f32 %v4919, %v5007
        %v5009 = vpop.f32.mrf.mxu0
        %v5010 = vadd.f32 %v4921, %v5009
        %5011 = vmatmul.bf16.gmra.mxu0 %v968
        %v5012 = vpop.f32.mrf.mxu0
        %v5013 = vadd.f32 %v4924, %v5012
        %v5014 = vpop.f32.mrf.mxu0
        %v5015 = vadd.f32 %v4926, %v5014
        %5016 = vmatmul.bf16.gmra.mxu0 %v971
        %v5017 = vpop.f32.mrf.mxu0
        %v5018 = vadd.f32 %v4929, %v5017
        %v5019 = vpop.f32.mrf.mxu0
        %v5020 = vadd.f32 %v4931, %v5019
        %5021 = vmatmul.bf16.gmra.mxu0 %v974
        %v5022 = vpop.f32.mrf.mxu0
        %v5023 = vadd.f32 %v4934, %v5022
        %v5024 = vpop.f32.mrf.mxu0
        %v5025 = vadd.f32 %v4936, %v5024
        %5026 = vmatmul.bf16.gmra.mxu0 %v977
        %v5027 = vpop.f32.mrf.mxu0
        %v5028 = vadd.f32 %v4939, %v5027
        %v5029 = vpop.f32.mrf.mxu0
        %v5030 = vadd.f32 %v4941, %v5029
        %5031 = vmatmul.bf16.gmra.mxu0 %v980
        %v5032 = vpop.f32.mrf.mxu0
        %v5033 = vadd.f32 %v4944, %v5032
        %v5034 = vpop.f32.mrf.mxu0
        %v5035 = vadd.f32 %v4946, %v5034
        %5036 = vmatmul.bf16.gmra.mxu0 %v983
        %v5037 = vpop.f32.mrf.mxu0
        %v5038 = vadd.f32 %v4949, %v5037
        %v5039 = vpop.f32.mrf.mxu0
        %v5040 = vadd.f32 %v4951, %v5039
        %5041 = vmatmul.bf16.gmra.mxu0 %v986
        %v5042 = vpop.f32.mrf.mxu0
        %v5043 = vadd.f32 %v4954, %v5042
        %v5044 = vpop.f32.mrf.mxu0
        %v5045 = vadd.f32 %v4956, %v5044
        %5046 = vmatmul.bf16.gmra.mxu0 %v989
        %v5047 = vpop.f32.mrf.mxu0
        %v5048 = vadd.f32 %v4959, %v5047
        %v5049 = vpop.f32.mrf.mxu0
        %v5050 = vadd.f32 %v4961, %v5049
        %5051 = vmatmul.bf16.gmra.mxu0 %v992
        %v5052 = vpop.f32.mrf.mxu0
        %v5053 = vadd.f32 %v4964, %v5052
        %v5054 = vpop.f32.mrf.mxu0
        %v5055 = vadd.f32 %v4966, %v5054
        %5056 = vmatmul.bf16.gmra.mxu0 %v995
        %v5057 = vpop.f32.mrf.mxu0
        %v5058 = vadd.f32 %v4969, %v5057
        %v5059 = vpop.f32.mrf.mxu0
        %v5060 = vadd.f32 %v4971, %v5059
        %5061 = vmatmul.bf16.gmra.mxu0 %v998
        %v5062 = vpop.f32.mrf.mxu0
        %v5063 = vadd.f32 %v4974, %v5062
        %v5064 = vpop.f32.mrf.mxu0
        %v5065 = vadd.f32 %v4976, %v5064
        %5066 = vmatmul.bf16.gmra.mxu0 %v1001
        %v5067 = vpop.f32.mrf.mxu0
        %v5068 = vadd.f32 %v4979, %v5067
        %v5069 = vpop.f32.mrf.mxu0
        %v5070 = vadd.f32 %v4981, %v5069
        %5071 = vdwg.mxu0
        %5072 = vmatpush.bf16.msra.mxu0 %v2200
        %5073 = vmatpush.bf16.msra.mxu0 %v2188
        %5074 = vmatpush.bf16.msra.mxu0 %v2176
        %5075 = vmatpush.bf16.msra.mxu0 %v2164
        %5076 = vmatpush.bf16.msra.mxu0 %v2152
        %5077 = vmatpush.bf16.msra.mxu0 %v2140
        %5078 = vmatpush.bf16.msra.mxu0 %v2128
        %5079 = vmatpush.bf16.msra.mxu0 %v2116
        %5080 = vmatmul.bf16.gmra.mxu0 %v957
        %v5081 = vpop.f32.mrf.mxu0
        %v5082 = vadd.f32 %v4993, %v5081
        %v5083 = vpop.f32.mrf.mxu0
        %v5084 = vadd.f32 %v4995, %v5083
        %5085 = vmatmul.bf16.gmra.mxu0 %v960
        %v5086 = vpop.f32.mrf.mxu0
        %v5087 = vadd.f32 %v4998, %v5086
        %v5088 = vpop.f32.mrf.mxu0
        %v5089 = vadd.f32 %v5000, %v5088
        %5090 = vmatmul.bf16.gmra.mxu0 %v963
        %v5091 = vpop.f32.mrf.mxu0
        %v5092 = vadd.f32 %v5003, %v5091
        %v5093 = vpop.f32.mrf.mxu0
        %v5094 = vadd.f32 %v5005, %v5093
        %5095 = vmatmul.bf16.gmra.mxu0 %v966
        %v5096 = vpop.f32.mrf.mxu0
        %v5097 = vadd.f32 %v5008, %v5096
        %v5098 = vpop.f32.mrf.mxu0
        %v5099 = vadd.f32 %v5010, %v5098
        %5100 = vmatmul.bf16.gmra.mxu0 %v969
        %v5101 = vpop.f32.mrf.mxu0
        %v5102 = vadd.f32 %v5013, %v5101
        %v5103 = vpop.f32.mrf.mxu0
        %v5104 = vadd.f32 %v5015, %v5103
        %5105 = vmatmul.bf16.gmra.mxu0 %v972
        %v5106 = vpop.f32.mrf.mxu0
        %v5107 = vadd.f32 %v5018, %v5106
        %v5108 = vpop.f32.mrf.mxu0
        %v5109 = vadd.f32 %v5020, %v5108
        %5110 = vmatmul.bf16.gmra.mxu0 %v975
        %v5111 = vpop.f32.mrf.mxu0
        %v5112 = vadd.f32 %v5023, %v5111
        %v5113 = vpop.f32.mrf.mxu0
        %v5114 = vadd.f32 %v5025, %v5113
        %5115 = vmatmul.bf16.gmra.mxu0 %v978
        %v5116 = vpop.f32.mrf.mxu0
        %v5117 = vadd.f32 %v5028, %v5116
        %v5118 = vpop.f32.mrf.mxu0
        %v5119 = vadd.f32 %v5030, %v5118
        %5120 = vmatmul.bf16.gmra.mxu0 %v981
        %v5121 = vpop.f32.mrf.mxu0
        %v5122 = vadd.f32 %v5033, %v5121
        %v5123 = vpop.f32.mrf.mxu0
        %v5124 = vadd.f32 %v5035, %v5123
        %5125 = vmatmul.bf16.gmra.mxu0 %v984
        %v5126 = vpop.f32.mrf.mxu0
        %v5127 = vadd.f32 %v5038, %v5126
        %v5128 = vpop.f32.mrf.mxu0
        %v5129 = vadd.f32 %v5040, %v5128
        %5130 = vmatmul.bf16.gmra.mxu0 %v987
        %v5131 = vpop.f32.mrf.mxu0
        %v5132 = vadd.f32 %v5043, %v5131
        %v5133 = vpop.f32.mrf.mxu0
        %v5134 = vadd.f32 %v5045, %v5133
        %5135 = vmatmul.bf16.gmra.mxu0 %v990
        %v5136 = vpop.f32.mrf.mxu0
        %v5137 = vadd.f32 %v5048, %v5136
        %v5138 = vpop.f32.mrf.mxu0
        %v5139 = vadd.f32 %v5050, %v5138
        %5140 = vmatmul.bf16.gmra.mxu0 %v993
        %v5141 = vpop.f32.mrf.mxu0
        %v5142 = vadd.f32 %v5053, %v5141
        %v5143 = vpop.f32.mrf.mxu0
        %v5144 = vadd.f32 %v5055, %v5143
        %5145 = vmatmul.bf16.gmra.mxu0 %v996
        %v5146 = vpop.f32.mrf.mxu0
        %v5147 = vadd.f32 %v5058, %v5146
        %v5148 = vpop.f32.mrf.mxu0
        %v5149 = vadd.f32 %v5060, %v5148
        %5150 = vmatmul.bf16.gmra.mxu0 %v999
        %v5151 = vpop.f32.mrf.mxu0
        %v5152 = vadd.f32 %v5063, %v5151
        %v5153 = vpop.f32.mrf.mxu0
        %v5154 = vadd.f32 %v5065, %v5153
        %5155 = vmatmul.bf16.gmra.mxu0 %v1002
        %v5156 = vpop.f32.mrf.mxu0
        %v5157 = vadd.f32 %v5068, %v5156
        %v5158 = vpop.f32.mrf.mxu0
        %v5159 = vadd.f32 %v5070, %v5158
        %5160 = vdwg.mxu0
        %5161 = vmatpush.bf16.msra.mxu0 %v2009
        %5162 = vmatpush.bf16.msra.mxu0 %v1997
        %5163 = vmatpush.bf16.msra.mxu0 %v1985
        %5164 = vmatpush.bf16.msra.mxu0 %v1973
        %5165 = vmatpush.bf16.msra.mxu0 %v1961
        %5166 = vmatpush.bf16.msra.mxu0 %v1949
        %5167 = vmatpush.bf16.msra.mxu0 %v1937
        %5168 = vmatpush.bf16.msra.mxu0 %v1925
        %5169 = vmatmul.bf16.gmra.mxu0 %v955
        %v5170 = vpop.f32.mrf.mxu0
        %v5171 = vadd.f32 %v781, %v5170
        %v5172 = vpop.f32.mrf.mxu0
        %v5173 = vadd.f32 %v781, %v5172
        %5174 = vmatmul.bf16.gmra.mxu0 %v958
        %v5175 = vpop.f32.mrf.mxu0
        %v5176 = vadd.f32 %v781, %v5175
        %v5177 = vpop.f32.mrf.mxu0
        %v5178 = vadd.f32 %v781, %v5177
        %5179 = vmatmul.bf16.gmra.mxu0 %v961
        %v5180 = vpop.f32.mrf.mxu0
        %v5181 = vadd.f32 %v781, %v5180
        %v5182 = vpop.f32.mrf.mxu0
        %v5183 = vadd.f32 %v781, %v5182
        %5184 = vmatmul.bf16.gmra.mxu0 %v964
        %v5185 = vpop.f32.mrf.mxu0
        %v5186 = vadd.f32 %v781, %v5185
        %v5187 = vpop.f32.mrf.mxu0
        %v5188 = vadd.f32 %v781, %v5187
        %5189 = vmatmul.bf16.gmra.mxu0 %v967
        %v5190 = vpop.f32.mrf.mxu0
        %v5191 = vadd.f32 %v781, %v5190
        %v5192 = vpop.f32.mrf.mxu0
        %v5193 = vadd.f32 %v781, %v5192
        %5194 = vmatmul.bf16.gmra.mxu0 %v970
        %v5195 = vpop.f32.mrf.mxu0
        %v5196 = vadd.f32 %v781, %v5195
        %v5197 = vpop.f32.mrf.mxu0
        %v5198 = vadd.f32 %v781, %v5197
        %5199 = vmatmul.bf16.gmra.mxu0 %v973
        %v5200 = vpop.f32.mrf.mxu0
        %v5201 = vadd.f32 %v781, %v5200
        %v5202 = vpop.f32.mrf.mxu0
        %v5203 = vadd.f32 %v781, %v5202
        %5204 = vmatmul.bf16.gmra.mxu0 %v976
        %v5205 = vpop.f32.mrf.mxu0
        %v5206 = vadd.f32 %v781, %v5205
        %v5207 = vpop.f32.mrf.mxu0
        %v5208 = vadd.f32 %v781, %v5207
        %5209 = vmatmul.bf16.gmra.mxu0 %v979
        %v5210 = vpop.f32.mrf.mxu0
        %v5211 = vadd.f32 %v781, %v5210
        %v5212 = vpop.f32.mrf.mxu0
        %v5213 = vadd.f32 %v781, %v5212
        %5214 = vmatmul.bf16.gmra.mxu0 %v982
        %v5215 = vpop.f32.mrf.mxu0
        %v5216 = vadd.f32 %v781, %v5215
        %v5217 = vpop.f32.mrf.mxu0
        %v5218 = vadd.f32 %v781, %v5217
        %5219 = vmatmul.bf16.gmra.mxu0 %v985
        %v5220 = vpop.f32.mrf.mxu0
        %v5221 = vadd.f32 %v781, %v5220
        %v5222 = vpop.f32.mrf.mxu0
        %v5223 = vadd.f32 %v781, %v5222
        %5224 = vmatmul.bf16.gmra.mxu0 %v988
        %v5225 = vpop.f32.mrf.mxu0
        %v5226 = vadd.f32 %v781, %v5225
        %v5227 = vpop.f32.mrf.mxu0
        %v5228 = vadd.f32 %v781, %v5227
        %5229 = vmatmul.bf16.gmra.mxu0 %v991
        %v5230 = vpop.f32.mrf.mxu0
        %v5231 = vadd.f32 %v781, %v5230
        %v5232 = vpop.f32.mrf.mxu0
        %v5233 = vadd.f32 %v781, %v5232
        %5234 = vmatmul.bf16.gmra.mxu0 %v994
        %v5235 = vpop.f32.mrf.mxu0
        %v5236 = vadd.f32 %v781, %v5235
        %v5237 = vpop.f32.mrf.mxu0
        %v5238 = vadd.f32 %v781, %v5237
        %5239 = vmatmul.bf16.gmra.mxu0 %v997
        %v5240 = vpop.f32.mrf.mxu0
        %v5241 = vadd.f32 %v781, %v5240
        %v5242 = vpop.f32.mrf.mxu0
        %v5243 = vadd.f32 %v781, %v5242
        %5244 = vmatmul.bf16.gmra.mxu0 %v1000
        %v5245 = vpop.f32.mrf.mxu0
        %v5246 = vadd.f32 %v781, %v5245
        %v5247 = vpop.f32.mrf.mxu0
        %v5248 = vadd.f32 %v781, %v5247
        %5249 = vdwg.mxu0
        %5250 = vmatpush.bf16.msra.mxu0 %v2105
        %5251 = vmatpush.bf16.msra.mxu0 %v2093
        %5252 = vmatpush.bf16.msra.mxu0 %v2081
        %5253 = vmatpush.bf16.msra.mxu0 %v2069
        %5254 = vmatpush.bf16.msra.mxu0 %v2057
        %5255 = vmatpush.bf16.msra.mxu0 %v2045
        %5256 = vmatpush.bf16.msra.mxu0 %v2033
        %5257 = vmatpush.bf16.msra.mxu0 %v2021
        %5258 = vmatmul.bf16.gmra.mxu0 %v956
        %v5259 = vpop.f32.mrf.mxu0
        %v5260 = vadd.f32 %v5171, %v5259
        %v5261 = vpop.f32.mrf.mxu0
        %v5262 = vadd.f32 %v5173, %v5261
        %5263 = vmatmul.bf16.gmra.mxu0 %v959
        %v5264 = vpop.f32.mrf.mxu0
        %v5265 = vadd.f32 %v5176, %v5264
        %v5266 = vpop.f32.mrf.mxu0
        %v5267 = vadd.f32 %v5178, %v5266
        %5268 = vmatmul.bf16.gmra.mxu0 %v962
        %v5269 = vpop.f32.mrf.mxu0
        %v5270 = vadd.f32 %v5181, %v5269
        %v5271 = vpop.f32.mrf.mxu0
        %v5272 = vadd.f32 %v5183, %v5271
        %5273 = vmatmul.bf16.gmra.mxu0 %v965
        %v5274 = vpop.f32.mrf.mxu0
        %v5275 = vadd.f32 %v5186, %v5274
        %v5276 = vpop.f32.mrf.mxu0
        %v5277 = vadd.f32 %v5188, %v5276
        %5278 = vmatmul.bf16.gmra.mxu0 %v968
        %v5279 = vpop.f32.mrf.mxu0
        %v5280 = vadd.f32 %v5191, %v5279
        %v5281 = vpop.f32.mrf.mxu0
        %v5282 = vadd.f32 %v5193, %v5281
        %5283 = vmatmul.bf16.gmra.mxu0 %v971
        %v5284 = vpop.f32.mrf.mxu0
        %v5285 = vadd.f32 %v5196, %v5284
        %v5286 = vpop.f32.mrf.mxu0
        %v5287 = vadd.f32 %v5198, %v5286
        %5288 = vmatmul.bf16.gmra.mxu0 %v974
        %v5289 = vpop.f32.mrf.mxu0
        %v5290 = vadd.f32 %v5201, %v5289
        %v5291 = vpop.f32.mrf.mxu0
        %v5292 = vadd.f32 %v5203, %v5291
        %5293 = vmatmul.bf16.gmra.mxu0 %v977
        %v5294 = vpop.f32.mrf.mxu0
        %v5295 = vadd.f32 %v5206, %v5294
        %v5296 = vpop.f32.mrf.mxu0
        %v5297 = vadd.f32 %v5208, %v5296
        %5298 = vmatmul.bf16.gmra.mxu0 %v980
        %v5299 = vpop.f32.mrf.mxu0
        %v5300 = vadd.f32 %v5211, %v5299
        %v5301 = vpop.f32.mrf.mxu0
        %v5302 = vadd.f32 %v5213, %v5301
        %5303 = vmatmul.bf16.gmra.mxu0 %v983
        %v5304 = vpop.f32.mrf.mxu0
        %v5305 = vadd.f32 %v5216, %v5304
        %v5306 = vpop.f32.mrf.mxu0
        %v5307 = vadd.f32 %v5218, %v5306
        %5308 = vmatmul.bf16.gmra.mxu0 %v986
        %v5309 = vpop.f32.mrf.mxu0
        %v5310 = vadd.f32 %v5221, %v5309
        %v5311 = vpop.f32.mrf.mxu0
        %v5312 = vadd.f32 %v5223, %v5311
        %5313 = vmatmul.bf16.gmra.mxu0 %v989
        %v5314 = vpop.f32.mrf.mxu0
        %v5315 = vadd.f32 %v5226, %v5314
        %v5316 = vpop.f32.mrf.mxu0
        %v5317 = vadd.f32 %v5228, %v5316
        %5318 = vmatmul.bf16.gmra.mxu0 %v992
        %v5319 = vpop.f32.mrf.mxu0
        %v5320 = vadd.f32 %v5231, %v5319
        %v5321 = vpop.f32.mrf.mxu0
        %v5322 = vadd.f32 %v5233, %v5321
        %5323 = vmatmul.bf16.gmra.mxu0 %v995
        %v5324 = vpop.f32.mrf.mxu0
        %v5325 = vadd.f32 %v5236, %v5324
        %v5326 = vpop.f32.mrf.mxu0
        %v5327 = vadd.f32 %v5238, %v5326
        %5328 = vmatmul.bf16.gmra.mxu0 %v998
        %v5329 = vpop.f32.mrf.mxu0
        %v5330 = vadd.f32 %v5241, %v5329
        %v5331 = vpop.f32.mrf.mxu0
        %v5332 = vadd.f32 %v5243, %v5331
        %5333 = vmatmul.bf16.gmra.mxu0 %v1001
        %v5334 = vpop.f32.mrf.mxu0
        %v5335 = vadd.f32 %v5246, %v5334
        %v5336 = vpop.f32.mrf.mxu0
        %v5337 = vadd.f32 %v5248, %v5336
        %5338 = vdwg.mxu0
        %5339 = vmatpush.bf16.msra.mxu0 %v2201
        %5340 = vmatpush.bf16.msra.mxu0 %v2189
        %5341 = vmatpush.bf16.msra.mxu0 %v2177
        %5342 = vmatpush.bf16.msra.mxu0 %v2165
        %5343 = vmatpush.bf16.msra.mxu0 %v2153
        %5344 = vmatpush.bf16.msra.mxu0 %v2141
        %5345 = vmatpush.bf16.msra.mxu0 %v2129
        %5346 = vmatpush.bf16.msra.mxu0 %v2117
        %5347 = vmatmul.bf16.gmra.mxu0 %v957
        %v5348 = vpop.f32.mrf.mxu0
        %v5349 = vadd.f32 %v5260, %v5348
        %v5350 = vpop.f32.mrf.mxu0
        %v5351 = vadd.f32 %v5262, %v5350
        %5352 = vmatmul.bf16.gmra.mxu0 %v960
        %v5353 = vpop.f32.mrf.mxu0
        %v5354 = vadd.f32 %v5265, %v5353
        %v5355 = vpop.f32.mrf.mxu0
        %v5356 = vadd.f32 %v5267, %v5355
        %5357 = vmatmul.bf16.gmra.mxu0 %v963
        %v5358 = vpop.f32.mrf.mxu0
        %v5359 = vadd.f32 %v5270, %v5358
        %v5360 = vpop.f32.mrf.mxu0
        %v5361 = vadd.f32 %v5272, %v5360
        %5362 = vmatmul.bf16.gmra.mxu0 %v966
        %v5363 = vpop.f32.mrf.mxu0
        %v5364 = vadd.f32 %v5275, %v5363
        %v5365 = vpop.f32.mrf.mxu0
        %v5366 = vadd.f32 %v5277, %v5365
        %5367 = vmatmul.bf16.gmra.mxu0 %v969
        %v5368 = vpop.f32.mrf.mxu0
        %v5369 = vadd.f32 %v5280, %v5368
        %v5370 = vpop.f32.mrf.mxu0
        %v5371 = vadd.f32 %v5282, %v5370
        %5372 = vmatmul.bf16.gmra.mxu0 %v972
        %v5373 = vpop.f32.mrf.mxu0
        %v5374 = vadd.f32 %v5285, %v5373
        %v5375 = vpop.f32.mrf.mxu0
        %v5376 = vadd.f32 %v5287, %v5375
        %5377 = vmatmul.bf16.gmra.mxu0 %v975
        %v5378 = vpop.f32.mrf.mxu0
        %v5379 = vadd.f32 %v5290, %v5378
        %v5380 = vpop.f32.mrf.mxu0
        %v5381 = vadd.f32 %v5292, %v5380
        %5382 = vmatmul.bf16.gmra.mxu0 %v978
        %v5383 = vpop.f32.mrf.mxu0
        %v5384 = vadd.f32 %v5295, %v5383
        %v5385 = vpop.f32.mrf.mxu0
        %v5386 = vadd.f32 %v5297, %v5385
        %5387 = vmatmul.bf16.gmra.mxu0 %v981
        %v5388 = vpop.f32.mrf.mxu0
        %v5389 = vadd.f32 %v5300, %v5388
        %v5390 = vpop.f32.mrf.mxu0
        %v5391 = vadd.f32 %v5302, %v5390
        %5392 = vmatmul.bf16.gmra.mxu0 %v984
        %v5393 = vpop.f32.mrf.mxu0
        %v5394 = vadd.f32 %v5305, %v5393
        %v5395 = vpop.f32.mrf.mxu0
        %v5396 = vadd.f32 %v5307, %v5395
        %5397 = vmatmul.bf16.gmra.mxu0 %v987
        %v5398 = vpop.f32.mrf.mxu0
        %v5399 = vadd.f32 %v5310, %v5398
        %v5400 = vpop.f32.mrf.mxu0
        %v5401 = vadd.f32 %v5312, %v5400
        %5402 = vmatmul.bf16.gmra.mxu0 %v990
        %v5403 = vpop.f32.mrf.mxu0
        %v5404 = vadd.f32 %v5315, %v5403
        %v5405 = vpop.f32.mrf.mxu0
        %v5406 = vadd.f32 %v5317, %v5405
        %5407 = vmatmul.bf16.gmra.mxu0 %v993
        %v5408 = vpop.f32.mrf.mxu0
        %v5409 = vadd.f32 %v5320, %v5408
        %v5410 = vpop.f32.mrf.mxu0
        %v5411 = vadd.f32 %v5322, %v5410
        %5412 = vmatmul.bf16.gmra.mxu0 %v996
        %v5413 = vpop.f32.mrf.mxu0
        %v5414 = vadd.f32 %v5325, %v5413
        %v5415 = vpop.f32.mrf.mxu0
        %v5416 = vadd.f32 %v5327, %v5415
        %5417 = vmatmul.bf16.gmra.mxu0 %v999
        %v5418 = vpop.f32.mrf.mxu0
        %v5419 = vadd.f32 %v5330, %v5418
        %v5420 = vpop.f32.mrf.mxu0
        %v5421 = vadd.f32 %v5332, %v5420
        %5422 = vmatmul.bf16.gmra.mxu0 %v1002
        %v5423 = vpop.f32.mrf.mxu0
        %v5424 = vadd.f32 %v5335, %v5423
        %v5425 = vpop.f32.mrf.mxu0
        %v5426 = vadd.f32 %v5337, %v5425
        %5427 = vdwg.mxu0
        %5428 = vmatpush.bf16.msra.mxu0 %v2010
        %5429 = vmatpush.bf16.msra.mxu0 %v1998
        %5430 = vmatpush.bf16.msra.mxu0 %v1986
        %5431 = vmatpush.bf16.msra.mxu0 %v1974
        %5432 = vmatpush.bf16.msra.mxu0 %v1962
        %5433 = vmatpush.bf16.msra.mxu0 %v1950
        %5434 = vmatpush.bf16.msra.mxu0 %v1938
        %5435 = vmatpush.bf16.msra.mxu0 %v1926
        %5436 = vmatmul.bf16.gmra.mxu0 %v955
        %v5437 = vpop.f32.mrf.mxu0
        %v5438 = vadd.f32 %v782, %v5437
        %v5439 = vpop.f32.mrf.mxu0
        %v5440 = vadd.f32 %v782, %v5439
        %5441 = vmatmul.bf16.gmra.mxu0 %v958
        %v5442 = vpop.f32.mrf.mxu0
        %v5443 = vadd.f32 %v782, %v5442
        %v5444 = vpop.f32.mrf.mxu0
        %v5445 = vadd.f32 %v782, %v5444
        %5446 = vmatmul.bf16.gmra.mxu0 %v961
        %v5447 = vpop.f32.mrf.mxu0
        %v5448 = vadd.f32 %v782, %v5447
        %v5449 = vpop.f32.mrf.mxu0
        %v5450 = vadd.f32 %v782, %v5449
        %5451 = vmatmul.bf16.gmra.mxu0 %v964
        %v5452 = vpop.f32.mrf.mxu0
        %v5453 = vadd.f32 %v782, %v5452
        %v5454 = vpop.f32.mrf.mxu0
        %v5455 = vadd.f32 %v782, %v5454
        %5456 = vmatmul.bf16.gmra.mxu0 %v967
        %v5457 = vpop.f32.mrf.mxu0
        %v5458 = vadd.f32 %v782, %v5457
        %v5459 = vpop.f32.mrf.mxu0
        %v5460 = vadd.f32 %v782, %v5459
        %5461 = vmatmul.bf16.gmra.mxu0 %v970
        %v5462 = vpop.f32.mrf.mxu0
        %v5463 = vadd.f32 %v782, %v5462
        %v5464 = vpop.f32.mrf.mxu0
        %v5465 = vadd.f32 %v782, %v5464
        %5466 = vmatmul.bf16.gmra.mxu0 %v973
        %v5467 = vpop.f32.mrf.mxu0
        %v5468 = vadd.f32 %v782, %v5467
        %v5469 = vpop.f32.mrf.mxu0
        %v5470 = vadd.f32 %v782, %v5469
        %5471 = vmatmul.bf16.gmra.mxu0 %v976
        %v5472 = vpop.f32.mrf.mxu0
        %v5473 = vadd.f32 %v782, %v5472
        %v5474 = vpop.f32.mrf.mxu0
        %v5475 = vadd.f32 %v782, %v5474
        %5476 = vmatmul.bf16.gmra.mxu0 %v979
        %v5477 = vpop.f32.mrf.mxu0
        %v5478 = vadd.f32 %v782, %v5477
        %v5479 = vpop.f32.mrf.mxu0
        %v5480 = vadd.f32 %v782, %v5479
        %5481 = vmatmul.bf16.gmra.mxu0 %v982
        %v5482 = vpop.f32.mrf.mxu0
        %v5483 = vadd.f32 %v782, %v5482
        %v5484 = vpop.f32.mrf.mxu0
        %v5485 = vadd.f32 %v782, %v5484
        %5486 = vmatmul.bf16.gmra.mxu0 %v985
        %v5487 = vpop.f32.mrf.mxu0
        %v5488 = vadd.f32 %v782, %v5487
        %v5489 = vpop.f32.mrf.mxu0
        %v5490 = vadd.f32 %v782, %v5489
        %5491 = vmatmul.bf16.gmra.mxu0 %v988
        %v5492 = vpop.f32.mrf.mxu0
        %v5493 = vadd.f32 %v782, %v5492
        %v5494 = vpop.f32.mrf.mxu0
        %v5495 = vadd.f32 %v782, %v5494
        %5496 = vmatmul.bf16.gmra.mxu0 %v991
        %v5497 = vpop.f32.mrf.mxu0
        %v5498 = vadd.f32 %v782, %v5497
        %v5499 = vpop.f32.mrf.mxu0
        %v5500 = vadd.f32 %v782, %v5499
        %5501 = vmatmul.bf16.gmra.mxu0 %v994
        %v5502 = vpop.f32.mrf.mxu0
        %v5503 = vadd.f32 %v782, %v5502
        %v5504 = vpop.f32.mrf.mxu0
        %v5505 = vadd.f32 %v782, %v5504
        %5506 = vmatmul.bf16.gmra.mxu0 %v997
        %v5507 = vpop.f32.mrf.mxu0
        %v5508 = vadd.f32 %v782, %v5507
        %v5509 = vpop.f32.mrf.mxu0
        %v5510 = vadd.f32 %v782, %v5509
        %5511 = vmatmul.bf16.gmra.mxu0 %v1000
        %v5512 = vpop.f32.mrf.mxu0
        %v5513 = vadd.f32 %v782, %v5512
        %v5514 = vpop.f32.mrf.mxu0
        %v5515 = vadd.f32 %v782, %v5514
        %5516 = vdwg.mxu0
        %5517 = vmatpush.bf16.msra.mxu0 %v2106
        %5518 = vmatpush.bf16.msra.mxu0 %v2094
        %5519 = vmatpush.bf16.msra.mxu0 %v2082
        %5520 = vmatpush.bf16.msra.mxu0 %v2070
        %5521 = vmatpush.bf16.msra.mxu0 %v2058
        %5522 = vmatpush.bf16.msra.mxu0 %v2046
        %5523 = vmatpush.bf16.msra.mxu0 %v2034
        %5524 = vmatpush.bf16.msra.mxu0 %v2022
        %5525 = vmatmul.bf16.gmra.mxu0 %v956
        %v5526 = vpop.f32.mrf.mxu0
        %v5527 = vadd.f32 %v5438, %v5526
        %v5528 = vpop.f32.mrf.mxu0
        %v5529 = vadd.f32 %v5440, %v5528
        %5530 = vmatmul.bf16.gmra.mxu0 %v959
        %v5531 = vpop.f32.mrf.mxu0
        %v5532 = vadd.f32 %v5443, %v5531
        %v5533 = vpop.f32.mrf.mxu0
        %v5534 = vadd.f32 %v5445, %v5533
        %5535 = vmatmul.bf16.gmra.mxu0 %v962
        %v5536 = vpop.f32.mrf.mxu0
        %v5537 = vadd.f32 %v5448, %v5536
        %v5538 = vpop.f32.mrf.mxu0
        %v5539 = vadd.f32 %v5450, %v5538
        %5540 = vmatmul.bf16.gmra.mxu0 %v965
        %v5541 = vpop.f32.mrf.mxu0
        %v5542 = vadd.f32 %v5453, %v5541
        %v5543 = vpop.f32.mrf.mxu0
        %v5544 = vadd.f32 %v5455, %v5543
        %5545 = vmatmul.bf16.gmra.mxu0 %v968
        %v5546 = vpop.f32.mrf.mxu0
        %v5547 = vadd.f32 %v5458, %v5546
        %v5548 = vpop.f32.mrf.mxu0
        %v5549 = vadd.f32 %v5460, %v5548
        %5550 = vmatmul.bf16.gmra.mxu0 %v971
        %v5551 = vpop.f32.mrf.mxu0
        %v5552 = vadd.f32 %v5463, %v5551
        %v5553 = vpop.f32.mrf.mxu0
        %v5554 = vadd.f32 %v5465, %v5553
        %5555 = vmatmul.bf16.gmra.mxu0 %v974
        %v5556 = vpop.f32.mrf.mxu0
        %v5557 = vadd.f32 %v5468, %v5556
        %v5558 = vpop.f32.mrf.mxu0
        %v5559 = vadd.f32 %v5470, %v5558
        %5560 = vmatmul.bf16.gmra.mxu0 %v977
        %v5561 = vpop.f32.mrf.mxu0
        %v5562 = vadd.f32 %v5473, %v5561
        %v5563 = vpop.f32.mrf.mxu0
        %v5564 = vadd.f32 %v5475, %v5563
        %5565 = vmatmul.bf16.gmra.mxu0 %v980
        %v5566 = vpop.f32.mrf.mxu0
        %v5567 = vadd.f32 %v5478, %v5566
        %v5568 = vpop.f32.mrf.mxu0
        %v5569 = vadd.f32 %v5480, %v5568
        %5570 = vmatmul.bf16.gmra.mxu0 %v983
        %v5571 = vpop.f32.mrf.mxu0
        %v5572 = vadd.f32 %v5483, %v5571
        %v5573 = vpop.f32.mrf.mxu0
        %v5574 = vadd.f32 %v5485, %v5573
        %5575 = vmatmul.bf16.gmra.mxu0 %v986
        %v5576 = vpop.f32.mrf.mxu0
        %v5577 = vadd.f32 %v5488, %v5576
        %v5578 = vpop.f32.mrf.mxu0
        %v5579 = vadd.f32 %v5490, %v5578
        %5580 = vmatmul.bf16.gmra.mxu0 %v989
        %v5581 = vpop.f32.mrf.mxu0
        %v5582 = vadd.f32 %v5493, %v5581
        %v5583 = vpop.f32.mrf.mxu0
        %v5584 = vadd.f32 %v5495, %v5583
        %5585 = vmatmul.bf16.gmra.mxu0 %v992
        %v5586 = vpop.f32.mrf.mxu0
        %v5587 = vadd.f32 %v5498, %v5586
        %v5588 = vpop.f32.mrf.mxu0
        %v5589 = vadd.f32 %v5500, %v5588
        %5590 = vmatmul.bf16.gmra.mxu0 %v995
        %v5591 = vpop.f32.mrf.mxu0
        %v5592 = vadd.f32 %v5503, %v5591
        %v5593 = vpop.f32.mrf.mxu0
        %v5594 = vadd.f32 %v5505, %v5593
        %5595 = vmatmul.bf16.gmra.mxu0 %v998
        %v5596 = vpop.f32.mrf.mxu0
        %v5597 = vadd.f32 %v5508, %v5596
        %v5598 = vpop.f32.mrf.mxu0
        %v5599 = vadd.f32 %v5510, %v5598
        %5600 = vmatmul.bf16.gmra.mxu0 %v1001
        %v5601 = vpop.f32.mrf.mxu0
        %v5602 = vadd.f32 %v5513, %v5601
        %v5603 = vpop.f32.mrf.mxu0
        %v5604 = vadd.f32 %v5515, %v5603
        %5605 = vdwg.mxu0
        %5606 = vmatpush.bf16.msra.mxu0 %v2202
        %5607 = vmatpush.bf16.msra.mxu0 %v2190
        %5608 = vmatpush.bf16.msra.mxu0 %v2178
        %5609 = vmatpush.bf16.msra.mxu0 %v2166
        %5610 = vmatpush.bf16.msra.mxu0 %v2154
        %5611 = vmatpush.bf16.msra.mxu0 %v2142
        %5612 = vmatpush.bf16.msra.mxu0 %v2130
        %5613 = vmatpush.bf16.msra.mxu0 %v2118
        %5614 = vmatmul.bf16.gmra.mxu0 %v957
        %v5615 = vpop.f32.mrf.mxu0
        %v5616 = vadd.f32 %v5527, %v5615
        %v5617 = vpop.f32.mrf.mxu0
        %v5618 = vadd.f32 %v5529, %v5617
        %5619 = vmatmul.bf16.gmra.mxu0 %v960
        %v5620 = vpop.f32.mrf.mxu0
        %v5621 = vadd.f32 %v5532, %v5620
        %v5622 = vpop.f32.mrf.mxu0
        %v5623 = vadd.f32 %v5534, %v5622
        %5624 = vmatmul.bf16.gmra.mxu0 %v963
        %v5625 = vpop.f32.mrf.mxu0
        %v5626 = vadd.f32 %v5537, %v5625
        %v5627 = vpop.f32.mrf.mxu0
        %v5628 = vadd.f32 %v5539, %v5627
        %5629 = vmatmul.bf16.gmra.mxu0 %v966
        %v5630 = vpop.f32.mrf.mxu0
        %v5631 = vadd.f32 %v5542, %v5630
        %v5632 = vpop.f32.mrf.mxu0
        %v5633 = vadd.f32 %v5544, %v5632
        %5634 = vmatmul.bf16.gmra.mxu0 %v969
        %v5635 = vpop.f32.mrf.mxu0
        %v5636 = vadd.f32 %v5547, %v5635
        %v5637 = vpop.f32.mrf.mxu0
        %v5638 = vadd.f32 %v5549, %v5637
        %5639 = vmatmul.bf16.gmra.mxu0 %v972
        %v5640 = vpop.f32.mrf.mxu0
        %v5641 = vadd.f32 %v5552, %v5640
        %v5642 = vpop.f32.mrf.mxu0
        %v5643 = vadd.f32 %v5554, %v5642
        %5644 = vmatmul.bf16.gmra.mxu0 %v975
        %v5645 = vpop.f32.mrf.mxu0
        %v5646 = vadd.f32 %v5557, %v5645
        %v5647 = vpop.f32.mrf.mxu0
        %v5648 = vadd.f32 %v5559, %v5647
        %5649 = vmatmul.bf16.gmra.mxu0 %v978
        %v5650 = vpop.f32.mrf.mxu0
        %v5651 = vadd.f32 %v5562, %v5650
        %v5652 = vpop.f32.mrf.mxu0
        %v5653 = vadd.f32 %v5564, %v5652
        %5654 = vmatmul.bf16.gmra.mxu0 %v981
        %v5655 = vpop.f32.mrf.mxu0
        %v5656 = vadd.f32 %v5567, %v5655
        %v5657 = vpop.f32.mrf.mxu0
        %v5658 = vadd.f32 %v5569, %v5657
        %5659 = vmatmul.bf16.gmra.mxu0 %v984
        %v5660 = vpop.f32.mrf.mxu0
        %v5661 = vadd.f32 %v5572, %v5660
        %v5662 = vpop.f32.mrf.mxu0
        %v5663 = vadd.f32 %v5574, %v5662
        %5664 = vmatmul.bf16.gmra.mxu0 %v987
        %v5665 = vpop.f32.mrf.mxu0
        %v5666 = vadd.f32 %v5577, %v5665
        %v5667 = vpop.f32.mrf.mxu0
        %v5668 = vadd.f32 %v5579, %v5667
        %5669 = vmatmul.bf16.gmra.mxu0 %v990
        %v5670 = vpop.f32.mrf.mxu0
        %v5671 = vadd.f32 %v5582, %v5670
        %v5672 = vpop.f32.mrf.mxu0
        %v5673 = vadd.f32 %v5584, %v5672
        %5674 = vmatmul.bf16.gmra.mxu0 %v993
        %v5675 = vpop.f32.mrf.mxu0
        %v5676 = vadd.f32 %v5587, %v5675
        %v5677 = vpop.f32.mrf.mxu0
        %v5678 = vadd.f32 %v5589, %v5677
        %5679 = vmatmul.bf16.gmra.mxu0 %v996
        %v5680 = vpop.f32.mrf.mxu0
        %v5681 = vadd.f32 %v5592, %v5680
        %v5682 = vpop.f32.mrf.mxu0
        %v5683 = vadd.f32 %v5594, %v5682
        %5684 = vmatmul.bf16.gmra.mxu0 %v999
        %v5685 = vpop.f32.mrf.mxu0
        %v5686 = vadd.f32 %v5597, %v5685
        %v5687 = vpop.f32.mrf.mxu0
        %v5688 = vadd.f32 %v5599, %v5687
        %5689 = vmatmul.bf16.gmra.mxu0 %v1002
        %v5690 = vpop.f32.mrf.mxu0
        %v5691 = vadd.f32 %v5602, %v5690
        %v5692 = vpop.f32.mrf.mxu0
        %v5693 = vadd.f32 %v5604, %v5692
        %5694 = vdwg.mxu0
        %v5695 = vmax.f32 %v2679, 0.0
        %v5696 = vmax.f32 %v2946, 0.0
        %v5697 = vmax.f32 %v3213, 0.0
        %v5698 = vmax.f32 %v3480, 0.0
        %v5699 = vmax.f32 %v3747, 0.0
        %v5700 = vmax.f32 %v4014, 0.0
        %v5701 = vmax.f32 %v4281, 0.0
        %v5702 = vmax.f32 %v4548, 0.0
        %v5703 = vmax.f32 %v4815, 0.0
        %v5704 = vmax.f32 %v5082, 0.0
        %v5705 = vmax.f32 %v5349, 0.0
        %v5706 = vmax.f32 %v5616, 0.0
        %v5707 = vmax.f32 %v2681, 0.0
        %v5708 = vmax.f32 %v2948, 0.0
        %v5709 = vmax.f32 %v3215, 0.0
        %v5710 = vmax.f32 %v3482, 0.0
        %v5711 = vmax.f32 %v3749, 0.0
        %v5712 = vmax.f32 %v4016, 0.0
        %v5713 = vmax.f32 %v4283, 0.0
        %v5714 = vmax.f32 %v4550, 0.0
        %v5715 = vmax.f32 %v4817, 0.0
        %v5716 = vmax.f32 %v5084, 0.0
        %v5717 = vmax.f32 %v5351, 0.0
        %v5718 = vmax.f32 %v5618, 0.0
        %v5719 = vmax.f32 %v2684, 0.0
        %v5720 = vmax.f32 %v2951, 0.0
        %v5721 = vmax.f32 %v3218, 0.0
        %v5722 = vmax.f32 %v3485, 0.0
        %v5723 = vmax.f32 %v3752, 0.0
        %v5724 = vmax.f32 %v4019, 0.0
        %v5725 = vmax.f32 %v4286, 0.0
        %v5726 = vmax.f32 %v4553, 0.0
        %v5727 = vmax.f32 %v4820, 0.0
        %v5728 = vmax.f32 %v5087, 0.0
        %v5729 = vmax.f32 %v5354, 0.0
        %v5730 = vmax.f32 %v5621, 0.0
        %v5731 = vmax.f32 %v2686, 0.0
        %v5732 = vmax.f32 %v2953, 0.0
        %v5733 = vmax.f32 %v3220, 0.0
        %v5734 = vmax.f32 %v3487, 0.0
        %v5735 = vmax.f32 %v3754, 0.0
        %v5736 = vmax.f32 %v4021, 0.0
        %v5737 = vmax.f32 %v4288, 0.0
        %v5738 = vmax.f32 %v4555, 0.0
        %v5739 = vmax.f32 %v4822, 0.0
        %v5740 = vmax.f32 %v5089, 0.0
        %v5741 = vmax.f32 %v5356, 0.0
        %v5742 = vmax.f32 %v5623, 0.0
        %v5743 = vmax.f32 %v2689, 0.0
        %v5744 = vmax.f32 %v2956, 0.0
        %v5745 = vmax.f32 %v3223, 0.0
        %v5746 = vmax.f32 %v3490, 0.0
        %v5747 = vmax.f32 %v3757, 0.0
        %v5748 = vmax.f32 %v4024, 0.0
        %v5749 = vmax.f32 %v4291, 0.0
        %v5750 = vmax.f32 %v4558, 0.0
        %v5751 = vmax.f32 %v4825, 0.0
        %v5752 = vmax.f32 %v5092, 0.0
        %v5753 = vmax.f32 %v5359, 0.0
        %v5754 = vmax.f32 %v5626, 0.0
        %v5755 = vmax.f32 %v2691, 0.0
        %v5756 = vmax.f32 %v2958, 0.0
        %v5757 = vmax.f32 %v3225, 0.0
        %v5758 = vmax.f32 %v3492, 0.0
        %v5759 = vmax.f32 %v3759, 0.0
        %v5760 = vmax.f32 %v4026, 0.0
        %v5761 = vmax.f32 %v4293, 0.0
        %v5762 = vmax.f32 %v4560, 0.0
        %v5763 = vmax.f32 %v4827, 0.0
        %v5764 = vmax.f32 %v5094, 0.0
        %v5765 = vmax.f32 %v5361, 0.0
        %v5766 = vmax.f32 %v5628, 0.0
        %v5767 = vmax.f32 %v2694, 0.0
        %v5768 = vmax.f32 %v2961, 0.0
        %v5769 = vmax.f32 %v3228, 0.0
        %v5770 = vmax.f32 %v3495, 0.0
        %v5771 = vmax.f32 %v3762, 0.0
        %v5772 = vmax.f32 %v4029, 0.0
        %v5773 = vmax.f32 %v4296, 0.0
        %v5774 = vmax.f32 %v4563, 0.0
        %v5775 = vmax.f32 %v4830, 0.0
        %v5776 = vmax.f32 %v5097, 0.0
        %v5777 = vmax.f32 %v5364, 0.0
        %v5778 = vmax.f32 %v5631, 0.0
        %v5779 = vmax.f32 %v2696, 0.0
        %v5780 = vmax.f32 %v2963, 0.0
        %v5781 = vmax.f32 %v3230, 0.0
        %v5782 = vmax.f32 %v3497, 0.0
        %v5783 = vmax.f32 %v3764, 0.0
        %v5784 = vmax.f32 %v4031, 0.0
        %v5785 = vmax.f32 %v4298, 0.0
        %v5786 = vmax.f32 %v4565, 0.0
        %v5787 = vmax.f32 %v4832, 0.0
        %v5788 = vmax.f32 %v5099, 0.0
        %v5789 = vmax.f32 %v5366, 0.0
        %v5790 = vmax.f32 %v5633, 0.0
        %v5791 = vmax.f32 %v2699, 0.0
        %v5792 = vmax.f32 %v2966, 0.0
        %v5793 = vmax.f32 %v3233, 0.0
        %v5794 = vmax.f32 %v3500, 0.0
        %v5795 = vmax.f32 %v3767, 0.0
        %v5796 = vmax.f32 %v4034, 0.0
        %v5797 = vmax.f32 %v4301, 0.0
        %v5798 = vmax.f32 %v4568, 0.0
        %v5799 = vmax.f32 %v4835, 0.0
        %v5800 = vmax.f32 %v5102, 0.0
        %v5801 = vmax.f32 %v5369, 0.0
        %v5802 = vmax.f32 %v5636, 0.0
        %v5803 = vmax.f32 %v2701, 0.0
        %v5804 = vmax.f32 %v2968, 0.0
        %v5805 = vmax.f32 %v3235, 0.0
        %v5806 = vmax.f32 %v3502, 0.0
        %v5807 = vmax.f32 %v3769, 0.0
        %v5808 = vmax.f32 %v4036, 0.0
        %v5809 = vmax.f32 %v4303, 0.0
        %v5810 = vmax.f32 %v4570, 0.0
        %v5811 = vmax.f32 %v4837, 0.0
        %v5812 = vmax.f32 %v5104, 0.0
        %v5813 = vmax.f32 %v5371, 0.0
        %v5814 = vmax.f32 %v5638, 0.0
        %v5815 = vmax.f32 %v2704, 0.0
        %v5816 = vmax.f32 %v2971, 0.0
        %v5817 = vmax.f32 %v3238, 0.0
        %v5818 = vmax.f32 %v3505, 0.0
        %v5819 = vmax.f32 %v3772, 0.0
        %v5820 = vmax.f32 %v4039, 0.0
        %v5821 = vmax.f32 %v4306, 0.0
        %v5822 = vmax.f32 %v4573, 0.0
        %v5823 = vmax.f32 %v4840, 0.0
        %v5824 = vmax.f32 %v5107, 0.0
        %v5825 = vmax.f32 %v5374, 0.0
        %v5826 = vmax.f32 %v5641, 0.0
        %v5827 = vmax.f32 %v2706, 0.0
        %v5828 = vmax.f32 %v2973, 0.0
        %v5829 = vmax.f32 %v3240, 0.0
        %v5830 = vmax.f32 %v3507, 0.0
        %v5831 = vmax.f32 %v3774, 0.0
        %v5832 = vmax.f32 %v4041, 0.0
        %v5833 = vmax.f32 %v4308, 0.0
        %v5834 = vmax.f32 %v4575, 0.0
        %v5835 = vmax.f32 %v4842, 0.0
        %v5836 = vmax.f32 %v5109, 0.0
        %v5837 = vmax.f32 %v5376, 0.0
        %v5838 = vmax.f32 %v5643, 0.0
        %v5839 = vmax.f32 %v2709, 0.0
        %v5840 = vmax.f32 %v2976, 0.0
        %v5841 = vmax.f32 %v3243, 0.0
        %v5842 = vmax.f32 %v3510, 0.0
        %v5843 = vmax.f32 %v3777, 0.0
        %v5844 = vmax.f32 %v4044, 0.0
        %v5845 = vmax.f32 %v4311, 0.0
        %v5846 = vmax.f32 %v4578, 0.0
        %v5847 = vmax.f32 %v4845, 0.0
        %v5848 = vmax.f32 %v5112, 0.0
        %v5849 = vmax.f32 %v5379, 0.0
        %v5850 = vmax.f32 %v5646, 0.0
        %v5851 = vmax.f32 %v2711, 0.0
        %v5852 = vmax.f32 %v2978, 0.0
        %v5853 = vmax.f32 %v3245, 0.0
        %v5854 = vmax.f32 %v3512, 0.0
        %v5855 = vmax.f32 %v3779, 0.0
        %v5856 = vmax.f32 %v4046, 0.0
        %v5857 = vmax.f32 %v4313, 0.0
        %v5858 = vmax.f32 %v4580, 0.0
        %v5859 = vmax.f32 %v4847, 0.0
        %v5860 = vmax.f32 %v5114, 0.0
        %v5861 = vmax.f32 %v5381, 0.0
        %v5862 = vmax.f32 %v5648, 0.0
        %v5863 = vmax.f32 %v2714, 0.0
        %v5864 = vmax.f32 %v2981, 0.0
        %v5865 = vmax.f32 %v3248, 0.0
        %v5866 = vmax.f32 %v3515, 0.0
        %v5867 = vmax.f32 %v3782, 0.0
        %v5868 = vmax.f32 %v4049, 0.0
        %v5869 = vmax.f32 %v4316, 0.0
        %v5870 = vmax.f32 %v4583, 0.0
        %v5871 = vmax.f32 %v4850, 0.0
        %v5872 = vmax.f32 %v5117, 0.0
        %v5873 = vmax.f32 %v5384, 0.0
        %v5874 = vmax.f32 %v5651, 0.0
        %v5875 = vmax.f32 %v2716, 0.0
        %v5876 = vmax.f32 %v2983, 0.0
        %v5877 = vmax.f32 %v3250, 0.0
        %v5878 = vmax.f32 %v3517, 0.0
        %v5879 = vmax.f32 %v3784, 0.0
        %v5880 = vmax.f32 %v4051, 0.0
        %v5881 = vmax.f32 %v4318, 0.0
        %v5882 = vmax.f32 %v4585, 0.0
        %v5883 = vmax.f32 %v4852, 0.0
        %v5884 = vmax.f32 %v5119, 0.0
        %v5885 = vmax.f32 %v5386, 0.0
        %v5886 = vmax.f32 %v5653, 0.0
        %v5887 = vmax.f32 %v2719, 0.0
        %v5888 = vmax.f32 %v2986, 0.0
        %v5889 = vmax.f32 %v3253, 0.0
        %v5890 = vmax.f32 %v3520, 0.0
        %v5891 = vmax.f32 %v3787, 0.0
        %v5892 = vmax.f32 %v4054, 0.0
        %v5893 = vmax.f32 %v4321, 0.0
        %v5894 = vmax.f32 %v4588, 0.0
        %v5895 = vmax.f32 %v4855, 0.0
        %v5896 = vmax.f32 %v5122, 0.0
        %v5897 = vmax.f32 %v5389, 0.0
        %v5898 = vmax.f32 %v5656, 0.0
        %v5899 = vmax.f32 %v2721, 0.0
        %v5900 = vmax.f32 %v2988, 0.0
        %v5901 = vmax.f32 %v3255, 0.0
        %v5902 = vmax.f32 %v3522, 0.0
        %v5903 = vmax.f32 %v3789, 0.0
        %v5904 = vmax.f32 %v4056, 0.0
        %v5905 = vmax.f32 %v4323, 0.0
        %v5906 = vmax.f32 %v4590, 0.0
        %v5907 = vmax.f32 %v4857, 0.0
        %v5908 = vmax.f32 %v5124, 0.0
        %v5909 = vmax.f32 %v5391, 0.0
        %v5910 = vmax.f32 %v5658, 0.0
        %v5911 = vmax.f32 %v2724, 0.0
        %v5912 = vmax.f32 %v2991, 0.0
        %v5913 = vmax.f32 %v3258, 0.0
        %v5914 = vmax.f32 %v3525, 0.0
        %v5915 = vmax.f32 %v3792, 0.0
        %v5916 = vmax.f32 %v4059, 0.0
        %v5917 = vmax.f32 %v4326, 0.0
        %v5918 = vmax.f32 %v4593, 0.0
        %v5919 = vmax.f32 %v4860, 0.0
        %v5920 = vmax.f32 %v5127, 0.0
        %v5921 = vmax.f32 %v5394, 0.0
        %v5922 = vmax.f32 %v5661, 0.0
        %v5923 = vmax.f32 %v2726, 0.0
        %v5924 = vmax.f32 %v2993, 0.0
        %v5925 = vmax.f32 %v3260, 0.0
        %v5926 = vmax.f32 %v3527, 0.0
        %v5927 = vmax.f32 %v3794, 0.0
        %v5928 = vmax.f32 %v4061, 0.0
        %v5929 = vmax.f32 %v4328, 0.0
        %v5930 = vmax.f32 %v4595, 0.0
        %v5931 = vmax.f32 %v4862, 0.0
        %v5932 = vmax.f32 %v5129, 0.0
        %v5933 = vmax.f32 %v5396, 0.0
        %v5934 = vmax.f32 %v5663, 0.0
        %v5935 = vmax.f32 %v2729, 0.0
        %v5936 = vmax.f32 %v2996, 0.0
        %v5937 = vmax.f32 %v3263, 0.0
        %v5938 = vmax.f32 %v3530, 0.0
        %v5939 = vmax.f32 %v3797, 0.0
        %v5940 = vmax.f32 %v4064, 0.0
        %v5941 = vmax.f32 %v4331, 0.0
        %v5942 = vmax.f32 %v4598, 0.0
        %v5943 = vmax.f32 %v4865, 0.0
        %v5944 = vmax.f32 %v5132, 0.0
        %v5945 = vmax.f32 %v5399, 0.0
        %v5946 = vmax.f32 %v5666, 0.0
        %v5947 = vmax.f32 %v2731, 0.0
        %v5948 = vmax.f32 %v2998, 0.0
        %v5949 = vmax.f32 %v3265, 0.0
        %v5950 = vmax.f32 %v3532, 0.0
        %v5951 = vmax.f32 %v3799, 0.0
        %v5952 = vmax.f32 %v4066, 0.0
        %v5953 = vmax.f32 %v4333, 0.0
        %v5954 = vmax.f32 %v4600, 0.0
        %v5955 = vmax.f32 %v4867, 0.0
        %v5956 = vmax.f32 %v5134, 0.0
        %v5957 = vmax.f32 %v5401, 0.0
        %v5958 = vmax.f32 %v5668, 0.0
        %v5959 = vmax.f32 %v2734, 0.0
        %v5960 = vmax.f32 %v3001, 0.0
        %v5961 = vmax.f32 %v3268, 0.0
        %v5962 = vmax.f32 %v3535, 0.0
        %v5963 = vmax.f32 %v3802, 0.0
        %v5964 = vmax.f32 %v4069, 0.0
        %v5965 = vmax.f32 %v4336, 0.0
        %v5966 = vmax.f32 %v4603, 0.0
        %v5967 = vmax.f32 %v4870, 0.0
        %v5968 = vmax.f32 %v5137, 0.0
        %v5969 = vmax.f32 %v5404, 0.0
        %v5970 = vmax.f32 %v5671, 0.0
        %v5971 = vmax.f32 %v2736, 0.0
        %v5972 = vmax.f32 %v3003, 0.0
        %v5973 = vmax.f32 %v3270, 0.0
        %v5974 = vmax.f32 %v3537, 0.0
        %v5975 = vmax.f32 %v3804, 0.0
        %v5976 = vmax.f32 %v4071, 0.0
        %v5977 = vmax.f32 %v4338, 0.0
        %v5978 = vmax.f32 %v4605, 0.0
        %v5979 = vmax.f32 %v4872, 0.0
        %v5980 = vmax.f32 %v5139, 0.0
        %v5981 = vmax.f32 %v5406, 0.0
        %v5982 = vmax.f32 %v5673, 0.0
        %v5983 = vmax.f32 %v2739, 0.0
        %v5984 = vmax.f32 %v3006, 0.0
        %v5985 = vmax.f32 %v3273, 0.0
        %v5986 = vmax.f32 %v3540, 0.0
        %v5987 = vmax.f32 %v3807, 0.0
        %v5988 = vmax.f32 %v4074, 0.0
        %v5989 = vmax.f32 %v4341, 0.0
        %v5990 = vmax.f32 %v4608, 0.0
        %v5991 = vmax.f32 %v4875, 0.0
        %v5992 = vmax.f32 %v5142, 0.0
        %v5993 = vmax.f32 %v5409, 0.0
        %v5994 = vmax.f32 %v5676, 0.0
        %v5995 = vmax.f32 %v2741, 0.0
        %v5996 = vmax.f32 %v3008, 0.0
        %v5997 = vmax.f32 %v3275, 0.0
        %v5998 = vmax.f32 %v3542, 0.0
        %v5999 = vmax.f32 %v3809, 0.0
        %v6000 = vmax.f32 %v4076, 0.0
        %v6001 = vmax.f32 %v4343, 0.0
        %v6002 = vmax.f32 %v4610, 0.0
        %v6003 = vmax.f32 %v4877, 0.0
        %v6004 = vmax.f32 %v5144, 0.0
        %v6005 = vmax.f32 %v5411, 0.0
        %v6006 = vmax.f32 %v5678, 0.0
        %v6007 = vmax.f32 %v2744, 0.0
        %v6008 = vmax.f32 %v3011, 0.0
        %v6009 = vmax.f32 %v3278, 0.0
        %v6010 = vmax.f32 %v3545, 0.0
        %v6011 = vmax.f32 %v3812, 0.0
        %v6012 = vmax.f32 %v4079, 0.0
        %v6013 = vmax.f32 %v4346, 0.0
        %v6014 = vmax.f32 %v4613, 0.0
        %v6015 = vmax.f32 %v4880, 0.0
        %v6016 = vmax.f32 %v5147, 0.0
        %v6017 = vmax.f32 %v5414, 0.0
        %v6018 = vmax.f32 %v5681, 0.0
        %v6019 = vmax.f32 %v2746, 0.0
        %v6020 = vmax.f32 %v3013, 0.0
        %v6021 = vmax.f32 %v3280, 0.0
        %v6022 = vmax.f32 %v3547, 0.0
        %v6023 = vmax.f32 %v3814, 0.0
        %v6024 = vmax.f32 %v4081, 0.0
        %v6025 = vmax.f32 %v4348, 0.0
        %v6026 = vmax.f32 %v4615, 0.0
        %v6027 = vmax.f32 %v4882, 0.0
        %v6028 = vmax.f32 %v5149, 0.0
        %v6029 = vmax.f32 %v5416, 0.0
        %v6030 = vmax.f32 %v5683, 0.0
        %v6031 = vmax.f32 %v2749, 0.0
        %v6032 = vmax.f32 %v3016, 0.0
        %v6033 = vmax.f32 %v3283, 0.0
        %v6034 = vmax.f32 %v3550, 0.0
        %v6035 = vmax.f32 %v3817, 0.0
        %v6036 = vmax.f32 %v4084, 0.0
        %v6037 = vmax.f32 %v4351, 0.0
        %v6038 = vmax.f32 %v4618, 0.0
        %v6039 = vmax.f32 %v4885, 0.0
        %v6040 = vmax.f32 %v5152, 0.0
        %v6041 = vmax.f32 %v5419, 0.0
        %v6042 = vmax.f32 %v5686, 0.0
        %v6043 = vmax.f32 %v2751, 0.0
        %v6044 = vmax.f32 %v3018, 0.0
        %v6045 = vmax.f32 %v3285, 0.0
        %v6046 = vmax.f32 %v3552, 0.0
        %v6047 = vmax.f32 %v3819, 0.0
        %v6048 = vmax.f32 %v4086, 0.0
        %v6049 = vmax.f32 %v4353, 0.0
        %v6050 = vmax.f32 %v4620, 0.0
        %v6051 = vmax.f32 %v4887, 0.0
        %v6052 = vmax.f32 %v5154, 0.0
        %v6053 = vmax.f32 %v5421, 0.0
        %v6054 = vmax.f32 %v5688, 0.0
        %v6055 = vmax.f32 %v2754, 0.0
        %v6056 = vmax.f32 %v3021, 0.0
        %v6057 = vmax.f32 %v3288, 0.0
        %v6058 = vmax.f32 %v3555, 0.0
        %v6059 = vmax.f32 %v3822, 0.0
        %v6060 = vmax.f32 %v4089, 0.0
        %v6061 = vmax.f32 %v4356, 0.0
        %v6062 = vmax.f32 %v4623, 0.0
        %v6063 = vmax.f32 %v4890, 0.0
        %v6064 = vmax.f32 %v5157, 0.0
        %v6065 = vmax.f32 %v5424, 0.0
        %v6066 = vmax.f32 %v5691, 0.0
        %v6067 = vmax.f32 %v2756, 0.0
        %v6068 = vmax.f32 %v3023, 0.0
        %v6069 = vmax.f32 %v3290, 0.0
        %v6070 = vmax.f32 %v3557, 0.0
        %v6071 = vmax.f32 %v3824, 0.0
        %v6072 = vmax.f32 %v4091, 0.0
        %v6073 = vmax.f32 %v4358, 0.0
        %v6074 = vmax.f32 %v4625, 0.0
        %v6075 = vmax.f32 %v4892, 0.0
        %v6076 = vmax.f32 %v5159, 0.0
        %v6077 = vmax.f32 %v5426, 0.0
        %v6078 = vmax.f32 %v5693, 0.0
        %v6079 = vld [vmem:[#allocation2] sm:$0xff]
        %v6080 = vld [vmem:[#allocation2 + $0x8] sm:$0xff]
        %v6081 = vld [vmem:[#allocation2 + $0x10] sm:$0xff]
        %v6082 = vld [vmem:[#allocation2 + $0x18] sm:$0xff]
        %v6083 = vld [vmem:[#allocation2 + $0x20] sm:$0xff]
        %v6084 = vld [vmem:[#allocation2 + $0x28] sm:$0xff]
        %v6085 = vld [vmem:[#allocation2 + $0x30] sm:$0xff]
        %v6086 = vld [vmem:[#allocation2 + $0x38] sm:$0xff]
        %v6087 = vld [vmem:[#allocation2 + $0x40] sm:$0xff]
        %v6088 = vld [vmem:[#allocation2 + $0x48] sm:$0xff]
        %v6089 = vld [vmem:[#allocation2 + $0x50] sm:$0xff]
        %v6090 = vld [vmem:[#allocation2 + $0x58] sm:$0xff]
        %v6091 = vld [vmem:[#allocation2 + $0x60] sm:$0xff]
        %v6092 = vld [vmem:[#allocation2 + $0x68] sm:$0xff]
        %v6093 = vld [vmem:[#allocation2 + $0x70] sm:$0xff]
        %v6094 = vld [vmem:[#allocation2 + $0x78] sm:$0xff]
        %v6095 = vld [vmem:[#allocation2 + $0x80] sm:$0xff]
        %v6096 = vld [vmem:[#allocation2 + $0x88] sm:$0xff]
        %v6097 = vld [vmem:[#allocation2 + $0x90] sm:$0xff]
        %v6098 = vld [vmem:[#allocation2 + $0x98] sm:$0xff]
        %v6099 = vld [vmem:[#allocation2 + $0xa0] sm:$0xff]
        %v6100 = vld [vmem:[#allocation2 + $0xa8] sm:$0xff]
        %v6101 = vld [vmem:[#allocation2 + $0xb0] sm:$0xff]
        %v6102 = vld [vmem:[#allocation2 + $0xb8] sm:$0xff]
        %v6103 = vld [vmem:[#allocation2 + $0xc0] sm:$0xff]
        %v6104 = vld [vmem:[#allocation2 + $0xc8] sm:$0xff]
        %v6105 = vld [vmem:[#allocation2 + $0xd0] sm:$0xff]
        %v6106 = vld [vmem:[#allocation2 + $0xd8] sm:$0xff]
        %v6107 = vld [vmem:[#allocation2 + $0xe0] sm:$0xff]
        %v6108 = vld [vmem:[#allocation2 + $0xe8] sm:$0xff]
        %v6109 = vld [vmem:[#allocation2 + $0xf0] sm:$0xff]
        %v6110 = vld [vmem:[#allocation2 + $0xf8] sm:$0xff]
        %v6111 = vld [vmem:[#allocation2 + $0x100] sm:$0xff]
        %v6112 = vld [vmem:[#allocation2 + $0x108] sm:$0xff]
        %v6113 = vld [vmem:[#allocation2 + $0x110] sm:$0xff]
        %v6114 = vld [vmem:[#allocation2 + $0x118] sm:$0xff]
        %v6115 = vld [vmem:[#allocation2 + $0x120] sm:$0xff]
        %v6116 = vld [vmem:[#allocation2 + $0x128] sm:$0xff]
        %v6117 = vld [vmem:[#allocation2 + $0x130] sm:$0xff]
        %v6118 = vld [vmem:[#allocation2 + $0x138] sm:$0xff]
        %v6119 = vld [vmem:[#allocation2 + $0x140] sm:$0xff]
        %v6120 = vld [vmem:[#allocation2 + $0x148] sm:$0xff]
        %v6121 = vld [vmem:[#allocation2 + $0x150] sm:$0xff]
        %v6122 = vld [vmem:[#allocation2 + $0x158] sm:$0xff]
        %v6123 = vld [vmem:[#allocation2 + $0x160] sm:$0xff]
        %v6124 = vld [vmem:[#allocation2 + $0x168] sm:$0xff]
        %v6125 = vld [vmem:[#allocation2 + $0x170] sm:$0xff]
        %v6126 = vld [vmem:[#allocation2 + $0x178] sm:$0xff]
        %v6127 = vld [vmem:[#allocation2 + $0x180] sm:$0xff]
        %v6128 = vld [vmem:[#allocation2 + $0x188] sm:$0xff]
        %v6129 = vld [vmem:[#allocation2 + $0x190] sm:$0xff]
        %v6130 = vld [vmem:[#allocation2 + $0x198] sm:$0xff]
        %v6131 = vld [vmem:[#allocation2 + $0x1a0] sm:$0xff]
        %v6132 = vld [vmem:[#allocation2 + $0x1a8] sm:$0xff]
        %v6133 = vld [vmem:[#allocation2 + $0x1b0] sm:$0xff]
        %v6134 = vld [vmem:[#allocation2 + $0x1b8] sm:$0xff]
        %v6135 = vld [vmem:[#allocation2 + $0x1c0] sm:$0xff]
        %v6136 = vld [vmem:[#allocation2 + $0x1c8] sm:$0xff]
        %v6137 = vld [vmem:[#allocation2 + $0x1d0] sm:$0xff]
        %v6138 = vld [vmem:[#allocation2 + $0x1d8] sm:$0xff]
        %v6139 = vld [vmem:[#allocation2 + $0x1e0] sm:$0xff]
        %v6140 = vld [vmem:[#allocation2 + $0x1e8] sm:$0xff]
        %v6141 = vld [vmem:[#allocation2 + $0x1f0] sm:$0xff]
        %v6142 = vld [vmem:[#allocation2 + $0x1f8] sm:$0xff]
        %v6143 = vld [vmem:[#allocation2 + $0x200] sm:$0xff]
        %v6144 = vld [vmem:[#allocation2 + $0x208] sm:$0xff]
        %v6145 = vld [vmem:[#allocation2 + $0x210] sm:$0xff]
        %v6146 = vld [vmem:[#allocation2 + $0x218] sm:$0xff]
        %v6147 = vld [vmem:[#allocation2 + $0x220] sm:$0xff]
        %v6148 = vld [vmem:[#allocation2 + $0x228] sm:$0xff]
        %v6149 = vld [vmem:[#allocation2 + $0x230] sm:$0xff]
        %v6150 = vld [vmem:[#allocation2 + $0x238] sm:$0xff]
        %v6151 = vld [vmem:[#allocation2 + $0x240] sm:$0xff]
        %v6152 = vld [vmem:[#allocation2 + $0x248] sm:$0xff]
        %v6153 = vld [vmem:[#allocation2 + $0x250] sm:$0xff]
        %v6154 = vld [vmem:[#allocation2 + $0x258] sm:$0xff]
        %v6155 = vld [vmem:[#allocation2 + $0x260] sm:$0xff]
        %v6156 = vld [vmem:[#allocation2 + $0x268] sm:$0xff]
        %v6157 = vld [vmem:[#allocation2 + $0x270] sm:$0xff]
        %v6158 = vld [vmem:[#allocation2 + $0x278] sm:$0xff]
        %v6159 = vld [vmem:[#allocation2 + $0x280] sm:$0xff]
        %v6160 = vld [vmem:[#allocation2 + $0x288] sm:$0xff]
        %v6161 = vld [vmem:[#allocation2 + $0x290] sm:$0xff]
        %v6162 = vld [vmem:[#allocation2 + $0x298] sm:$0xff]
        %v6163 = vld [vmem:[#allocation2 + $0x2a0] sm:$0xff]
        %v6164 = vld [vmem:[#allocation2 + $0x2a8] sm:$0xff]
        %v6165 = vld [vmem:[#allocation2 + $0x2b0] sm:$0xff]
        %v6166 = vld [vmem:[#allocation2 + $0x2b8] sm:$0xff]
        %v6167 = vld [vmem:[#allocation2 + $0x2c0] sm:$0xff]
        %v6168 = vld [vmem:[#allocation2 + $0x2c8] sm:$0xff]
        %v6169 = vld [vmem:[#allocation2 + $0x2d0] sm:$0xff]
        %v6170 = vld [vmem:[#allocation2 + $0x2d8] sm:$0xff]
        %v6171 = vld [vmem:[#allocation2 + $0x2e0] sm:$0xff]
        %v6172 = vld [vmem:[#allocation2 + $0x2e8] sm:$0xff]
        %v6173 = vld [vmem:[#allocation2 + $0x2f0] sm:$0xff]
        %v6174 = vld [vmem:[#allocation2 + $0x2f8] sm:$0xff]
        %v6175 = vpack.c.bf16 %v5707, %v5695
        %v6176 = vpack.c.bf16 %v5708, %v5696
        %v6177 = vpack.c.bf16 %v5709, %v5697
        %v6178 = vpack.c.bf16 %v5710, %v5698
        %v6179 = vpack.c.bf16 %v5711, %v5699
        %v6180 = vpack.c.bf16 %v5712, %v5700
        %v6181 = vpack.c.bf16 %v5713, %v5701
        %v6182 = vpack.c.bf16 %v5714, %v5702
        %v6183 = vpack.c.bf16 %v5715, %v5703
        %v6184 = vpack.c.bf16 %v5716, %v5704
        %v6185 = vpack.c.bf16 %v5717, %v5705
        %v6186 = vpack.c.bf16 %v5718, %v5706
        %v6187 = vpack.c.bf16 %v5731, %v5719
        %v6188 = vpack.c.bf16 %v5732, %v5720
        %v6189 = vpack.c.bf16 %v5733, %v5721
        %v6190 = vpack.c.bf16 %v5734, %v5722
        %v6191 = vpack.c.bf16 %v5735, %v5723
        %v6192 = vpack.c.bf16 %v5736, %v5724
        %v6193 = vpack.c.bf16 %v5737, %v5725
        %v6194 = vpack.c.bf16 %v5738, %v5726
        %v6195 = vpack.c.bf16 %v5739, %v5727
        %v6196 = vpack.c.bf16 %v5740, %v5728
        %v6197 = vpack.c.bf16 %v5741, %v5729
        %v6198 = vpack.c.bf16 %v5742, %v5730
        %v6199 = vpack.c.bf16 %v5755, %v5743
        %v6200 = vpack.c.bf16 %v5756, %v5744
        %v6201 = vpack.c.bf16 %v5757, %v5745
        %v6202 = vpack.c.bf16 %v5758, %v5746
        %v6203 = vpack.c.bf16 %v5759, %v5747
        %v6204 = vpack.c.bf16 %v5760, %v5748
        %v6205 = vpack.c.bf16 %v5761, %v5749
        %v6206 = vpack.c.bf16 %v5762, %v5750
        %v6207 = vpack.c.bf16 %v5763, %v5751
        %v6208 = vpack.c.bf16 %v5764, %v5752
        %v6209 = vpack.c.bf16 %v5765, %v5753
        %v6210 = vpack.c.bf16 %v5766, %v5754
        %v6211 = vpack.c.bf16 %v5779, %v5767
        %v6212 = vpack.c.bf16 %v5780, %v5768
        %v6213 = vpack.c.bf16 %v5781, %v5769
        %v6214 = vpack.c.bf16 %v5782, %v5770
        %v6215 = vpack.c.bf16 %v5783, %v5771
        %v6216 = vpack.c.bf16 %v5784, %v5772
        %v6217 = vpack.c.bf16 %v5785, %v5773
        %v6218 = vpack.c.bf16 %v5786, %v5774
        %v6219 = vpack.c.bf16 %v5787, %v5775
        %v6220 = vpack.c.bf16 %v5788, %v5776
        %v6221 = vpack.c.bf16 %v5789, %v5777
        %v6222 = vpack.c.bf16 %v5790, %v5778
        %v6223 = vpack.c.bf16 %v5803, %v5791
        %v6224 = vpack.c.bf16 %v5804, %v5792
        %v6225 = vpack.c.bf16 %v5805, %v5793
        %v6226 = vpack.c.bf16 %v5806, %v5794
        %v6227 = vpack.c.bf16 %v5807, %v5795
        %v6228 = vpack.c.bf16 %v5808, %v5796
        %v6229 = vpack.c.bf16 %v5809, %v5797
        %v6230 = vpack.c.bf16 %v5810, %v5798
        %v6231 = vpack.c.bf16 %v5811, %v5799
        %v6232 = vpack.c.bf16 %v5812, %v5800
        %v6233 = vpack.c.bf16 %v5813, %v5801
        %v6234 = vpack.c.bf16 %v5814, %v5802
        %v6235 = vpack.c.bf16 %v5827, %v5815
        %v6236 = vpack.c.bf16 %v5828, %v5816
        %v6237 = vpack.c.bf16 %v5829, %v5817
        %v6238 = vpack.c.bf16 %v5830, %v5818
        %v6239 = vpack.c.bf16 %v5831, %v5819
        %v6240 = vpack.c.bf16 %v5832, %v5820
        %v6241 = vpack.c.bf16 %v5833, %v5821
        %v6242 = vpack.c.bf16 %v5834, %v5822
        %v6243 = vpack.c.bf16 %v5835, %v5823
        %v6244 = vpack.c.bf16 %v5836, %v5824
        %v6245 = vpack.c.bf16 %v5837, %v5825
        %v6246 = vpack.c.bf16 %v5838, %v5826
        %v6247 = vpack.c.bf16 %v5851, %v5839
        %v6248 = vpack.c.bf16 %v5852, %v5840
        %v6249 = vpack.c.bf16 %v5853, %v5841
        %v6250 = vpack.c.bf16 %v5854, %v5842
        %v6251 = vpack.c.bf16 %v5855, %v5843
        %v6252 = vpack.c.bf16 %v5856, %v5844
        %v6253 = vpack.c.bf16 %v5857, %v5845
        %v6254 = vpack.c.bf16 %v5858, %v5846
        %v6255 = vpack.c.bf16 %v5859, %v5847
        %v6256 = vpack.c.bf16 %v5860, %v5848
        %v6257 = vpack.c.bf16 %v5861, %v5849
        %v6258 = vpack.c.bf16 %v5862, %v5850
        %v6259 = vpack.c.bf16 %v5875, %v5863
        %v6260 = vpack.c.bf16 %v5876, %v5864
        %v6261 = vpack.c.bf16 %v5877, %v5865
        %v6262 = vpack.c.bf16 %v5878, %v5866
        %v6263 = vpack.c.bf16 %v5879, %v5867
        %v6264 = vpack.c.bf16 %v5880, %v5868
        %v6265 = vpack.c.bf16 %v5881, %v5869
        %v6266 = vpack.c.bf16 %v5882, %v5870
        %v6267 = vpack.c.bf16 %v5883, %v5871
        %v6268 = vpack.c.bf16 %v5884, %v5872
        %v6269 = vpack.c.bf16 %v5885, %v5873
        %v6270 = vpack.c.bf16 %v5886, %v5874
        %v6271 = vpack.c.bf16 %v5899, %v5887
        %v6272 = vpack.c.bf16 %v5900, %v5888
        %v6273 = vpack.c.bf16 %v5901, %v5889
        %v6274 = vpack.c.bf16 %v5902, %v5890
        %v6275 = vpack.c.bf16 %v5903, %v5891
        %v6276 = vpack.c.bf16 %v5904, %v5892
        %v6277 = vpack.c.bf16 %v5905, %v5893
        %v6278 = vpack.c.bf16 %v5906, %v5894
        %v6279 = vpack.c.bf16 %v5907, %v5895
        %v6280 = vpack.c.bf16 %v5908, %v5896
        %v6281 = vpack.c.bf16 %v5909, %v5897
        %v6282 = vpack.c.bf16 %v5910, %v5898
        %v6283 = vpack.c.bf16 %v5923, %v5911
        %v6284 = vpack.c.bf16 %v5924, %v5912
        %v6285 = vpack.c.bf16 %v5925, %v5913
        %v6286 = vpack.c.bf16 %v5926, %v5914
        %v6287 = vpack.c.bf16 %v5927, %v5915
        %v6288 = vpack.c.bf16 %v5928, %v5916
        %v6289 = vpack.c.bf16 %v5929, %v5917
        %v6290 = vpack.c.bf16 %v5930, %v5918
        %v6291 = vpack.c.bf16 %v5931, %v5919
        %v6292 = vpack.c.bf16 %v5932, %v5920
        %v6293 = vpack.c.bf16 %v5933, %v5921
        %v6294 = vpack.c.bf16 %v5934, %v5922
        %v6295 = vpack.c.bf16 %v5947, %v5935
        %v6296 = vpack.c.bf16 %v5948, %v5936
        %v6297 = vpack.c.bf16 %v5949, %v5937
        %v6298 = vpack.c.bf16 %v5950, %v5938
        %v6299 = vpack.c.bf16 %v5951, %v5939
        %v6300 = vpack.c.bf16 %v5952, %v5940
        %v6301 = vpack.c.bf16 %v5953, %v5941
        %v6302 = vpack.c.bf16 %v5954, %v5942
        %v6303 = vpack.c.bf16 %v5955, %v5943
        %v6304 = vpack.c.bf16 %v5956, %v5944
        %v6305 = vpack.c.bf16 %v5957, %v5945
        %v6306 = vpack.c.bf16 %v5958, %v5946
        %v6307 = vpack.c.bf16 %v5971, %v5959
        %v6308 = vpack.c.bf16 %v5972, %v5960
        %v6309 = vpack.c.bf16 %v5973, %v5961
        %v6310 = vpack.c.bf16 %v5974, %v5962
        %v6311 = vpack.c.bf16 %v5975, %v5963
        %v6312 = vpack.c.bf16 %v5976, %v5964
        %v6313 = vpack.c.bf16 %v5977, %v5965
        %v6314 = vpack.c.bf16 %v5978, %v5966
        %v6315 = vpack.c.bf16 %v5979, %v5967
        %v6316 = vpack.c.bf16 %v5980, %v5968
        %v6317 = vpack.c.bf16 %v5981, %v5969
        %v6318 = vpack.c.bf16 %v5982, %v5970
        %v6319 = vpack.c.bf16 %v5995, %v5983
        %v6320 = vpack.c.bf16 %v5996, %v5984
        %v6321 = vpack.c.bf16 %v5997, %v5985
        %v6322 = vpack.c.bf16 %v5998, %v5986
        %v6323 = vpack.c.bf16 %v5999, %v5987
        %v6324 = vpack.c.bf16 %v6000, %v5988
        %v6325 = vpack.c.bf16 %v6001, %v5989
        %v6326 = vpack.c.bf16 %v6002, %v5990
        %v6327 = vpack.c.bf16 %v6003, %v5991
        %v6328 = vpack.c.bf16 %v6004, %v5992
        %v6329 = vpack.c.bf16 %v6005, %v5993
        %v6330 = vpack.c.bf16 %v6006, %v5994
        %v6331 = vpack.c.bf16 %v6019, %v6007
        %v6332 = vpack.c.bf16 %v6020, %v6008
        %v6333 = vpack.c.bf16 %v6021, %v6009
        %v6334 = vpack.c.bf16 %v6022, %v6010
        %v6335 = vpack.c.bf16 %v6023, %v6011
        %v6336 = vpack.c.bf16 %v6024, %v6012
        %v6337 = vpack.c.bf16 %v6025, %v6013
        %v6338 = vpack.c.bf16 %v6026, %v6014
        %v6339 = vpack.c.bf16 %v6027, %v6015
        %v6340 = vpack.c.bf16 %v6028, %v6016
        %v6341 = vpack.c.bf16 %v6029, %v6017
        %v6342 = vpack.c.bf16 %v6030, %v6018
        %v6343 = vpack.c.bf16 %v6043, %v6031
        %v6344 = vpack.c.bf16 %v6044, %v6032
        %v6345 = vpack.c.bf16 %v6045, %v6033
        %v6346 = vpack.c.bf16 %v6046, %v6034
        %v6347 = vpack.c.bf16 %v6047, %v6035
        %v6348 = vpack.c.bf16 %v6048, %v6036
        %v6349 = vpack.c.bf16 %v6049, %v6037
        %v6350 = vpack.c.bf16 %v6050, %v6038
        %v6351 = vpack.c.bf16 %v6051, %v6039
        %v6352 = vpack.c.bf16 %v6052, %v6040
        %v6353 = vpack.c.bf16 %v6053, %v6041
        %v6354 = vpack.c.bf16 %v6054, %v6042
        %v6355 = vpack.c.bf16 %v6067, %v6055
        %v6356 = vpack.c.bf16 %v6068, %v6056
        %v6357 = vpack.c.bf16 %v6069, %v6057
        %v6358 = vpack.c.bf16 %v6070, %v6058
        %v6359 = vpack.c.bf16 %v6071, %v6059
        %v6360 = vpack.c.bf16 %v6072, %v6060
        %v6361 = vpack.c.bf16 %v6073, %v6061
        %v6362 = vpack.c.bf16 %v6074, %v6062
        %v6363 = vpack.c.bf16 %v6075, %v6063
        %v6364 = vpack.c.bf16 %v6076, %v6064
        %v6365 = vpack.c.bf16 %v6077, %v6065
        %v6366 = vpack.c.bf16 %v6078, %v6066
        %v6367 = vld [vmem:[%s304] sm:$0xff]
        %v6368 = vld [vmem:[%s304 + $0x8] sm:$0xf]
        %v6369 = vld [vmem:[%s304 + $0xc] sm:$0xff]
        %v6370 = vld [vmem:[%s304 + $0x14] sm:$0xf]
        %v6371 = vld [vmem:[%s304 + $0x18] sm:$0xff]
        %v6372 = vld [vmem:[%s304 + $0x20] sm:$0xf]
        %v6373 = vld [vmem:[%s304 + $0x24] sm:$0xff]
        %v6374 = vld [vmem:[%s304 + $0x2c] sm:$0xf]
        %v6375 = vld [vmem:[%s304 + $0x30] sm:$0xff]
        %v6376 = vld [vmem:[%s304 + $0x38] sm:$0xf]
        %v6377 = vld [vmem:[%s304 + $0x3c] sm:$0xff]
        %v6378 = vld [vmem:[%s304 + $0x44] sm:$0xf]
        %v6379 = vld [vmem:[%s304 + $0x48] sm:$0xff]
        %v6380 = vld [vmem:[%s304 + $0x50] sm:$0xf]
        %v6381 = vld [vmem:[%s304 + $0x54] sm:$0xff]
        %v6382 = vld [vmem:[%s304 + $0x5c] sm:$0xf]
        %v6383 = vld [vmem:[%s304 + $0x60] sm:$0xff]
        %v6384 = vld [vmem:[%s304 + $0x68] sm:$0xf]
        %v6385 = vld [vmem:[%s304 + $0x6c] sm:$0xff]
        %v6386 = vld [vmem:[%s304 + $0x74] sm:$0xf]
        %v6387 = vld [vmem:[%s304 + $0x78] sm:$0xff]
        %v6388 = vld [vmem:[%s304 + $0x80] sm:$0xf]
        %v6389 = vld [vmem:[%s304 + $0x84] sm:$0xff]
        %v6390 = vld [vmem:[%s304 + $0x8c] sm:$0xf]
        %v6391 = vld [vmem:[%s304 + $0x90] sm:$0xff]
        %v6392 = vld [vmem:[%s304 + $0x98] sm:$0xf]
        %v6393 = vld [vmem:[%s304 + $0x9c] sm:$0xff]
        %v6394 = vld [vmem:[%s304 + $0xa4] sm:$0xf]
        %v6395 = vld [vmem:[%s304 + $0xa8] sm:$0xff]
        %v6396 = vld [vmem:[%s304 + $0xb0] sm:$0xf]
        %v6397 = vld [vmem:[%s304 + $0xb4] sm:$0xff]
        %v6398 = vld [vmem:[%s304 + $0xbc] sm:$0xf]
        %v6399 = vld [vmem:[%s304 + $0xc0] sm:$0xff]
        %v6400 = vld [vmem:[%s304 + $0xc8] sm:$0xf]
        %v6401 = vld [vmem:[%s304 + $0xcc] sm:$0xff]
        %v6402 = vld [vmem:[%s304 + $0xd4] sm:$0xf]
        %v6403 = vld [vmem:[%s304 + $0xd8] sm:$0xff]
        %v6404 = vld [vmem:[%s304 + $0xe0] sm:$0xf]
        %v6405 = vld [vmem:[%s304 + $0xe4] sm:$0xff]
        %v6406 = vld [vmem:[%s304 + $0xec] sm:$0xf]
        %v6407 = vld [vmem:[%s304 + $0xf0] sm:$0xff]
        %v6408 = vld [vmem:[%s304 + $0xf8] sm:$0xf]
        %v6409 = vld [vmem:[%s304 + $0xfc] sm:$0xff]
        %v6410 = vld [vmem:[%s304 + $0x104] sm:$0xf]
        %v6411 = vld [vmem:[%s304 + $0x108] sm:$0xff]
        %v6412 = vld [vmem:[%s304 + $0x110] sm:$0xf]
        %v6413 = vld [vmem:[%s304 + $0x114] sm:$0xff]
        %v6414 = vld [vmem:[%s304 + $0x11c] sm:$0xf]
        %v6415 = vld [vmem:[%s304 + $0x120] sm:$0xff]
        %v6416 = vld [vmem:[%s304 + $0x128] sm:$0xf]
        %v6417 = vld [vmem:[%s304 + $0x12c] sm:$0xff]
        %v6418 = vld [vmem:[%s304 + $0x134] sm:$0xf]
        %v6419 = vld [vmem:[%s304 + $0x138] sm:$0xff]
        %v6420 = vld [vmem:[%s304 + $0x140] sm:$0xf]
        %v6421 = vld [vmem:[%s304 + $0x144] sm:$0xff]
        %v6422 = vld [vmem:[%s304 + $0x14c] sm:$0xf]
        %v6423 = vld [vmem:[%s304 + $0x150] sm:$0xff]
        %v6424 = vld [vmem:[%s304 + $0x158] sm:$0xf]
        %v6425 = vld [vmem:[%s304 + $0x15c] sm:$0xff]
        %v6426 = vld [vmem:[%s304 + $0x164] sm:$0xf]
        %v6427 = vld [vmem:[%s304 + $0x168] sm:$0xff]
        %v6428 = vld [vmem:[%s304 + $0x170] sm:$0xf]
        %v6429 = vld [vmem:[%s304 + $0x174] sm:$0xff]
        %v6430 = vld [vmem:[%s304 + $0x17c] sm:$0xf]
        %v6431 = vld [vmem:[%s304 + $0x180] sm:$0xff]
        %v6432 = vld [vmem:[%s304 + $0x188] sm:$0xf]
        %v6433 = vld [vmem:[%s304 + $0x18c] sm:$0xff]
        %v6434 = vld [vmem:[%s304 + $0x194] sm:$0xf]
        %v6435 = vld [vmem:[%s304 + $0x198] sm:$0xff]
        %v6436 = vld [vmem:[%s304 + $0x1a0] sm:$0xf]
        %v6437 = vld [vmem:[%s304 + $0x1a4] sm:$0xff]
        %v6438 = vld [vmem:[%s304 + $0x1ac] sm:$0xf]
        %v6439 = vld [vmem:[%s304 + $0x1b0] sm:$0xff]
        %v6440 = vld [vmem:[%s304 + $0x1b8] sm:$0xf]
        %v6441 = vld [vmem:[%s304 + $0x1bc] sm:$0xff]
        %v6442 = vld [vmem:[%s304 + $0x1c4] sm:$0xf]
        %v6443 = vld [vmem:[%s304 + $0x1c8] sm:$0xff]
        %v6444 = vld [vmem:[%s304 + $0x1d0] sm:$0xf]
        %v6445 = vld [vmem:[%s304 + $0x1d4] sm:$0xff]
        %v6446 = vld [vmem:[%s304 + $0x1dc] sm:$0xf]
        %v6447 = vld [vmem:[%s304 + $0x1e0] sm:$0xff]
        %v6448 = vld [vmem:[%s304 + $0x1e8] sm:$0xf]
        %v6449 = vld [vmem:[%s304 + $0x1ec] sm:$0xff]
        %v6450 = vld [vmem:[%s304 + $0x1f4] sm:$0xf]
        %v6451 = vld [vmem:[%s304 + $0x1f8] sm:$0xff]
        %v6452 = vld [vmem:[%s304 + $0x200] sm:$0xf]
        %v6453 = vld [vmem:[%s304 + $0x204] sm:$0xff]
        %v6454 = vld [vmem:[%s304 + $0x20c] sm:$0xf]
        %v6455 = vld [vmem:[%s304 + $0x210] sm:$0xff]
        %v6456 = vld [vmem:[%s304 + $0x218] sm:$0xf]
        %v6457 = vld [vmem:[%s304 + $0x21c] sm:$0xff]
        %v6458 = vld [vmem:[%s304 + $0x224] sm:$0xf]
        %v6459 = vld [vmem:[%s304 + $0x228] sm:$0xff]
        %v6460 = vld [vmem:[%s304 + $0x230] sm:$0xf]
        %v6461 = vld [vmem:[%s304 + $0x234] sm:$0xff]
        %v6462 = vld [vmem:[%s304 + $0x23c] sm:$0xf]
        %v6463 = vld [vmem:[%s304 + $0x240] sm:$0xff]
        %v6464 = vld [vmem:[%s304 + $0x248] sm:$0xf]
        %v6465 = vld [vmem:[%s304 + $0x24c] sm:$0xff]
        %v6466 = vld [vmem:[%s304 + $0x254] sm:$0xf]
        %v6467 = vld [vmem:[%s304 + $0x258] sm:$0xff]
        %v6468 = vld [vmem:[%s304 + $0x260] sm:$0xf]
        %v6469 = vld [vmem:[%s304 + $0x264] sm:$0xff]
        %v6470 = vld [vmem:[%s304 + $0x26c] sm:$0xf]
        %v6471 = vld [vmem:[%s304 + $0x270] sm:$0xff]
        %v6472 = vld [vmem:[%s304 + $0x278] sm:$0xf]
        %v6473 = vld [vmem:[%s304 + $0x27c] sm:$0xff]
        %v6474 = vld [vmem:[%s304 + $0x284] sm:$0xf]
        %v6475 = vld [vmem:[%s304 + $0x288] sm:$0xff]
        %v6476 = vld [vmem:[%s304 + $0x290] sm:$0xf]
        %v6477 = vld [vmem:[%s304 + $0x294] sm:$0xff]
        %v6478 = vld [vmem:[%s304 + $0x29c] sm:$0xf]
        %v6479 = vld [vmem:[%s304 + $0x2a0] sm:$0xff]
        %v6480 = vld [vmem:[%s304 + $0x2a8] sm:$0xf]
        %v6481 = vld [vmem:[%s304 + $0x2ac] sm:$0xff]
        %v6482 = vld [vmem:[%s304 + $0x2b4] sm:$0xf]
        %v6483 = vld [vmem:[%s304 + $0x2b8] sm:$0xff]
        %v6484 = vld [vmem:[%s304 + $0x2c0] sm:$0xf]
        %v6485 = vld [vmem:[%s304 + $0x2c4] sm:$0xff]
        %v6486 = vld [vmem:[%s304 + $0x2cc] sm:$0xf]
        %v6487 = vld [vmem:[%s304 + $0x2d0] sm:$0xff]
        %v6488 = vld [vmem:[%s304 + $0x2d8] sm:$0xf]
        %v6489 = vld [vmem:[%s304 + $0x2dc] sm:$0xff]
        %v6490 = vld [vmem:[%s304 + $0x2e4] sm:$0xf]
        %v6491 = vld [vmem:[%s304 + $0x2e8] sm:$0xff]
        %v6492 = vld [vmem:[%s304 + $0x2f0] sm:$0xf]
        %v6493 = vld [vmem:[%s304 + $0x2f4] sm:$0xff]
        %v6494 = vld [vmem:[%s304 + $0x2fc] sm:$0xf]
        %v6495 = vld [vmem:[%s304 + $0x300] sm:$0xff]
        %v6496 = vld [vmem:[%s304 + $0x308] sm:$0xf]
        %v6497 = vld [vmem:[%s304 + $0x30c] sm:$0xff]
        %v6498 = vld [vmem:[%s304 + $0x314] sm:$0xf]
        %v6499 = vld [vmem:[%s304 + $0x318] sm:$0xff]
        %v6500 = vld [vmem:[%s304 + $0x320] sm:$0xf]
        %v6501 = vld [vmem:[%s304 + $0x324] sm:$0xff]
        %v6502 = vld [vmem:[%s304 + $0x32c] sm:$0xf]
        %v6503 = vld [vmem:[%s304 + $0x330] sm:$0xff]
        %v6504 = vld [vmem:[%s304 + $0x338] sm:$0xf]
        %v6505 = vld [vmem:[%s304 + $0x33c] sm:$0xff]
        %v6506 = vld [vmem:[%s304 + $0x344] sm:$0xf]
        %v6507 = vld [vmem:[%s304 + $0x348] sm:$0xff]
        %v6508 = vld [vmem:[%s304 + $0x350] sm:$0xf]
        %v6509 = vld [vmem:[%s304 + $0x354] sm:$0xff]
        %v6510 = vld [vmem:[%s304 + $0x35c] sm:$0xf]
        %v6511 = vld [vmem:[%s304 + $0x360] sm:$0xff]
        %v6512 = vld [vmem:[%s304 + $0x368] sm:$0xf]
        %v6513 = vld [vmem:[%s304 + $0x36c] sm:$0xff]
        %v6514 = vld [vmem:[%s304 + $0x374] sm:$0xf]
        %v6515 = vld [vmem:[%s304 + $0x378] sm:$0xff]
        %v6516 = vld [vmem:[%s304 + $0x380] sm:$0xf]
        %v6517 = vld [vmem:[%s304 + $0x384] sm:$0xff]
        %v6518 = vld [vmem:[%s304 + $0x38c] sm:$0xf]
        %v6519 = vld [vmem:[%s304 + $0x390] sm:$0xff]
        %v6520 = vld [vmem:[%s304 + $0x398] sm:$0xf]
        %v6521 = vld [vmem:[%s304 + $0x39c] sm:$0xff]
        %v6522 = vld [vmem:[%s304 + $0x3a4] sm:$0xf]
        %v6523 = vld [vmem:[%s304 + $0x3a8] sm:$0xff]
        %v6524 = vld [vmem:[%s304 + $0x3b0] sm:$0xf]
        %v6525 = vld [vmem:[%s304 + $0x3b4] sm:$0xff]
        %v6526 = vld [vmem:[%s304 + $0x3bc] sm:$0xf]
        %v6527 = vld [vmem:[%s304 + $0x3c0] sm:$0xff]
        %v6528 = vld [vmem:[%s304 + $0x3c8] sm:$0xf]
        %v6529 = vld [vmem:[%s304 + $0x3cc] sm:$0xff]
        %v6530 = vld [vmem:[%s304 + $0x3d4] sm:$0xf]
        %v6531 = vld [vmem:[%s304 + $0x3d8] sm:$0xff]
        %v6532 = vld [vmem:[%s304 + $0x3e0] sm:$0xf]
        %v6533 = vld [vmem:[%s304 + $0x3e4] sm:$0xff]
        %v6534 = vld [vmem:[%s304 + $0x3ec] sm:$0xf]
        %v6535 = vld [vmem:[%s304 + $0x3f0] sm:$0xff]
        %v6536 = vld [vmem:[%s304 + $0x3f8] sm:$0xf]
        %v6537 = vld [vmem:[%s304 + $0x3fc] sm:$0xff]
        %v6538 = vld [vmem:[%s304 + $0x404] sm:$0xf]
        %v6539 = vld [vmem:[%s304 + $0x408] sm:$0xff]
        %v6540 = vld [vmem:[%s304 + $0x410] sm:$0xf]
        %v6541 = vld [vmem:[%s304 + $0x414] sm:$0xff]
        %v6542 = vld [vmem:[%s304 + $0x41c] sm:$0xf]
        %v6543 = vld [vmem:[%s304 + $0x420] sm:$0xff]
        %v6544 = vld [vmem:[%s304 + $0x428] sm:$0xf]
        %v6545 = vld [vmem:[%s304 + $0x42c] sm:$0xff]
        %v6546 = vld [vmem:[%s304 + $0x434] sm:$0xf]
        %v6547 = vld [vmem:[%s304 + $0x438] sm:$0xff]
        %v6548 = vld [vmem:[%s304 + $0x440] sm:$0xf]
        %v6549 = vld [vmem:[%s304 + $0x444] sm:$0xff]
        %v6550 = vld [vmem:[%s304 + $0x44c] sm:$0xf]
        %v6551 = vld [vmem:[%s304 + $0x450] sm:$0xff]
        %v6552 = vld [vmem:[%s304 + $0x458] sm:$0xf]
        %v6553 = vld [vmem:[%s304 + $0x45c] sm:$0xff]
        %v6554 = vld [vmem:[%s304 + $0x464] sm:$0xf]
        %v6555 = vld [vmem:[%s304 + $0x468] sm:$0xff]
        %v6556 = vld [vmem:[%s304 + $0x470] sm:$0xf]
        %v6557 = vld [vmem:[%s304 + $0x474] sm:$0xff]
        %v6558 = vld [vmem:[%s304 + $0x47c] sm:$0xf]
        %v6559 = vld [vmem:[%s304 + $0x480] sm:$0xff]
        %v6560 = vld [vmem:[%s304 + $0x488] sm:$0xf]
        %v6561 = vld [vmem:[%s304 + $0x48c] sm:$0xff]
        %v6562 = vld [vmem:[%s304 + $0x494] sm:$0xf]
        %v6563 = vld [vmem:[%s304 + $0x498] sm:$0xff]
        %v6564 = vld [vmem:[%s304 + $0x4a0] sm:$0xf]
        %v6565 = vld [vmem:[%s304 + $0x4a4] sm:$0xff]
        %v6566 = vld [vmem:[%s304 + $0x4ac] sm:$0xf]
        %v6567 = vld [vmem:[%s304 + $0x4b0] sm:$0xff]
        %v6568 = vld [vmem:[%s304 + $0x4b8] sm:$0xf]
        %v6569 = vld [vmem:[%s304 + $0x4bc] sm:$0xff]
        %v6570 = vld [vmem:[%s304 + $0x4c4] sm:$0xf]
        %v6571 = vld [vmem:[%s304 + $0x4c8] sm:$0xff]
        %v6572 = vld [vmem:[%s304 + $0x4d0] sm:$0xf]
        %v6573 = vld [vmem:[%s304 + $0x4d4] sm:$0xff]
        %v6574 = vld [vmem:[%s304 + $0x4dc] sm:$0xf]
        %v6575 = vld [vmem:[%s304 + $0x4e0] sm:$0xff]
        %v6576 = vld [vmem:[%s304 + $0x4e8] sm:$0xf]
        %v6577 = vld [vmem:[%s304 + $0x4ec] sm:$0xff]
        %v6578 = vld [vmem:[%s304 + $0x4f4] sm:$0xf]
        %v6579 = vld [vmem:[%s304 + $0x4f8] sm:$0xff]
        %v6580 = vld [vmem:[%s304 + $0x500] sm:$0xf]
        %v6581 = vld [vmem:[%s304 + $0x504] sm:$0xff]
        %v6582 = vld [vmem:[%s304 + $0x50c] sm:$0xf]
        %v6583 = vld [vmem:[%s304 + $0x510] sm:$0xff]
        %v6584 = vld [vmem:[%s304 + $0x518] sm:$0xf]
        %v6585 = vld [vmem:[%s304 + $0x51c] sm:$0xff]
        %v6586 = vld [vmem:[%s304 + $0x524] sm:$0xf]
        %v6587 = vld [vmem:[%s304 + $0x528] sm:$0xff]
        %v6588 = vld [vmem:[%s304 + $0x530] sm:$0xf]
        %v6589 = vld [vmem:[%s304 + $0x534] sm:$0xff]
        %v6590 = vld [vmem:[%s304 + $0x53c] sm:$0xf]
        %v6591 = vld [vmem:[%s304 + $0x540] sm:$0xff]
        %v6592 = vld [vmem:[%s304 + $0x548] sm:$0xf]
        %v6593 = vld [vmem:[%s304 + $0x54c] sm:$0xff]
        %v6594 = vld [vmem:[%s304 + $0x554] sm:$0xf]
        %v6595 = vld [vmem:[%s304 + $0x558] sm:$0xff]
        %v6596 = vld [vmem:[%s304 + $0x560] sm:$0xf]
        %v6597 = vld [vmem:[%s304 + $0x564] sm:$0xff]
        %v6598 = vld [vmem:[%s304 + $0x56c] sm:$0xf]
        %v6599 = vld [vmem:[%s304 + $0x570] sm:$0xff]
        %v6600 = vld [vmem:[%s304 + $0x578] sm:$0xf]
        %v6601 = vld [vmem:[%s304 + $0x57c] sm:$0xff]
        %v6602 = vld [vmem:[%s304 + $0x584] sm:$0xf]
        %v6603 = vld [vmem:[%s304 + $0x588] sm:$0xff]
        %v6604 = vld [vmem:[%s304 + $0x590] sm:$0xf]
        %v6605 = vld [vmem:[%s304 + $0x594] sm:$0xff]
        %v6606 = vld [vmem:[%s304 + $0x59c] sm:$0xf]
        %v6607 = vld [vmem:[%s304 + $0x5a0] sm:$0xff]
        %v6608 = vld [vmem:[%s304 + $0x5a8] sm:$0xf]
        %v6609 = vld [vmem:[%s304 + $0x5ac] sm:$0xff]
        %v6610 = vld [vmem:[%s304 + $0x5b4] sm:$0xf]
        %v6611 = vld [vmem:[%s304 + $0x5b8] sm:$0xff]
        %v6612 = vld [vmem:[%s304 + $0x5c0] sm:$0xf]
        %v6613 = vld [vmem:[%s304 + $0x5c4] sm:$0xff]
        %v6614 = vld [vmem:[%s304 + $0x5cc] sm:$0xf]
        %v6615 = vld [vmem:[%s304 + $0x5d0] sm:$0xff]
        %v6616 = vld [vmem:[%s304 + $0x5d8] sm:$0xf]
        %v6617 = vld [vmem:[%s304 + $0x5dc] sm:$0xff]
        %v6618 = vld [vmem:[%s304 + $0x5e4] sm:$0xf]
        %v6619 = vld [vmem:[%s304 + $0x5e8] sm:$0xff]
        %v6620 = vld [vmem:[%s304 + $0x5f0] sm:$0xf]
        %v6621 = vld [vmem:[%s304 + $0x5f4] sm:$0xff]
        %v6622 = vld [vmem:[%s304 + $0x5fc] sm:$0xf]
        %v6623 = vld [vmem:[%s304 + $0x600] sm:$0xff]
        %v6624 = vld [vmem:[%s304 + $0x608] sm:$0xf]
        %v6625 = vld [vmem:[%s304 + $0x60c] sm:$0xff]
        %v6626 = vld [vmem:[%s304 + $0x614] sm:$0xf]
        %v6627 = vld [vmem:[%s304 + $0x618] sm:$0xff]
        %v6628 = vld [vmem:[%s304 + $0x620] sm:$0xf]
        %v6629 = vld [vmem:[%s304 + $0x624] sm:$0xff]
        %v6630 = vld [vmem:[%s304 + $0x62c] sm:$0xf]
        %v6631 = vld [vmem:[%s304 + $0x630] sm:$0xff]
        %v6632 = vld [vmem:[%s304 + $0x638] sm:$0xf]
        %v6633 = vld [vmem:[%s304 + $0x63c] sm:$0xff]
        %v6634 = vld [vmem:[%s304 + $0x644] sm:$0xf]
        %v6635 = vld [vmem:[%s304 + $0x648] sm:$0xff]
        %v6636 = vld [vmem:[%s304 + $0x650] sm:$0xf]
        %v6637 = vld [vmem:[%s304 + $0x654] sm:$0xff]
        %v6638 = vld [vmem:[%s304 + $0x65c] sm:$0xf]
        %v6639 = vld [vmem:[%s304 + $0x660] sm:$0xff]
        %v6640 = vld [vmem:[%s304 + $0x668] sm:$0xf]
        %v6641 = vld [vmem:[%s304 + $0x66c] sm:$0xff]
        %v6642 = vld [vmem:[%s304 + $0x674] sm:$0xf]
        %v6643 = vld [vmem:[%s304 + $0x678] sm:$0xff]
        %v6644 = vld [vmem:[%s304 + $0x680] sm:$0xf]
        %v6645 = vld [vmem:[%s304 + $0x684] sm:$0xff]
        %v6646 = vld [vmem:[%s304 + $0x68c] sm:$0xf]
        %v6647 = vld [vmem:[%s304 + $0x690] sm:$0xff]
        %v6648 = vld [vmem:[%s304 + $0x698] sm:$0xf]
        %v6649 = vld [vmem:[%s304 + $0x69c] sm:$0xff]
        %v6650 = vld [vmem:[%s304 + $0x6a4] sm:$0xf]
        %v6651 = vld [vmem:[%s304 + $0x6a8] sm:$0xff]
        %v6652 = vld [vmem:[%s304 + $0x6b0] sm:$0xf]
        %v6653 = vld [vmem:[%s304 + $0x6b4] sm:$0xff]
        %v6654 = vld [vmem:[%s304 + $0x6bc] sm:$0xf]
        %v6655 = vld [vmem:[%s304 + $0x6c0] sm:$0xff]
        %v6656 = vld [vmem:[%s304 + $0x6c8] sm:$0xf]
        %v6657 = vld [vmem:[%s304 + $0x6cc] sm:$0xff]
        %v6658 = vld [vmem:[%s304 + $0x6d4] sm:$0xf]
        %v6659 = vld [vmem:[%s304 + $0x6d8] sm:$0xff]
        %v6660 = vld [vmem:[%s304 + $0x6e0] sm:$0xf]
        %v6661 = vld [vmem:[%s304 + $0x6e4] sm:$0xff]
        %v6662 = vld [vmem:[%s304 + $0x6ec] sm:$0xf]
        %v6663 = vld [vmem:[%s304 + $0x6f0] sm:$0xff]
        %v6664 = vld [vmem:[%s304 + $0x6f8] sm:$0xf]
        %v6665 = vld [vmem:[%s304 + $0x6fc] sm:$0xff]
        %v6666 = vld [vmem:[%s304 + $0x704] sm:$0xf]
        %v6667 = vld [vmem:[%s304 + $0x708] sm:$0xff]
        %v6668 = vld [vmem:[%s304 + $0x710] sm:$0xf]
        %v6669 = vld [vmem:[%s304 + $0x714] sm:$0xff]
        %v6670 = vld [vmem:[%s304 + $0x71c] sm:$0xf]
        %v6671 = vld [vmem:[%s304 + $0x720] sm:$0xff]
        %v6672 = vld [vmem:[%s304 + $0x728] sm:$0xf]
        %v6673 = vld [vmem:[%s304 + $0x72c] sm:$0xff]
        %v6674 = vld [vmem:[%s304 + $0x734] sm:$0xf]
        %v6675 = vld [vmem:[%s304 + $0x738] sm:$0xff]
        %v6676 = vld [vmem:[%s304 + $0x740] sm:$0xf]
        %v6677 = vld [vmem:[%s304 + $0x744] sm:$0xff]
        %v6678 = vld [vmem:[%s304 + $0x74c] sm:$0xf]
        %v6679 = vld [vmem:[%s304 + $0x750] sm:$0xff]
        %v6680 = vld [vmem:[%s304 + $0x758] sm:$0xf]
        %v6681 = vld [vmem:[%s304 + $0x75c] sm:$0xff]
        %v6682 = vld [vmem:[%s304 + $0x764] sm:$0xf]
        %v6683 = vld [vmem:[%s304 + $0x768] sm:$0xff]
        %v6684 = vld [vmem:[%s304 + $0x770] sm:$0xf]
        %v6685 = vld [vmem:[%s304 + $0x774] sm:$0xff]
        %v6686 = vld [vmem:[%s304 + $0x77c] sm:$0xf]
        %v6687 = vld [vmem:[%s304 + $0x780] sm:$0xff]
        %v6688 = vld [vmem:[%s304 + $0x788] sm:$0xf]
        %v6689 = vld [vmem:[%s304 + $0x78c] sm:$0xff]
        %v6690 = vld [vmem:[%s304 + $0x794] sm:$0xf]
        %v6691 = vld [vmem:[%s304 + $0x798] sm:$0xff]
        %v6692 = vld [vmem:[%s304 + $0x7a0] sm:$0xf]
        %v6693 = vld [vmem:[%s304 + $0x7a4] sm:$0xff]
        %v6694 = vld [vmem:[%s304 + $0x7ac] sm:$0xf]
        %v6695 = vld [vmem:[%s304 + $0x7b0] sm:$0xff]
        %v6696 = vld [vmem:[%s304 + $0x7b8] sm:$0xf]
        %v6697 = vld [vmem:[%s304 + $0x7bc] sm:$0xff]
        %v6698 = vld [vmem:[%s304 + $0x7c4] sm:$0xf]
        %v6699 = vld [vmem:[%s304 + $0x7c8] sm:$0xff]
        %v6700 = vld [vmem:[%s304 + $0x7d0] sm:$0xf]
        %v6701 = vld [vmem:[%s304 + $0x7d4] sm:$0xff]
        %v6702 = vld [vmem:[%s304 + $0x7dc] sm:$0xf]
        %v6703 = vld [vmem:[%s304 + $0x7e0] sm:$0xff]
        %v6704 = vld [vmem:[%s304 + $0x7e8] sm:$0xf]
        %v6705 = vld [vmem:[%s304 + $0x7ec] sm:$0xff]
        %v6706 = vld [vmem:[%s304 + $0x7f4] sm:$0xf]
        %v6707 = vld [vmem:[%s304 + $0x7f8] sm:$0xff]
        %v6708 = vld [vmem:[%s304 + $0x800] sm:$0xf]
        %v6709 = vld [vmem:[%s304 + $0x804] sm:$0xff]
        %v6710 = vld [vmem:[%s304 + $0x80c] sm:$0xf]
        %v6711 = vld [vmem:[%s304 + $0x810] sm:$0xff]
        %v6712 = vld [vmem:[%s304 + $0x818] sm:$0xf]
        %v6713 = vld [vmem:[%s304 + $0x81c] sm:$0xff]
        %v6714 = vld [vmem:[%s304 + $0x824] sm:$0xf]
        %v6715 = vld [vmem:[%s304 + $0x828] sm:$0xff]
        %v6716 = vld [vmem:[%s304 + $0x830] sm:$0xf]
        %v6717 = vld [vmem:[%s304 + $0x834] sm:$0xff]
        %v6718 = vld [vmem:[%s304 + $0x83c] sm:$0xf]
        %v6719 = vld [vmem:[%s304 + $0x840] sm:$0xff]
        %v6720 = vld [vmem:[%s304 + $0x848] sm:$0xf]
        %v6721 = vld [vmem:[%s304 + $0x84c] sm:$0xff]
        %v6722 = vld [vmem:[%s304 + $0x854] sm:$0xf]
        %v6723 = vld [vmem:[%s304 + $0x858] sm:$0xff]
        %v6724 = vld [vmem:[%s304 + $0x860] sm:$0xf]
        %v6725 = vld [vmem:[%s304 + $0x864] sm:$0xff]
        %v6726 = vld [vmem:[%s304 + $0x86c] sm:$0xf]
        %v6727 = vld [vmem:[%s304 + $0x870] sm:$0xff]
        %v6728 = vld [vmem:[%s304 + $0x878] sm:$0xf]
        %v6729 = vld [vmem:[%s304 + $0x87c] sm:$0xff]
        %v6730 = vld [vmem:[%s304 + $0x884] sm:$0xf]
        %v6731 = vld [vmem:[%s304 + $0x888] sm:$0xff]
        %v6732 = vld [vmem:[%s304 + $0x890] sm:$0xf]
        %v6733 = vld [vmem:[%s304 + $0x894] sm:$0xff]
        %v6734 = vld [vmem:[%s304 + $0x89c] sm:$0xf]
        %v6735 = vld [vmem:[%s304 + $0x8a0] sm:$0xff]
        %v6736 = vld [vmem:[%s304 + $0x8a8] sm:$0xf]
        %v6737 = vld [vmem:[%s304 + $0x8ac] sm:$0xff]
        %v6738 = vld [vmem:[%s304 + $0x8b4] sm:$0xf]
        %v6739 = vld [vmem:[%s304 + $0x8b8] sm:$0xff]
        %v6740 = vld [vmem:[%s304 + $0x8c0] sm:$0xf]
        %v6741 = vld [vmem:[%s304 + $0x8c4] sm:$0xff]
        %v6742 = vld [vmem:[%s304 + $0x8cc] sm:$0xf]
        %v6743 = vld [vmem:[%s304 + $0x8d0] sm:$0xff]
        %v6744 = vld [vmem:[%s304 + $0x8d8] sm:$0xf]
        %v6745 = vld [vmem:[%s304 + $0x8dc] sm:$0xff]
        %v6746 = vld [vmem:[%s304 + $0x8e4] sm:$0xf]
        %v6747 = vld [vmem:[%s304 + $0x8e8] sm:$0xff]
        %v6748 = vld [vmem:[%s304 + $0x8f0] sm:$0xf]
        %v6749 = vld [vmem:[%s304 + $0x8f4] sm:$0xff]
        %v6750 = vld [vmem:[%s304 + $0x8fc] sm:$0xf]
        %v7135 = vunpack.c.l.b16 %v6367
        %v7136 = vunpack.c.h.b16 %v6367
        %v7137 = vunpack.c.l.b16 %v6368
        %v7138 = vunpack.c.l.b16 %v6369
        %v7139 = vunpack.c.h.b16 %v6369
        %v7140 = vunpack.c.l.b16 %v6370
        %v7141 = vunpack.c.l.b16 %v6371
        %v7142 = vunpack.c.h.b16 %v6371
        %v7143 = vunpack.c.l.b16 %v6372
        %v7144 = vunpack.c.l.b16 %v6373
        %v7145 = vunpack.c.h.b16 %v6373
        %v7146 = vunpack.c.l.b16 %v6374
        %v7147 = vunpack.c.l.b16 %v6375
        %v7148 = vunpack.c.h.b16 %v6375
        %v7149 = vunpack.c.l.b16 %v6376
        %v7150 = vunpack.c.l.b16 %v6377
        %v7151 = vunpack.c.h.b16 %v6377
        %v7152 = vunpack.c.l.b16 %v6378
        %v7153 = vunpack.c.l.b16 %v6379
        %v7154 = vunpack.c.h.b16 %v6379
        %v7155 = vunpack.c.l.b16 %v6380
        %v7156 = vunpack.c.l.b16 %v6381
        %v7157 = vunpack.c.h.b16 %v6381
        %v7158 = vunpack.c.l.b16 %v6382
        %v7159 = vunpack.c.l.b16 %v6383
        %v7160 = vunpack.c.h.b16 %v6383
        %v7161 = vunpack.c.l.b16 %v6384
        %v7162 = vunpack.c.l.b16 %v6385
        %v7163 = vunpack.c.h.b16 %v6385
        %v7164 = vunpack.c.l.b16 %v6386
        %v7165 = vunpack.c.l.b16 %v6387
        %v7166 = vunpack.c.h.b16 %v6387
        %v7167 = vunpack.c.l.b16 %v6388
        %v7168 = vunpack.c.l.b16 %v6389
        %v7169 = vunpack.c.h.b16 %v6389
        %v7170 = vunpack.c.l.b16 %v6390
        %v7171 = vunpack.c.l.b16 %v6391
        %v7172 = vunpack.c.h.b16 %v6391
        %v7173 = vunpack.c.l.b16 %v6392
        %v7174 = vunpack.c.l.b16 %v6393
        %v7175 = vunpack.c.h.b16 %v6393
        %v7176 = vunpack.c.l.b16 %v6394
        %v7177 = vunpack.c.l.b16 %v6395
        %v7178 = vunpack.c.h.b16 %v6395
        %v7179 = vunpack.c.l.b16 %v6396
        %v7180 = vunpack.c.l.b16 %v6397
        %v7181 = vunpack.c.h.b16 %v6397
        %v7182 = vunpack.c.l.b16 %v6398
        %v7183 = vunpack.c.l.b16 %v6399
        %v7184 = vunpack.c.h.b16 %v6399
        %v7185 = vunpack.c.l.b16 %v6400
        %v7186 = vunpack.c.l.b16 %v6401
        %v7187 = vunpack.c.h.b16 %v6401
        %v7188 = vunpack.c.l.b16 %v6402
        %v7189 = vunpack.c.l.b16 %v6403
        %v7190 = vunpack.c.h.b16 %v6403
        %v7191 = vunpack.c.l.b16 %v6404
        %v7192 = vunpack.c.l.b16 %v6405
        %v7193 = vunpack.c.h.b16 %v6405
        %v7194 = vunpack.c.l.b16 %v6406
        %v7195 = vunpack.c.l.b16 %v6407
        %v7196 = vunpack.c.h.b16 %v6407
        %v7197 = vunpack.c.l.b16 %v6408
        %v7198 = vunpack.c.l.b16 %v6409
        %v7199 = vunpack.c.h.b16 %v6409
        %v7200 = vunpack.c.l.b16 %v6410
        %v7201 = vunpack.c.l.b16 %v6411
        %v7202 = vunpack.c.h.b16 %v6411
        %v7203 = vunpack.c.l.b16 %v6412
        %v7204 = vunpack.c.l.b16 %v6413
        %v7205 = vunpack.c.h.b16 %v6413
        %v7206 = vunpack.c.l.b16 %v6414
        %v7207 = vunpack.c.l.b16 %v6415
        %v7208 = vunpack.c.h.b16 %v6415
        %v7209 = vunpack.c.l.b16 %v6416
        %v7210 = vunpack.c.l.b16 %v6417
        %v7211 = vunpack.c.h.b16 %v6417
        %v7212 = vunpack.c.l.b16 %v6418
        %v7213 = vunpack.c.l.b16 %v6419
        %v7214 = vunpack.c.h.b16 %v6419
        %v7215 = vunpack.c.l.b16 %v6420
        %v7216 = vunpack.c.l.b16 %v6421
        %v7217 = vunpack.c.h.b16 %v6421
        %v7218 = vunpack.c.l.b16 %v6422
        %v7219 = vunpack.c.l.b16 %v6423
        %v7220 = vunpack.c.h.b16 %v6423
        %v7221 = vunpack.c.l.b16 %v6424
        %v7222 = vunpack.c.l.b16 %v6425
        %v7223 = vunpack.c.h.b16 %v6425
        %v7224 = vunpack.c.l.b16 %v6426
        %v7225 = vunpack.c.l.b16 %v6427
        %v7226 = vunpack.c.h.b16 %v6427
        %v7227 = vunpack.c.l.b16 %v6428
        %v7228 = vunpack.c.l.b16 %v6429
        %v7229 = vunpack.c.h.b16 %v6429
        %v7230 = vunpack.c.l.b16 %v6430
        %v7231 = vunpack.c.l.b16 %v6431
        %v7232 = vunpack.c.h.b16 %v6431
        %v7233 = vunpack.c.l.b16 %v6432
        %v7234 = vunpack.c.l.b16 %v6433
        %v7235 = vunpack.c.h.b16 %v6433
        %v7236 = vunpack.c.l.b16 %v6434
        %v7237 = vunpack.c.l.b16 %v6435
        %v7238 = vunpack.c.h.b16 %v6435
        %v7239 = vunpack.c.l.b16 %v6436
        %v7240 = vunpack.c.l.b16 %v6437
        %v7241 = vunpack.c.h.b16 %v6437
        %v7242 = vunpack.c.l.b16 %v6438
        %v7243 = vunpack.c.l.b16 %v6439
        %v7244 = vunpack.c.h.b16 %v6439
        %v7245 = vunpack.c.l.b16 %v6440
        %v7246 = vunpack.c.l.b16 %v6441
        %v7247 = vunpack.c.h.b16 %v6441
        %v7248 = vunpack.c.l.b16 %v6442
        %v7249 = vunpack.c.l.b16 %v6443
        %v7250 = vunpack.c.h.b16 %v6443
        %v7251 = vunpack.c.l.b16 %v6444
        %v7252 = vunpack.c.l.b16 %v6445
        %v7253 = vunpack.c.h.b16 %v6445
        %v7254 = vunpack.c.l.b16 %v6446
        %v7255 = vunpack.c.l.b16 %v6447
        %v7256 = vunpack.c.h.b16 %v6447
        %v7257 = vunpack.c.l.b16 %v6448
        %v7258 = vunpack.c.l.b16 %v6449
        %v7259 = vunpack.c.h.b16 %v6449
        %v7260 = vunpack.c.l.b16 %v6450
        %v7261 = vunpack.c.l.b16 %v6451
        %v7262 = vunpack.c.h.b16 %v6451
        %v7263 = vunpack.c.l.b16 %v6452
        %v7264 = vunpack.c.l.b16 %v6453
        %v7265 = vunpack.c.h.b16 %v6453
        %v7266 = vunpack.c.l.b16 %v6454
        %v7267 = vunpack.c.l.b16 %v6455
        %v7268 = vunpack.c.h.b16 %v6455
        %v7269 = vunpack.c.l.b16 %v6456
        %v7270 = vunpack.c.l.b16 %v6457
        %v7271 = vunpack.c.h.b16 %v6457
        %v7272 = vunpack.c.l.b16 %v6458
        %v7273 = vunpack.c.l.b16 %v6459
        %v7274 = vunpack.c.h.b16 %v6459
        %v7275 = vunpack.c.l.b16 %v6460
        %v7276 = vunpack.c.l.b16 %v6461
        %v7277 = vunpack.c.h.b16 %v6461
        %v7278 = vunpack.c.l.b16 %v6462
        %v7279 = vunpack.c.l.b16 %v6463
        %v7280 = vunpack.c.h.b16 %v6463
        %v7281 = vunpack.c.l.b16 %v6464
        %v7282 = vunpack.c.l.b16 %v6465
        %v7283 = vunpack.c.h.b16 %v6465
        %v7284 = vunpack.c.l.b16 %v6466
        %v7285 = vunpack.c.l.b16 %v6467
        %v7286 = vunpack.c.h.b16 %v6467
        %v7287 = vunpack.c.l.b16 %v6468
        %v7288 = vunpack.c.l.b16 %v6469
        %v7289 = vunpack.c.h.b16 %v6469
        %v7290 = vunpack.c.l.b16 %v6470
        %v7291 = vunpack.c.l.b16 %v6471
        %v7292 = vunpack.c.h.b16 %v6471
        %v7293 = vunpack.c.l.b16 %v6472
        %v7294 = vunpack.c.l.b16 %v6473
        %v7295 = vunpack.c.h.b16 %v6473
        %v7296 = vunpack.c.l.b16 %v6474
        %v7297 = vunpack.c.l.b16 %v6475
        %v7298 = vunpack.c.h.b16 %v6475
        %v7299 = vunpack.c.l.b16 %v6476
        %v7300 = vunpack.c.l.b16 %v6477
        %v7301 = vunpack.c.h.b16 %v6477
        %v7302 = vunpack.c.l.b16 %v6478
        %v7303 = vunpack.c.l.b16 %v6479
        %v7304 = vunpack.c.h.b16 %v6479
        %v7305 = vunpack.c.l.b16 %v6480
        %v7306 = vunpack.c.l.b16 %v6481
        %v7307 = vunpack.c.h.b16 %v6481
        %v7308 = vunpack.c.l.b16 %v6482
        %v7309 = vunpack.c.l.b16 %v6483
        %v7310 = vunpack.c.h.b16 %v6483
        %v7311 = vunpack.c.l.b16 %v6484
        %v7312 = vunpack.c.l.b16 %v6485
        %v7313 = vunpack.c.h.b16 %v6485
        %v7314 = vunpack.c.l.b16 %v6486
        %v7315 = vunpack.c.l.b16 %v6487
        %v7316 = vunpack.c.h.b16 %v6487
        %v7317 = vunpack.c.l.b16 %v6488
        %v7318 = vunpack.c.l.b16 %v6489
        %v7319 = vunpack.c.h.b16 %v6489
        %v7320 = vunpack.c.l.b16 %v6490
        %v7321 = vunpack.c.l.b16 %v6491
        %v7322 = vunpack.c.h.b16 %v6491
        %v7323 = vunpack.c.l.b16 %v6492
        %v7324 = vunpack.c.l.b16 %v6493
        %v7325 = vunpack.c.h.b16 %v6493
        %v7326 = vunpack.c.l.b16 %v6494
        %v7327 = vunpack.c.l.b16 %v6495
        %v7328 = vunpack.c.h.b16 %v6495
        %v7329 = vunpack.c.l.b16 %v6496
        %v7330 = vunpack.c.l.b16 %v6497
        %v7331 = vunpack.c.h.b16 %v6497
        %v7332 = vunpack.c.l.b16 %v6498
        %v7333 = vunpack.c.l.b16 %v6499
        %v7334 = vunpack.c.h.b16 %v6499
        %v7335 = vunpack.c.l.b16 %v6500
        %v7336 = vunpack.c.l.b16 %v6501
        %v7337 = vunpack.c.h.b16 %v6501
        %v7338 = vunpack.c.l.b16 %v6502
        %v7339 = vunpack.c.l.b16 %v6503
        %v7340 = vunpack.c.h.b16 %v6503
        %v7341 = vunpack.c.l.b16 %v6504
        %v7342 = vunpack.c.l.b16 %v6505
        %v7343 = vunpack.c.h.b16 %v6505
        %v7344 = vunpack.c.l.b16 %v6506
        %v7345 = vunpack.c.l.b16 %v6507
        %v7346 = vunpack.c.h.b16 %v6507
        %v7347 = vunpack.c.l.b16 %v6508
        %v7348 = vunpack.c.l.b16 %v6509
        %v7349 = vunpack.c.h.b16 %v6509
        %v7350 = vunpack.c.l.b16 %v6510
        %v7351 = vunpack.c.l.b16 %v6511
        %v7352 = vunpack.c.h.b16 %v6511
        %v7353 = vunpack.c.l.b16 %v6512
        %v7354 = vunpack.c.l.b16 %v6513
        %v7355 = vunpack.c.h.b16 %v6513
        %v7356 = vunpack.c.l.b16 %v6514
        %v7357 = vunpack.c.l.b16 %v6515
        %v7358 = vunpack.c.h.b16 %v6515
        %v7359 = vunpack.c.l.b16 %v6516
        %v7360 = vunpack.c.l.b16 %v6517
        %v7361 = vunpack.c.h.b16 %v6517
        %v7362 = vunpack.c.l.b16 %v6518
        %v7363 = vunpack.c.l.b16 %v6519
        %v7364 = vunpack.c.h.b16 %v6519
        %v7365 = vunpack.c.l.b16 %v6520
        %v7366 = vunpack.c.l.b16 %v6521
        %v7367 = vunpack.c.h.b16 %v6521
        %v7368 = vunpack.c.l.b16 %v6522
        %v7369 = vunpack.c.l.b16 %v6523
        %v7370 = vunpack.c.h.b16 %v6523
        %v7371 = vunpack.c.l.b16 %v6524
        %v7372 = vunpack.c.l.b16 %v6525
        %v7373 = vunpack.c.h.b16 %v6525
        %v7374 = vunpack.c.l.b16 %v6526
        %v7375 = vunpack.c.l.b16 %v6527
        %v7376 = vunpack.c.h.b16 %v6527
        %v7377 = vunpack.c.l.b16 %v6528
        %v7378 = vunpack.c.l.b16 %v6529
        %v7379 = vunpack.c.h.b16 %v6529
        %v7380 = vunpack.c.l.b16 %v6530
        %v7381 = vunpack.c.l.b16 %v6531
        %v7382 = vunpack.c.h.b16 %v6531
        %v7383 = vunpack.c.l.b16 %v6532
        %v7384 = vunpack.c.l.b16 %v6533
        %v7385 = vunpack.c.h.b16 %v6533
        %v7386 = vunpack.c.l.b16 %v6534
        %v7387 = vunpack.c.l.b16 %v6535
        %v7388 = vunpack.c.h.b16 %v6535
        %v7389 = vunpack.c.l.b16 %v6536
        %v7390 = vunpack.c.l.b16 %v6537
        %v7391 = vunpack.c.h.b16 %v6537
        %v7392 = vunpack.c.l.b16 %v6538
        %v7393 = vunpack.c.l.b16 %v6539
        %v7394 = vunpack.c.h.b16 %v6539
        %v7395 = vunpack.c.l.b16 %v6540
        %v7396 = vunpack.c.l.b16 %v6541
        %v7397 = vunpack.c.h.b16 %v6541
        %v7398 = vunpack.c.l.b16 %v6542
        %v7399 = vunpack.c.l.b16 %v6543
        %v7400 = vunpack.c.h.b16 %v6543
        %v7401 = vunpack.c.l.b16 %v6544
        %v7402 = vunpack.c.l.b16 %v6545
        %v7403 = vunpack.c.h.b16 %v6545
        %v7404 = vunpack.c.l.b16 %v6546
        %v7405 = vunpack.c.l.b16 %v6547
        %v7406 = vunpack.c.h.b16 %v6547
        %v7407 = vunpack.c.l.b16 %v6548
        %v7408 = vunpack.c.l.b16 %v6549
        %v7409 = vunpack.c.h.b16 %v6549
        %v7410 = vunpack.c.l.b16 %v6550
        %v7411 = vunpack.c.l.b16 %v6551
        %v7412 = vunpack.c.h.b16 %v6551
        %v7413 = vunpack.c.l.b16 %v6552
        %v7414 = vunpack.c.l.b16 %v6553
        %v7415 = vunpack.c.h.b16 %v6553
        %v7416 = vunpack.c.l.b16 %v6554
        %v7417 = vunpack.c.l.b16 %v6555
        %v7418 = vunpack.c.h.b16 %v6555
        %v7419 = vunpack.c.l.b16 %v6556
        %v7420 = vunpack.c.l.b16 %v6557
        %v7421 = vunpack.c.h.b16 %v6557
        %v7422 = vunpack.c.l.b16 %v6558
        %v7423 = vunpack.c.l.b16 %v6559
        %v7424 = vunpack.c.h.b16 %v6559
        %v7425 = vunpack.c.l.b16 %v6560
        %v7426 = vunpack.c.l.b16 %v6561
        %v7427 = vunpack.c.h.b16 %v6561
        %v7428 = vunpack.c.l.b16 %v6562
        %v7429 = vunpack.c.l.b16 %v6563
        %v7430 = vunpack.c.h.b16 %v6563
        %v7431 = vunpack.c.l.b16 %v6564
        %v7432 = vunpack.c.l.b16 %v6565
        %v7433 = vunpack.c.h.b16 %v6565
        %v7434 = vunpack.c.l.b16 %v6566
        %v7435 = vunpack.c.l.b16 %v6567
        %v7436 = vunpack.c.h.b16 %v6567
        %v7437 = vunpack.c.l.b16 %v6568
        %v7438 = vunpack.c.l.b16 %v6569
        %v7439 = vunpack.c.h.b16 %v6569
        %v7440 = vunpack.c.l.b16 %v6570
        %v7441 = vunpack.c.l.b16 %v6571
        %v7442 = vunpack.c.h.b16 %v6571
        %v7443 = vunpack.c.l.b16 %v6572
        %v7444 = vunpack.c.l.b16 %v6573
        %v7445 = vunpack.c.h.b16 %v6573
        %v7446 = vunpack.c.l.b16 %v6574
        %v7447 = vunpack.c.l.b16 %v6575
        %v7448 = vunpack.c.h.b16 %v6575
        %v7449 = vunpack.c.l.b16 %v6576
        %v7450 = vunpack.c.l.b16 %v6577
        %v7451 = vunpack.c.h.b16 %v6577
        %v7452 = vunpack.c.l.b16 %v6578
        %v7453 = vunpack.c.l.b16 %v6579
        %v7454 = vunpack.c.h.b16 %v6579
        %v7455 = vunpack.c.l.b16 %v6580
        %v7456 = vunpack.c.l.b16 %v6581
        %v7457 = vunpack.c.h.b16 %v6581
        %v7458 = vunpack.c.l.b16 %v6582
        %v7459 = vunpack.c.l.b16 %v6583
        %v7460 = vunpack.c.h.b16 %v6583
        %v7461 = vunpack.c.l.b16 %v6584
        %v7462 = vunpack.c.l.b16 %v6585
        %v7463 = vunpack.c.h.b16 %v6585
        %v7464 = vunpack.c.l.b16 %v6586
        %v7465 = vunpack.c.l.b16 %v6587
        %v7466 = vunpack.c.h.b16 %v6587
        %v7467 = vunpack.c.l.b16 %v6588
        %v7468 = vunpack.c.l.b16 %v6589
        %v7469 = vunpack.c.h.b16 %v6589
        %v7470 = vunpack.c.l.b16 %v6590
        %v7471 = vunpack.c.l.b16 %v6591
        %v7472 = vunpack.c.h.b16 %v6591
        %v7473 = vunpack.c.l.b16 %v6592
        %v7474 = vunpack.c.l.b16 %v6593
        %v7475 = vunpack.c.h.b16 %v6593
        %v7476 = vunpack.c.l.b16 %v6594
        %v7477 = vunpack.c.l.b16 %v6595
        %v7478 = vunpack.c.h.b16 %v6595
        %v7479 = vunpack.c.l.b16 %v6596
        %v7480 = vunpack.c.l.b16 %v6597
        %v7481 = vunpack.c.h.b16 %v6597
        %v7482 = vunpack.c.l.b16 %v6598
        %v7483 = vunpack.c.l.b16 %v6599
        %v7484 = vunpack.c.h.b16 %v6599
        %v7485 = vunpack.c.l.b16 %v6600
        %v7486 = vunpack.c.l.b16 %v6601
        %v7487 = vunpack.c.h.b16 %v6601
        %v7488 = vunpack.c.l.b16 %v6602
        %v7489 = vunpack.c.l.b16 %v6603
        %v7490 = vunpack.c.h.b16 %v6603
        %v7491 = vunpack.c.l.b16 %v6604
        %v7492 = vunpack.c.l.b16 %v6605
        %v7493 = vunpack.c.h.b16 %v6605
        %v7494 = vunpack.c.l.b16 %v6606
        %v7495 = vunpack.c.l.b16 %v6607
        %v7496 = vunpack.c.h.b16 %v6607
        %v7497 = vunpack.c.l.b16 %v6608
        %v7498 = vunpack.c.l.b16 %v6609
        %v7499 = vunpack.c.h.b16 %v6609
        %v7500 = vunpack.c.l.b16 %v6610
        %v7501 = vunpack.c.l.b16 %v6611
        %v7502 = vunpack.c.h.b16 %v6611
        %v7503 = vunpack.c.l.b16 %v6612
        %v7504 = vunpack.c.l.b16 %v6613
        %v7505 = vunpack.c.h.b16 %v6613
        %v7506 = vunpack.c.l.b16 %v6614
        %v7507 = vunpack.c.l.b16 %v6615
        %v7508 = vunpack.c.h.b16 %v6615
        %v7509 = vunpack.c.l.b16 %v6616
        %v7510 = vunpack.c.l.b16 %v6617
        %v7511 = vunpack.c.h.b16 %v6617
        %v7512 = vunpack.c.l.b16 %v6618
        %v7513 = vunpack.c.l.b16 %v6619
        %v7514 = vunpack.c.h.b16 %v6619
        %v7515 = vunpack.c.l.b16 %v6620
        %v7516 = vunpack.c.l.b16 %v6621
        %v7517 = vunpack.c.h.b16 %v6621
        %v7518 = vunpack.c.l.b16 %v6622
        %v7519 = vunpack.c.l.b16 %v6623
        %v7520 = vunpack.c.h.b16 %v6623
        %v7521 = vunpack.c.l.b16 %v6624
        %v7522 = vunpack.c.l.b16 %v6625
        %v7523 = vunpack.c.h.b16 %v6625
        %v7524 = vunpack.c.l.b16 %v6626
        %v7525 = vunpack.c.l.b16 %v6627
        %v7526 = vunpack.c.h.b16 %v6627
        %v7527 = vunpack.c.l.b16 %v6628
        %v7528 = vunpack.c.l.b16 %v6629
        %v7529 = vunpack.c.h.b16 %v6629
        %v7530 = vunpack.c.l.b16 %v6630
        %v7531 = vunpack.c.l.b16 %v6631
        %v7532 = vunpack.c.h.b16 %v6631
        %v7533 = vunpack.c.l.b16 %v6632
        %v7534 = vunpack.c.l.b16 %v6633
        %v7535 = vunpack.c.h.b16 %v6633
        %v7536 = vunpack.c.l.b16 %v6634
        %v7537 = vunpack.c.l.b16 %v6635
        %v7538 = vunpack.c.h.b16 %v6635
        %v7539 = vunpack.c.l.b16 %v6636
        %v7540 = vunpack.c.l.b16 %v6637
        %v7541 = vunpack.c.h.b16 %v6637
        %v7542 = vunpack.c.l.b16 %v6638
        %v7543 = vunpack.c.l.b16 %v6639
        %v7544 = vunpack.c.h.b16 %v6639
        %v7545 = vunpack.c.l.b16 %v6640
        %v7546 = vunpack.c.l.b16 %v6641
        %v7547 = vunpack.c.h.b16 %v6641
        %v7548 = vunpack.c.l.b16 %v6642
        %v7549 = vunpack.c.l.b16 %v6643
        %v7550 = vunpack.c.h.b16 %v6643
        %v7551 = vunpack.c.l.b16 %v6644
        %v7552 = vunpack.c.l.b16 %v6645
        %v7553 = vunpack.c.h.b16 %v6645
        %v7554 = vunpack.c.l.b16 %v6646
        %v7555 = vunpack.c.l.b16 %v6647
        %v7556 = vunpack.c.h.b16 %v6647
        %v7557 = vunpack.c.l.b16 %v6648
        %v7558 = vunpack.c.l.b16 %v6649
        %v7559 = vunpack.c.h.b16 %v6649
        %v7560 = vunpack.c.l.b16 %v6650
        %v7561 = vunpack.c.l.b16 %v6651
        %v7562 = vunpack.c.h.b16 %v6651
        %v7563 = vunpack.c.l.b16 %v6652
        %v7564 = vunpack.c.l.b16 %v6653
        %v7565 = vunpack.c.h.b16 %v6653
        %v7566 = vunpack.c.l.b16 %v6654
        %v7567 = vunpack.c.l.b16 %v6655
        %v7568 = vunpack.c.h.b16 %v6655
        %v7569 = vunpack.c.l.b16 %v6656
        %v7570 = vunpack.c.l.b16 %v6657
        %v7571 = vunpack.c.h.b16 %v6657
        %v7572 = vunpack.c.l.b16 %v6658
        %v7573 = vunpack.c.l.b16 %v6659
        %v7574 = vunpack.c.h.b16 %v6659
        %v7575 = vunpack.c.l.b16 %v6660
        %v7576 = vunpack.c.l.b16 %v6661
        %v7577 = vunpack.c.h.b16 %v6661
        %v7578 = vunpack.c.l.b16 %v6662
        %v7579 = vunpack.c.l.b16 %v6663
        %v7580 = vunpack.c.h.b16 %v6663
        %v7581 = vunpack.c.l.b16 %v6664
        %v7582 = vunpack.c.l.b16 %v6665
        %v7583 = vunpack.c.h.b16 %v6665
        %v7584 = vunpack.c.l.b16 %v6666
        %v7585 = vunpack.c.l.b16 %v6667
        %v7586 = vunpack.c.h.b16 %v6667
        %v7587 = vunpack.c.l.b16 %v6668
        %v7588 = vunpack.c.l.b16 %v6669
        %v7589 = vunpack.c.h.b16 %v6669
        %v7590 = vunpack.c.l.b16 %v6670
        %v7591 = vunpack.c.l.b16 %v6671
        %v7592 = vunpack.c.h.b16 %v6671
        %v7593 = vunpack.c.l.b16 %v6672
        %v7594 = vunpack.c.l.b16 %v6673
        %v7595 = vunpack.c.h.b16 %v6673
        %v7596 = vunpack.c.l.b16 %v6674
        %v7597 = vunpack.c.l.b16 %v6675
        %v7598 = vunpack.c.h.b16 %v6675
        %v7599 = vunpack.c.l.b16 %v6676
        %v7600 = vunpack.c.l.b16 %v6677
        %v7601 = vunpack.c.h.b16 %v6677
        %v7602 = vunpack.c.l.b16 %v6678
        %v7603 = vunpack.c.l.b16 %v6679
        %v7604 = vunpack.c.h.b16 %v6679
        %v7605 = vunpack.c.l.b16 %v6680
        %v7606 = vunpack.c.l.b16 %v6681
        %v7607 = vunpack.c.h.b16 %v6681
        %v7608 = vunpack.c.l.b16 %v6682
        %v7609 = vunpack.c.l.b16 %v6683
        %v7610 = vunpack.c.h.b16 %v6683
        %v7611 = vunpack.c.l.b16 %v6684
        %v7612 = vunpack.c.l.b16 %v6685
        %v7613 = vunpack.c.h.b16 %v6685
        %v7614 = vunpack.c.l.b16 %v6686
        %v7615 = vunpack.c.l.b16 %v6687
        %v7616 = vunpack.c.h.b16 %v6687
        %v7617 = vunpack.c.l.b16 %v6688
        %v7618 = vunpack.c.l.b16 %v6689
        %v7619 = vunpack.c.h.b16 %v6689
        %v7620 = vunpack.c.l.b16 %v6690
        %v7621 = vunpack.c.l.b16 %v6691
        %v7622 = vunpack.c.h.b16 %v6691
        %v7623 = vunpack.c.l.b16 %v6692
        %v7624 = vunpack.c.l.b16 %v6693
        %v7625 = vunpack.c.h.b16 %v6693
        %v7626 = vunpack.c.l.b16 %v6694
        %v7627 = vunpack.c.l.b16 %v6695
        %v7628 = vunpack.c.h.b16 %v6695
        %v7629 = vunpack.c.l.b16 %v6696
        %v7630 = vunpack.c.l.b16 %v6697
        %v7631 = vunpack.c.h.b16 %v6697
        %v7632 = vunpack.c.l.b16 %v6698
        %v7633 = vunpack.c.l.b16 %v6699
        %v7634 = vunpack.c.h.b16 %v6699
        %v7635 = vunpack.c.l.b16 %v6700
        %v7636 = vunpack.c.l.b16 %v6701
        %v7637 = vunpack.c.h.b16 %v6701
        %v7638 = vunpack.c.l.b16 %v6702
        %v7639 = vunpack.c.l.b16 %v6703
        %v7640 = vunpack.c.h.b16 %v6703
        %v7641 = vunpack.c.l.b16 %v6704
        %v7642 = vunpack.c.l.b16 %v6705
        %v7643 = vunpack.c.h.b16 %v6705
        %v7644 = vunpack.c.l.b16 %v6706
        %v7645 = vunpack.c.l.b16 %v6707
        %v7646 = vunpack.c.h.b16 %v6707
        %v7647 = vunpack.c.l.b16 %v6708
        %v7648 = vunpack.c.l.b16 %v6709
        %v7649 = vunpack.c.h.b16 %v6709
        %v7650 = vunpack.c.l.b16 %v6710
        %v7651 = vunpack.c.l.b16 %v6711
        %v7652 = vunpack.c.h.b16 %v6711
        %v7653 = vunpack.c.l.b16 %v6712
        %v7654 = vunpack.c.l.b16 %v6713
        %v7655 = vunpack.c.h.b16 %v6713
        %v7656 = vunpack.c.l.b16 %v6714
        %v7657 = vunpack.c.l.b16 %v6715
        %v7658 = vunpack.c.h.b16 %v6715
        %v7659 = vunpack.c.l.b16 %v6716
        %v7660 = vunpack.c.l.b16 %v6717
        %v7661 = vunpack.c.h.b16 %v6717
        %v7662 = vunpack.c.l.b16 %v6718
        %v7663 = vunpack.c.l.b16 %v6719
        %v7664 = vunpack.c.h.b16 %v6719
        %v7665 = vunpack.c.l.b16 %v6720
        %v7666 = vunpack.c.l.b16 %v6721
        %v7667 = vunpack.c.h.b16 %v6721
        %v7668 = vunpack.c.l.b16 %v6722
        %v7669 = vunpack.c.l.b16 %v6723
        %v7670 = vunpack.c.h.b16 %v6723
        %v7671 = vunpack.c.l.b16 %v6724
        %v7672 = vunpack.c.l.b16 %v6725
        %v7673 = vunpack.c.h.b16 %v6725
        %v7674 = vunpack.c.l.b16 %v6726
        %v7675 = vunpack.c.l.b16 %v6727
        %v7676 = vunpack.c.h.b16 %v6727
        %v7677 = vunpack.c.l.b16 %v6728
        %v7678 = vunpack.c.l.b16 %v6729
        %v7679 = vunpack.c.h.b16 %v6729
        %v7680 = vunpack.c.l.b16 %v6730
        %v7681 = vunpack.c.l.b16 %v6731
        %v7682 = vunpack.c.h.b16 %v6731
        %v7683 = vunpack.c.l.b16 %v6732
        %v7684 = vunpack.c.l.b16 %v6733
        %v7685 = vunpack.c.h.b16 %v6733
        %v7686 = vunpack.c.l.b16 %v6734
        %v7687 = vunpack.c.l.b16 %v6735
        %v7688 = vunpack.c.h.b16 %v6735
        %v7689 = vunpack.c.l.b16 %v6736
        %v7690 = vunpack.c.l.b16 %v6737
        %v7691 = vunpack.c.h.b16 %v6737
        %v7692 = vunpack.c.l.b16 %v6738
        %v7693 = vunpack.c.l.b16 %v6739
        %v7694 = vunpack.c.h.b16 %v6739
        %v7695 = vunpack.c.l.b16 %v6740
        %v7696 = vunpack.c.l.b16 %v6741
        %v7697 = vunpack.c.h.b16 %v6741
        %v7698 = vunpack.c.l.b16 %v6742
        %v7699 = vunpack.c.l.b16 %v6743
        %v7700 = vunpack.c.h.b16 %v6743
        %v7701 = vunpack.c.l.b16 %v6744
        %v7702 = vunpack.c.l.b16 %v6745
        %v7703 = vunpack.c.h.b16 %v6745
        %v7704 = vunpack.c.l.b16 %v6746
        %v7705 = vunpack.c.l.b16 %v6747
        %v7706 = vunpack.c.h.b16 %v6747
        %v7707 = vunpack.c.l.b16 %v6748
        %v7708 = vunpack.c.l.b16 %v6749
        %v7709 = vunpack.c.h.b16 %v6749
        %v7710 = vunpack.c.l.b16 %v6750
        %v7711 = vpack.c.b16 %v7138, %v7135
        %v7712 = vpack.c.b16 %v7139, %v7136
        %v7713 = vpack.c.b16 %v7140, %v7137
        %v7714 = vpack.c.b16 %v7144, %v7141
        %v7715 = vpack.c.b16 %v7145, %v7142
        %v7716 = vpack.c.b16 %v7146, %v7143
        %v7717 = vpack.c.b16 %v7150, %v7147
        %v7718 = vpack.c.b16 %v7151, %v7148
        %v7719 = vpack.c.b16 %v7152, %v7149
        %v7720 = vpack.c.b16 %v7156, %v7153
        %v7721 = vpack.c.b16 %v7157, %v7154
        %v7722 = vpack.c.b16 %v7158, %v7155
        %v7723 = vpack.c.b16 %v7162, %v7159
        %v7724 = vpack.c.b16 %v7163, %v7160
        %v7725 = vpack.c.b16 %v7164, %v7161
        %v7726 = vpack.c.b16 %v7168, %v7165
        %v7727 = vpack.c.b16 %v7169, %v7166
        %v7728 = vpack.c.b16 %v7170, %v7167
        %v7729 = vpack.c.b16 %v7174, %v7171
        %v7730 = vpack.c.b16 %v7175, %v7172
        %v7731 = vpack.c.b16 %v7176, %v7173
        %v7732 = vpack.c.b16 %v7180, %v7177
        %v7733 = vpack.c.b16 %v7181, %v7178
        %v7734 = vpack.c.b16 %v7182, %v7179
        %v7735 = vpack.c.b16 %v7186, %v7183
        %v7736 = vpack.c.b16 %v7187, %v7184
        %v7737 = vpack.c.b16 %v7188, %v7185
        %v7738 = vpack.c.b16 %v7192, %v7189
        %v7739 = vpack.c.b16 %v7193, %v7190
        %v7740 = vpack.c.b16 %v7194, %v7191
        %v7741 = vpack.c.b16 %v7198, %v7195
        %v7742 = vpack.c.b16 %v7199, %v7196
        %v7743 = vpack.c.b16 %v7200, %v7197
        %v7744 = vpack.c.b16 %v7204, %v7201
        %v7745 = vpack.c.b16 %v7205, %v7202
        %v7746 = vpack.c.b16 %v7206, %v7203
        %v7747 = vpack.c.b16 %v7210, %v7207
        %v7748 = vpack.c.b16 %v7211, %v7208
        %v7749 = vpack.c.b16 %v7212, %v7209
        %v7750 = vpack.c.b16 %v7216, %v7213
        %v7751 = vpack.c.b16 %v7217, %v7214
        %v7752 = vpack.c.b16 %v7218, %v7215
        %v7753 = vpack.c.b16 %v7222, %v7219
        %v7754 = vpack.c.b16 %v7223, %v7220
        %v7755 = vpack.c.b16 %v7224, %v7221
        %v7756 = vpack.c.b16 %v7228, %v7225
        %v7757 = vpack.c.b16 %v7229, %v7226
        %v7758 = vpack.c.b16 %v7230, %v7227
        %v7759 = vpack.c.b16 %v7234, %v7231
        %v7760 = vpack.c.b16 %v7235, %v7232
        %v7761 = vpack.c.b16 %v7236, %v7233
        %v7762 = vpack.c.b16 %v7240, %v7237
        %v7763 = vpack.c.b16 %v7241, %v7238
        %v7764 = vpack.c.b16 %v7242, %v7239
        %v7765 = vpack.c.b16 %v7246, %v7243
        %v7766 = vpack.c.b16 %v7247, %v7244
        %v7767 = vpack.c.b16 %v7248, %v7245
        %v7768 = vpack.c.b16 %v7252, %v7249
        %v7769 = vpack.c.b16 %v7253, %v7250
        %v7770 = vpack.c.b16 %v7254, %v7251
        %v7771 = vpack.c.b16 %v7258, %v7255
        %v7772 = vpack.c.b16 %v7259, %v7256
        %v7773 = vpack.c.b16 %v7260, %v7257
        %v7774 = vpack.c.b16 %v7264, %v7261
        %v7775 = vpack.c.b16 %v7265, %v7262
        %v7776 = vpack.c.b16 %v7266, %v7263
        %v7777 = vpack.c.b16 %v7270, %v7267
        %v7778 = vpack.c.b16 %v7271, %v7268
        %v7779 = vpack.c.b16 %v7272, %v7269
        %v7780 = vpack.c.b16 %v7276, %v7273
        %v7781 = vpack.c.b16 %v7277, %v7274
        %v7782 = vpack.c.b16 %v7278, %v7275
        %v7783 = vpack.c.b16 %v7282, %v7279
        %v7784 = vpack.c.b16 %v7283, %v7280
        %v7785 = vpack.c.b16 %v7284, %v7281
        %v7786 = vpack.c.b16 %v7288, %v7285
        %v7787 = vpack.c.b16 %v7289, %v7286
        %v7788 = vpack.c.b16 %v7290, %v7287
        %v7789 = vpack.c.b16 %v7294, %v7291
        %v7790 = vpack.c.b16 %v7295, %v7292
        %v7791 = vpack.c.b16 %v7296, %v7293
        %v7792 = vpack.c.b16 %v7300, %v7297
        %v7793 = vpack.c.b16 %v7301, %v7298
        %v7794 = vpack.c.b16 %v7302, %v7299
        %v7795 = vpack.c.b16 %v7306, %v7303
        %v7796 = vpack.c.b16 %v7307, %v7304
        %v7797 = vpack.c.b16 %v7308, %v7305
        %v7798 = vpack.c.b16 %v7312, %v7309
        %v7799 = vpack.c.b16 %v7313, %v7310
        %v7800 = vpack.c.b16 %v7314, %v7311
        %v7801 = vpack.c.b16 %v7318, %v7315
        %v7802 = vpack.c.b16 %v7319, %v7316
        %v7803 = vpack.c.b16 %v7320, %v7317
        %v7804 = vpack.c.b16 %v7324, %v7321
        %v7805 = vpack.c.b16 %v7325, %v7322
        %v7806 = vpack.c.b16 %v7326, %v7323
        %v7807 = vpack.c.b16 %v7330, %v7327
        %v7808 = vpack.c.b16 %v7331, %v7328
        %v7809 = vpack.c.b16 %v7332, %v7329
        %v7810 = vpack.c.b16 %v7336, %v7333
        %v7811 = vpack.c.b16 %v7337, %v7334
        %v7812 = vpack.c.b16 %v7338, %v7335
        %v7813 = vpack.c.b16 %v7342, %v7339
        %v7814 = vpack.c.b16 %v7343, %v7340
        %v7815 = vpack.c.b16 %v7344, %v7341
        %v7816 = vpack.c.b16 %v7348, %v7345
        %v7817 = vpack.c.b16 %v7349, %v7346
        %v7818 = vpack.c.b16 %v7350, %v7347
        %v7819 = vpack.c.b16 %v7354, %v7351
        %v7820 = vpack.c.b16 %v7355, %v7352
        %v7821 = vpack.c.b16 %v7356, %v7353
        %v7822 = vpack.c.b16 %v7360, %v7357
        %v7823 = vpack.c.b16 %v7361, %v7358
        %v7824 = vpack.c.b16 %v7362, %v7359
        %v7825 = vpack.c.b16 %v7366, %v7363
        %v7826 = vpack.c.b16 %v7367, %v7364
        %v7827 = vpack.c.b16 %v7368, %v7365
        %v7828 = vpack.c.b16 %v7372, %v7369
        %v7829 = vpack.c.b16 %v7373, %v7370
        %v7830 = vpack.c.b16 %v7374, %v7371
        %v7831 = vpack.c.b16 %v7378, %v7375
        %v7832 = vpack.c.b16 %v7379, %v7376
        %v7833 = vpack.c.b16 %v7380, %v7377
        %v7834 = vpack.c.b16 %v7384, %v7381
        %v7835 = vpack.c.b16 %v7385, %v7382
        %v7836 = vpack.c.b16 %v7386, %v7383
        %v7837 = vpack.c.b16 %v7390, %v7387
        %v7838 = vpack.c.b16 %v7391, %v7388
        %v7839 = vpack.c.b16 %v7392, %v7389
        %v7840 = vpack.c.b16 %v7396, %v7393
        %v7841 = vpack.c.b16 %v7397, %v7394
        %v7842 = vpack.c.b16 %v7398, %v7395
        %v7843 = vpack.c.b16 %v7402, %v7399
        %v7844 = vpack.c.b16 %v7403, %v7400
        %v7845 = vpack.c.b16 %v7404, %v7401
        %v7846 = vpack.c.b16 %v7408, %v7405
        %v7847 = vpack.c.b16 %v7409, %v7406
        %v7848 = vpack.c.b16 %v7410, %v7407
        %v7849 = vpack.c.b16 %v7414, %v7411
        %v7850 = vpack.c.b16 %v7415, %v7412
        %v7851 = vpack.c.b16 %v7416, %v7413
        %v7852 = vpack.c.b16 %v7420, %v7417
        %v7853 = vpack.c.b16 %v7421, %v7418
        %v7854 = vpack.c.b16 %v7422, %v7419
        %v7855 = vpack.c.b16 %v7426, %v7423
        %v7856 = vpack.c.b16 %v7427, %v7424
        %v7857 = vpack.c.b16 %v7428, %v7425
        %v7858 = vpack.c.b16 %v7432, %v7429
        %v7859 = vpack.c.b16 %v7433, %v7430
        %v7860 = vpack.c.b16 %v7434, %v7431
        %v7861 = vpack.c.b16 %v7438, %v7435
        %v7862 = vpack.c.b16 %v7439, %v7436
        %v7863 = vpack.c.b16 %v7440, %v7437
        %v7864 = vpack.c.b16 %v7444, %v7441
        %v7865 = vpack.c.b16 %v7445, %v7442
        %v7866 = vpack.c.b16 %v7446, %v7443
        %v7867 = vpack.c.b16 %v7450, %v7447
        %v7868 = vpack.c.b16 %v7451, %v7448
        %v7869 = vpack.c.b16 %v7452, %v7449
        %v7870 = vpack.c.b16 %v7456, %v7453
        %v7871 = vpack.c.b16 %v7457, %v7454
        %v7872 = vpack.c.b16 %v7458, %v7455
        %v7873 = vpack.c.b16 %v7462, %v7459
        %v7874 = vpack.c.b16 %v7463, %v7460
        %v7875 = vpack.c.b16 %v7464, %v7461
        %v7876 = vpack.c.b16 %v7468, %v7465
        %v7877 = vpack.c.b16 %v7469, %v7466
        %v7878 = vpack.c.b16 %v7470, %v7467
        %v7879 = vpack.c.b16 %v7474, %v7471
        %v7880 = vpack.c.b16 %v7475, %v7472
        %v7881 = vpack.c.b16 %v7476, %v7473
        %v7882 = vpack.c.b16 %v7480, %v7477
        %v7883 = vpack.c.b16 %v7481, %v7478
        %v7884 = vpack.c.b16 %v7482, %v7479
        %v7885 = vpack.c.b16 %v7486, %v7483
        %v7886 = vpack.c.b16 %v7487, %v7484
        %v7887 = vpack.c.b16 %v7488, %v7485
        %v7888 = vpack.c.b16 %v7492, %v7489
        %v7889 = vpack.c.b16 %v7493, %v7490
        %v7890 = vpack.c.b16 %v7494, %v7491
        %v7891 = vpack.c.b16 %v7498, %v7495
        %v7892 = vpack.c.b16 %v7499, %v7496
        %v7893 = vpack.c.b16 %v7500, %v7497
        %v7894 = vpack.c.b16 %v7504, %v7501
        %v7895 = vpack.c.b16 %v7505, %v7502
        %v7896 = vpack.c.b16 %v7506, %v7503
        %v7897 = vpack.c.b16 %v7510, %v7507
        %v7898 = vpack.c.b16 %v7511, %v7508
        %v7899 = vpack.c.b16 %v7512, %v7509
        %v7900 = vpack.c.b16 %v7516, %v7513
        %v7901 = vpack.c.b16 %v7517, %v7514
        %v7902 = vpack.c.b16 %v7518, %v7515
        %v7903 = vpack.c.b16 %v7522, %v7519
        %v7904 = vpack.c.b16 %v7523, %v7520
        %v7905 = vpack.c.b16 %v7524, %v7521
        %v7906 = vpack.c.b16 %v7528, %v7525
        %v7907 = vpack.c.b16 %v7529, %v7526
        %v7908 = vpack.c.b16 %v7530, %v7527
        %v7909 = vpack.c.b16 %v7534, %v7531
        %v7910 = vpack.c.b16 %v7535, %v7532
        %v7911 = vpack.c.b16 %v7536, %v7533
        %v7912 = vpack.c.b16 %v7540, %v7537
        %v7913 = vpack.c.b16 %v7541, %v7538
        %v7914 = vpack.c.b16 %v7542, %v7539
        %v7915 = vpack.c.b16 %v7546, %v7543
        %v7916 = vpack.c.b16 %v7547, %v7544
        %v7917 = vpack.c.b16 %v7548, %v7545
        %v7918 = vpack.c.b16 %v7552, %v7549
        %v7919 = vpack.c.b16 %v7553, %v7550
        %v7920 = vpack.c.b16 %v7554, %v7551
        %v7921 = vpack.c.b16 %v7558, %v7555
        %v7922 = vpack.c.b16 %v7559, %v7556
        %v7923 = vpack.c.b16 %v7560, %v7557
        %v7924 = vpack.c.b16 %v7564, %v7561
        %v7925 = vpack.c.b16 %v7565, %v7562
        %v7926 = vpack.c.b16 %v7566, %v7563
        %v7927 = vpack.c.b16 %v7570, %v7567
        %v7928 = vpack.c.b16 %v7571, %v7568
        %v7929 = vpack.c.b16 %v7572, %v7569
        %v7930 = vpack.c.b16 %v7576, %v7573
        %v7931 = vpack.c.b16 %v7577, %v7574
        %v7932 = vpack.c.b16 %v7578, %v7575
        %v7933 = vpack.c.b16 %v7582, %v7579
        %v7934 = vpack.c.b16 %v7583, %v7580
        %v7935 = vpack.c.b16 %v7584, %v7581
        %v7936 = vpack.c.b16 %v7588, %v7585
        %v7937 = vpack.c.b16 %v7589, %v7586
        %v7938 = vpack.c.b16 %v7590, %v7587
        %v7939 = vpack.c.b16 %v7594, %v7591
        %v7940 = vpack.c.b16 %v7595, %v7592
        %v7941 = vpack.c.b16 %v7596, %v7593
        %v7942 = vpack.c.b16 %v7600, %v7597
        %v7943 = vpack.c.b16 %v7601, %v7598
        %v7944 = vpack.c.b16 %v7602, %v7599
        %v7945 = vpack.c.b16 %v7606, %v7603
        %v7946 = vpack.c.b16 %v7607, %v7604
        %v7947 = vpack.c.b16 %v7608, %v7605
        %v7948 = vpack.c.b16 %v7612, %v7609
        %v7949 = vpack.c.b16 %v7613, %v7610
        %v7950 = vpack.c.b16 %v7614, %v7611
        %v7951 = vpack.c.b16 %v7618, %v7615
        %v7952 = vpack.c.b16 %v7619, %v7616
        %v7953 = vpack.c.b16 %v7620, %v7617
        %v7954 = vpack.c.b16 %v7624, %v7621
        %v7955 = vpack.c.b16 %v7625, %v7622
        %v7956 = vpack.c.b16 %v7626, %v7623
        %v7957 = vpack.c.b16 %v7630, %v7627
        %v7958 = vpack.c.b16 %v7631, %v7628
        %v7959 = vpack.c.b16 %v7632, %v7629
        %v7960 = vpack.c.b16 %v7636, %v7633
        %v7961 = vpack.c.b16 %v7637, %v7634
        %v7962 = vpack.c.b16 %v7638, %v7635
        %v7963 = vpack.c.b16 %v7642, %v7639
        %v7964 = vpack.c.b16 %v7643, %v7640
        %v7965 = vpack.c.b16 %v7644, %v7641
        %v7966 = vpack.c.b16 %v7648, %v7645
        %v7967 = vpack.c.b16 %v7649, %v7646
        %v7968 = vpack.c.b16 %v7650, %v7647
        %v7969 = vpack.c.b16 %v7654, %v7651
        %v7970 = vpack.c.b16 %v7655, %v7652
        %v7971 = vpack.c.b16 %v7656, %v7653
        %v7972 = vpack.c.b16 %v7660, %v7657
        %v7973 = vpack.c.b16 %v7661, %v7658
        %v7974 = vpack.c.b16 %v7662, %v7659
        %v7975 = vpack.c.b16 %v7666, %v7663
        %v7976 = vpack.c.b16 %v7667, %v7664
        %v7977 = vpack.c.b16 %v7668, %v7665
        %v7978 = vpack.c.b16 %v7672, %v7669
        %v7979 = vpack.c.b16 %v7673, %v7670
        %v7980 = vpack.c.b16 %v7674, %v7671
        %v7981 = vpack.c.b16 %v7678, %v7675
        %v7982 = vpack.c.b16 %v7679, %v7676
        %v7983 = vpack.c.b16 %v7680, %v7677
        %v7984 = vpack.c.b16 %v7684, %v7681
        %v7985 = vpack.c.b16 %v7685, %v7682
        %v7986 = vpack.c.b16 %v7686, %v7683
        %v7987 = vpack.c.b16 %v7690, %v7687
        %v7988 = vpack.c.b16 %v7691, %v7688
        %v7989 = vpack.c.b16 %v7692, %v7689
        %v7990 = vpack.c.b16 %v7696, %v7693
        %v7991 = vpack.c.b16 %v7697, %v7694
        %v7992 = vpack.c.b16 %v7698, %v7695
        %v7993 = vpack.c.b16 %v7702, %v7699
        %v7994 = vpack.c.b16 %v7703, %v7700
        %v7995 = vpack.c.b16 %v7704, %v7701
        %v7996 = vpack.c.b16 %v7708, %v7705
        %v7997 = vpack.c.b16 %v7709, %v7706
        %v7998 = vpack.c.b16 %v7710, %v7707
        %8287 = vmatpush.bf16.msra.mxu0 %v7732
        %8288 = vmatpush.bf16.msra.mxu0 %v7729
        %8289 = vmatpush.bf16.msra.mxu0 %v7726
        %8290 = vmatpush.bf16.msra.mxu0 %v7723
        %8291 = vmatpush.bf16.msra.mxu0 %v7720
        %8292 = vmatpush.bf16.msra.mxu0 %v7717
        %8293 = vmatpush.bf16.msra.mxu0 %v7714
        %8294 = vmatpush.bf16.msra.mxu0 %v7711
        %8295 = vmatmul.bf16.gmra.mxu0 %v6175
        %v8296 = vpop.f32.mrf.mxu0
        %v8297 = vadd.f32 0.0, %v8296
        %v8298 = vpop.f32.mrf.mxu0
        %v8299 = vadd.f32 0.0, %v8298
        %8300 = vmatmul.bf16.gmra.mxu0 %v6187
        %v8301 = vpop.f32.mrf.mxu0
        %v8302 = vadd.f32 0.0, %v8301
        %v8303 = vpop.f32.mrf.mxu0
        %v8304 = vadd.f32 0.0, %v8303
        %8305 = vmatmul.bf16.gmra.mxu0 %v6199
        %v8306 = vpop.f32.mrf.mxu0
        %v8307 = vadd.f32 0.0, %v8306
        %v8308 = vpop.f32.mrf.mxu0
        %v8309 = vadd.f32 0.0, %v8308
        %8310 = vmatmul.bf16.gmra.mxu0 %v6211
        %v8311 = vpop.f32.mrf.mxu0
        %v8312 = vadd.f32 0.0, %v8311
        %v8313 = vpop.f32.mrf.mxu0
        %v8314 = vadd.f32 0.0, %v8313
        %8315 = vmatmul.bf16.gmra.mxu0 %v6223
        %v8316 = vpop.f32.mrf.mxu0
        %v8317 = vadd.f32 0.0, %v8316
        %v8318 = vpop.f32.mrf.mxu0
        %v8319 = vadd.f32 0.0, %v8318
        %8320 = vmatmul.bf16.gmra.mxu0 %v6235
        %v8321 = vpop.f32.mrf.mxu0
        %v8322 = vadd.f32 0.0, %v8321
        %v8323 = vpop.f32.mrf.mxu0
        %v8324 = vadd.f32 0.0, %v8323
        %8325 = vmatmul.bf16.gmra.mxu0 %v6247
        %v8326 = vpop.f32.mrf.mxu0
        %v8327 = vadd.f32 0.0, %v8326
        %v8328 = vpop.f32.mrf.mxu0
        %v8329 = vadd.f32 0.0, %v8328
        %8330 = vmatmul.bf16.gmra.mxu0 %v6259
        %v8331 = vpop.f32.mrf.mxu0
        %v8332 = vadd.f32 0.0, %v8331
        %v8333 = vpop.f32.mrf.mxu0
        %v8334 = vadd.f32 0.0, %v8333
        %8335 = vmatmul.bf16.gmra.mxu0 %v6271
        %v8336 = vpop.f32.mrf.mxu0
        %v8337 = vadd.f32 0.0, %v8336
        %v8338 = vpop.f32.mrf.mxu0
        %v8339 = vadd.f32 0.0, %v8338
        %8340 = vmatmul.bf16.gmra.mxu0 %v6283
        %v8341 = vpop.f32.mrf.mxu0
        %v8342 = vadd.f32 0.0, %v8341
        %v8343 = vpop.f32.mrf.mxu0
        %v8344 = vadd.f32 0.0, %v8343
        %8345 = vmatmul.bf16.gmra.mxu0 %v6295
        %v8346 = vpop.f32.mrf.mxu0
        %v8347 = vadd.f32 0.0, %v8346
        %v8348 = vpop.f32.mrf.mxu0
        %v8349 = vadd.f32 0.0, %v8348
        %8350 = vmatmul.bf16.gmra.mxu0 %v6307
        %v8351 = vpop.f32.mrf.mxu0
        %v8352 = vadd.f32 0.0, %v8351
        %v8353 = vpop.f32.mrf.mxu0
        %v8354 = vadd.f32 0.0, %v8353
        %8355 = vmatmul.bf16.gmra.mxu0 %v6319
        %v8356 = vpop.f32.mrf.mxu0
        %v8357 = vadd.f32 0.0, %v8356
        %v8358 = vpop.f32.mrf.mxu0
        %v8359 = vadd.f32 0.0, %v8358
        %8360 = vmatmul.bf16.gmra.mxu0 %v6331
        %v8361 = vpop.f32.mrf.mxu0
        %v8362 = vadd.f32 0.0, %v8361
        %v8363 = vpop.f32.mrf.mxu0
        %v8364 = vadd.f32 0.0, %v8363
        %8365 = vmatmul.bf16.gmra.mxu0 %v6343
        %v8366 = vpop.f32.mrf.mxu0
        %v8367 = vadd.f32 0.0, %v8366
        %v8368 = vpop.f32.mrf.mxu0
        %v8369 = vadd.f32 0.0, %v8368
        %8370 = vmatmul.bf16.gmra.mxu0 %v6355
        %v8371 = vpop.f32.mrf.mxu0
        %v8372 = vadd.f32 0.0, %v8371
        %v8373 = vpop.f32.mrf.mxu0
        %v8374 = vadd.f32 0.0, %v8373
        %8375 = vdwg.mxu0
        %8376 = vmatpush.bf16.msra.mxu0 %v7756
        %8377 = vmatpush.bf16.msra.mxu0 %v7753
        %8378 = vmatpush.bf16.msra.mxu0 %v7750
        %8379 = vmatpush.bf16.msra.mxu0 %v7747
        %8380 = vmatpush.bf16.msra.mxu0 %v7744
        %8381 = vmatpush.bf16.msra.mxu0 %v7741
        %8382 = vmatpush.bf16.msra.mxu0 %v7738
        %8383 = vmatpush.bf16.msra.mxu0 %v7735
        %8384 = vmatmul.bf16.gmra.mxu0 %v6176
        %v8385 = vpop.f32.mrf.mxu0
        %v8386 = vadd.f32 %v8297, %v8385
        %v8387 = vpop.f32.mrf.mxu0
        %v8388 = vadd.f32 %v8299, %v8387
        %8389 = vmatmul.bf16.gmra.mxu0 %v6188
        %v8390 = vpop.f32.mrf.mxu0
        %v8391 = vadd.f32 %v8302, %v8390
        %v8392 = vpop.f32.mrf.mxu0
        %v8393 = vadd.f32 %v8304, %v8392
        %8394 = vmatmul.bf16.gmra.mxu0 %v6200
        %v8395 = vpop.f32.mrf.mxu0
        %v8396 = vadd.f32 %v8307, %v8395
        %v8397 = vpop.f32.mrf.mxu0
        %v8398 = vadd.f32 %v8309, %v8397
        %8399 = vmatmul.bf16.gmra.mxu0 %v6212
        %v8400 = vpop.f32.mrf.mxu0
        %v8401 = vadd.f32 %v8312, %v8400
        %v8402 = vpop.f32.mrf.mxu0
        %v8403 = vadd.f32 %v8314, %v8402
        %8404 = vmatmul.bf16.gmra.mxu0 %v6224
        %v8405 = vpop.f32.mrf.mxu0
        %v8406 = vadd.f32 %v8317, %v8405
        %v8407 = vpop.f32.mrf.mxu0
        %v8408 = vadd.f32 %v8319, %v8407
        %8409 = vmatmul.bf16.gmra.mxu0 %v6236
        %v8410 = vpop.f32.mrf.mxu0
        %v8411 = vadd.f32 %v8322, %v8410
        %v8412 = vpop.f32.mrf.mxu0
        %v8413 = vadd.f32 %v8324, %v8412
        %8414 = vmatmul.bf16.gmra.mxu0 %v6248
        %v8415 = vpop.f32.mrf.mxu0
        %v8416 = vadd.f32 %v8327, %v8415
        %v8417 = vpop.f32.mrf.mxu0
        %v8418 = vadd.f32 %v8329, %v8417
        %8419 = vmatmul.bf16.gmra.mxu0 %v6260
        %v8420 = vpop.f32.mrf.mxu0
        %v8421 = vadd.f32 %v8332, %v8420
        %v8422 = vpop.f32.mrf.mxu0
        %v8423 = vadd.f32 %v8334, %v8422
        %8424 = vmatmul.bf16.gmra.mxu0 %v6272
        %v8425 = vpop.f32.mrf.mxu0
        %v8426 = vadd.f32 %v8337, %v8425
        %v8427 = vpop.f32.mrf.mxu0
        %v8428 = vadd.f32 %v8339, %v8427
        %8429 = vmatmul.bf16.gmra.mxu0 %v6284
        %v8430 = vpop.f32.mrf.mxu0
        %v8431 = vadd.f32 %v8342, %v8430
        %v8432 = vpop.f32.mrf.mxu0
        %v8433 = vadd.f32 %v8344, %v8432
        %8434 = vmatmul.bf16.gmra.mxu0 %v6296
        %v8435 = vpop.f32.mrf.mxu0
        %v8436 = vadd.f32 %v8347, %v8435
        %v8437 = vpop.f32.mrf.mxu0
        %v8438 = vadd.f32 %v8349, %v8437
        %8439 = vmatmul.bf16.gmra.mxu0 %v6308
        %v8440 = vpop.f32.mrf.mxu0
        %v8441 = vadd.f32 %v8352, %v8440
        %v8442 = vpop.f32.mrf.mxu0
        %v8443 = vadd.f32 %v8354, %v8442
        %8444 = vmatmul.bf16.gmra.mxu0 %v6320
        %v8445 = vpop.f32.mrf.mxu0
        %v8446 = vadd.f32 %v8357, %v8445
        %v8447 = vpop.f32.mrf.mxu0
        %v8448 = vadd.f32 %v8359, %v8447
        %8449 = vmatmul.bf16.gmra.mxu0 %v6332
        %v8450 = vpop.f32.mrf.mxu0
        %v8451 = vadd.f32 %v8362, %v8450
        %v8452 = vpop.f32.mrf.mxu0
        %v8453 = vadd.f32 %v8364, %v8452
        %8454 = vmatmul.bf16.gmra.mxu0 %v6344
        %v8455 = vpop.f32.mrf.mxu0
        %v8456 = vadd.f32 %v8367, %v8455
        %v8457 = vpop.f32.mrf.mxu0
        %v8458 = vadd.f32 %v8369, %v8457
        %8459 = vmatmul.bf16.gmra.mxu0 %v6356
        %v8460 = vpop.f32.mrf.mxu0
        %v8461 = vadd.f32 %v8372, %v8460
        %v8462 = vpop.f32.mrf.mxu0
        %v8463 = vadd.f32 %v8374, %v8462
        %8464 = vdwg.mxu0
        %8465 = vmatpush.bf16.msra.mxu0 %v7780
        %8466 = vmatpush.bf16.msra.mxu0 %v7777
        %8467 = vmatpush.bf16.msra.mxu0 %v7774
        %8468 = vmatpush.bf16.msra.mxu0 %v7771
        %8469 = vmatpush.bf16.msra.mxu0 %v7768
        %8470 = vmatpush.bf16.msra.mxu0 %v7765
        %8471 = vmatpush.bf16.msra.mxu0 %v7762
        %8472 = vmatpush.bf16.msra.mxu0 %v7759
        %8473 = vmatmul.bf16.gmra.mxu0 %v6177
        %v8474 = vpop.f32.mrf.mxu0
        %v8475 = vadd.f32 %v8386, %v8474
        %v8476 = vpop.f32.mrf.mxu0
        %v8477 = vadd.f32 %v8388, %v8476
        %8478 = vmatmul.bf16.gmra.mxu0 %v6189
        %v8479 = vpop.f32.mrf.mxu0
        %v8480 = vadd.f32 %v8391, %v8479
        %v8481 = vpop.f32.mrf.mxu0
        %v8482 = vadd.f32 %v8393, %v8481
        %8483 = vmatmul.bf16.gmra.mxu0 %v6201
        %v8484 = vpop.f32.mrf.mxu0
        %v8485 = vadd.f32 %v8396, %v8484
        %v8486 = vpop.f32.mrf.mxu0
        %v8487 = vadd.f32 %v8398, %v8486
        %8488 = vmatmul.bf16.gmra.mxu0 %v6213
        %v8489 = vpop.f32.mrf.mxu0
        %v8490 = vadd.f32 %v8401, %v8489
        %v8491 = vpop.f32.mrf.mxu0
        %v8492 = vadd.f32 %v8403, %v8491
        %8493 = vmatmul.bf16.gmra.mxu0 %v6225
        %v8494 = vpop.f32.mrf.mxu0
        %v8495 = vadd.f32 %v8406, %v8494
        %v8496 = vpop.f32.mrf.mxu0
        %v8497 = vadd.f32 %v8408, %v8496
        %8498 = vmatmul.bf16.gmra.mxu0 %v6237
        %v8499 = vpop.f32.mrf.mxu0
        %v8500 = vadd.f32 %v8411, %v8499
        %v8501 = vpop.f32.mrf.mxu0
        %v8502 = vadd.f32 %v8413, %v8501
        %8503 = vmatmul.bf16.gmra.mxu0 %v6249
        %v8504 = vpop.f32.mrf.mxu0
        %v8505 = vadd.f32 %v8416, %v8504
        %v8506 = vpop.f32.mrf.mxu0
        %v8507 = vadd.f32 %v8418, %v8506
        %8508 = vmatmul.bf16.gmra.mxu0 %v6261
        %v8509 = vpop.f32.mrf.mxu0
        %v8510 = vadd.f32 %v8421, %v8509
        %v8511 = vpop.f32.mrf.mxu0
        %v8512 = vadd.f32 %v8423, %v8511
        %8513 = vmatmul.bf16.gmra.mxu0 %v6273
        %v8514 = vpop.f32.mrf.mxu0
        %v8515 = vadd.f32 %v8426, %v8514
        %v8516 = vpop.f32.mrf.mxu0
        %v8517 = vadd.f32 %v8428, %v8516
        %8518 = vmatmul.bf16.gmra.mxu0 %v6285
        %v8519 = vpop.f32.mrf.mxu0
        %v8520 = vadd.f32 %v8431, %v8519
        %v8521 = vpop.f32.mrf.mxu0
        %v8522 = vadd.f32 %v8433, %v8521
        %8523 = vmatmul.bf16.gmra.mxu0 %v6297
        %v8524 = vpop.f32.mrf.mxu0
        %v8525 = vadd.f32 %v8436, %v8524
        %v8526 = vpop.f32.mrf.mxu0
        %v8527 = vadd.f32 %v8438, %v8526
        %8528 = vmatmul.bf16.gmra.mxu0 %v6309
        %v8529 = vpop.f32.mrf.mxu0
        %v8530 = vadd.f32 %v8441, %v8529
        %v8531 = vpop.f32.mrf.mxu0
        %v8532 = vadd.f32 %v8443, %v8531
        %8533 = vmatmul.bf16.gmra.mxu0 %v6321
        %v8534 = vpop.f32.mrf.mxu0
        %v8535 = vadd.f32 %v8446, %v8534
        %v8536 = vpop.f32.mrf.mxu0
        %v8537 = vadd.f32 %v8448, %v8536
        %8538 = vmatmul.bf16.gmra.mxu0 %v6333
        %v8539 = vpop.f32.mrf.mxu0
        %v8540 = vadd.f32 %v8451, %v8539
        %v8541 = vpop.f32.mrf.mxu0
        %v8542 = vadd.f32 %v8453, %v8541
        %8543 = vmatmul.bf16.gmra.mxu0 %v6345
        %v8544 = vpop.f32.mrf.mxu0
        %v8545 = vadd.f32 %v8456, %v8544
        %v8546 = vpop.f32.mrf.mxu0
        %v8547 = vadd.f32 %v8458, %v8546
        %8548 = vmatmul.bf16.gmra.mxu0 %v6357
        %v8549 = vpop.f32.mrf.mxu0
        %v8550 = vadd.f32 %v8461, %v8549
        %v8551 = vpop.f32.mrf.mxu0
        %v8552 = vadd.f32 %v8463, %v8551
        %8553 = vdwg.mxu0
        %8554 = vmatpush.bf16.msra.mxu0 %v7804
        %8555 = vmatpush.bf16.msra.mxu0 %v7801
        %8556 = vmatpush.bf16.msra.mxu0 %v7798
        %8557 = vmatpush.bf16.msra.mxu0 %v7795
        %8558 = vmatpush.bf16.msra.mxu0 %v7792
        %8559 = vmatpush.bf16.msra.mxu0 %v7789
        %8560 = vmatpush.bf16.msra.mxu0 %v7786
        %8561 = vmatpush.bf16.msra.mxu0 %v7783
        %8562 = vmatmul.bf16.gmra.mxu0 %v6178
        %v8563 = vpop.f32.mrf.mxu0
        %v8564 = vadd.f32 %v8475, %v8563
        %v8565 = vpop.f32.mrf.mxu0
        %v8566 = vadd.f32 %v8477, %v8565
        %8567 = vmatmul.bf16.gmra.mxu0 %v6190
        %v8568 = vpop.f32.mrf.mxu0
        %v8569 = vadd.f32 %v8480, %v8568
        %v8570 = vpop.f32.mrf.mxu0
        %v8571 = vadd.f32 %v8482, %v8570
        %8572 = vmatmul.bf16.gmra.mxu0 %v6202
        %v8573 = vpop.f32.mrf.mxu0
        %v8574 = vadd.f32 %v8485, %v8573
        %v8575 = vpop.f32.mrf.mxu0
        %v8576 = vadd.f32 %v8487, %v8575
        %8577 = vmatmul.bf16.gmra.mxu0 %v6214
        %v8578 = vpop.f32.mrf.mxu0
        %v8579 = vadd.f32 %v8490, %v8578
        %v8580 = vpop.f32.mrf.mxu0
        %v8581 = vadd.f32 %v8492, %v8580
        %8582 = vmatmul.bf16.gmra.mxu0 %v6226
        %v8583 = vpop.f32.mrf.mxu0
        %v8584 = vadd.f32 %v8495, %v8583
        %v8585 = vpop.f32.mrf.mxu0
        %v8586 = vadd.f32 %v8497, %v8585
        %8587 = vmatmul.bf16.gmra.mxu0 %v6238
        %v8588 = vpop.f32.mrf.mxu0
        %v8589 = vadd.f32 %v8500, %v8588
        %v8590 = vpop.f32.mrf.mxu0
        %v8591 = vadd.f32 %v8502, %v8590
        %8592 = vmatmul.bf16.gmra.mxu0 %v6250
        %v8593 = vpop.f32.mrf.mxu0
        %v8594 = vadd.f32 %v8505, %v8593
        %v8595 = vpop.f32.mrf.mxu0
        %v8596 = vadd.f32 %v8507, %v8595
        %8597 = vmatmul.bf16.gmra.mxu0 %v6262
        %v8598 = vpop.f32.mrf.mxu0
        %v8599 = vadd.f32 %v8510, %v8598
        %v8600 = vpop.f32.mrf.mxu0
        %v8601 = vadd.f32 %v8512, %v8600
        %8602 = vmatmul.bf16.gmra.mxu0 %v6274
        %v8603 = vpop.f32.mrf.mxu0
        %v8604 = vadd.f32 %v8515, %v8603
        %v8605 = vpop.f32.mrf.mxu0
        %v8606 = vadd.f32 %v8517, %v8605
        %8607 = vmatmul.bf16.gmra.mxu0 %v6286
        %v8608 = vpop.f32.mrf.mxu0
        %v8609 = vadd.f32 %v8520, %v8608
        %v8610 = vpop.f32.mrf.mxu0
        %v8611 = vadd.f32 %v8522, %v8610
        %8612 = vmatmul.bf16.gmra.mxu0 %v6298
        %v8613 = vpop.f32.mrf.mxu0
        %v8614 = vadd.f32 %v8525, %v8613
        %v8615 = vpop.f32.mrf.mxu0
        %v8616 = vadd.f32 %v8527, %v8615
        %8617 = vmatmul.bf16.gmra.mxu0 %v6310
        %v8618 = vpop.f32.mrf.mxu0
        %v8619 = vadd.f32 %v8530, %v8618
        %v8620 = vpop.f32.mrf.mxu0
        %v8621 = vadd.f32 %v8532, %v8620
        %8622 = vmatmul.bf16.gmra.mxu0 %v6322
        %v8623 = vpop.f32.mrf.mxu0
        %v8624 = vadd.f32 %v8535, %v8623
        %v8625 = vpop.f32.mrf.mxu0
        %v8626 = vadd.f32 %v8537, %v8625
        %8627 = vmatmul.bf16.gmra.mxu0 %v6334
        %v8628 = vpop.f32.mrf.mxu0
        %v8629 = vadd.f32 %v8540, %v8628
        %v8630 = vpop.f32.mrf.mxu0
        %v8631 = vadd.f32 %v8542, %v8630
        %8632 = vmatmul.bf16.gmra.mxu0 %v6346
        %v8633 = vpop.f32.mrf.mxu0
        %v8634 = vadd.f32 %v8545, %v8633
        %v8635 = vpop.f32.mrf.mxu0
        %v8636 = vadd.f32 %v8547, %v8635
        %8637 = vmatmul.bf16.gmra.mxu0 %v6358
        %v8638 = vpop.f32.mrf.mxu0
        %v8639 = vadd.f32 %v8550, %v8638
        %v8640 = vpop.f32.mrf.mxu0
        %v8641 = vadd.f32 %v8552, %v8640
        %8642 = vdwg.mxu0
        %8643 = vmatpush.bf16.msra.mxu0 %v7828
        %8644 = vmatpush.bf16.msra.mxu0 %v7825
        %8645 = vmatpush.bf16.msra.mxu0 %v7822
        %8646 = vmatpush.bf16.msra.mxu0 %v7819
        %8647 = vmatpush.bf16.msra.mxu0 %v7816
        %8648 = vmatpush.bf16.msra.mxu0 %v7813
        %8649 = vmatpush.bf16.msra.mxu0 %v7810
        %8650 = vmatpush.bf16.msra.mxu0 %v7807
        %8651 = vmatmul.bf16.gmra.mxu0 %v6179
        %v8652 = vpop.f32.mrf.mxu0
        %v8653 = vadd.f32 %v8564, %v8652
        %v8654 = vpop.f32.mrf.mxu0
        %v8655 = vadd.f32 %v8566, %v8654
        %8656 = vmatmul.bf16.gmra.mxu0 %v6191
        %v8657 = vpop.f32.mrf.mxu0
        %v8658 = vadd.f32 %v8569, %v8657
        %v8659 = vpop.f32.mrf.mxu0
        %v8660 = vadd.f32 %v8571, %v8659
        %8661 = vmatmul.bf16.gmra.mxu0 %v6203
        %v8662 = vpop.f32.mrf.mxu0
        %v8663 = vadd.f32 %v8574, %v8662
        %v8664 = vpop.f32.mrf.mxu0
        %v8665 = vadd.f32 %v8576, %v8664
        %8666 = vmatmul.bf16.gmra.mxu0 %v6215
        %v8667 = vpop.f32.mrf.mxu0
        %v8668 = vadd.f32 %v8579, %v8667
        %v8669 = vpop.f32.mrf.mxu0
        %v8670 = vadd.f32 %v8581, %v8669
        %8671 = vmatmul.bf16.gmra.mxu0 %v6227
        %v8672 = vpop.f32.mrf.mxu0
        %v8673 = vadd.f32 %v8584, %v8672
        %v8674 = vpop.f32.mrf.mxu0
        %v8675 = vadd.f32 %v8586, %v8674
        %8676 = vmatmul.bf16.gmra.mxu0 %v6239
        %v8677 = vpop.f32.mrf.mxu0
        %v8678 = vadd.f32 %v8589, %v8677
        %v8679 = vpop.f32.mrf.mxu0
        %v8680 = vadd.f32 %v8591, %v8679
        %8681 = vmatmul.bf16.gmra.mxu0 %v6251
        %v8682 = vpop.f32.mrf.mxu0
        %v8683 = vadd.f32 %v8594, %v8682
        %v8684 = vpop.f32.mrf.mxu0
        %v8685 = vadd.f32 %v8596, %v8684
        %8686 = vmatmul.bf16.gmra.mxu0 %v6263
        %v8687 = vpop.f32.mrf.mxu0
        %v8688 = vadd.f32 %v8599, %v8687
        %v8689 = vpop.f32.mrf.mxu0
        %v8690 = vadd.f32 %v8601, %v8689
        %8691 = vmatmul.bf16.gmra.mxu0 %v6275
        %v8692 = vpop.f32.mrf.mxu0
        %v8693 = vadd.f32 %v8604, %v8692
        %v8694 = vpop.f32.mrf.mxu0
        %v8695 = vadd.f32 %v8606, %v8694
        %8696 = vmatmul.bf16.gmra.mxu0 %v6287
        %v8697 = vpop.f32.mrf.mxu0
        %v8698 = vadd.f32 %v8609, %v8697
        %v8699 = vpop.f32.mrf.mxu0
        %v8700 = vadd.f32 %v8611, %v8699
        %8701 = vmatmul.bf16.gmra.mxu0 %v6299
        %v8702 = vpop.f32.mrf.mxu0
        %v8703 = vadd.f32 %v8614, %v8702
        %v8704 = vpop.f32.mrf.mxu0
        %v8705 = vadd.f32 %v8616, %v8704
        %8706 = vmatmul.bf16.gmra.mxu0 %v6311
        %v8707 = vpop.f32.mrf.mxu0
        %v8708 = vadd.f32 %v8619, %v8707
        %v8709 = vpop.f32.mrf.mxu0
        %v8710 = vadd.f32 %v8621, %v8709
        %8711 = vmatmul.bf16.gmra.mxu0 %v6323
        %v8712 = vpop.f32.mrf.mxu0
        %v8713 = vadd.f32 %v8624, %v8712
        %v8714 = vpop.f32.mrf.mxu0
        %v8715 = vadd.f32 %v8626, %v8714
        %8716 = vmatmul.bf16.gmra.mxu0 %v6335
        %v8717 = vpop.f32.mrf.mxu0
        %v8718 = vadd.f32 %v8629, %v8717
        %v8719 = vpop.f32.mrf.mxu0
        %v8720 = vadd.f32 %v8631, %v8719
        %8721 = vmatmul.bf16.gmra.mxu0 %v6347
        %v8722 = vpop.f32.mrf.mxu0
        %v8723 = vadd.f32 %v8634, %v8722
        %v8724 = vpop.f32.mrf.mxu0
        %v8725 = vadd.f32 %v8636, %v8724
        %8726 = vmatmul.bf16.gmra.mxu0 %v6359
        %v8727 = vpop.f32.mrf.mxu0
        %v8728 = vadd.f32 %v8639, %v8727
        %v8729 = vpop.f32.mrf.mxu0
        %v8730 = vadd.f32 %v8641, %v8729
        %8731 = vdwg.mxu0
        %8732 = vmatpush.bf16.msra.mxu0 %v7852
        %8733 = vmatpush.bf16.msra.mxu0 %v7849
        %8734 = vmatpush.bf16.msra.mxu0 %v7846
        %8735 = vmatpush.bf16.msra.mxu0 %v7843
        %8736 = vmatpush.bf16.msra.mxu0 %v7840
        %8737 = vmatpush.bf16.msra.mxu0 %v7837
        %8738 = vmatpush.bf16.msra.mxu0 %v7834
        %8739 = vmatpush.bf16.msra.mxu0 %v7831
        %8740 = vmatmul.bf16.gmra.mxu0 %v6180
        %v8741 = vpop.f32.mrf.mxu0
        %v8742 = vadd.f32 %v8653, %v8741
        %v8743 = vpop.f32.mrf.mxu0
        %v8744 = vadd.f32 %v8655, %v8743
        %8745 = vmatmul.bf16.gmra.mxu0 %v6192
        %v8746 = vpop.f32.mrf.mxu0
        %v8747 = vadd.f32 %v8658, %v8746
        %v8748 = vpop.f32.mrf.mxu0
        %v8749 = vadd.f32 %v8660, %v8748
        %8750 = vmatmul.bf16.gmra.mxu0 %v6204
        %v8751 = vpop.f32.mrf.mxu0
        %v8752 = vadd.f32 %v8663, %v8751
        %v8753 = vpop.f32.mrf.mxu0
        %v8754 = vadd.f32 %v8665, %v8753
        %8755 = vmatmul.bf16.gmra.mxu0 %v6216
        %v8756 = vpop.f32.mrf.mxu0
        %v8757 = vadd.f32 %v8668, %v8756
        %v8758 = vpop.f32.mrf.mxu0
        %v8759 = vadd.f32 %v8670, %v8758
        %8760 = vmatmul.bf16.gmra.mxu0 %v6228
        %v8761 = vpop.f32.mrf.mxu0
        %v8762 = vadd.f32 %v8673, %v8761
        %v8763 = vpop.f32.mrf.mxu0
        %v8764 = vadd.f32 %v8675, %v8763
        %8765 = vmatmul.bf16.gmra.mxu0 %v6240
        %v8766 = vpop.f32.mrf.mxu0
        %v8767 = vadd.f32 %v8678, %v8766
        %v8768 = vpop.f32.mrf.mxu0
        %v8769 = vadd.f32 %v8680, %v8768
        %8770 = vmatmul.bf16.gmra.mxu0 %v6252
        %v8771 = vpop.f32.mrf.mxu0
        %v8772 = vadd.f32 %v8683, %v8771
        %v8773 = vpop.f32.mrf.mxu0
        %v8774 = vadd.f32 %v8685, %v8773
        %8775 = vmatmul.bf16.gmra.mxu0 %v6264
        %v8776 = vpop.f32.mrf.mxu0
        %v8777 = vadd.f32 %v8688, %v8776
        %v8778 = vpop.f32.mrf.mxu0
        %v8779 = vadd.f32 %v8690, %v8778
        %8780 = vmatmul.bf16.gmra.mxu0 %v6276
        %v8781 = vpop.f32.mrf.mxu0
        %v8782 = vadd.f32 %v8693, %v8781
        %v8783 = vpop.f32.mrf.mxu0
        %v8784 = vadd.f32 %v8695, %v8783
        %8785 = vmatmul.bf16.gmra.mxu0 %v6288
        %v8786 = vpop.f32.mrf.mxu0
        %v8787 = vadd.f32 %v8698, %v8786
        %v8788 = vpop.f32.mrf.mxu0
        %v8789 = vadd.f32 %v8700, %v8788
        %8790 = vmatmul.bf16.gmra.mxu0 %v6300
        %v8791 = vpop.f32.mrf.mxu0
        %v8792 = vadd.f32 %v8703, %v8791
        %v8793 = vpop.f32.mrf.mxu0
        %v8794 = vadd.f32 %v8705, %v8793
        %8795 = vmatmul.bf16.gmra.mxu0 %v6312
        %v8796 = vpop.f32.mrf.mxu0
        %v8797 = vadd.f32 %v8708, %v8796
        %v8798 = vpop.f32.mrf.mxu0
        %v8799 = vadd.f32 %v8710, %v8798
        %8800 = vmatmul.bf16.gmra.mxu0 %v6324
        %v8801 = vpop.f32.mrf.mxu0
        %v8802 = vadd.f32 %v8713, %v8801
        %v8803 = vpop.f32.mrf.mxu0
        %v8804 = vadd.f32 %v8715, %v8803
        %8805 = vmatmul.bf16.gmra.mxu0 %v6336
        %v8806 = vpop.f32.mrf.mxu0
        %v8807 = vadd.f32 %v8718, %v8806
        %v8808 = vpop.f32.mrf.mxu0
        %v8809 = vadd.f32 %v8720, %v8808
        %8810 = vmatmul.bf16.gmra.mxu0 %v6348
        %v8811 = vpop.f32.mrf.mxu0
        %v8812 = vadd.f32 %v8723, %v8811
        %v8813 = vpop.f32.mrf.mxu0
        %v8814 = vadd.f32 %v8725, %v8813
        %8815 = vmatmul.bf16.gmra.mxu0 %v6360
        %v8816 = vpop.f32.mrf.mxu0
        %v8817 = vadd.f32 %v8728, %v8816
        %v8818 = vpop.f32.mrf.mxu0
        %v8819 = vadd.f32 %v8730, %v8818
        %8820 = vdwg.mxu0
        %8821 = vmatpush.bf16.msra.mxu0 %v7876
        %8822 = vmatpush.bf16.msra.mxu0 %v7873
        %8823 = vmatpush.bf16.msra.mxu0 %v7870
        %8824 = vmatpush.bf16.msra.mxu0 %v7867
        %8825 = vmatpush.bf16.msra.mxu0 %v7864
        %8826 = vmatpush.bf16.msra.mxu0 %v7861
        %8827 = vmatpush.bf16.msra.mxu0 %v7858
        %8828 = vmatpush.bf16.msra.mxu0 %v7855
        %8829 = vmatmul.bf16.gmra.mxu0 %v6181
        %v8830 = vpop.f32.mrf.mxu0
        %v8831 = vadd.f32 %v8742, %v8830
        %v8832 = vpop.f32.mrf.mxu0
        %v8833 = vadd.f32 %v8744, %v8832
        %8834 = vmatmul.bf16.gmra.mxu0 %v6193
        %v8835 = vpop.f32.mrf.mxu0
        %v8836 = vadd.f32 %v8747, %v8835
        %v8837 = vpop.f32.mrf.mxu0
        %v8838 = vadd.f32 %v8749, %v8837
        %8839 = vmatmul.bf16.gmra.mxu0 %v6205
        %v8840 = vpop.f32.mrf.mxu0
        %v8841 = vadd.f32 %v8752, %v8840
        %v8842 = vpop.f32.mrf.mxu0
        %v8843 = vadd.f32 %v8754, %v8842
        %8844 = vmatmul.bf16.gmra.mxu0 %v6217
        %v8845 = vpop.f32.mrf.mxu0
        %v8846 = vadd.f32 %v8757, %v8845
        %v8847 = vpop.f32.mrf.mxu0
        %v8848 = vadd.f32 %v8759, %v8847
        %8849 = vmatmul.bf16.gmra.mxu0 %v6229
        %v8850 = vpop.f32.mrf.mxu0
        %v8851 = vadd.f32 %v8762, %v8850
        %v8852 = vpop.f32.mrf.mxu0
        %v8853 = vadd.f32 %v8764, %v8852
        %8854 = vmatmul.bf16.gmra.mxu0 %v6241
        %v8855 = vpop.f32.mrf.mxu0
        %v8856 = vadd.f32 %v8767, %v8855
        %v8857 = vpop.f32.mrf.mxu0
        %v8858 = vadd.f32 %v8769, %v8857
        %8859 = vmatmul.bf16.gmra.mxu0 %v6253
        %v8860 = vpop.f32.mrf.mxu0
        %v8861 = vadd.f32 %v8772, %v8860
        %v8862 = vpop.f32.mrf.mxu0
        %v8863 = vadd.f32 %v8774, %v8862
        %8864 = vmatmul.bf16.gmra.mxu0 %v6265
        %v8865 = vpop.f32.mrf.mxu0
        %v8866 = vadd.f32 %v8777, %v8865
        %v8867 = vpop.f32.mrf.mxu0
        %v8868 = vadd.f32 %v8779, %v8867
        %8869 = vmatmul.bf16.gmra.mxu0 %v6277
        %v8870 = vpop.f32.mrf.mxu0
        %v8871 = vadd.f32 %v8782, %v8870
        %v8872 = vpop.f32.mrf.mxu0
        %v8873 = vadd.f32 %v8784, %v8872
        %8874 = vmatmul.bf16.gmra.mxu0 %v6289
        %v8875 = vpop.f32.mrf.mxu0
        %v8876 = vadd.f32 %v8787, %v8875
        %v8877 = vpop.f32.mrf.mxu0
        %v8878 = vadd.f32 %v8789, %v8877
        %8879 = vmatmul.bf16.gmra.mxu0 %v6301
        %v8880 = vpop.f32.mrf.mxu0
        %v8881 = vadd.f32 %v8792, %v8880
        %v8882 = vpop.f32.mrf.mxu0
        %v8883 = vadd.f32 %v8794, %v8882
        %8884 = vmatmul.bf16.gmra.mxu0 %v6313
        %v8885 = vpop.f32.mrf.mxu0
        %v8886 = vadd.f32 %v8797, %v8885
        %v8887 = vpop.f32.mrf.mxu0
        %v8888 = vadd.f32 %v8799, %v8887
        %8889 = vmatmul.bf16.gmra.mxu0 %v6325
        %v8890 = vpop.f32.mrf.mxu0
        %v8891 = vadd.f32 %v8802, %v8890
        %v8892 = vpop.f32.mrf.mxu0
        %v8893 = vadd.f32 %v8804, %v8892
        %8894 = vmatmul.bf16.gmra.mxu0 %v6337
        %v8895 = vpop.f32.mrf.mxu0
        %v8896 = vadd.f32 %v8807, %v8895
        %v8897 = vpop.f32.mrf.mxu0
        %v8898 = vadd.f32 %v8809, %v8897
        %8899 = vmatmul.bf16.gmra.mxu0 %v6349
        %v8900 = vpop.f32.mrf.mxu0
        %v8901 = vadd.f32 %v8812, %v8900
        %v8902 = vpop.f32.mrf.mxu0
        %v8903 = vadd.f32 %v8814, %v8902
        %8904 = vmatmul.bf16.gmra.mxu0 %v6361
        %v8905 = vpop.f32.mrf.mxu0
        %v8906 = vadd.f32 %v8817, %v8905
        %v8907 = vpop.f32.mrf.mxu0
        %v8908 = vadd.f32 %v8819, %v8907
        %8909 = vdwg.mxu0
        %8910 = vmatpush.bf16.msra.mxu0 %v7900
        %8911 = vmatpush.bf16.msra.mxu0 %v7897
        %8912 = vmatpush.bf16.msra.mxu0 %v7894
        %8913 = vmatpush.bf16.msra.mxu0 %v7891
        %8914 = vmatpush.bf16.msra.mxu0 %v7888
        %8915 = vmatpush.bf16.msra.mxu0 %v7885
        %8916 = vmatpush.bf16.msra.mxu0 %v7882
        %8917 = vmatpush.bf16.msra.mxu0 %v7879
        %8918 = vmatmul.bf16.gmra.mxu0 %v6182
        %v8919 = vpop.f32.mrf.mxu0
        %v8920 = vadd.f32 %v8831, %v8919
        %v8921 = vpop.f32.mrf.mxu0
        %v8922 = vadd.f32 %v8833, %v8921
        %8923 = vmatmul.bf16.gmra.mxu0 %v6194
        %v8924 = vpop.f32.mrf.mxu0
        %v8925 = vadd.f32 %v8836, %v8924
        %v8926 = vpop.f32.mrf.mxu0
        %v8927 = vadd.f32 %v8838, %v8926
        %8928 = vmatmul.bf16.gmra.mxu0 %v6206
        %v8929 = vpop.f32.mrf.mxu0
        %v8930 = vadd.f32 %v8841, %v8929
        %v8931 = vpop.f32.mrf.mxu0
        %v8932 = vadd.f32 %v8843, %v8931
        %8933 = vmatmul.bf16.gmra.mxu0 %v6218
        %v8934 = vpop.f32.mrf.mxu0
        %v8935 = vadd.f32 %v8846, %v8934
        %v8936 = vpop.f32.mrf.mxu0
        %v8937 = vadd.f32 %v8848, %v8936
        %8938 = vmatmul.bf16.gmra.mxu0 %v6230
        %v8939 = vpop.f32.mrf.mxu0
        %v8940 = vadd.f32 %v8851, %v8939
        %v8941 = vpop.f32.mrf.mxu0
        %v8942 = vadd.f32 %v8853, %v8941
        %8943 = vmatmul.bf16.gmra.mxu0 %v6242
        %v8944 = vpop.f32.mrf.mxu0
        %v8945 = vadd.f32 %v8856, %v8944
        %v8946 = vpop.f32.mrf.mxu0
        %v8947 = vadd.f32 %v8858, %v8946
        %8948 = vmatmul.bf16.gmra.mxu0 %v6254
        %v8949 = vpop.f32.mrf.mxu0
        %v8950 = vadd.f32 %v8861, %v8949
        %v8951 = vpop.f32.mrf.mxu0
        %v8952 = vadd.f32 %v8863, %v8951
        %8953 = vmatmul.bf16.gmra.mxu0 %v6266
        %v8954 = vpop.f32.mrf.mxu0
        %v8955 = vadd.f32 %v8866, %v8954
        %v8956 = vpop.f32.mrf.mxu0
        %v8957 = vadd.f32 %v8868, %v8956
        %8958 = vmatmul.bf16.gmra.mxu0 %v6278
        %v8959 = vpop.f32.mrf.mxu0
        %v8960 = vadd.f32 %v8871, %v8959
        %v8961 = vpop.f32.mrf.mxu0
        %v8962 = vadd.f32 %v8873, %v8961
        %8963 = vmatmul.bf16.gmra.mxu0 %v6290
        %v8964 = vpop.f32.mrf.mxu0
        %v8965 = vadd.f32 %v8876, %v8964
        %v8966 = vpop.f32.mrf.mxu0
        %v8967 = vadd.f32 %v8878, %v8966
        %8968 = vmatmul.bf16.gmra.mxu0 %v6302
        %v8969 = vpop.f32.mrf.mxu0
        %v8970 = vadd.f32 %v8881, %v8969
        %v8971 = vpop.f32.mrf.mxu0
        %v8972 = vadd.f32 %v8883, %v8971
        %8973 = vmatmul.bf16.gmra.mxu0 %v6314
        %v8974 = vpop.f32.mrf.mxu0
        %v8975 = vadd.f32 %v8886, %v8974
        %v8976 = vpop.f32.mrf.mxu0
        %v8977 = vadd.f32 %v8888, %v8976
        %8978 = vmatmul.bf16.gmra.mxu0 %v6326
        %v8979 = vpop.f32.mrf.mxu0
        %v8980 = vadd.f32 %v8891, %v8979
        %v8981 = vpop.f32.mrf.mxu0
        %v8982 = vadd.f32 %v8893, %v8981
        %8983 = vmatmul.bf16.gmra.mxu0 %v6338
        %v8984 = vpop.f32.mrf.mxu0
        %v8985 = vadd.f32 %v8896, %v8984
        %v8986 = vpop.f32.mrf.mxu0
        %v8987 = vadd.f32 %v8898, %v8986
        %8988 = vmatmul.bf16.gmra.mxu0 %v6350
        %v8989 = vpop.f32.mrf.mxu0
        %v8990 = vadd.f32 %v8901, %v8989
        %v8991 = vpop.f32.mrf.mxu0
        %v8992 = vadd.f32 %v8903, %v8991
        %8993 = vmatmul.bf16.gmra.mxu0 %v6362
        %v8994 = vpop.f32.mrf.mxu0
        %v8995 = vadd.f32 %v8906, %v8994
        %v8996 = vpop.f32.mrf.mxu0
        %v8997 = vadd.f32 %v8908, %v8996
        %8998 = vdwg.mxu0
        %8999 = vmatpush.bf16.msra.mxu0 %v7924
        %9000 = vmatpush.bf16.msra.mxu0 %v7921
        %9001 = vmatpush.bf16.msra.mxu0 %v7918
        %9002 = vmatpush.bf16.msra.mxu0 %v7915
        %9003 = vmatpush.bf16.msra.mxu0 %v7912
        %9004 = vmatpush.bf16.msra.mxu0 %v7909
        %9005 = vmatpush.bf16.msra.mxu0 %v7906
        %9006 = vmatpush.bf16.msra.mxu0 %v7903
        %9007 = vmatmul.bf16.gmra.mxu0 %v6183
        %v9008 = vpop.f32.mrf.mxu0
        %v9009 = vadd.f32 %v8920, %v9008
        %v9010 = vpop.f32.mrf.mxu0
        %v9011 = vadd.f32 %v8922, %v9010
        %9012 = vmatmul.bf16.gmra.mxu0 %v6195
        %v9013 = vpop.f32.mrf.mxu0
        %v9014 = vadd.f32 %v8925, %v9013
        %v9015 = vpop.f32.mrf.mxu0
        %v9016 = vadd.f32 %v8927, %v9015
        %9017 = vmatmul.bf16.gmra.mxu0 %v6207
        %v9018 = vpop.f32.mrf.mxu0
        %v9019 = vadd.f32 %v8930, %v9018
        %v9020 = vpop.f32.mrf.mxu0
        %v9021 = vadd.f32 %v8932, %v9020
        %9022 = vmatmul.bf16.gmra.mxu0 %v6219
        %v9023 = vpop.f32.mrf.mxu0
        %v9024 = vadd.f32 %v8935, %v9023
        %v9025 = vpop.f32.mrf.mxu0
        %v9026 = vadd.f32 %v8937, %v9025
        %9027 = vmatmul.bf16.gmra.mxu0 %v6231
        %v9028 = vpop.f32.mrf.mxu0
        %v9029 = vadd.f32 %v8940, %v9028
        %v9030 = vpop.f32.mrf.mxu0
        %v9031 = vadd.f32 %v8942, %v9030
        %9032 = vmatmul.bf16.gmra.mxu0 %v6243
        %v9033 = vpop.f32.mrf.mxu0
        %v9034 = vadd.f32 %v8945, %v9033
        %v9035 = vpop.f32.mrf.mxu0
        %v9036 = vadd.f32 %v8947, %v9035
        %9037 = vmatmul.bf16.gmra.mxu0 %v6255
        %v9038 = vpop.f32.mrf.mxu0
        %v9039 = vadd.f32 %v8950, %v9038
        %v9040 = vpop.f32.mrf.mxu0
        %v9041 = vadd.f32 %v8952, %v9040
        %9042 = vmatmul.bf16.gmra.mxu0 %v6267
        %v9043 = vpop.f32.mrf.mxu0
        %v9044 = vadd.f32 %v8955, %v9043
        %v9045 = vpop.f32.mrf.mxu0
        %v9046 = vadd.f32 %v8957, %v9045
        %9047 = vmatmul.bf16.gmra.mxu0 %v6279
        %v9048 = vpop.f32.mrf.mxu0
        %v9049 = vadd.f32 %v8960, %v9048
        %v9050 = vpop.f32.mrf.mxu0
        %v9051 = vadd.f32 %v8962, %v9050
        %9052 = vmatmul.bf16.gmra.mxu0 %v6291
        %v9053 = vpop.f32.mrf.mxu0
        %v9054 = vadd.f32 %v8965, %v9053
        %v9055 = vpop.f32.mrf.mxu0
        %v9056 = vadd.f32 %v8967, %v9055
        %9057 = vmatmul.bf16.gmra.mxu0 %v6303
        %v9058 = vpop.f32.mrf.mxu0
        %v9059 = vadd.f32 %v8970, %v9058
        %v9060 = vpop.f32.mrf.mxu0
        %v9061 = vadd.f32 %v8972, %v9060
        %9062 = vmatmul.bf16.gmra.mxu0 %v6315
        %v9063 = vpop.f32.mrf.mxu0
        %v9064 = vadd.f32 %v8975, %v9063
        %v9065 = vpop.f32.mrf.mxu0
        %v9066 = vadd.f32 %v8977, %v9065
        %9067 = vmatmul.bf16.gmra.mxu0 %v6327
        %v9068 = vpop.f32.mrf.mxu0
        %v9069 = vadd.f32 %v8980, %v9068
        %v9070 = vpop.f32.mrf.mxu0
        %v9071 = vadd.f32 %v8982, %v9070
        %9072 = vmatmul.bf16.gmra.mxu0 %v6339
        %v9073 = vpop.f32.mrf.mxu0
        %v9074 = vadd.f32 %v8985, %v9073
        %v9075 = vpop.f32.mrf.mxu0
        %v9076 = vadd.f32 %v8987, %v9075
        %9077 = vmatmul.bf16.gmra.mxu0 %v6351
        %v9078 = vpop.f32.mrf.mxu0
        %v9079 = vadd.f32 %v8990, %v9078
        %v9080 = vpop.f32.mrf.mxu0
        %v9081 = vadd.f32 %v8992, %v9080
        %9082 = vmatmul.bf16.gmra.mxu0 %v6363
        %v9083 = vpop.f32.mrf.mxu0
        %v9084 = vadd.f32 %v8995, %v9083
        %v9085 = vpop.f32.mrf.mxu0
        %v9086 = vadd.f32 %v8997, %v9085
        %9087 = vdwg.mxu0
        %9088 = vmatpush.bf16.msra.mxu0 %v7948
        %9089 = vmatpush.bf16.msra.mxu0 %v7945
        %9090 = vmatpush.bf16.msra.mxu0 %v7942
        %9091 = vmatpush.bf16.msra.mxu0 %v7939
        %9092 = vmatpush.bf16.msra.mxu0 %v7936
        %9093 = vmatpush.bf16.msra.mxu0 %v7933
        %9094 = vmatpush.bf16.msra.mxu0 %v7930
        %9095 = vmatpush.bf16.msra.mxu0 %v7927
        %9096 = vmatmul.bf16.gmra.mxu0 %v6184
        %v9097 = vpop.f32.mrf.mxu0
        %v9098 = vadd.f32 %v9009, %v9097
        %v9099 = vpop.f32.mrf.mxu0
        %v9100 = vadd.f32 %v9011, %v9099
        %9101 = vmatmul.bf16.gmra.mxu0 %v6196
        %v9102 = vpop.f32.mrf.mxu0
        %v9103 = vadd.f32 %v9014, %v9102
        %v9104 = vpop.f32.mrf.mxu0
        %v9105 = vadd.f32 %v9016, %v9104
        %9106 = vmatmul.bf16.gmra.mxu0 %v6208
        %v9107 = vpop.f32.mrf.mxu0
        %v9108 = vadd.f32 %v9019, %v9107
        %v9109 = vpop.f32.mrf.mxu0
        %v9110 = vadd.f32 %v9021, %v9109
        %9111 = vmatmul.bf16.gmra.mxu0 %v6220
        %v9112 = vpop.f32.mrf.mxu0
        %v9113 = vadd.f32 %v9024, %v9112
        %v9114 = vpop.f32.mrf.mxu0
        %v9115 = vadd.f32 %v9026, %v9114
        %9116 = vmatmul.bf16.gmra.mxu0 %v6232
        %v9117 = vpop.f32.mrf.mxu0
        %v9118 = vadd.f32 %v9029, %v9117
        %v9119 = vpop.f32.mrf.mxu0
        %v9120 = vadd.f32 %v9031, %v9119
        %9121 = vmatmul.bf16.gmra.mxu0 %v6244
        %v9122 = vpop.f32.mrf.mxu0
        %v9123 = vadd.f32 %v9034, %v9122
        %v9124 = vpop.f32.mrf.mxu0
        %v9125 = vadd.f32 %v9036, %v9124
        %9126 = vmatmul.bf16.gmra.mxu0 %v6256
        %v9127 = vpop.f32.mrf.mxu0
        %v9128 = vadd.f32 %v9039, %v9127
        %v9129 = vpop.f32.mrf.mxu0
        %v9130 = vadd.f32 %v9041, %v9129
        %9131 = vmatmul.bf16.gmra.mxu0 %v6268
        %v9132 = vpop.f32.mrf.mxu0
        %v9133 = vadd.f32 %v9044, %v9132
        %v9134 = vpop.f32.mrf.mxu0
        %v9135 = vadd.f32 %v9046, %v9134
        %9136 = vmatmul.bf16.gmra.mxu0 %v6280
        %v9137 = vpop.f32.mrf.mxu0
        %v9138 = vadd.f32 %v9049, %v9137
        %v9139 = vpop.f32.mrf.mxu0
        %v9140 = vadd.f32 %v9051, %v9139
        %9141 = vmatmul.bf16.gmra.mxu0 %v6292
        %v9142 = vpop.f32.mrf.mxu0
        %v9143 = vadd.f32 %v9054, %v9142
        %v9144 = vpop.f32.mrf.mxu0
        %v9145 = vadd.f32 %v9056, %v9144
        %9146 = vmatmul.bf16.gmra.mxu0 %v6304
        %v9147 = vpop.f32.mrf.mxu0
        %v9148 = vadd.f32 %v9059, %v9147
        %v9149 = vpop.f32.mrf.mxu0
        %v9150 = vadd.f32 %v9061, %v9149
        %9151 = vmatmul.bf16.gmra.mxu0 %v6316
        %v9152 = vpop.f32.mrf.mxu0
        %v9153 = vadd.f32 %v9064, %v9152
        %v9154 = vpop.f32.mrf.mxu0
        %v9155 = vadd.f32 %v9066, %v9154
        %9156 = vmatmul.bf16.gmra.mxu0 %v6328
        %v9157 = vpop.f32.mrf.mxu0
        %v9158 = vadd.f32 %v9069, %v9157
        %v9159 = vpop.f32.mrf.mxu0
        %v9160 = vadd.f32 %v9071, %v9159
        %9161 = vmatmul.bf16.gmra.mxu0 %v6340
        %v9162 = vpop.f32.mrf.mxu0
        %v9163 = vadd.f32 %v9074, %v9162
        %v9164 = vpop.f32.mrf.mxu0
        %v9165 = vadd.f32 %v9076, %v9164
        %9166 = vmatmul.bf16.gmra.mxu0 %v6352
        %v9167 = vpop.f32.mrf.mxu0
        %v9168 = vadd.f32 %v9079, %v9167
        %v9169 = vpop.f32.mrf.mxu0
        %v9170 = vadd.f32 %v9081, %v9169
        %9171 = vmatmul.bf16.gmra.mxu0 %v6364
        %v9172 = vpop.f32.mrf.mxu0
        %v9173 = vadd.f32 %v9084, %v9172
        %v9174 = vpop.f32.mrf.mxu0
        %v9175 = vadd.f32 %v9086, %v9174
        %9176 = vdwg.mxu0
        %9177 = vmatpush.bf16.msra.mxu0 %v7972
        %9178 = vmatpush.bf16.msra.mxu0 %v7969
        %9179 = vmatpush.bf16.msra.mxu0 %v7966
        %9180 = vmatpush.bf16.msra.mxu0 %v7963
        %9181 = vmatpush.bf16.msra.mxu0 %v7960
        %9182 = vmatpush.bf16.msra.mxu0 %v7957
        %9183 = vmatpush.bf16.msra.mxu0 %v7954
        %9184 = vmatpush.bf16.msra.mxu0 %v7951
        %9185 = vmatmul.bf16.gmra.mxu0 %v6185
        %v9186 = vpop.f32.mrf.mxu0
        %v9187 = vadd.f32 %v9098, %v9186
        %v9188 = vpop.f32.mrf.mxu0
        %v9189 = vadd.f32 %v9100, %v9188
        %9190 = vmatmul.bf16.gmra.mxu0 %v6197
        %v9191 = vpop.f32.mrf.mxu0
        %v9192 = vadd.f32 %v9103, %v9191
        %v9193 = vpop.f32.mrf.mxu0
        %v9194 = vadd.f32 %v9105, %v9193
        %9195 = vmatmul.bf16.gmra.mxu0 %v6209
        %v9196 = vpop.f32.mrf.mxu0
        %v9197 = vadd.f32 %v9108, %v9196
        %v9198 = vpop.f32.mrf.mxu0
        %v9199 = vadd.f32 %v9110, %v9198
        %9200 = vmatmul.bf16.gmra.mxu0 %v6221
        %v9201 = vpop.f32.mrf.mxu0
        %v9202 = vadd.f32 %v9113, %v9201
        %v9203 = vpop.f32.mrf.mxu0
        %v9204 = vadd.f32 %v9115, %v9203
        %9205 = vmatmul.bf16.gmra.mxu0 %v6233
        %v9206 = vpop.f32.mrf.mxu0
        %v9207 = vadd.f32 %v9118, %v9206
        %v9208 = vpop.f32.mrf.mxu0
        %v9209 = vadd.f32 %v9120, %v9208
        %9210 = vmatmul.bf16.gmra.mxu0 %v6245
        %v9211 = vpop.f32.mrf.mxu0
        %v9212 = vadd.f32 %v9123, %v9211
        %v9213 = vpop.f32.mrf.mxu0
        %v9214 = vadd.f32 %v9125, %v9213
        %9215 = vmatmul.bf16.gmra.mxu0 %v6257
        %v9216 = vpop.f32.mrf.mxu0
        %v9217 = vadd.f32 %v9128, %v9216
        %v9218 = vpop.f32.mrf.mxu0
        %v9219 = vadd.f32 %v9130, %v9218
        %9220 = vmatmul.bf16.gmra.mxu0 %v6269
        %v9221 = vpop.f32.mrf.mxu0
        %v9222 = vadd.f32 %v9133, %v9221
        %v9223 = vpop.f32.mrf.mxu0
        %v9224 = vadd.f32 %v9135, %v9223
        %9225 = vmatmul.bf16.gmra.mxu0 %v6281
        %v9226 = vpop.f32.mrf.mxu0
        %v9227 = vadd.f32 %v9138, %v9226
        %v9228 = vpop.f32.mrf.mxu0
        %v9229 = vadd.f32 %v9140, %v9228
        %9230 = vmatmul.bf16.gmra.mxu0 %v6293
        %v9231 = vpop.f32.mrf.mxu0
        %v9232 = vadd.f32 %v9143, %v9231
        %v9233 = vpop.f32.mrf.mxu0
        %v9234 = vadd.f32 %v9145, %v9233
        %9235 = vmatmul.bf16.gmra.mxu0 %v6305
        %v9236 = vpop.f32.mrf.mxu0
        %v9237 = vadd.f32 %v9148, %v9236
        %v9238 = vpop.f32.mrf.mxu0
        %v9239 = vadd.f32 %v9150, %v9238
        %9240 = vmatmul.bf16.gmra.mxu0 %v6317
        %v9241 = vpop.f32.mrf.mxu0
        %v9242 = vadd.f32 %v9153, %v9241
        %v9243 = vpop.f32.mrf.mxu0
        %v9244 = vadd.f32 %v9155, %v9243
        %9245 = vmatmul.bf16.gmra.mxu0 %v6329
        %v9246 = vpop.f32.mrf.mxu0
        %v9247 = vadd.f32 %v9158, %v9246
        %v9248 = vpop.f32.mrf.mxu0
        %v9249 = vadd.f32 %v9160, %v9248
        %9250 = vmatmul.bf16.gmra.mxu0 %v6341
        %v9251 = vpop.f32.mrf.mxu0
        %v9252 = vadd.f32 %v9163, %v9251
        %v9253 = vpop.f32.mrf.mxu0
        %v9254 = vadd.f32 %v9165, %v9253
        %9255 = vmatmul.bf16.gmra.mxu0 %v6353
        %v9256 = vpop.f32.mrf.mxu0
        %v9257 = vadd.f32 %v9168, %v9256
        %v9258 = vpop.f32.mrf.mxu0
        %v9259 = vadd.f32 %v9170, %v9258
        %9260 = vmatmul.bf16.gmra.mxu0 %v6365
        %v9261 = vpop.f32.mrf.mxu0
        %v9262 = vadd.f32 %v9173, %v9261
        %v9263 = vpop.f32.mrf.mxu0
        %v9264 = vadd.f32 %v9175, %v9263
        %9265 = vdwg.mxu0
        %9266 = vmatpush.bf16.msra.mxu0 %v7996
        %9267 = vmatpush.bf16.msra.mxu0 %v7993
        %9268 = vmatpush.bf16.msra.mxu0 %v7990
        %9269 = vmatpush.bf16.msra.mxu0 %v7987
        %9270 = vmatpush.bf16.msra.mxu0 %v7984
        %9271 = vmatpush.bf16.msra.mxu0 %v7981
        %9272 = vmatpush.bf16.msra.mxu0 %v7978
        %9273 = vmatpush.bf16.msra.mxu0 %v7975
        %9274 = vmatmul.bf16.gmra.mxu0 %v6186
        %v9275 = vpop.f32.mrf.mxu0
        %v9276 = vadd.f32 %v9187, %v9275
        %v9277 = vpop.f32.mrf.mxu0
        %v9278 = vadd.f32 %v9189, %v9277
        %9279 = vmatmul.bf16.gmra.mxu0 %v6198
        %v9280 = vpop.f32.mrf.mxu0
        %v9281 = vadd.f32 %v9192, %v9280
        %v9282 = vpop.f32.mrf.mxu0
        %v9283 = vadd.f32 %v9194, %v9282
        %9284 = vmatmul.bf16.gmra.mxu0 %v6210
        %v9285 = vpop.f32.mrf.mxu0
        %v9286 = vadd.f32 %v9197, %v9285
        %v9287 = vpop.f32.mrf.mxu0
        %v9288 = vadd.f32 %v9199, %v9287
        %9289 = vmatmul.bf16.gmra.mxu0 %v6222
        %v9290 = vpop.f32.mrf.mxu0
        %v9291 = vadd.f32 %v9202, %v9290
        %v9292 = vpop.f32.mrf.mxu0
        %v9293 = vadd.f32 %v9204, %v9292
        %9294 = vmatmul.bf16.gmra.mxu0 %v6234
        %v9295 = vpop.f32.mrf.mxu0
        %v9296 = vadd.f32 %v9207, %v9295
        %v9297 = vpop.f32.mrf.mxu0
        %v9298 = vadd.f32 %v9209, %v9297
        %9299 = vmatmul.bf16.gmra.mxu0 %v6246
        %v9300 = vpop.f32.mrf.mxu0
        %v9301 = vadd.f32 %v9212, %v9300
        %v9302 = vpop.f32.mrf.mxu0
        %v9303 = vadd.f32 %v9214, %v9302
        %9304 = vmatmul.bf16.gmra.mxu0 %v6258
        %v9305 = vpop.f32.mrf.mxu0
        %v9306 = vadd.f32 %v9217, %v9305
        %v9307 = vpop.f32.mrf.mxu0
        %v9308 = vadd.f32 %v9219, %v9307
        %9309 = vmatmul.bf16.gmra.mxu0 %v6270
        %v9310 = vpop.f32.mrf.mxu0
        %v9311 = vadd.f32 %v9222, %v9310
        %v9312 = vpop.f32.mrf.mxu0
        %v9313 = vadd.f32 %v9224, %v9312
        %9314 = vmatmul.bf16.gmra.mxu0 %v6282
        %v9315 = vpop.f32.mrf.mxu0
        %v9316 = vadd.f32 %v9227, %v9315
        %v9317 = vpop.f32.mrf.mxu0
        %v9318 = vadd.f32 %v9229, %v9317
        %9319 = vmatmul.bf16.gmra.mxu0 %v6294
        %v9320 = vpop.f32.mrf.mxu0
        %v9321 = vadd.f32 %v9232, %v9320
        %v9322 = vpop.f32.mrf.mxu0
        %v9323 = vadd.f32 %v9234, %v9322
        %9324 = vmatmul.bf16.gmra.mxu0 %v6306
        %v9325 = vpop.f32.mrf.mxu0
        %v9326 = vadd.f32 %v9237, %v9325
        %v9327 = vpop.f32.mrf.mxu0
        %v9328 = vadd.f32 %v9239, %v9327
        %9329 = vmatmul.bf16.gmra.mxu0 %v6318
        %v9330 = vpop.f32.mrf.mxu0
        %v9331 = vadd.f32 %v9242, %v9330
        %v9332 = vpop.f32.mrf.mxu0
        %v9333 = vadd.f32 %v9244, %v9332
        %9334 = vmatmul.bf16.gmra.mxu0 %v6330
        %v9335 = vpop.f32.mrf.mxu0
        %v9336 = vadd.f32 %v9247, %v9335
        %v9337 = vpop.f32.mrf.mxu0
        %v9338 = vadd.f32 %v9249, %v9337
        %9339 = vmatmul.bf16.gmra.mxu0 %v6342
        %v9340 = vpop.f32.mrf.mxu0
        %v9341 = vadd.f32 %v9252, %v9340
        %v9342 = vpop.f32.mrf.mxu0
        %v9343 = vadd.f32 %v9254, %v9342
        %9344 = vmatmul.bf16.gmra.mxu0 %v6354
        %v9345 = vpop.f32.mrf.mxu0
        %v9346 = vadd.f32 %v9257, %v9345
        %v9347 = vpop.f32.mrf.mxu0
        %v9348 = vadd.f32 %v9259, %v9347
        %9349 = vmatmul.bf16.gmra.mxu0 %v6366
        %v9350 = vpop.f32.mrf.mxu0
        %v9351 = vadd.f32 %v9262, %v9350
        %v9352 = vpop.f32.mrf.mxu0
        %v9353 = vadd.f32 %v9264, %v9352
        %9354 = vdwg.mxu0
        %9355 = vmatpush.bf16.msra.mxu0 %v7733
        %9356 = vmatpush.bf16.msra.mxu0 %v7730
        %9357 = vmatpush.bf16.msra.mxu0 %v7727
        %9358 = vmatpush.bf16.msra.mxu0 %v7724
        %9359 = vmatpush.bf16.msra.mxu0 %v7721
        %9360 = vmatpush.bf16.msra.mxu0 %v7718
        %9361 = vmatpush.bf16.msra.mxu0 %v7715
        %9362 = vmatpush.bf16.msra.mxu0 %v7712
        %9363 = vmatmul.bf16.gmra.mxu0 %v6175
        %v9364 = vpop.f32.mrf.mxu0
        %v9365 = vadd.f32 0.0, %v9364
        %v9366 = vpop.f32.mrf.mxu0
        %v9367 = vadd.f32 0.0, %v9366
        %9368 = vmatmul.bf16.gmra.mxu0 %v6187
        %v9369 = vpop.f32.mrf.mxu0
        %v9370 = vadd.f32 0.0, %v9369
        %v9371 = vpop.f32.mrf.mxu0
        %v9372 = vadd.f32 0.0, %v9371
        %9373 = vmatmul.bf16.gmra.mxu0 %v6199
        %v9374 = vpop.f32.mrf.mxu0
        %v9375 = vadd.f32 0.0, %v9374
        %v9376 = vpop.f32.mrf.mxu0
        %v9377 = vadd.f32 0.0, %v9376
        %9378 = vmatmul.bf16.gmra.mxu0 %v6211
        %v9379 = vpop.f32.mrf.mxu0
        %v9380 = vadd.f32 0.0, %v9379
        %v9381 = vpop.f32.mrf.mxu0
        %v9382 = vadd.f32 0.0, %v9381
        %9383 = vmatmul.bf16.gmra.mxu0 %v6223
        %v9384 = vpop.f32.mrf.mxu0
        %v9385 = vadd.f32 0.0, %v9384
        %v9386 = vpop.f32.mrf.mxu0
        %v9387 = vadd.f32 0.0, %v9386
        %9388 = vmatmul.bf16.gmra.mxu0 %v6235
        %v9389 = vpop.f32.mrf.mxu0
        %v9390 = vadd.f32 0.0, %v9389
        %v9391 = vpop.f32.mrf.mxu0
        %v9392 = vadd.f32 0.0, %v9391
        %9393 = vmatmul.bf16.gmra.mxu0 %v6247
        %v9394 = vpop.f32.mrf.mxu0
        %v9395 = vadd.f32 0.0, %v9394
        %v9396 = vpop.f32.mrf.mxu0
        %v9397 = vadd.f32 0.0, %v9396
        %9398 = vmatmul.bf16.gmra.mxu0 %v6259
        %v9399 = vpop.f32.mrf.mxu0
        %v9400 = vadd.f32 0.0, %v9399
        %v9401 = vpop.f32.mrf.mxu0
        %v9402 = vadd.f32 0.0, %v9401
        %9403 = vmatmul.bf16.gmra.mxu0 %v6271
        %v9404 = vpop.f32.mrf.mxu0
        %v9405 = vadd.f32 0.0, %v9404
        %v9406 = vpop.f32.mrf.mxu0
        %v9407 = vadd.f32 0.0, %v9406
        %9408 = vmatmul.bf16.gmra.mxu0 %v6283
        %v9409 = vpop.f32.mrf.mxu0
        %v9410 = vadd.f32 0.0, %v9409
        %v9411 = vpop.f32.mrf.mxu0
        %v9412 = vadd.f32 0.0, %v9411
        %9413 = vmatmul.bf16.gmra.mxu0 %v6295
        %v9414 = vpop.f32.mrf.mxu0
        %v9415 = vadd.f32 0.0, %v9414
        %v9416 = vpop.f32.mrf.mxu0
        %v9417 = vadd.f32 0.0, %v9416
        %9418 = vmatmul.bf16.gmra.mxu0 %v6307
        %v9419 = vpop.f32.mrf.mxu0
        %v9420 = vadd.f32 0.0, %v9419
        %v9421 = vpop.f32.mrf.mxu0
        %v9422 = vadd.f32 0.0, %v9421
        %9423 = vmatmul.bf16.gmra.mxu0 %v6319
        %v9424 = vpop.f32.mrf.mxu0
        %v9425 = vadd.f32 0.0, %v9424
        %v9426 = vpop.f32.mrf.mxu0
        %v9427 = vadd.f32 0.0, %v9426
        %9428 = vmatmul.bf16.gmra.mxu0 %v6331
        %v9429 = vpop.f32.mrf.mxu0
        %v9430 = vadd.f32 0.0, %v9429
        %v9431 = vpop.f32.mrf.mxu0
        %v9432 = vadd.f32 0.0, %v9431
        %9433 = vmatmul.bf16.gmra.mxu0 %v6343
        %v9434 = vpop.f32.mrf.mxu0
        %v9435 = vadd.f32 0.0, %v9434
        %v9436 = vpop.f32.mrf.mxu0
        %v9437 = vadd.f32 0.0, %v9436
        %9438 = vmatmul.bf16.gmra.mxu0 %v6355
        %v9439 = vpop.f32.mrf.mxu0
        %v9440 = vadd.f32 0.0, %v9439
        %v9441 = vpop.f32.mrf.mxu0
        %v9442 = vadd.f32 0.0, %v9441
        %9443 = vdwg.mxu0
        %9444 = vmatpush.bf16.msra.mxu0 %v7757
        %9445 = vmatpush.bf16.msra.mxu0 %v7754
        %9446 = vmatpush.bf16.msra.mxu0 %v7751
        %9447 = vmatpush.bf16.msra.mxu0 %v7748
        %9448 = vmatpush.bf16.msra.mxu0 %v7745
        %9449 = vmatpush.bf16.msra.mxu0 %v7742
        %9450 = vmatpush.bf16.msra.mxu0 %v7739
        %9451 = vmatpush.bf16.msra.mxu0 %v7736
        %9452 = vmatmul.bf16.gmra.mxu0 %v6176
        %v9453 = vpop.f32.mrf.mxu0
        %v9454 = vadd.f32 %v9365, %v9453
        %v9455 = vpop.f32.mrf.mxu0
        %v9456 = vadd.f32 %v9367, %v9455
        %9457 = vmatmul.bf16.gmra.mxu0 %v6188
        %v9458 = vpop.f32.mrf.mxu0
        %v9459 = vadd.f32 %v9370, %v9458
        %v9460 = vpop.f32.mrf.mxu0
        %v9461 = vadd.f32 %v9372, %v9460
        %9462 = vmatmul.bf16.gmra.mxu0 %v6200
        %v9463 = vpop.f32.mrf.mxu0
        %v9464 = vadd.f32 %v9375, %v9463
        %v9465 = vpop.f32.mrf.mxu0
        %v9466 = vadd.f32 %v9377, %v9465
        %9467 = vmatmul.bf16.gmra.mxu0 %v6212
        %v9468 = vpop.f32.mrf.mxu0
        %v9469 = vadd.f32 %v9380, %v9468
        %v9470 = vpop.f32.mrf.mxu0
        %v9471 = vadd.f32 %v9382, %v9470
        %9472 = vmatmul.bf16.gmra.mxu0 %v6224
        %v9473 = vpop.f32.mrf.mxu0
        %v9474 = vadd.f32 %v9385, %v9473
        %v9475 = vpop.f32.mrf.mxu0
        %v9476 = vadd.f32 %v9387, %v9475
        %9477 = vmatmul.bf16.gmra.mxu0 %v6236
        %v9478 = vpop.f32.mrf.mxu0
        %v9479 = vadd.f32 %v9390, %v9478
        %v9480 = vpop.f32.mrf.mxu0
        %v9481 = vadd.f32 %v9392, %v9480
        %9482 = vmatmul.bf16.gmra.mxu0 %v6248
        %v9483 = vpop.f32.mrf.mxu0
        %v9484 = vadd.f32 %v9395, %v9483
        %v9485 = vpop.f32.mrf.mxu0
        %v9486 = vadd.f32 %v9397, %v9485
        %9487 = vmatmul.bf16.gmra.mxu0 %v6260
        %v9488 = vpop.f32.mrf.mxu0
        %v9489 = vadd.f32 %v9400, %v9488
        %v9490 = vpop.f32.mrf.mxu0
        %v9491 = vadd.f32 %v9402, %v9490
        %9492 = vmatmul.bf16.gmra.mxu0 %v6272
        %v9493 = vpop.f32.mrf.mxu0
        %v9494 = vadd.f32 %v9405, %v9493
        %v9495 = vpop.f32.mrf.mxu0
        %v9496 = vadd.f32 %v9407, %v9495
        %9497 = vmatmul.bf16.gmra.mxu0 %v6284
        %v9498 = vpop.f32.mrf.mxu0
        %v9499 = vadd.f32 %v9410, %v9498
        %v9500 = vpop.f32.mrf.mxu0
        %v9501 = vadd.f32 %v9412, %v9500
        %9502 = vmatmul.bf16.gmra.mxu0 %v6296
        %v9503 = vpop.f32.mrf.mxu0
        %v9504 = vadd.f32 %v9415, %v9503
        %v9505 = vpop.f32.mrf.mxu0
        %v9506 = vadd.f32 %v9417, %v9505
        %9507 = vmatmul.bf16.gmra.mxu0 %v6308
        %v9508 = vpop.f32.mrf.mxu0
        %v9509 = vadd.f32 %v9420, %v9508
        %v9510 = vpop.f32.mrf.mxu0
        %v9511 = vadd.f32 %v9422, %v9510
        %9512 = vmatmul.bf16.gmra.mxu0 %v6320
        %v9513 = vpop.f32.mrf.mxu0
        %v9514 = vadd.f32 %v9425, %v9513
        %v9515 = vpop.f32.mrf.mxu0
        %v9516 = vadd.f32 %v9427, %v9515
        %9517 = vmatmul.bf16.gmra.mxu0 %v6332
        %v9518 = vpop.f32.mrf.mxu0
        %v9519 = vadd.f32 %v9430, %v9518
        %v9520 = vpop.f32.mrf.mxu0
        %v9521 = vadd.f32 %v9432, %v9520
        %9522 = vmatmul.bf16.gmra.mxu0 %v6344
        %v9523 = vpop.f32.mrf.mxu0
        %v9524 = vadd.f32 %v9435, %v9523
        %v9525 = vpop.f32.mrf.mxu0
        %v9526 = vadd.f32 %v9437, %v9525
        %9527 = vmatmul.bf16.gmra.mxu0 %v6356
        %v9528 = vpop.f32.mrf.mxu0
        %v9529 = vadd.f32 %v9440, %v9528
        %v9530 = vpop.f32.mrf.mxu0
        %v9531 = vadd.f32 %v9442, %v9530
        %9532 = vdwg.mxu0
        %9533 = vmatpush.bf16.msra.mxu0 %v7781
        %9534 = vmatpush.bf16.msra.mxu0 %v7778
        %9535 = vmatpush.bf16.msra.mxu0 %v7775
        %9536 = vmatpush.bf16.msra.mxu0 %v7772
        %9537 = vmatpush.bf16.msra.mxu0 %v7769
        %9538 = vmatpush.bf16.msra.mxu0 %v7766
        %9539 = vmatpush.bf16.msra.mxu0 %v7763
        %9540 = vmatpush.bf16.msra.mxu0 %v7760
        %9541 = vmatmul.bf16.gmra.mxu0 %v6177
        %v9542 = vpop.f32.mrf.mxu0
        %v9543 = vadd.f32 %v9454, %v9542
        %v9544 = vpop.f32.mrf.mxu0
        %v9545 = vadd.f32 %v9456, %v9544
        %9546 = vmatmul.bf16.gmra.mxu0 %v6189
        %v9547 = vpop.f32.mrf.mxu0
        %v9548 = vadd.f32 %v9459, %v9547
        %v9549 = vpop.f32.mrf.mxu0
        %v9550 = vadd.f32 %v9461, %v9549
        %9551 = vmatmul.bf16.gmra.mxu0 %v6201
        %v9552 = vpop.f32.mrf.mxu0
        %v9553 = vadd.f32 %v9464, %v9552
        %v9554 = vpop.f32.mrf.mxu0
        %v9555 = vadd.f32 %v9466, %v9554
        %9556 = vmatmul.bf16.gmra.mxu0 %v6213
        %v9557 = vpop.f32.mrf.mxu0
        %v9558 = vadd.f32 %v9469, %v9557
        %v9559 = vpop.f32.mrf.mxu0
        %v9560 = vadd.f32 %v9471, %v9559
        %9561 = vmatmul.bf16.gmra.mxu0 %v6225
        %v9562 = vpop.f32.mrf.mxu0
        %v9563 = vadd.f32 %v9474, %v9562
        %v9564 = vpop.f32.mrf.mxu0
        %v9565 = vadd.f32 %v9476, %v9564
        %9566 = vmatmul.bf16.gmra.mxu0 %v6237
        %v9567 = vpop.f32.mrf.mxu0
        %v9568 = vadd.f32 %v9479, %v9567
        %v9569 = vpop.f32.mrf.mxu0
        %v9570 = vadd.f32 %v9481, %v9569
        %9571 = vmatmul.bf16.gmra.mxu0 %v6249
        %v9572 = vpop.f32.mrf.mxu0
        %v9573 = vadd.f32 %v9484, %v9572
        %v9574 = vpop.f32.mrf.mxu0
        %v9575 = vadd.f32 %v9486, %v9574
        %9576 = vmatmul.bf16.gmra.mxu0 %v6261
        %v9577 = vpop.f32.mrf.mxu0
        %v9578 = vadd.f32 %v9489, %v9577
        %v9579 = vpop.f32.mrf.mxu0
        %v9580 = vadd.f32 %v9491, %v9579
        %9581 = vmatmul.bf16.gmra.mxu0 %v6273
        %v9582 = vpop.f32.mrf.mxu0
        %v9583 = vadd.f32 %v9494, %v9582
        %v9584 = vpop.f32.mrf.mxu0
        %v9585 = vadd.f32 %v9496, %v9584
        %9586 = vmatmul.bf16.gmra.mxu0 %v6285
        %v9587 = vpop.f32.mrf.mxu0
        %v9588 = vadd.f32 %v9499, %v9587
        %v9589 = vpop.f32.mrf.mxu0
        %v9590 = vadd.f32 %v9501, %v9589
        %9591 = vmatmul.bf16.gmra.mxu0 %v6297
        %v9592 = vpop.f32.mrf.mxu0
        %v9593 = vadd.f32 %v9504, %v9592
        %v9594 = vpop.f32.mrf.mxu0
        %v9595 = vadd.f32 %v9506, %v9594
        %9596 = vmatmul.bf16.gmra.mxu0 %v6309
        %v9597 = vpop.f32.mrf.mxu0
        %v9598 = vadd.f32 %v9509, %v9597
        %v9599 = vpop.f32.mrf.mxu0
        %v9600 = vadd.f32 %v9511, %v9599
        %9601 = vmatmul.bf16.gmra.mxu0 %v6321
        %v9602 = vpop.f32.mrf.mxu0
        %v9603 = vadd.f32 %v9514, %v9602
        %v9604 = vpop.f32.mrf.mxu0
        %v9605 = vadd.f32 %v9516, %v9604
        %9606 = vmatmul.bf16.gmra.mxu0 %v6333
        %v9607 = vpop.f32.mrf.mxu0
        %v9608 = vadd.f32 %v9519, %v9607
        %v9609 = vpop.f32.mrf.mxu0
        %v9610 = vadd.f32 %v9521, %v9609
        %9611 = vmatmul.bf16.gmra.mxu0 %v6345
        %v9612 = vpop.f32.mrf.mxu0
        %v9613 = vadd.f32 %v9524, %v9612
        %v9614 = vpop.f32.mrf.mxu0
        %v9615 = vadd.f32 %v9526, %v9614
        %9616 = vmatmul.bf16.gmra.mxu0 %v6357
        %v9617 = vpop.f32.mrf.mxu0
        %v9618 = vadd.f32 %v9529, %v9617
        %v9619 = vpop.f32.mrf.mxu0
        %v9620 = vadd.f32 %v9531, %v9619
        %9621 = vdwg.mxu0
        %9622 = vmatpush.bf16.msra.mxu0 %v7805
        %9623 = vmatpush.bf16.msra.mxu0 %v7802
        %9624 = vmatpush.bf16.msra.mxu0 %v7799
        %9625 = vmatpush.bf16.msra.mxu0 %v7796
        %9626 = vmatpush.bf16.msra.mxu0 %v7793
        %9627 = vmatpush.bf16.msra.mxu0 %v7790
        %9628 = vmatpush.bf16.msra.mxu0 %v7787
        %9629 = vmatpush.bf16.msra.mxu0 %v7784
        %9630 = vmatmul.bf16.gmra.mxu0 %v6178
        %v9631 = vpop.f32.mrf.mxu0
        %v9632 = vadd.f32 %v9543, %v9631
        %v9633 = vpop.f32.mrf.mxu0
        %v9634 = vadd.f32 %v9545, %v9633
        %9635 = vmatmul.bf16.gmra.mxu0 %v6190
        %v9636 = vpop.f32.mrf.mxu0
        %v9637 = vadd.f32 %v9548, %v9636
        %v9638 = vpop.f32.mrf.mxu0
        %v9639 = vadd.f32 %v9550, %v9638
        %9640 = vmatmul.bf16.gmra.mxu0 %v6202
        %v9641 = vpop.f32.mrf.mxu0
        %v9642 = vadd.f32 %v9553, %v9641
        %v9643 = vpop.f32.mrf.mxu0
        %v9644 = vadd.f32 %v9555, %v9643
        %9645 = vmatmul.bf16.gmra.mxu0 %v6214
        %v9646 = vpop.f32.mrf.mxu0
        %v9647 = vadd.f32 %v9558, %v9646
        %v9648 = vpop.f32.mrf.mxu0
        %v9649 = vadd.f32 %v9560, %v9648
        %9650 = vmatmul.bf16.gmra.mxu0 %v6226
        %v9651 = vpop.f32.mrf.mxu0
        %v9652 = vadd.f32 %v9563, %v9651
        %v9653 = vpop.f32.mrf.mxu0
        %v9654 = vadd.f32 %v9565, %v9653
        %9655 = vmatmul.bf16.gmra.mxu0 %v6238
        %v9656 = vpop.f32.mrf.mxu0
        %v9657 = vadd.f32 %v9568, %v9656
        %v9658 = vpop.f32.mrf.mxu0
        %v9659 = vadd.f32 %v9570, %v9658
        %9660 = vmatmul.bf16.gmra.mxu0 %v6250
        %v9661 = vpop.f32.mrf.mxu0
        %v9662 = vadd.f32 %v9573, %v9661
        %v9663 = vpop.f32.mrf.mxu0
        %v9664 = vadd.f32 %v9575, %v9663
        %9665 = vmatmul.bf16.gmra.mxu0 %v6262
        %v9666 = vpop.f32.mrf.mxu0
        %v9667 = vadd.f32 %v9578, %v9666
        %v9668 = vpop.f32.mrf.mxu0
        %v9669 = vadd.f32 %v9580, %v9668
        %9670 = vmatmul.bf16.gmra.mxu0 %v6274
        %v9671 = vpop.f32.mrf.mxu0
        %v9672 = vadd.f32 %v9583, %v9671
        %v9673 = vpop.f32.mrf.mxu0
        %v9674 = vadd.f32 %v9585, %v9673
        %9675 = vmatmul.bf16.gmra.mxu0 %v6286
        %v9676 = vpop.f32.mrf.mxu0
        %v9677 = vadd.f32 %v9588, %v9676
        %v9678 = vpop.f32.mrf.mxu0
        %v9679 = vadd.f32 %v9590, %v9678
        %9680 = vmatmul.bf16.gmra.mxu0 %v6298
        %v9681 = vpop.f32.mrf.mxu0
        %v9682 = vadd.f32 %v9593, %v9681
        %v9683 = vpop.f32.mrf.mxu0
        %v9684 = vadd.f32 %v9595, %v9683
        %9685 = vmatmul.bf16.gmra.mxu0 %v6310
        %v9686 = vpop.f32.mrf.mxu0
        %v9687 = vadd.f32 %v9598, %v9686
        %v9688 = vpop.f32.mrf.mxu0
        %v9689 = vadd.f32 %v9600, %v9688
        %9690 = vmatmul.bf16.gmra.mxu0 %v6322
        %v9691 = vpop.f32.mrf.mxu0
        %v9692 = vadd.f32 %v9603, %v9691
        %v9693 = vpop.f32.mrf.mxu0
        %v9694 = vadd.f32 %v9605, %v9693
        %9695 = vmatmul.bf16.gmra.mxu0 %v6334
        %v9696 = vpop.f32.mrf.mxu0
        %v9697 = vadd.f32 %v9608, %v9696
        %v9698 = vpop.f32.mrf.mxu0
        %v9699 = vadd.f32 %v9610, %v9698
        %9700 = vmatmul.bf16.gmra.mxu0 %v6346
        %v9701 = vpop.f32.mrf.mxu0
        %v9702 = vadd.f32 %v9613, %v9701
        %v9703 = vpop.f32.mrf.mxu0
        %v9704 = vadd.f32 %v9615, %v9703
        %9705 = vmatmul.bf16.gmra.mxu0 %v6358
        %v9706 = vpop.f32.mrf.mxu0
        %v9707 = vadd.f32 %v9618, %v9706
        %v9708 = vpop.f32.mrf.mxu0
        %v9709 = vadd.f32 %v9620, %v9708
        %9710 = vdwg.mxu0
        %9711 = vmatpush.bf16.msra.mxu0 %v7829
        %9712 = vmatpush.bf16.msra.mxu0 %v7826
        %9713 = vmatpush.bf16.msra.mxu0 %v7823
        %9714 = vmatpush.bf16.msra.mxu0 %v7820
        %9715 = vmatpush.bf16.msra.mxu0 %v7817
        %9716 = vmatpush.bf16.msra.mxu0 %v7814
        %9717 = vmatpush.bf16.msra.mxu0 %v7811
        %9718 = vmatpush.bf16.msra.mxu0 %v7808
        %9719 = vmatmul.bf16.gmra.mxu0 %v6179
        %v9720 = vpop.f32.mrf.mxu0
        %v9721 = vadd.f32 %v9632, %v9720
        %v9722 = vpop.f32.mrf.mxu0
        %v9723 = vadd.f32 %v9634, %v9722
        %9724 = vmatmul.bf16.gmra.mxu0 %v6191
        %v9725 = vpop.f32.mrf.mxu0
        %v9726 = vadd.f32 %v9637, %v9725
        %v9727 = vpop.f32.mrf.mxu0
        %v9728 = vadd.f32 %v9639, %v9727
        %9729 = vmatmul.bf16.gmra.mxu0 %v6203
        %v9730 = vpop.f32.mrf.mxu0
        %v9731 = vadd.f32 %v9642, %v9730
        %v9732 = vpop.f32.mrf.mxu0
        %v9733 = vadd.f32 %v9644, %v9732
        %9734 = vmatmul.bf16.gmra.mxu0 %v6215
        %v9735 = vpop.f32.mrf.mxu0
        %v9736 = vadd.f32 %v9647, %v9735
        %v9737 = vpop.f32.mrf.mxu0
        %v9738 = vadd.f32 %v9649, %v9737
        %9739 = vmatmul.bf16.gmra.mxu0 %v6227
        %v9740 = vpop.f32.mrf.mxu0
        %v9741 = vadd.f32 %v9652, %v9740
        %v9742 = vpop.f32.mrf.mxu0
        %v9743 = vadd.f32 %v9654, %v9742
        %9744 = vmatmul.bf16.gmra.mxu0 %v6239
        %v9745 = vpop.f32.mrf.mxu0
        %v9746 = vadd.f32 %v9657, %v9745
        %v9747 = vpop.f32.mrf.mxu0
        %v9748 = vadd.f32 %v9659, %v9747
        %9749 = vmatmul.bf16.gmra.mxu0 %v6251
        %v9750 = vpop.f32.mrf.mxu0
        %v9751 = vadd.f32 %v9662, %v9750
        %v9752 = vpop.f32.mrf.mxu0
        %v9753 = vadd.f32 %v9664, %v9752
        %9754 = vmatmul.bf16.gmra.mxu0 %v6263
        %v9755 = vpop.f32.mrf.mxu0
        %v9756 = vadd.f32 %v9667, %v9755
        %v9757 = vpop.f32.mrf.mxu0
        %v9758 = vadd.f32 %v9669, %v9757
        %9759 = vmatmul.bf16.gmra.mxu0 %v6275
        %v9760 = vpop.f32.mrf.mxu0
        %v9761 = vadd.f32 %v9672, %v9760
        %v9762 = vpop.f32.mrf.mxu0
        %v9763 = vadd.f32 %v9674, %v9762
        %9764 = vmatmul.bf16.gmra.mxu0 %v6287
        %v9765 = vpop.f32.mrf.mxu0
        %v9766 = vadd.f32 %v9677, %v9765
        %v9767 = vpop.f32.mrf.mxu0
        %v9768 = vadd.f32 %v9679, %v9767
        %9769 = vmatmul.bf16.gmra.mxu0 %v6299
        %v9770 = vpop.f32.mrf.mxu0
        %v9771 = vadd.f32 %v9682, %v9770
        %v9772 = vpop.f32.mrf.mxu0
        %v9773 = vadd.f32 %v9684, %v9772
        %9774 = vmatmul.bf16.gmra.mxu0 %v6311
        %v9775 = vpop.f32.mrf.mxu0
        %v9776 = vadd.f32 %v9687, %v9775
        %v9777 = vpop.f32.mrf.mxu0
        %v9778 = vadd.f32 %v9689, %v9777
        %9779 = vmatmul.bf16.gmra.mxu0 %v6323
        %v9780 = vpop.f32.mrf.mxu0
        %v9781 = vadd.f32 %v9692, %v9780
        %v9782 = vpop.f32.mrf.mxu0
        %v9783 = vadd.f32 %v9694, %v9782
        %9784 = vmatmul.bf16.gmra.mxu0 %v6335
        %v9785 = vpop.f32.mrf.mxu0
        %v9786 = vadd.f32 %v9697, %v9785
        %v9787 = vpop.f32.mrf.mxu0
        %v9788 = vadd.f32 %v9699, %v9787
        %9789 = vmatmul.bf16.gmra.mxu0 %v6347
        %v9790 = vpop.f32.mrf.mxu0
        %v9791 = vadd.f32 %v9702, %v9790
        %v9792 = vpop.f32.mrf.mxu0
        %v9793 = vadd.f32 %v9704, %v9792
        %9794 = vmatmul.bf16.gmra.mxu0 %v6359
        %v9795 = vpop.f32.mrf.mxu0
        %v9796 = vadd.f32 %v9707, %v9795
        %v9797 = vpop.f32.mrf.mxu0
        %v9798 = vadd.f32 %v9709, %v9797
        %9799 = vdwg.mxu0
        %9800 = vmatpush.bf16.msra.mxu0 %v7853
        %9801 = vmatpush.bf16.msra.mxu0 %v7850
        %9802 = vmatpush.bf16.msra.mxu0 %v7847
        %9803 = vmatpush.bf16.msra.mxu0 %v7844
        %9804 = vmatpush.bf16.msra.mxu0 %v7841
        %9805 = vmatpush.bf16.msra.mxu0 %v7838
        %9806 = vmatpush.bf16.msra.mxu0 %v7835
        %9807 = vmatpush.bf16.msra.mxu0 %v7832
        %9808 = vmatmul.bf16.gmra.mxu0 %v6180
        %v9809 = vpop.f32.mrf.mxu0
        %v9810 = vadd.f32 %v9721, %v9809
        %v9811 = vpop.f32.mrf.mxu0
        %v9812 = vadd.f32 %v9723, %v9811
        %9813 = vmatmul.bf16.gmra.mxu0 %v6192
        %v9814 = vpop.f32.mrf.mxu0
        %v9815 = vadd.f32 %v9726, %v9814
        %v9816 = vpop.f32.mrf.mxu0
        %v9817 = vadd.f32 %v9728, %v9816
        %9818 = vmatmul.bf16.gmra.mxu0 %v6204
        %v9819 = vpop.f32.mrf.mxu0
        %v9820 = vadd.f32 %v9731, %v9819
        %v9821 = vpop.f32.mrf.mxu0
        %v9822 = vadd.f32 %v9733, %v9821
        %9823 = vmatmul.bf16.gmra.mxu0 %v6216
        %v9824 = vpop.f32.mrf.mxu0
        %v9825 = vadd.f32 %v9736, %v9824
        %v9826 = vpop.f32.mrf.mxu0
        %v9827 = vadd.f32 %v9738, %v9826
        %9828 = vmatmul.bf16.gmra.mxu0 %v6228
        %v9829 = vpop.f32.mrf.mxu0
        %v9830 = vadd.f32 %v9741, %v9829
        %v9831 = vpop.f32.mrf.mxu0
        %v9832 = vadd.f32 %v9743, %v9831
        %9833 = vmatmul.bf16.gmra.mxu0 %v6240
        %v9834 = vpop.f32.mrf.mxu0
        %v9835 = vadd.f32 %v9746, %v9834
        %v9836 = vpop.f32.mrf.mxu0
        %v9837 = vadd.f32 %v9748, %v9836
        %9838 = vmatmul.bf16.gmra.mxu0 %v6252
        %v9839 = vpop.f32.mrf.mxu0
        %v9840 = vadd.f32 %v9751, %v9839
        %v9841 = vpop.f32.mrf.mxu0
        %v9842 = vadd.f32 %v9753, %v9841
        %9843 = vmatmul.bf16.gmra.mxu0 %v6264
        %v9844 = vpop.f32.mrf.mxu0
        %v9845 = vadd.f32 %v9756, %v9844
        %v9846 = vpop.f32.mrf.mxu0
        %v9847 = vadd.f32 %v9758, %v9846
        %9848 = vmatmul.bf16.gmra.mxu0 %v6276
        %v9849 = vpop.f32.mrf.mxu0
        %v9850 = vadd.f32 %v9761, %v9849
        %v9851 = vpop.f32.mrf.mxu0
        %v9852 = vadd.f32 %v9763, %v9851
        %9853 = vmatmul.bf16.gmra.mxu0 %v6288
        %v9854 = vpop.f32.mrf.mxu0
        %v9855 = vadd.f32 %v9766, %v9854
        %v9856 = vpop.f32.mrf.mxu0
        %v9857 = vadd.f32 %v9768, %v9856
        %9858 = vmatmul.bf16.gmra.mxu0 %v6300
        %v9859 = vpop.f32.mrf.mxu0
        %v9860 = vadd.f32 %v9771, %v9859
        %v9861 = vpop.f32.mrf.mxu0
        %v9862 = vadd.f32 %v9773, %v9861
        %9863 = vmatmul.bf16.gmra.mxu0 %v6312
        %v9864 = vpop.f32.mrf.mxu0
        %v9865 = vadd.f32 %v9776, %v9864
        %v9866 = vpop.f32.mrf.mxu0
        %v9867 = vadd.f32 %v9778, %v9866
        %9868 = vmatmul.bf16.gmra.mxu0 %v6324
        %v9869 = vpop.f32.mrf.mxu0
        %v9870 = vadd.f32 %v9781, %v9869
        %v9871 = vpop.f32.mrf.mxu0
        %v9872 = vadd.f32 %v9783, %v9871
        %9873 = vmatmul.bf16.gmra.mxu0 %v6336
        %v9874 = vpop.f32.mrf.mxu0
        %v9875 = vadd.f32 %v9786, %v9874
        %v9876 = vpop.f32.mrf.mxu0
        %v9877 = vadd.f32 %v9788, %v9876
        %9878 = vmatmul.bf16.gmra.mxu0 %v6348
        %v9879 = vpop.f32.mrf.mxu0
        %v9880 = vadd.f32 %v9791, %v9879
        %v9881 = vpop.f32.mrf.mxu0
        %v9882 = vadd.f32 %v9793, %v9881
        %9883 = vmatmul.bf16.gmra.mxu0 %v6360
        %v9884 = vpop.f32.mrf.mxu0
        %v9885 = vadd.f32 %v9796, %v9884
        %v9886 = vpop.f32.mrf.mxu0
        %v9887 = vadd.f32 %v9798, %v9886
        %9888 = vdwg.mxu0
        %9889 = vmatpush.bf16.msra.mxu0 %v7877
        %9890 = vmatpush.bf16.msra.mxu0 %v7874
        %9891 = vmatpush.bf16.msra.mxu0 %v7871
        %9892 = vmatpush.bf16.msra.mxu0 %v7868
        %9893 = vmatpush.bf16.msra.mxu0 %v7865
        %9894 = vmatpush.bf16.msra.mxu0 %v7862
        %9895 = vmatpush.bf16.msra.mxu0 %v7859
        %9896 = vmatpush.bf16.msra.mxu0 %v7856
        %9897 = vmatmul.bf16.gmra.mxu0 %v6181
        %v9898 = vpop.f32.mrf.mxu0
        %v9899 = vadd.f32 %v9810, %v9898
        %v9900 = vpop.f32.mrf.mxu0
        %v9901 = vadd.f32 %v9812, %v9900
        %9902 = vmatmul.bf16.gmra.mxu0 %v6193
        %v9903 = vpop.f32.mrf.mxu0
        %v9904 = vadd.f32 %v9815, %v9903
        %v9905 = vpop.f32.mrf.mxu0
        %v9906 = vadd.f32 %v9817, %v9905
        %9907 = vmatmul.bf16.gmra.mxu0 %v6205
        %v9908 = vpop.f32.mrf.mxu0
        %v9909 = vadd.f32 %v9820, %v9908
        %v9910 = vpop.f32.mrf.mxu0
        %v9911 = vadd.f32 %v9822, %v9910
        %9912 = vmatmul.bf16.gmra.mxu0 %v6217
        %v9913 = vpop.f32.mrf.mxu0
        %v9914 = vadd.f32 %v9825, %v9913
        %v9915 = vpop.f32.mrf.mxu0
        %v9916 = vadd.f32 %v9827, %v9915
        %9917 = vmatmul.bf16.gmra.mxu0 %v6229
        %v9918 = vpop.f32.mrf.mxu0
        %v9919 = vadd.f32 %v9830, %v9918
        %v9920 = vpop.f32.mrf.mxu0
        %v9921 = vadd.f32 %v9832, %v9920
        %9922 = vmatmul.bf16.gmra.mxu0 %v6241
        %v9923 = vpop.f32.mrf.mxu0
        %v9924 = vadd.f32 %v9835, %v9923
        %v9925 = vpop.f32.mrf.mxu0
        %v9926 = vadd.f32 %v9837, %v9925
        %9927 = vmatmul.bf16.gmra.mxu0 %v6253
        %v9928 = vpop.f32.mrf.mxu0
        %v9929 = vadd.f32 %v9840, %v9928
        %v9930 = vpop.f32.mrf.mxu0
        %v9931 = vadd.f32 %v9842, %v9930
        %9932 = vmatmul.bf16.gmra.mxu0 %v6265
        %v9933 = vpop.f32.mrf.mxu0
        %v9934 = vadd.f32 %v9845, %v9933
        %v9935 = vpop.f32.mrf.mxu0
        %v9936 = vadd.f32 %v9847, %v9935
        %9937 = vmatmul.bf16.gmra.mxu0 %v6277
        %v9938 = vpop.f32.mrf.mxu0
        %v9939 = vadd.f32 %v9850, %v9938
        %v9940 = vpop.f32.mrf.mxu0
        %v9941 = vadd.f32 %v9852, %v9940
        %9942 = vmatmul.bf16.gmra.mxu0 %v6289
        %v9943 = vpop.f32.mrf.mxu0
        %v9944 = vadd.f32 %v9855, %v9943
        %v9945 = vpop.f32.mrf.mxu0
        %v9946 = vadd.f32 %v9857, %v9945
        %9947 = vmatmul.bf16.gmra.mxu0 %v6301
        %v9948 = vpop.f32.mrf.mxu0
        %v9949 = vadd.f32 %v9860, %v9948
        %v9950 = vpop.f32.mrf.mxu0
        %v9951 = vadd.f32 %v9862, %v9950
        %9952 = vmatmul.bf16.gmra.mxu0 %v6313
        %v9953 = vpop.f32.mrf.mxu0
        %v9954 = vadd.f32 %v9865, %v9953
        %v9955 = vpop.f32.mrf.mxu0
        %v9956 = vadd.f32 %v9867, %v9955
        %9957 = vmatmul.bf16.gmra.mxu0 %v6325
        %v9958 = vpop.f32.mrf.mxu0
        %v9959 = vadd.f32 %v9870, %v9958
        %v9960 = vpop.f32.mrf.mxu0
        %v9961 = vadd.f32 %v9872, %v9960
        %9962 = vmatmul.bf16.gmra.mxu0 %v6337
        %v9963 = vpop.f32.mrf.mxu0
        %v9964 = vadd.f32 %v9875, %v9963
        %v9965 = vpop.f32.mrf.mxu0
        %v9966 = vadd.f32 %v9877, %v9965
        %9967 = vmatmul.bf16.gmra.mxu0 %v6349
        %v9968 = vpop.f32.mrf.mxu0
        %v9969 = vadd.f32 %v9880, %v9968
        %v9970 = vpop.f32.mrf.mxu0
        %v9971 = vadd.f32 %v9882, %v9970
        %9972 = vmatmul.bf16.gmra.mxu0 %v6361
        %v9973 = vpop.f32.mrf.mxu0
        %v9974 = vadd.f32 %v9885, %v9973
        %v9975 = vpop.f32.mrf.mxu0
        %v9976 = vadd.f32 %v9887, %v9975
        %9977 = vdwg.mxu0
        %9978 = vmatpush.bf16.msra.mxu0 %v7901
        %9979 = vmatpush.bf16.msra.mxu0 %v7898
        %9980 = vmatpush.bf16.msra.mxu0 %v7895
        %9981 = vmatpush.bf16.msra.mxu0 %v7892
        %9982 = vmatpush.bf16.msra.mxu0 %v7889
        %9983 = vmatpush.bf16.msra.mxu0 %v7886
        %9984 = vmatpush.bf16.msra.mxu0 %v7883
        %9985 = vmatpush.bf16.msra.mxu0 %v7880
        %9986 = vmatmul.bf16.gmra.mxu0 %v6182
        %v9987 = vpop.f32.mrf.mxu0
        %v9988 = vadd.f32 %v9899, %v9987
        %v9989 = vpop.f32.mrf.mxu0
        %v9990 = vadd.f32 %v9901, %v9989
        %9991 = vmatmul.bf16.gmra.mxu0 %v6194
        %v9992 = vpop.f32.mrf.mxu0
        %v9993 = vadd.f32 %v9904, %v9992
        %v9994 = vpop.f32.mrf.mxu0
        %v9995 = vadd.f32 %v9906, %v9994
        %9996 = vmatmul.bf16.gmra.mxu0 %v6206
        %v9997 = vpop.f32.mrf.mxu0
        %v9998 = vadd.f32 %v9909, %v9997
        %v9999 = vpop.f32.mrf.mxu0
        %v10000 = vadd.f32 %v9911, %v9999
        %10001 = vmatmul.bf16.gmra.mxu0 %v6218
        %v10002 = vpop.f32.mrf.mxu0
        %v10003 = vadd.f32 %v9914, %v10002
        %v10004 = vpop.f32.mrf.mxu0
        %v10005 = vadd.f32 %v9916, %v10004
        %10006 = vmatmul.bf16.gmra.mxu0 %v6230
        %v10007 = vpop.f32.mrf.mxu0
        %v10008 = vadd.f32 %v9919, %v10007
        %v10009 = vpop.f32.mrf.mxu0
        %v10010 = vadd.f32 %v9921, %v10009
        %10011 = vmatmul.bf16.gmra.mxu0 %v6242
        %v10012 = vpop.f32.mrf.mxu0
        %v10013 = vadd.f32 %v9924, %v10012
        %v10014 = vpop.f32.mrf.mxu0
        %v10015 = vadd.f32 %v9926, %v10014
        %10016 = vmatmul.bf16.gmra.mxu0 %v6254
        %v10017 = vpop.f32.mrf.mxu0
        %v10018 = vadd.f32 %v9929, %v10017
        %v10019 = vpop.f32.mrf.mxu0
        %v10020 = vadd.f32 %v9931, %v10019
        %10021 = vmatmul.bf16.gmra.mxu0 %v6266
        %v10022 = vpop.f32.mrf.mxu0
        %v10023 = vadd.f32 %v9934, %v10022
        %v10024 = vpop.f32.mrf.mxu0
        %v10025 = vadd.f32 %v9936, %v10024
        %10026 = vmatmul.bf16.gmra.mxu0 %v6278
        %v10027 = vpop.f32.mrf.mxu0
        %v10028 = vadd.f32 %v9939, %v10027
        %v10029 = vpop.f32.mrf.mxu0
        %v10030 = vadd.f32 %v9941, %v10029
        %10031 = vmatmul.bf16.gmra.mxu0 %v6290
        %v10032 = vpop.f32.mrf.mxu0
        %v10033 = vadd.f32 %v9944, %v10032
        %v10034 = vpop.f32.mrf.mxu0
        %v10035 = vadd.f32 %v9946, %v10034
        %10036 = vmatmul.bf16.gmra.mxu0 %v6302
        %v10037 = vpop.f32.mrf.mxu0
        %v10038 = vadd.f32 %v9949, %v10037
        %v10039 = vpop.f32.mrf.mxu0
        %v10040 = vadd.f32 %v9951, %v10039
        %10041 = vmatmul.bf16.gmra.mxu0 %v6314
        %v10042 = vpop.f32.mrf.mxu0
        %v10043 = vadd.f32 %v9954, %v10042
        %v10044 = vpop.f32.mrf.mxu0
        %v10045 = vadd.f32 %v9956, %v10044
        %10046 = vmatmul.bf16.gmra.mxu0 %v6326
        %v10047 = vpop.f32.mrf.mxu0
        %v10048 = vadd.f32 %v9959, %v10047
        %v10049 = vpop.f32.mrf.mxu0
        %v10050 = vadd.f32 %v9961, %v10049
        %10051 = vmatmul.bf16.gmra.mxu0 %v6338
        %v10052 = vpop.f32.mrf.mxu0
        %v10053 = vadd.f32 %v9964, %v10052
        %v10054 = vpop.f32.mrf.mxu0
        %v10055 = vadd.f32 %v9966, %v10054
        %10056 = vmatmul.bf16.gmra.mxu0 %v6350
        %v10057 = vpop.f32.mrf.mxu0
        %v10058 = vadd.f32 %v9969, %v10057
        %v10059 = vpop.f32.mrf.mxu0
        %v10060 = vadd.f32 %v9971, %v10059
        %10061 = vmatmul.bf16.gmra.mxu0 %v6362
        %v10062 = vpop.f32.mrf.mxu0
        %v10063 = vadd.f32 %v9974, %v10062
        %v10064 = vpop.f32.mrf.mxu0
        %v10065 = vadd.f32 %v9976, %v10064
        %10066 = vdwg.mxu0
        %10067 = vmatpush.bf16.msra.mxu0 %v7925
        %10068 = vmatpush.bf16.msra.mxu0 %v7922
        %10069 = vmatpush.bf16.msra.mxu0 %v7919
        %10070 = vmatpush.bf16.msra.mxu0 %v7916
        %10071 = vmatpush.bf16.msra.mxu0 %v7913
        %10072 = vmatpush.bf16.msra.mxu0 %v7910
        %10073 = vmatpush.bf16.msra.mxu0 %v7907
        %10074 = vmatpush.bf16.msra.mxu0 %v7904
        %10075 = vmatmul.bf16.gmra.mxu0 %v6183
        %v10076 = vpop.f32.mrf.mxu0
        %v10077 = vadd.f32 %v9988, %v10076
        %v10078 = vpop.f32.mrf.mxu0
        %v10079 = vadd.f32 %v9990, %v10078
        %10080 = vmatmul.bf16.gmra.mxu0 %v6195
        %v10081 = vpop.f32.mrf.mxu0
        %v10082 = vadd.f32 %v9993, %v10081
        %v10083 = vpop.f32.mrf.mxu0
        %v10084 = vadd.f32 %v9995, %v10083
        %10085 = vmatmul.bf16.gmra.mxu0 %v6207
        %v10086 = vpop.f32.mrf.mxu0
        %v10087 = vadd.f32 %v9998, %v10086
        %v10088 = vpop.f32.mrf.mxu0
        %v10089 = vadd.f32 %v10000, %v10088
        %10090 = vmatmul.bf16.gmra.mxu0 %v6219
        %v10091 = vpop.f32.mrf.mxu0
        %v10092 = vadd.f32 %v10003, %v10091
        %v10093 = vpop.f32.mrf.mxu0
        %v10094 = vadd.f32 %v10005, %v10093
        %10095 = vmatmul.bf16.gmra.mxu0 %v6231
        %v10096 = vpop.f32.mrf.mxu0
        %v10097 = vadd.f32 %v10008, %v10096
        %v10098 = vpop.f32.mrf.mxu0
        %v10099 = vadd.f32 %v10010, %v10098
        %10100 = vmatmul.bf16.gmra.mxu0 %v6243
        %v10101 = vpop.f32.mrf.mxu0
        %v10102 = vadd.f32 %v10013, %v10101
        %v10103 = vpop.f32.mrf.mxu0
        %v10104 = vadd.f32 %v10015, %v10103
        %10105 = vmatmul.bf16.gmra.mxu0 %v6255
        %v10106 = vpop.f32.mrf.mxu0
        %v10107 = vadd.f32 %v10018, %v10106
        %v10108 = vpop.f32.mrf.mxu0
        %v10109 = vadd.f32 %v10020, %v10108
        %10110 = vmatmul.bf16.gmra.mxu0 %v6267
        %v10111 = vpop.f32.mrf.mxu0
        %v10112 = vadd.f32 %v10023, %v10111
        %v10113 = vpop.f32.mrf.mxu0
        %v10114 = vadd.f32 %v10025, %v10113
        %10115 = vmatmul.bf16.gmra.mxu0 %v6279
        %v10116 = vpop.f32.mrf.mxu0
        %v10117 = vadd.f32 %v10028, %v10116
        %v10118 = vpop.f32.mrf.mxu0
        %v10119 = vadd.f32 %v10030, %v10118
        %10120 = vmatmul.bf16.gmra.mxu0 %v6291
        %v10121 = vpop.f32.mrf.mxu0
        %v10122 = vadd.f32 %v10033, %v10121
        %v10123 = vpop.f32.mrf.mxu0
        %v10124 = vadd.f32 %v10035, %v10123
        %10125 = vmatmul.bf16.gmra.mxu0 %v6303
        %v10126 = vpop.f32.mrf.mxu0
        %v10127 = vadd.f32 %v10038, %v10126
        %v10128 = vpop.f32.mrf.mxu0
        %v10129 = vadd.f32 %v10040, %v10128
        %10130 = vmatmul.bf16.gmra.mxu0 %v6315
        %v10131 = vpop.f32.mrf.mxu0
        %v10132 = vadd.f32 %v10043, %v10131
        %v10133 = vpop.f32.mrf.mxu0
        %v10134 = vadd.f32 %v10045, %v10133
        %10135 = vmatmul.bf16.gmra.mxu0 %v6327
        %v10136 = vpop.f32.mrf.mxu0
        %v10137 = vadd.f32 %v10048, %v10136
        %v10138 = vpop.f32.mrf.mxu0
        %v10139 = vadd.f32 %v10050, %v10138
        %10140 = vmatmul.bf16.gmra.mxu0 %v6339
        %v10141 = vpop.f32.mrf.mxu0
        %v10142 = vadd.f32 %v10053, %v10141
        %v10143 = vpop.f32.mrf.mxu0
        %v10144 = vadd.f32 %v10055, %v10143
        %10145 = vmatmul.bf16.gmra.mxu0 %v6351
        %v10146 = vpop.f32.mrf.mxu0
        %v10147 = vadd.f32 %v10058, %v10146
        %v10148 = vpop.f32.mrf.mxu0
        %v10149 = vadd.f32 %v10060, %v10148
        %10150 = vmatmul.bf16.gmra.mxu0 %v6363
        %v10151 = vpop.f32.mrf.mxu0
        %v10152 = vadd.f32 %v10063, %v10151
        %v10153 = vpop.f32.mrf.mxu0
        %v10154 = vadd.f32 %v10065, %v10153
        %10155 = vdwg.mxu0
        %10156 = vmatpush.bf16.msra.mxu0 %v7949
        %10157 = vmatpush.bf16.msra.mxu0 %v7946
        %10158 = vmatpush.bf16.msra.mxu0 %v7943
        %10159 = vmatpush.bf16.msra.mxu0 %v7940
        %10160 = vmatpush.bf16.msra.mxu0 %v7937
        %10161 = vmatpush.bf16.msra.mxu0 %v7934
        %10162 = vmatpush.bf16.msra.mxu0 %v7931
        %10163 = vmatpush.bf16.msra.mxu0 %v7928
        %10164 = vmatmul.bf16.gmra.mxu0 %v6184
        %v10165 = vpop.f32.mrf.mxu0
        %v10166 = vadd.f32 %v10077, %v10165
        %v10167 = vpop.f32.mrf.mxu0
        %v10168 = vadd.f32 %v10079, %v10167
        %10169 = vmatmul.bf16.gmra.mxu0 %v6196
        %v10170 = vpop.f32.mrf.mxu0
        %v10171 = vadd.f32 %v10082, %v10170
        %v10172 = vpop.f32.mrf.mxu0
        %v10173 = vadd.f32 %v10084, %v10172
        %10174 = vmatmul.bf16.gmra.mxu0 %v6208
        %v10175 = vpop.f32.mrf.mxu0
        %v10176 = vadd.f32 %v10087, %v10175
        %v10177 = vpop.f32.mrf.mxu0
        %v10178 = vadd.f32 %v10089, %v10177
        %10179 = vmatmul.bf16.gmra.mxu0 %v6220
        %v10180 = vpop.f32.mrf.mxu0
        %v10181 = vadd.f32 %v10092, %v10180
        %v10182 = vpop.f32.mrf.mxu0
        %v10183 = vadd.f32 %v10094, %v10182
        %10184 = vmatmul.bf16.gmra.mxu0 %v6232
        %v10185 = vpop.f32.mrf.mxu0
        %v10186 = vadd.f32 %v10097, %v10185
        %v10187 = vpop.f32.mrf.mxu0
        %v10188 = vadd.f32 %v10099, %v10187
        %10189 = vmatmul.bf16.gmra.mxu0 %v6244
        %v10190 = vpop.f32.mrf.mxu0
        %v10191 = vadd.f32 %v10102, %v10190
        %v10192 = vpop.f32.mrf.mxu0
        %v10193 = vadd.f32 %v10104, %v10192
        %10194 = vmatmul.bf16.gmra.mxu0 %v6256
        %v10195 = vpop.f32.mrf.mxu0
        %v10196 = vadd.f32 %v10107, %v10195
        %v10197 = vpop.f32.mrf.mxu0
        %v10198 = vadd.f32 %v10109, %v10197
        %10199 = vmatmul.bf16.gmra.mxu0 %v6268
        %v10200 = vpop.f32.mrf.mxu0
        %v10201 = vadd.f32 %v10112, %v10200
        %v10202 = vpop.f32.mrf.mxu0
        %v10203 = vadd.f32 %v10114, %v10202
        %10204 = vmatmul.bf16.gmra.mxu0 %v6280
        %v10205 = vpop.f32.mrf.mxu0
        %v10206 = vadd.f32 %v10117, %v10205
        %v10207 = vpop.f32.mrf.mxu0
        %v10208 = vadd.f32 %v10119, %v10207
        %10209 = vmatmul.bf16.gmra.mxu0 %v6292
        %v10210 = vpop.f32.mrf.mxu0
        %v10211 = vadd.f32 %v10122, %v10210
        %v10212 = vpop.f32.mrf.mxu0
        %v10213 = vadd.f32 %v10124, %v10212
        %10214 = vmatmul.bf16.gmra.mxu0 %v6304
        %v10215 = vpop.f32.mrf.mxu0
        %v10216 = vadd.f32 %v10127, %v10215
        %v10217 = vpop.f32.mrf.mxu0
        %v10218 = vadd.f32 %v10129, %v10217
        %10219 = vmatmul.bf16.gmra.mxu0 %v6316
        %v10220 = vpop.f32.mrf.mxu0
        %v10221 = vadd.f32 %v10132, %v10220
        %v10222 = vpop.f32.mrf.mxu0
        %v10223 = vadd.f32 %v10134, %v10222
        %10224 = vmatmul.bf16.gmra.mxu0 %v6328
        %v10225 = vpop.f32.mrf.mxu0
        %v10226 = vadd.f32 %v10137, %v10225
        %v10227 = vpop.f32.mrf.mxu0
        %v10228 = vadd.f32 %v10139, %v10227
        %10229 = vmatmul.bf16.gmra.mxu0 %v6340
        %v10230 = vpop.f32.mrf.mxu0
        %v10231 = vadd.f32 %v10142, %v10230
        %v10232 = vpop.f32.mrf.mxu0
        %v10233 = vadd.f32 %v10144, %v10232
        %10234 = vmatmul.bf16.gmra.mxu0 %v6352
        %v10235 = vpop.f32.mrf.mxu0
        %v10236 = vadd.f32 %v10147, %v10235
        %v10237 = vpop.f32.mrf.mxu0
        %v10238 = vadd.f32 %v10149, %v10237
        %10239 = vmatmul.bf16.gmra.mxu0 %v6364
        %v10240 = vpop.f32.mrf.mxu0
        %v10241 = vadd.f32 %v10152, %v10240
        %v10242 = vpop.f32.mrf.mxu0
        %v10243 = vadd.f32 %v10154, %v10242
        %10244 = vdwg.mxu0
        %10245 = vmatpush.bf16.msra.mxu0 %v7973
        %10246 = vmatpush.bf16.msra.mxu0 %v7970
        %10247 = vmatpush.bf16.msra.mxu0 %v7967
        %10248 = vmatpush.bf16.msra.mxu0 %v7964
        %10249 = vmatpush.bf16.msra.mxu0 %v7961
        %10250 = vmatpush.bf16.msra.mxu0 %v7958
        %10251 = vmatpush.bf16.msra.mxu0 %v7955
        %10252 = vmatpush.bf16.msra.mxu0 %v7952
        %10253 = vmatmul.bf16.gmra.mxu0 %v6185
        %v10254 = vpop.f32.mrf.mxu0
        %v10255 = vadd.f32 %v10166, %v10254
        %v10256 = vpop.f32.mrf.mxu0
        %v10257 = vadd.f32 %v10168, %v10256
        %10258 = vmatmul.bf16.gmra.mxu0 %v6197
        %v10259 = vpop.f32.mrf.mxu0
        %v10260 = vadd.f32 %v10171, %v10259
        %v10261 = vpop.f32.mrf.mxu0
        %v10262 = vadd.f32 %v10173, %v10261
        %10263 = vmatmul.bf16.gmra.mxu0 %v6209
        %v10264 = vpop.f32.mrf.mxu0
        %v10265 = vadd.f32 %v10176, %v10264
        %v10266 = vpop.f32.mrf.mxu0
        %v10267 = vadd.f32 %v10178, %v10266
        %10268 = vmatmul.bf16.gmra.mxu0 %v6221
        %v10269 = vpop.f32.mrf.mxu0
        %v10270 = vadd.f32 %v10181, %v10269
        %v10271 = vpop.f32.mrf.mxu0
        %v10272 = vadd.f32 %v10183, %v10271
        %10273 = vmatmul.bf16.gmra.mxu0 %v6233
        %v10274 = vpop.f32.mrf.mxu0
        %v10275 = vadd.f32 %v10186, %v10274
        %v10276 = vpop.f32.mrf.mxu0
        %v10277 = vadd.f32 %v10188, %v10276
        %10278 = vmatmul.bf16.gmra.mxu0 %v6245
        %v10279 = vpop.f32.mrf.mxu0
        %v10280 = vadd.f32 %v10191, %v10279
        %v10281 = vpop.f32.mrf.mxu0
        %v10282 = vadd.f32 %v10193, %v10281
        %10283 = vmatmul.bf16.gmra.mxu0 %v6257
        %v10284 = vpop.f32.mrf.mxu0
        %v10285 = vadd.f32 %v10196, %v10284
        %v10286 = vpop.f32.mrf.mxu0
        %v10287 = vadd.f32 %v10198, %v10286
        %10288 = vmatmul.bf16.gmra.mxu0 %v6269
        %v10289 = vpop.f32.mrf.mxu0
        %v10290 = vadd.f32 %v10201, %v10289
        %v10291 = vpop.f32.mrf.mxu0
        %v10292 = vadd.f32 %v10203, %v10291
        %10293 = vmatmul.bf16.gmra.mxu0 %v6281
        %v10294 = vpop.f32.mrf.mxu0
        %v10295 = vadd.f32 %v10206, %v10294
        %v10296 = vpop.f32.mrf.mxu0
        %v10297 = vadd.f32 %v10208, %v10296
        %10298 = vmatmul.bf16.gmra.mxu0 %v6293
        %v10299 = vpop.f32.mrf.mxu0
        %v10300 = vadd.f32 %v10211, %v10299
        %v10301 = vpop.f32.mrf.mxu0
        %v10302 = vadd.f32 %v10213, %v10301
        %10303 = vmatmul.bf16.gmra.mxu0 %v6305
        %v10304 = vpop.f32.mrf.mxu0
        %v10305 = vadd.f32 %v10216, %v10304
        %v10306 = vpop.f32.mrf.mxu0
        %v10307 = vadd.f32 %v10218, %v10306
        %10308 = vmatmul.bf16.gmra.mxu0 %v6317
        %v10309 = vpop.f32.mrf.mxu0
        %v10310 = vadd.f32 %v10221, %v10309
        %v10311 = vpop.f32.mrf.mxu0
        %v10312 = vadd.f32 %v10223, %v10311
        %10313 = vmatmul.bf16.gmra.mxu0 %v6329
        %v10314 = vpop.f32.mrf.mxu0
        %v10315 = vadd.f32 %v10226, %v10314
        %v10316 = vpop.f32.mrf.mxu0
        %v10317 = vadd.f32 %v10228, %v10316
        %10318 = vmatmul.bf16.gmra.mxu0 %v6341
        %v10319 = vpop.f32.mrf.mxu0
        %v10320 = vadd.f32 %v10231, %v10319
        %v10321 = vpop.f32.mrf.mxu0
        %v10322 = vadd.f32 %v10233, %v10321
        %10323 = vmatmul.bf16.gmra.mxu0 %v6353
        %v10324 = vpop.f32.mrf.mxu0
        %v10325 = vadd.f32 %v10236, %v10324
        %v10326 = vpop.f32.mrf.mxu0
        %v10327 = vadd.f32 %v10238, %v10326
        %10328 = vmatmul.bf16.gmra.mxu0 %v6365
        %v10329 = vpop.f32.mrf.mxu0
        %v10330 = vadd.f32 %v10241, %v10329
        %v10331 = vpop.f32.mrf.mxu0
        %v10332 = vadd.f32 %v10243, %v10331
        %10333 = vdwg.mxu0
        %10334 = vmatpush.bf16.msra.mxu0 %v7997
        %10335 = vmatpush.bf16.msra.mxu0 %v7994
        %10336 = vmatpush.bf16.msra.mxu0 %v7991
        %10337 = vmatpush.bf16.msra.mxu0 %v7988
        %10338 = vmatpush.bf16.msra.mxu0 %v7985
        %10339 = vmatpush.bf16.msra.mxu0 %v7982
        %10340 = vmatpush.bf16.msra.mxu0 %v7979
        %10341 = vmatpush.bf16.msra.mxu0 %v7976
        %10342 = vmatmul.bf16.gmra.mxu0 %v6186
        %v10343 = vpop.f32.mrf.mxu0
        %v10344 = vadd.f32 %v10255, %v10343
        %v10345 = vpop.f32.mrf.mxu0
        %v10346 = vadd.f32 %v10257, %v10345
        %10347 = vmatmul.bf16.gmra.mxu0 %v6198
        %v10348 = vpop.f32.mrf.mxu0
        %v10349 = vadd.f32 %v10260, %v10348
        %v10350 = vpop.f32.mrf.mxu0
        %v10351 = vadd.f32 %v10262, %v10350
        %10352 = vmatmul.bf16.gmra.mxu0 %v6210
        %v10353 = vpop.f32.mrf.mxu0
        %v10354 = vadd.f32 %v10265, %v10353
        %v10355 = vpop.f32.mrf.mxu0
        %v10356 = vadd.f32 %v10267, %v10355
        %10357 = vmatmul.bf16.gmra.mxu0 %v6222
        %v10358 = vpop.f32.mrf.mxu0
        %v10359 = vadd.f32 %v10270, %v10358
        %v10360 = vpop.f32.mrf.mxu0
        %v10361 = vadd.f32 %v10272, %v10360
        %10362 = vmatmul.bf16.gmra.mxu0 %v6234
        %v10363 = vpop.f32.mrf.mxu0
        %v10364 = vadd.f32 %v10275, %v10363
        %v10365 = vpop.f32.mrf.mxu0
        %v10366 = vadd.f32 %v10277, %v10365
        %10367 = vmatmul.bf16.gmra.mxu0 %v6246
        %v10368 = vpop.f32.mrf.mxu0
        %v10369 = vadd.f32 %v10280, %v10368
        %v10370 = vpop.f32.mrf.mxu0
        %v10371 = vadd.f32 %v10282, %v10370
        %10372 = vmatmul.bf16.gmra.mxu0 %v6258
        %v10373 = vpop.f32.mrf.mxu0
        %v10374 = vadd.f32 %v10285, %v10373
        %v10375 = vpop.f32.mrf.mxu0
        %v10376 = vadd.f32 %v10287, %v10375
        %10377 = vmatmul.bf16.gmra.mxu0 %v6270
        %v10378 = vpop.f32.mrf.mxu0
        %v10379 = vadd.f32 %v10290, %v10378
        %v10380 = vpop.f32.mrf.mxu0
        %v10381 = vadd.f32 %v10292, %v10380
        %10382 = vmatmul.bf16.gmra.mxu0 %v6282
        %v10383 = vpop.f32.mrf.mxu0
        %v10384 = vadd.f32 %v10295, %v10383
        %v10385 = vpop.f32.mrf.mxu0
        %v10386 = vadd.f32 %v10297, %v10385
        %10387 = vmatmul.bf16.gmra.mxu0 %v6294
        %v10388 = vpop.f32.mrf.mxu0
        %v10389 = vadd.f32 %v10300, %v10388
        %v10390 = vpop.f32.mrf.mxu0
        %v10391 = vadd.f32 %v10302, %v10390
        %10392 = vmatmul.bf16.gmra.mxu0 %v6306
        %v10393 = vpop.f32.mrf.mxu0
        %v10394 = vadd.f32 %v10305, %v10393
        %v10395 = vpop.f32.mrf.mxu0
        %v10396 = vadd.f32 %v10307, %v10395
        %10397 = vmatmul.bf16.gmra.mxu0 %v6318
        %v10398 = vpop.f32.mrf.mxu0
        %v10399 = vadd.f32 %v10310, %v10398
        %v10400 = vpop.f32.mrf.mxu0
        %v10401 = vadd.f32 %v10312, %v10400
        %10402 = vmatmul.bf16.gmra.mxu0 %v6330
        %v10403 = vpop.f32.mrf.mxu0
        %v10404 = vadd.f32 %v10315, %v10403
        %v10405 = vpop.f32.mrf.mxu0
        %v10406 = vadd.f32 %v10317, %v10405
        %10407 = vmatmul.bf16.gmra.mxu0 %v6342
        %v10408 = vpop.f32.mrf.mxu0
        %v10409 = vadd.f32 %v10320, %v10408
        %v10410 = vpop.f32.mrf.mxu0
        %v10411 = vadd.f32 %v10322, %v10410
        %10412 = vmatmul.bf16.gmra.mxu0 %v6354
        %v10413 = vpop.f32.mrf.mxu0
        %v10414 = vadd.f32 %v10325, %v10413
        %v10415 = vpop.f32.mrf.mxu0
        %v10416 = vadd.f32 %v10327, %v10415
        %10417 = vmatmul.bf16.gmra.mxu0 %v6366
        %v10418 = vpop.f32.mrf.mxu0
        %v10419 = vadd.f32 %v10330, %v10418
        %v10420 = vpop.f32.mrf.mxu0
        %v10421 = vadd.f32 %v10332, %v10420
        %10422 = vdwg.mxu0
        %10423 = vmatpush.bf16.msra.mxu0 %v7734
        %10424 = vmatpush.bf16.msra.mxu0 %v7731
        %10425 = vmatpush.bf16.msra.mxu0 %v7728
        %10426 = vmatpush.bf16.msra.mxu0 %v7725
        %10427 = vmatpush.bf16.msra.mxu0 %v7722
        %10428 = vmatpush.bf16.msra.mxu0 %v7719
        %10429 = vmatpush.bf16.msra.mxu0 %v7716
        %10430 = vmatpush.bf16.msra.mxu0 %v7713
        %10431 = vmatmul.bf16.gmra.mxu0 %v6175
        %v10432 = vpop.f32.mrf.mxu0
        %v10433 = vadd.f32 0.0, %v10432
        %v10434 = vpop.f32.mrf.mxu0
        %v10435 = vadd.f32 0.0, %v10434
        %10436 = vmatmul.bf16.gmra.mxu0 %v6187
        %v10437 = vpop.f32.mrf.mxu0
        %v10438 = vadd.f32 0.0, %v10437
        %v10439 = vpop.f32.mrf.mxu0
        %v10440 = vadd.f32 0.0, %v10439
        %10441 = vmatmul.bf16.gmra.mxu0 %v6199
        %v10442 = vpop.f32.mrf.mxu0
        %v10443 = vadd.f32 0.0, %v10442
        %v10444 = vpop.f32.mrf.mxu0
        %v10445 = vadd.f32 0.0, %v10444
        %10446 = vmatmul.bf16.gmra.mxu0 %v6211
        %v10447 = vpop.f32.mrf.mxu0
        %v10448 = vadd.f32 0.0, %v10447
        %v10449 = vpop.f32.mrf.mxu0
        %v10450 = vadd.f32 0.0, %v10449
        %10451 = vmatmul.bf16.gmra.mxu0 %v6223
        %v10452 = vpop.f32.mrf.mxu0
        %v10453 = vadd.f32 0.0, %v10452
        %v10454 = vpop.f32.mrf.mxu0
        %v10455 = vadd.f32 0.0, %v10454
        %10456 = vmatmul.bf16.gmra.mxu0 %v6235
        %v10457 = vpop.f32.mrf.mxu0
        %v10458 = vadd.f32 0.0, %v10457
        %v10459 = vpop.f32.mrf.mxu0
        %v10460 = vadd.f32 0.0, %v10459
        %10461 = vmatmul.bf16.gmra.mxu0 %v6247
        %v10462 = vpop.f32.mrf.mxu0
        %v10463 = vadd.f32 0.0, %v10462
        %v10464 = vpop.f32.mrf.mxu0
        %v10465 = vadd.f32 0.0, %v10464
        %10466 = vmatmul.bf16.gmra.mxu0 %v6259
        %v10467 = vpop.f32.mrf.mxu0
        %v10468 = vadd.f32 0.0, %v10467
        %v10469 = vpop.f32.mrf.mxu0
        %v10470 = vadd.f32 0.0, %v10469
        %10471 = vmatmul.bf16.gmra.mxu0 %v6271
        %v10472 = vpop.f32.mrf.mxu0
        %v10473 = vadd.f32 0.0, %v10472
        %v10474 = vpop.f32.mrf.mxu0
        %v10475 = vadd.f32 0.0, %v10474
        %10476 = vmatmul.bf16.gmra.mxu0 %v6283
        %v10477 = vpop.f32.mrf.mxu0
        %v10478 = vadd.f32 0.0, %v10477
        %v10479 = vpop.f32.mrf.mxu0
        %v10480 = vadd.f32 0.0, %v10479
        %10481 = vmatmul.bf16.gmra.mxu0 %v6295
        %v10482 = vpop.f32.mrf.mxu0
        %v10483 = vadd.f32 0.0, %v10482
        %v10484 = vpop.f32.mrf.mxu0
        %v10485 = vadd.f32 0.0, %v10484
        %10486 = vmatmul.bf16.gmra.mxu0 %v6307
        %v10487 = vpop.f32.mrf.mxu0
        %v10488 = vadd.f32 0.0, %v10487
        %v10489 = vpop.f32.mrf.mxu0
        %v10490 = vadd.f32 0.0, %v10489
        %10491 = vmatmul.bf16.gmra.mxu0 %v6319
        %v10492 = vpop.f32.mrf.mxu0
        %v10493 = vadd.f32 0.0, %v10492
        %v10494 = vpop.f32.mrf.mxu0
        %v10495 = vadd.f32 0.0, %v10494
        %10496 = vmatmul.bf16.gmra.mxu0 %v6331
        %v10497 = vpop.f32.mrf.mxu0
        %v10498 = vadd.f32 0.0, %v10497
        %v10499 = vpop.f32.mrf.mxu0
        %v10500 = vadd.f32 0.0, %v10499
        %10501 = vmatmul.bf16.gmra.mxu0 %v6343
        %v10502 = vpop.f32.mrf.mxu0
        %v10503 = vadd.f32 0.0, %v10502
        %v10504 = vpop.f32.mrf.mxu0
        %v10505 = vadd.f32 0.0, %v10504
        %10506 = vmatmul.bf16.gmra.mxu0 %v6355
        %v10507 = vpop.f32.mrf.mxu0
        %v10508 = vadd.f32 0.0, %v10507
        %v10509 = vpop.f32.mrf.mxu0
        %v10510 = vadd.f32 0.0, %v10509
        %10511 = vdwg.mxu0
        %10512 = vmatpush.bf16.msra.mxu0 %v7758
        %10513 = vmatpush.bf16.msra.mxu0 %v7755
        %10514 = vmatpush.bf16.msra.mxu0 %v7752
        %10515 = vmatpush.bf16.msra.mxu0 %v7749
        %10516 = vmatpush.bf16.msra.mxu0 %v7746
        %10517 = vmatpush.bf16.msra.mxu0 %v7743
        %10518 = vmatpush.bf16.msra.mxu0 %v7740
        %10519 = vmatpush.bf16.msra.mxu0 %v7737
        %10520 = vmatmul.bf16.gmra.mxu0 %v6176
        %v10521 = vpop.f32.mrf.mxu0
        %v10522 = vadd.f32 %v10433, %v10521
        %v10523 = vpop.f32.mrf.mxu0
        %v10524 = vadd.f32 %v10435, %v10523
        %10525 = vmatmul.bf16.gmra.mxu0 %v6188
        %v10526 = vpop.f32.mrf.mxu0
        %v10527 = vadd.f32 %v10438, %v10526
        %v10528 = vpop.f32.mrf.mxu0
        %v10529 = vadd.f32 %v10440, %v10528
        %10530 = vmatmul.bf16.gmra.mxu0 %v6200
        %v10531 = vpop.f32.mrf.mxu0
        %v10532 = vadd.f32 %v10443, %v10531
        %v10533 = vpop.f32.mrf.mxu0
        %v10534 = vadd.f32 %v10445, %v10533
        %10535 = vmatmul.bf16.gmra.mxu0 %v6212
        %v10536 = vpop.f32.mrf.mxu0
        %v10537 = vadd.f32 %v10448, %v10536
        %v10538 = vpop.f32.mrf.mxu0
        %v10539 = vadd.f32 %v10450, %v10538
        %10540 = vmatmul.bf16.gmra.mxu0 %v6224
        %v10541 = vpop.f32.mrf.mxu0
        %v10542 = vadd.f32 %v10453, %v10541
        %v10543 = vpop.f32.mrf.mxu0
        %v10544 = vadd.f32 %v10455, %v10543
        %10545 = vmatmul.bf16.gmra.mxu0 %v6236
        %v10546 = vpop.f32.mrf.mxu0
        %v10547 = vadd.f32 %v10458, %v10546
        %v10548 = vpop.f32.mrf.mxu0
        %v10549 = vadd.f32 %v10460, %v10548
        %10550 = vmatmul.bf16.gmra.mxu0 %v6248
        %v10551 = vpop.f32.mrf.mxu0
        %v10552 = vadd.f32 %v10463, %v10551
        %v10553 = vpop.f32.mrf.mxu0
        %v10554 = vadd.f32 %v10465, %v10553
        %10555 = vmatmul.bf16.gmra.mxu0 %v6260
        %v10556 = vpop.f32.mrf.mxu0
        %v10557 = vadd.f32 %v10468, %v10556
        %v10558 = vpop.f32.mrf.mxu0
        %v10559 = vadd.f32 %v10470, %v10558
        %10560 = vmatmul.bf16.gmra.mxu0 %v6272
        %v10561 = vpop.f32.mrf.mxu0
        %v10562 = vadd.f32 %v10473, %v10561
        %v10563 = vpop.f32.mrf.mxu0
        %v10564 = vadd.f32 %v10475, %v10563
        %10565 = vmatmul.bf16.gmra.mxu0 %v6284
        %v10566 = vpop.f32.mrf.mxu0
        %v10567 = vadd.f32 %v10478, %v10566
        %v10568 = vpop.f32.mrf.mxu0
        %v10569 = vadd.f32 %v10480, %v10568
        %10570 = vmatmul.bf16.gmra.mxu0 %v6296
        %v10571 = vpop.f32.mrf.mxu0
        %v10572 = vadd.f32 %v10483, %v10571
        %v10573 = vpop.f32.mrf.mxu0
        %v10574 = vadd.f32 %v10485, %v10573
        %10575 = vmatmul.bf16.gmra.mxu0 %v6308
        %v10576 = vpop.f32.mrf.mxu0
        %v10577 = vadd.f32 %v10488, %v10576
        %v10578 = vpop.f32.mrf.mxu0
        %v10579 = vadd.f32 %v10490, %v10578
        %10580 = vmatmul.bf16.gmra.mxu0 %v6320
        %v10581 = vpop.f32.mrf.mxu0
        %v10582 = vadd.f32 %v10493, %v10581
        %v10583 = vpop.f32.mrf.mxu0
        %v10584 = vadd.f32 %v10495, %v10583
        %10585 = vmatmul.bf16.gmra.mxu0 %v6332
        %v10586 = vpop.f32.mrf.mxu0
        %v10587 = vadd.f32 %v10498, %v10586
        %v10588 = vpop.f32.mrf.mxu0
        %v10589 = vadd.f32 %v10500, %v10588
        %10590 = vmatmul.bf16.gmra.mxu0 %v6344
        %v10591 = vpop.f32.mrf.mxu0
        %v10592 = vadd.f32 %v10503, %v10591
        %v10593 = vpop.f32.mrf.mxu0
        %v10594 = vadd.f32 %v10505, %v10593
        %10595 = vmatmul.bf16.gmra.mxu0 %v6356
        %v10596 = vpop.f32.mrf.mxu0
        %v10597 = vadd.f32 %v10508, %v10596
        %v10598 = vpop.f32.mrf.mxu0
        %v10599 = vadd.f32 %v10510, %v10598
        %10600 = vdwg.mxu0
        %10601 = vmatpush.bf16.msra.mxu0 %v7782
        %10602 = vmatpush.bf16.msra.mxu0 %v7779
        %10603 = vmatpush.bf16.msra.mxu0 %v7776
        %10604 = vmatpush.bf16.msra.mxu0 %v7773
        %10605 = vmatpush.bf16.msra.mxu0 %v7770
        %10606 = vmatpush.bf16.msra.mxu0 %v7767
        %10607 = vmatpush.bf16.msra.mxu0 %v7764
        %10608 = vmatpush.bf16.msra.mxu0 %v7761
        %10609 = vmatmul.bf16.gmra.mxu0 %v6177
        %v10610 = vpop.f32.mrf.mxu0
        %v10611 = vadd.f32 %v10522, %v10610
        %v10612 = vpop.f32.mrf.mxu0
        %v10613 = vadd.f32 %v10524, %v10612
        %10614 = vmatmul.bf16.gmra.mxu0 %v6189
        %v10615 = vpop.f32.mrf.mxu0
        %v10616 = vadd.f32 %v10527, %v10615
        %v10617 = vpop.f32.mrf.mxu0
        %v10618 = vadd.f32 %v10529, %v10617
        %10619 = vmatmul.bf16.gmra.mxu0 %v6201
        %v10620 = vpop.f32.mrf.mxu0
        %v10621 = vadd.f32 %v10532, %v10620
        %v10622 = vpop.f32.mrf.mxu0
        %v10623 = vadd.f32 %v10534, %v10622
        %10624 = vmatmul.bf16.gmra.mxu0 %v6213
        %v10625 = vpop.f32.mrf.mxu0
        %v10626 = vadd.f32 %v10537, %v10625
        %v10627 = vpop.f32.mrf.mxu0
        %v10628 = vadd.f32 %v10539, %v10627
        %10629 = vmatmul.bf16.gmra.mxu0 %v6225
        %v10630 = vpop.f32.mrf.mxu0
        %v10631 = vadd.f32 %v10542, %v10630
        %v10632 = vpop.f32.mrf.mxu0
        %v10633 = vadd.f32 %v10544, %v10632
        %10634 = vmatmul.bf16.gmra.mxu0 %v6237
        %v10635 = vpop.f32.mrf.mxu0
        %v10636 = vadd.f32 %v10547, %v10635
        %v10637 = vpop.f32.mrf.mxu0
        %v10638 = vadd.f32 %v10549, %v10637
        %10639 = vmatmul.bf16.gmra.mxu0 %v6249
        %v10640 = vpop.f32.mrf.mxu0
        %v10641 = vadd.f32 %v10552, %v10640
        %v10642 = vpop.f32.mrf.mxu0
        %v10643 = vadd.f32 %v10554, %v10642
        %10644 = vmatmul.bf16.gmra.mxu0 %v6261
        %v10645 = vpop.f32.mrf.mxu0
        %v10646 = vadd.f32 %v10557, %v10645
        %v10647 = vpop.f32.mrf.mxu0
        %v10648 = vadd.f32 %v10559, %v10647
        %10649 = vmatmul.bf16.gmra.mxu0 %v6273
        %v10650 = vpop.f32.mrf.mxu0
        %v10651 = vadd.f32 %v10562, %v10650
        %v10652 = vpop.f32.mrf.mxu0
        %v10653 = vadd.f32 %v10564, %v10652
        %10654 = vmatmul.bf16.gmra.mxu0 %v6285
        %v10655 = vpop.f32.mrf.mxu0
        %v10656 = vadd.f32 %v10567, %v10655
        %v10657 = vpop.f32.mrf.mxu0
        %v10658 = vadd.f32 %v10569, %v10657
        %10659 = vmatmul.bf16.gmra.mxu0 %v6297
        %v10660 = vpop.f32.mrf.mxu0
        %v10661 = vadd.f32 %v10572, %v10660
        %v10662 = vpop.f32.mrf.mxu0
        %v10663 = vadd.f32 %v10574, %v10662
        %10664 = vmatmul.bf16.gmra.mxu0 %v6309
        %v10665 = vpop.f32.mrf.mxu0
        %v10666 = vadd.f32 %v10577, %v10665
        %v10667 = vpop.f32.mrf.mxu0
        %v10668 = vadd.f32 %v10579, %v10667
        %10669 = vmatmul.bf16.gmra.mxu0 %v6321
        %v10670 = vpop.f32.mrf.mxu0
        %v10671 = vadd.f32 %v10582, %v10670
        %v10672 = vpop.f32.mrf.mxu0
        %v10673 = vadd.f32 %v10584, %v10672
        %10674 = vmatmul.bf16.gmra.mxu0 %v6333
        %v10675 = vpop.f32.mrf.mxu0
        %v10676 = vadd.f32 %v10587, %v10675
        %v10677 = vpop.f32.mrf.mxu0
        %v10678 = vadd.f32 %v10589, %v10677
        %10679 = vmatmul.bf16.gmra.mxu0 %v6345
        %v10680 = vpop.f32.mrf.mxu0
        %v10681 = vadd.f32 %v10592, %v10680
        %v10682 = vpop.f32.mrf.mxu0
        %v10683 = vadd.f32 %v10594, %v10682
        %10684 = vmatmul.bf16.gmra.mxu0 %v6357
        %v10685 = vpop.f32.mrf.mxu0
        %v10686 = vadd.f32 %v10597, %v10685
        %v10687 = vpop.f32.mrf.mxu0
        %v10688 = vadd.f32 %v10599, %v10687
        %10689 = vdwg.mxu0
        %10690 = vmatpush.bf16.msra.mxu0 %v7806
        %10691 = vmatpush.bf16.msra.mxu0 %v7803
        %10692 = vmatpush.bf16.msra.mxu0 %v7800
        %10693 = vmatpush.bf16.msra.mxu0 %v7797
        %10694 = vmatpush.bf16.msra.mxu0 %v7794
        %10695 = vmatpush.bf16.msra.mxu0 %v7791
        %10696 = vmatpush.bf16.msra.mxu0 %v7788
        %10697 = vmatpush.bf16.msra.mxu0 %v7785
        %10698 = vmatmul.bf16.gmra.mxu0 %v6178
        %v10699 = vpop.f32.mrf.mxu0
        %v10700 = vadd.f32 %v10611, %v10699
        %v10701 = vpop.f32.mrf.mxu0
        %v10702 = vadd.f32 %v10613, %v10701
        %10703 = vmatmul.bf16.gmra.mxu0 %v6190
        %v10704 = vpop.f32.mrf.mxu0
        %v10705 = vadd.f32 %v10616, %v10704
        %v10706 = vpop.f32.mrf.mxu0
        %v10707 = vadd.f32 %v10618, %v10706
        %10708 = vmatmul.bf16.gmra.mxu0 %v6202
        %v10709 = vpop.f32.mrf.mxu0
        %v10710 = vadd.f32 %v10621, %v10709
        %v10711 = vpop.f32.mrf.mxu0
        %v10712 = vadd.f32 %v10623, %v10711
        %10713 = vmatmul.bf16.gmra.mxu0 %v6214
        %v10714 = vpop.f32.mrf.mxu0
        %v10715 = vadd.f32 %v10626, %v10714
        %v10716 = vpop.f32.mrf.mxu0
        %v10717 = vadd.f32 %v10628, %v10716
        %10718 = vmatmul.bf16.gmra.mxu0 %v6226
        %v10719 = vpop.f32.mrf.mxu0
        %v10720 = vadd.f32 %v10631, %v10719
        %v10721 = vpop.f32.mrf.mxu0
        %v10722 = vadd.f32 %v10633, %v10721
        %10723 = vmatmul.bf16.gmra.mxu0 %v6238
        %v10724 = vpop.f32.mrf.mxu0
        %v10725 = vadd.f32 %v10636, %v10724
        %v10726 = vpop.f32.mrf.mxu0
        %v10727 = vadd.f32 %v10638, %v10726
        %10728 = vmatmul.bf16.gmra.mxu0 %v6250
        %v10729 = vpop.f32.mrf.mxu0
        %v10730 = vadd.f32 %v10641, %v10729
        %v10731 = vpop.f32.mrf.mxu0
        %v10732 = vadd.f32 %v10643, %v10731
        %10733 = vmatmul.bf16.gmra.mxu0 %v6262
        %v10734 = vpop.f32.mrf.mxu0
        %v10735 = vadd.f32 %v10646, %v10734
        %v10736 = vpop.f32.mrf.mxu0
        %v10737 = vadd.f32 %v10648, %v10736
        %10738 = vmatmul.bf16.gmra.mxu0 %v6274
        %v10739 = vpop.f32.mrf.mxu0
        %v10740 = vadd.f32 %v10651, %v10739
        %v10741 = vpop.f32.mrf.mxu0
        %v10742 = vadd.f32 %v10653, %v10741
        %10743 = vmatmul.bf16.gmra.mxu0 %v6286
        %v10744 = vpop.f32.mrf.mxu0
        %v10745 = vadd.f32 %v10656, %v10744
        %v10746 = vpop.f32.mrf.mxu0
        %v10747 = vadd.f32 %v10658, %v10746
        %10748 = vmatmul.bf16.gmra.mxu0 %v6298
        %v10749 = vpop.f32.mrf.mxu0
        %v10750 = vadd.f32 %v10661, %v10749
        %v10751 = vpop.f32.mrf.mxu0
        %v10752 = vadd.f32 %v10663, %v10751
        %10753 = vmatmul.bf16.gmra.mxu0 %v6310
        %v10754 = vpop.f32.mrf.mxu0
        %v10755 = vadd.f32 %v10666, %v10754
        %v10756 = vpop.f32.mrf.mxu0
        %v10757 = vadd.f32 %v10668, %v10756
        %10758 = vmatmul.bf16.gmra.mxu0 %v6322
        %v10759 = vpop.f32.mrf.mxu0
        %v10760 = vadd.f32 %v10671, %v10759
        %v10761 = vpop.f32.mrf.mxu0
        %v10762 = vadd.f32 %v10673, %v10761
        %10763 = vmatmul.bf16.gmra.mxu0 %v6334
        %v10764 = vpop.f32.mrf.mxu0
        %v10765 = vadd.f32 %v10676, %v10764
        %v10766 = vpop.f32.mrf.mxu0
        %v10767 = vadd.f32 %v10678, %v10766
        %10768 = vmatmul.bf16.gmra.mxu0 %v6346
        %v10769 = vpop.f32.mrf.mxu0
        %v10770 = vadd.f32 %v10681, %v10769
        %v10771 = vpop.f32.mrf.mxu0
        %v10772 = vadd.f32 %v10683, %v10771
        %10773 = vmatmul.bf16.gmra.mxu0 %v6358
        %v10774 = vpop.f32.mrf.mxu0
        %v10775 = vadd.f32 %v10686, %v10774
        %v10776 = vpop.f32.mrf.mxu0
        %v10777 = vadd.f32 %v10688, %v10776
        %10778 = vdwg.mxu0
        %10779 = vmatpush.bf16.msra.mxu0 %v7830
        %10780 = vmatpush.bf16.msra.mxu0 %v7827
        %10781 = vmatpush.bf16.msra.mxu0 %v7824
        %10782 = vmatpush.bf16.msra.mxu0 %v7821
        %10783 = vmatpush.bf16.msra.mxu0 %v7818
        %10784 = vmatpush.bf16.msra.mxu0 %v7815
        %10785 = vmatpush.bf16.msra.mxu0 %v7812
        %10786 = vmatpush.bf16.msra.mxu0 %v7809
        %10787 = vmatmul.bf16.gmra.mxu0 %v6179
        %v10788 = vpop.f32.mrf.mxu0
        %v10789 = vadd.f32 %v10700, %v10788
        %v10790 = vpop.f32.mrf.mxu0
        %v10791 = vadd.f32 %v10702, %v10790
        %10792 = vmatmul.bf16.gmra.mxu0 %v6191
        %v10793 = vpop.f32.mrf.mxu0
        %v10794 = vadd.f32 %v10705, %v10793
        %v10795 = vpop.f32.mrf.mxu0
        %v10796 = vadd.f32 %v10707, %v10795
        %10797 = vmatmul.bf16.gmra.mxu0 %v6203
        %v10798 = vpop.f32.mrf.mxu0
        %v10799 = vadd.f32 %v10710, %v10798
        %v10800 = vpop.f32.mrf.mxu0
        %v10801 = vadd.f32 %v10712, %v10800
        %10802 = vmatmul.bf16.gmra.mxu0 %v6215
        %v10803 = vpop.f32.mrf.mxu0
        %v10804 = vadd.f32 %v10715, %v10803
        %v10805 = vpop.f32.mrf.mxu0
        %v10806 = vadd.f32 %v10717, %v10805
        %10807 = vmatmul.bf16.gmra.mxu0 %v6227
        %v10808 = vpop.f32.mrf.mxu0
        %v10809 = vadd.f32 %v10720, %v10808
        %v10810 = vpop.f32.mrf.mxu0
        %v10811 = vadd.f32 %v10722, %v10810
        %10812 = vmatmul.bf16.gmra.mxu0 %v6239
        %v10813 = vpop.f32.mrf.mxu0
        %v10814 = vadd.f32 %v10725, %v10813
        %v10815 = vpop.f32.mrf.mxu0
        %v10816 = vadd.f32 %v10727, %v10815
        %10817 = vmatmul.bf16.gmra.mxu0 %v6251
        %v10818 = vpop.f32.mrf.mxu0
        %v10819 = vadd.f32 %v10730, %v10818
        %v10820 = vpop.f32.mrf.mxu0
        %v10821 = vadd.f32 %v10732, %v10820
        %10822 = vmatmul.bf16.gmra.mxu0 %v6263
        %v10823 = vpop.f32.mrf.mxu0
        %v10824 = vadd.f32 %v10735, %v10823
        %v10825 = vpop.f32.mrf.mxu0
        %v10826 = vadd.f32 %v10737, %v10825
        %10827 = vmatmul.bf16.gmra.mxu0 %v6275
        %v10828 = vpop.f32.mrf.mxu0
        %v10829 = vadd.f32 %v10740, %v10828
        %v10830 = vpop.f32.mrf.mxu0
        %v10831 = vadd.f32 %v10742, %v10830
        %10832 = vmatmul.bf16.gmra.mxu0 %v6287
        %v10833 = vpop.f32.mrf.mxu0
        %v10834 = vadd.f32 %v10745, %v10833
        %v10835 = vpop.f32.mrf.mxu0
        %v10836 = vadd.f32 %v10747, %v10835
        %10837 = vmatmul.bf16.gmra.mxu0 %v6299
        %v10838 = vpop.f32.mrf.mxu0
        %v10839 = vadd.f32 %v10750, %v10838
        %v10840 = vpop.f32.mrf.mxu0
        %v10841 = vadd.f32 %v10752, %v10840
        %10842 = vmatmul.bf16.gmra.mxu0 %v6311
        %v10843 = vpop.f32.mrf.mxu0
        %v10844 = vadd.f32 %v10755, %v10843
        %v10845 = vpop.f32.mrf.mxu0
        %v10846 = vadd.f32 %v10757, %v10845
        %10847 = vmatmul.bf16.gmra.mxu0 %v6323
        %v10848 = vpop.f32.mrf.mxu0
        %v10849 = vadd.f32 %v10760, %v10848
        %v10850 = vpop.f32.mrf.mxu0
        %v10851 = vadd.f32 %v10762, %v10850
        %10852 = vmatmul.bf16.gmra.mxu0 %v6335
        %v10853 = vpop.f32.mrf.mxu0
        %v10854 = vadd.f32 %v10765, %v10853
        %v10855 = vpop.f32.mrf.mxu0
        %v10856 = vadd.f32 %v10767, %v10855
        %10857 = vmatmul.bf16.gmra.mxu0 %v6347
        %v10858 = vpop.f32.mrf.mxu0
        %v10859 = vadd.f32 %v10770, %v10858
        %v10860 = vpop.f32.mrf.mxu0
        %v10861 = vadd.f32 %v10772, %v10860
        %10862 = vmatmul.bf16.gmra.mxu0 %v6359
        %v10863 = vpop.f32.mrf.mxu0
        %v10864 = vadd.f32 %v10775, %v10863
        %v10865 = vpop.f32.mrf.mxu0
        %v10866 = vadd.f32 %v10777, %v10865
        %10867 = vdwg.mxu0
        %10868 = vmatpush.bf16.msra.mxu0 %v7854
        %10869 = vmatpush.bf16.msra.mxu0 %v7851
        %10870 = vmatpush.bf16.msra.mxu0 %v7848
        %10871 = vmatpush.bf16.msra.mxu0 %v7845
        %10872 = vmatpush.bf16.msra.mxu0 %v7842
        %10873 = vmatpush.bf16.msra.mxu0 %v7839
        %10874 = vmatpush.bf16.msra.mxu0 %v7836
        %10875 = vmatpush.bf16.msra.mxu0 %v7833
        %10876 = vmatmul.bf16.gmra.mxu0 %v6180
        %v10877 = vpop.f32.mrf.mxu0
        %v10878 = vadd.f32 %v10789, %v10877
        %v10879 = vpop.f32.mrf.mxu0
        %v10880 = vadd.f32 %v10791, %v10879
        %10881 = vmatmul.bf16.gmra.mxu0 %v6192
        %v10882 = vpop.f32.mrf.mxu0
        %v10883 = vadd.f32 %v10794, %v10882
        %v10884 = vpop.f32.mrf.mxu0
        %v10885 = vadd.f32 %v10796, %v10884
        %10886 = vmatmul.bf16.gmra.mxu0 %v6204
        %v10887 = vpop.f32.mrf.mxu0
        %v10888 = vadd.f32 %v10799, %v10887
        %v10889 = vpop.f32.mrf.mxu0
        %v10890 = vadd.f32 %v10801, %v10889
        %10891 = vmatmul.bf16.gmra.mxu0 %v6216
        %v10892 = vpop.f32.mrf.mxu0
        %v10893 = vadd.f32 %v10804, %v10892
        %v10894 = vpop.f32.mrf.mxu0
        %v10895 = vadd.f32 %v10806, %v10894
        %10896 = vmatmul.bf16.gmra.mxu0 %v6228
        %v10897 = vpop.f32.mrf.mxu0
        %v10898 = vadd.f32 %v10809, %v10897
        %v10899 = vpop.f32.mrf.mxu0
        %v10900 = vadd.f32 %v10811, %v10899
        %10901 = vmatmul.bf16.gmra.mxu0 %v6240
        %v10902 = vpop.f32.mrf.mxu0
        %v10903 = vadd.f32 %v10814, %v10902
        %v10904 = vpop.f32.mrf.mxu0
        %v10905 = vadd.f32 %v10816, %v10904
        %10906 = vmatmul.bf16.gmra.mxu0 %v6252
        %v10907 = vpop.f32.mrf.mxu0
        %v10908 = vadd.f32 %v10819, %v10907
        %v10909 = vpop.f32.mrf.mxu0
        %v10910 = vadd.f32 %v10821, %v10909
        %10911 = vmatmul.bf16.gmra.mxu0 %v6264
        %v10912 = vpop.f32.mrf.mxu0
        %v10913 = vadd.f32 %v10824, %v10912
        %v10914 = vpop.f32.mrf.mxu0
        %v10915 = vadd.f32 %v10826, %v10914
        %10916 = vmatmul.bf16.gmra.mxu0 %v6276
        %v10917 = vpop.f32.mrf.mxu0
        %v10918 = vadd.f32 %v10829, %v10917
        %v10919 = vpop.f32.mrf.mxu0
        %v10920 = vadd.f32 %v10831, %v10919
        %10921 = vmatmul.bf16.gmra.mxu0 %v6288
        %v10922 = vpop.f32.mrf.mxu0
        %v10923 = vadd.f32 %v10834, %v10922
        %v10924 = vpop.f32.mrf.mxu0
        %v10925 = vadd.f32 %v10836, %v10924
        %10926 = vmatmul.bf16.gmra.mxu0 %v6300
        %v10927 = vpop.f32.mrf.mxu0
        %v10928 = vadd.f32 %v10839, %v10927
        %v10929 = vpop.f32.mrf.mxu0
        %v10930 = vadd.f32 %v10841, %v10929
        %10931 = vmatmul.bf16.gmra.mxu0 %v6312
        %v10932 = vpop.f32.mrf.mxu0
        %v10933 = vadd.f32 %v10844, %v10932
        %v10934 = vpop.f32.mrf.mxu0
        %v10935 = vadd.f32 %v10846, %v10934
        %10936 = vmatmul.bf16.gmra.mxu0 %v6324
        %v10937 = vpop.f32.mrf.mxu0
        %v10938 = vadd.f32 %v10849, %v10937
        %v10939 = vpop.f32.mrf.mxu0
        %v10940 = vadd.f32 %v10851, %v10939
        %10941 = vmatmul.bf16.gmra.mxu0 %v6336
        %v10942 = vpop.f32.mrf.mxu0
        %v10943 = vadd.f32 %v10854, %v10942
        %v10944 = vpop.f32.mrf.mxu0
        %v10945 = vadd.f32 %v10856, %v10944
        %10946 = vmatmul.bf16.gmra.mxu0 %v6348
        %v10947 = vpop.f32.mrf.mxu0
        %v10948 = vadd.f32 %v10859, %v10947
        %v10949 = vpop.f32.mrf.mxu0
        %v10950 = vadd.f32 %v10861, %v10949
        %10951 = vmatmul.bf16.gmra.mxu0 %v6360
        %v10952 = vpop.f32.mrf.mxu0
        %v10953 = vadd.f32 %v10864, %v10952
        %v10954 = vpop.f32.mrf.mxu0
        %v10955 = vadd.f32 %v10866, %v10954
        %10956 = vdwg.mxu0
        %10957 = vmatpush.bf16.msra.mxu0 %v7878
        %10958 = vmatpush.bf16.msra.mxu0 %v7875
        %10959 = vmatpush.bf16.msra.mxu0 %v7872
        %10960 = vmatpush.bf16.msra.mxu0 %v7869
        %10961 = vmatpush.bf16.msra.mxu0 %v7866
        %10962 = vmatpush.bf16.msra.mxu0 %v7863
        %10963 = vmatpush.bf16.msra.mxu0 %v7860
        %10964 = vmatpush.bf16.msra.mxu0 %v7857
        %10965 = vmatmul.bf16.gmra.mxu0 %v6181
        %v10966 = vpop.f32.mrf.mxu0
        %v10967 = vadd.f32 %v10878, %v10966
        %v10968 = vpop.f32.mrf.mxu0
        %v10969 = vadd.f32 %v10880, %v10968
        %10970 = vmatmul.bf16.gmra.mxu0 %v6193
        %v10971 = vpop.f32.mrf.mxu0
        %v10972 = vadd.f32 %v10883, %v10971
        %v10973 = vpop.f32.mrf.mxu0
        %v10974 = vadd.f32 %v10885, %v10973
        %10975 = vmatmul.bf16.gmra.mxu0 %v6205
        %v10976 = vpop.f32.mrf.mxu0
        %v10977 = vadd.f32 %v10888, %v10976
        %v10978 = vpop.f32.mrf.mxu0
        %v10979 = vadd.f32 %v10890, %v10978
        %10980 = vmatmul.bf16.gmra.mxu0 %v6217
        %v10981 = vpop.f32.mrf.mxu0
        %v10982 = vadd.f32 %v10893, %v10981
        %v10983 = vpop.f32.mrf.mxu0
        %v10984 = vadd.f32 %v10895, %v10983
        %10985 = vmatmul.bf16.gmra.mxu0 %v6229
        %v10986 = vpop.f32.mrf.mxu0
        %v10987 = vadd.f32 %v10898, %v10986
        %v10988 = vpop.f32.mrf.mxu0
        %v10989 = vadd.f32 %v10900, %v10988
        %10990 = vmatmul.bf16.gmra.mxu0 %v6241
        %v10991 = vpop.f32.mrf.mxu0
        %v10992 = vadd.f32 %v10903, %v10991
        %v10993 = vpop.f32.mrf.mxu0
        %v10994 = vadd.f32 %v10905, %v10993
        %10995 = vmatmul.bf16.gmra.mxu0 %v6253
        %v10996 = vpop.f32.mrf.mxu0
        %v10997 = vadd.f32 %v10908, %v10996
        %v10998 = vpop.f32.mrf.mxu0
        %v10999 = vadd.f32 %v10910, %v10998
        %11000 = vmatmul.bf16.gmra.mxu0 %v6265
        %v11001 = vpop.f32.mrf.mxu0
        %v11002 = vadd.f32 %v10913, %v11001
        %v11003 = vpop.f32.mrf.mxu0
        %v11004 = vadd.f32 %v10915, %v11003
        %11005 = vmatmul.bf16.gmra.mxu0 %v6277
        %v11006 = vpop.f32.mrf.mxu0
        %v11007 = vadd.f32 %v10918, %v11006
        %v11008 = vpop.f32.mrf.mxu0
        %v11009 = vadd.f32 %v10920, %v11008
        %11010 = vmatmul.bf16.gmra.mxu0 %v6289
        %v11011 = vpop.f32.mrf.mxu0
        %v11012 = vadd.f32 %v10923, %v11011
        %v11013 = vpop.f32.mrf.mxu0
        %v11014 = vadd.f32 %v10925, %v11013
        %11015 = vmatmul.bf16.gmra.mxu0 %v6301
        %v11016 = vpop.f32.mrf.mxu0
        %v11017 = vadd.f32 %v10928, %v11016
        %v11018 = vpop.f32.mrf.mxu0
        %v11019 = vadd.f32 %v10930, %v11018
        %11020 = vmatmul.bf16.gmra.mxu0 %v6313
        %v11021 = vpop.f32.mrf.mxu0
        %v11022 = vadd.f32 %v10933, %v11021
        %v11023 = vpop.f32.mrf.mxu0
        %v11024 = vadd.f32 %v10935, %v11023
        %11025 = vmatmul.bf16.gmra.mxu0 %v6325
        %v11026 = vpop.f32.mrf.mxu0
        %v11027 = vadd.f32 %v10938, %v11026
        %v11028 = vpop.f32.mrf.mxu0
        %v11029 = vadd.f32 %v10940, %v11028
        %11030 = vmatmul.bf16.gmra.mxu0 %v6337
        %v11031 = vpop.f32.mrf.mxu0
        %v11032 = vadd.f32 %v10943, %v11031
        %v11033 = vpop.f32.mrf.mxu0
        %v11034 = vadd.f32 %v10945, %v11033
        %11035 = vmatmul.bf16.gmra.mxu0 %v6349
        %v11036 = vpop.f32.mrf.mxu0
        %v11037 = vadd.f32 %v10948, %v11036
        %v11038 = vpop.f32.mrf.mxu0
        %v11039 = vadd.f32 %v10950, %v11038
        %11040 = vmatmul.bf16.gmra.mxu0 %v6361
        %v11041 = vpop.f32.mrf.mxu0
        %v11042 = vadd.f32 %v10953, %v11041
        %v11043 = vpop.f32.mrf.mxu0
        %v11044 = vadd.f32 %v10955, %v11043
        %11045 = vdwg.mxu0
        %11046 = vmatpush.bf16.msra.mxu0 %v7902
        %11047 = vmatpush.bf16.msra.mxu0 %v7899
        %11048 = vmatpush.bf16.msra.mxu0 %v7896
        %11049 = vmatpush.bf16.msra.mxu0 %v7893
        %11050 = vmatpush.bf16.msra.mxu0 %v7890
        %11051 = vmatpush.bf16.msra.mxu0 %v7887
        %11052 = vmatpush.bf16.msra.mxu0 %v7884
        %11053 = vmatpush.bf16.msra.mxu0 %v7881
        %11054 = vmatmul.bf16.gmra.mxu0 %v6182
        %v11055 = vpop.f32.mrf.mxu0
        %v11056 = vadd.f32 %v10967, %v11055
        %v11057 = vpop.f32.mrf.mxu0
        %v11058 = vadd.f32 %v10969, %v11057
        %11059 = vmatmul.bf16.gmra.mxu0 %v6194
        %v11060 = vpop.f32.mrf.mxu0
        %v11061 = vadd.f32 %v10972, %v11060
        %v11062 = vpop.f32.mrf.mxu0
        %v11063 = vadd.f32 %v10974, %v11062
        %11064 = vmatmul.bf16.gmra.mxu0 %v6206
        %v11065 = vpop.f32.mrf.mxu0
        %v11066 = vadd.f32 %v10977, %v11065
        %v11067 = vpop.f32.mrf.mxu0
        %v11068 = vadd.f32 %v10979, %v11067
        %11069 = vmatmul.bf16.gmra.mxu0 %v6218
        %v11070 = vpop.f32.mrf.mxu0
        %v11071 = vadd.f32 %v10982, %v11070
        %v11072 = vpop.f32.mrf.mxu0
        %v11073 = vadd.f32 %v10984, %v11072
        %11074 = vmatmul.bf16.gmra.mxu0 %v6230
        %v11075 = vpop.f32.mrf.mxu0
        %v11076 = vadd.f32 %v10987, %v11075
        %v11077 = vpop.f32.mrf.mxu0
        %v11078 = vadd.f32 %v10989, %v11077
        %11079 = vmatmul.bf16.gmra.mxu0 %v6242
        %v11080 = vpop.f32.mrf.mxu0
        %v11081 = vadd.f32 %v10992, %v11080
        %v11082 = vpop.f32.mrf.mxu0
        %v11083 = vadd.f32 %v10994, %v11082
        %11084 = vmatmul.bf16.gmra.mxu0 %v6254
        %v11085 = vpop.f32.mrf.mxu0
        %v11086 = vadd.f32 %v10997, %v11085
        %v11087 = vpop.f32.mrf.mxu0
        %v11088 = vadd.f32 %v10999, %v11087
        %11089 = vmatmul.bf16.gmra.mxu0 %v6266
        %v11090 = vpop.f32.mrf.mxu0
        %v11091 = vadd.f32 %v11002, %v11090
        %v11092 = vpop.f32.mrf.mxu0
        %v11093 = vadd.f32 %v11004, %v11092
        %11094 = vmatmul.bf16.gmra.mxu0 %v6278
        %v11095 = vpop.f32.mrf.mxu0
        %v11096 = vadd.f32 %v11007, %v11095
        %v11097 = vpop.f32.mrf.mxu0
        %v11098 = vadd.f32 %v11009, %v11097
        %11099 = vmatmul.bf16.gmra.mxu0 %v6290
        %v11100 = vpop.f32.mrf.mxu0
        %v11101 = vadd.f32 %v11012, %v11100
        %v11102 = vpop.f32.mrf.mxu0
        %v11103 = vadd.f32 %v11014, %v11102
        %11104 = vmatmul.bf16.gmra.mxu0 %v6302
        %v11105 = vpop.f32.mrf.mxu0
        %v11106 = vadd.f32 %v11017, %v11105
        %v11107 = vpop.f32.mrf.mxu0
        %v11108 = vadd.f32 %v11019, %v11107
        %11109 = vmatmul.bf16.gmra.mxu0 %v6314
        %v11110 = vpop.f32.mrf.mxu0
        %v11111 = vadd.f32 %v11022, %v11110
        %v11112 = vpop.f32.mrf.mxu0
        %v11113 = vadd.f32 %v11024, %v11112
        %11114 = vmatmul.bf16.gmra.mxu0 %v6326
        %v11115 = vpop.f32.mrf.mxu0
        %v11116 = vadd.f32 %v11027, %v11115
        %v11117 = vpop.f32.mrf.mxu0
        %v11118 = vadd.f32 %v11029, %v11117
        %11119 = vmatmul.bf16.gmra.mxu0 %v6338
        %v11120 = vpop.f32.mrf.mxu0
        %v11121 = vadd.f32 %v11032, %v11120
        %v11122 = vpop.f32.mrf.mxu0
        %v11123 = vadd.f32 %v11034, %v11122
        %11124 = vmatmul.bf16.gmra.mxu0 %v6350
        %v11125 = vpop.f32.mrf.mxu0
        %v11126 = vadd.f32 %v11037, %v11125
        %v11127 = vpop.f32.mrf.mxu0
        %v11128 = vadd.f32 %v11039, %v11127
        %11129 = vmatmul.bf16.gmra.mxu0 %v6362
        %v11130 = vpop.f32.mrf.mxu0
        %v11131 = vadd.f32 %v11042, %v11130
        %v11132 = vpop.f32.mrf.mxu0
        %v11133 = vadd.f32 %v11044, %v11132
        %11134 = vdwg.mxu0
        %11135 = vmatpush.bf16.msra.mxu0 %v7926
        %11136 = vmatpush.bf16.msra.mxu0 %v7923
        %11137 = vmatpush.bf16.msra.mxu0 %v7920
        %11138 = vmatpush.bf16.msra.mxu0 %v7917
        %11139 = vmatpush.bf16.msra.mxu0 %v7914
        %11140 = vmatpush.bf16.msra.mxu0 %v7911
        %11141 = vmatpush.bf16.msra.mxu0 %v7908
        %11142 = vmatpush.bf16.msra.mxu0 %v7905
        %11143 = vmatmul.bf16.gmra.mxu0 %v6183
        %v11144 = vpop.f32.mrf.mxu0
        %v11145 = vadd.f32 %v11056, %v11144
        %v11146 = vpop.f32.mrf.mxu0
        %v11147 = vadd.f32 %v11058, %v11146
        %11148 = vmatmul.bf16.gmra.mxu0 %v6195
        %v11149 = vpop.f32.mrf.mxu0
        %v11150 = vadd.f32 %v11061, %v11149
        %v11151 = vpop.f32.mrf.mxu0
        %v11152 = vadd.f32 %v11063, %v11151
        %11153 = vmatmul.bf16.gmra.mxu0 %v6207
        %v11154 = vpop.f32.mrf.mxu0
        %v11155 = vadd.f32 %v11066, %v11154
        %v11156 = vpop.f32.mrf.mxu0
        %v11157 = vadd.f32 %v11068, %v11156
        %11158 = vmatmul.bf16.gmra.mxu0 %v6219
        %v11159 = vpop.f32.mrf.mxu0
        %v11160 = vadd.f32 %v11071, %v11159
        %v11161 = vpop.f32.mrf.mxu0
        %v11162 = vadd.f32 %v11073, %v11161
        %11163 = vmatmul.bf16.gmra.mxu0 %v6231
        %v11164 = vpop.f32.mrf.mxu0
        %v11165 = vadd.f32 %v11076, %v11164
        %v11166 = vpop.f32.mrf.mxu0
        %v11167 = vadd.f32 %v11078, %v11166
        %11168 = vmatmul.bf16.gmra.mxu0 %v6243
        %v11169 = vpop.f32.mrf.mxu0
        %v11170 = vadd.f32 %v11081, %v11169
        %v11171 = vpop.f32.mrf.mxu0
        %v11172 = vadd.f32 %v11083, %v11171
        %11173 = vmatmul.bf16.gmra.mxu0 %v6255
        %v11174 = vpop.f32.mrf.mxu0
        %v11175 = vadd.f32 %v11086, %v11174
        %v11176 = vpop.f32.mrf.mxu0
        %v11177 = vadd.f32 %v11088, %v11176
        %11178 = vmatmul.bf16.gmra.mxu0 %v6267
        %v11179 = vpop.f32.mrf.mxu0
        %v11180 = vadd.f32 %v11091, %v11179
        %v11181 = vpop.f32.mrf.mxu0
        %v11182 = vadd.f32 %v11093, %v11181
        %11183 = vmatmul.bf16.gmra.mxu0 %v6279
        %v11184 = vpop.f32.mrf.mxu0
        %v11185 = vadd.f32 %v11096, %v11184
        %v11186 = vpop.f32.mrf.mxu0
        %v11187 = vadd.f32 %v11098, %v11186
        %11188 = vmatmul.bf16.gmra.mxu0 %v6291
        %v11189 = vpop.f32.mrf.mxu0
        %v11190 = vadd.f32 %v11101, %v11189
        %v11191 = vpop.f32.mrf.mxu0
        %v11192 = vadd.f32 %v11103, %v11191
        %11193 = vmatmul.bf16.gmra.mxu0 %v6303
        %v11194 = vpop.f32.mrf.mxu0
        %v11195 = vadd.f32 %v11106, %v11194
        %v11196 = vpop.f32.mrf.mxu0
        %v11197 = vadd.f32 %v11108, %v11196
        %11198 = vmatmul.bf16.gmra.mxu0 %v6315
        %v11199 = vpop.f32.mrf.mxu0
        %v11200 = vadd.f32 %v11111, %v11199
        %v11201 = vpop.f32.mrf.mxu0
        %v11202 = vadd.f32 %v11113, %v11201
        %11203 = vmatmul.bf16.gmra.mxu0 %v6327
        %v11204 = vpop.f32.mrf.mxu0
        %v11205 = vadd.f32 %v11116, %v11204
        %v11206 = vpop.f32.mrf.mxu0
        %v11207 = vadd.f32 %v11118, %v11206
        %11208 = vmatmul.bf16.gmra.mxu0 %v6339
        %v11209 = vpop.f32.mrf.mxu0
        %v11210 = vadd.f32 %v11121, %v11209
        %v11211 = vpop.f32.mrf.mxu0
        %v11212 = vadd.f32 %v11123, %v11211
        %11213 = vmatmul.bf16.gmra.mxu0 %v6351
        %v11214 = vpop.f32.mrf.mxu0
        %v11215 = vadd.f32 %v11126, %v11214
        %v11216 = vpop.f32.mrf.mxu0
        %v11217 = vadd.f32 %v11128, %v11216
        %11218 = vmatmul.bf16.gmra.mxu0 %v6363
        %v11219 = vpop.f32.mrf.mxu0
        %v11220 = vadd.f32 %v11131, %v11219
        %v11221 = vpop.f32.mrf.mxu0
        %v11222 = vadd.f32 %v11133, %v11221
        %11223 = vdwg.mxu0
        %11224 = vmatpush.bf16.msra.mxu0 %v7950
        %11225 = vmatpush.bf16.msra.mxu0 %v7947
        %11226 = vmatpush.bf16.msra.mxu0 %v7944
        %11227 = vmatpush.bf16.msra.mxu0 %v7941
        %11228 = vmatpush.bf16.msra.mxu0 %v7938
        %11229 = vmatpush.bf16.msra.mxu0 %v7935
        %11230 = vmatpush.bf16.msra.mxu0 %v7932
        %11231 = vmatpush.bf16.msra.mxu0 %v7929
        %11232 = vmatmul.bf16.gmra.mxu0 %v6184
        %v11233 = vpop.f32.mrf.mxu0
        %v11234 = vadd.f32 %v11145, %v11233
        %v11235 = vpop.f32.mrf.mxu0
        %v11236 = vadd.f32 %v11147, %v11235
        %11237 = vmatmul.bf16.gmra.mxu0 %v6196
        %v11238 = vpop.f32.mrf.mxu0
        %v11239 = vadd.f32 %v11150, %v11238
        %v11240 = vpop.f32.mrf.mxu0
        %v11241 = vadd.f32 %v11152, %v11240
        %11242 = vmatmul.bf16.gmra.mxu0 %v6208
        %v11243 = vpop.f32.mrf.mxu0
        %v11244 = vadd.f32 %v11155, %v11243
        %v11245 = vpop.f32.mrf.mxu0
        %v11246 = vadd.f32 %v11157, %v11245
        %11247 = vmatmul.bf16.gmra.mxu0 %v6220
        %v11248 = vpop.f32.mrf.mxu0
        %v11249 = vadd.f32 %v11160, %v11248
        %v11250 = vpop.f32.mrf.mxu0
        %v11251 = vadd.f32 %v11162, %v11250
        %11252 = vmatmul.bf16.gmra.mxu0 %v6232
        %v11253 = vpop.f32.mrf.mxu0
        %v11254 = vadd.f32 %v11165, %v11253
        %v11255 = vpop.f32.mrf.mxu0
        %v11256 = vadd.f32 %v11167, %v11255
        %11257 = vmatmul.bf16.gmra.mxu0 %v6244
        %v11258 = vpop.f32.mrf.mxu0
        %v11259 = vadd.f32 %v11170, %v11258
        %v11260 = vpop.f32.mrf.mxu0
        %v11261 = vadd.f32 %v11172, %v11260
        %11262 = vmatmul.bf16.gmra.mxu0 %v6256
        %v11263 = vpop.f32.mrf.mxu0
        %v11264 = vadd.f32 %v11175, %v11263
        %v11265 = vpop.f32.mrf.mxu0
        %v11266 = vadd.f32 %v11177, %v11265
        %11267 = vmatmul.bf16.gmra.mxu0 %v6268
        %v11268 = vpop.f32.mrf.mxu0
        %v11269 = vadd.f32 %v11180, %v11268
        %v11270 = vpop.f32.mrf.mxu0
        %v11271 = vadd.f32 %v11182, %v11270
        %11272 = vmatmul.bf16.gmra.mxu0 %v6280
        %v11273 = vpop.f32.mrf.mxu0
        %v11274 = vadd.f32 %v11185, %v11273
        %v11275 = vpop.f32.mrf.mxu0
        %v11276 = vadd.f32 %v11187, %v11275
        %11277 = vmatmul.bf16.gmra.mxu0 %v6292
        %v11278 = vpop.f32.mrf.mxu0
        %v11279 = vadd.f32 %v11190, %v11278
        %v11280 = vpop.f32.mrf.mxu0
        %v11281 = vadd.f32 %v11192, %v11280
        %11282 = vmatmul.bf16.gmra.mxu0 %v6304
        %v11283 = vpop.f32.mrf.mxu0
        %v11284 = vadd.f32 %v11195, %v11283
        %v11285 = vpop.f32.mrf.mxu0
        %v11286 = vadd.f32 %v11197, %v11285
        %11287 = vmatmul.bf16.gmra.mxu0 %v6316
        %v11288 = vpop.f32.mrf.mxu0
        %v11289 = vadd.f32 %v11200, %v11288
        %v11290 = vpop.f32.mrf.mxu0
        %v11291 = vadd.f32 %v11202, %v11290
        %11292 = vmatmul.bf16.gmra.mxu0 %v6328
        %v11293 = vpop.f32.mrf.mxu0
        %v11294 = vadd.f32 %v11205, %v11293
        %v11295 = vpop.f32.mrf.mxu0
        %v11296 = vadd.f32 %v11207, %v11295
        %11297 = vmatmul.bf16.gmra.mxu0 %v6340
        %v11298 = vpop.f32.mrf.mxu0
        %v11299 = vadd.f32 %v11210, %v11298
        %v11300 = vpop.f32.mrf.mxu0
        %v11301 = vadd.f32 %v11212, %v11300
        %11302 = vmatmul.bf16.gmra.mxu0 %v6352
        %v11303 = vpop.f32.mrf.mxu0
        %v11304 = vadd.f32 %v11215, %v11303
        %v11305 = vpop.f32.mrf.mxu0
        %v11306 = vadd.f32 %v11217, %v11305
        %11307 = vmatmul.bf16.gmra.mxu0 %v6364
        %v11308 = vpop.f32.mrf.mxu0
        %v11309 = vadd.f32 %v11220, %v11308
        %v11310 = vpop.f32.mrf.mxu0
        %v11311 = vadd.f32 %v11222, %v11310
        %11312 = vdwg.mxu0
        %11313 = vmatpush.bf16.msra.mxu0 %v7974
        %11314 = vmatpush.bf16.msra.mxu0 %v7971
        %11315 = vmatpush.bf16.msra.mxu0 %v7968
        %11316 = vmatpush.bf16.msra.mxu0 %v7965
        %11317 = vmatpush.bf16.msra.mxu0 %v7962
        %11318 = vmatpush.bf16.msra.mxu0 %v7959
        %11319 = vmatpush.bf16.msra.mxu0 %v7956
        %11320 = vmatpush.bf16.msra.mxu0 %v7953
        %11321 = vmatmul.bf16.gmra.mxu0 %v6185
        %v11322 = vpop.f32.mrf.mxu0
        %v11323 = vadd.f32 %v11234, %v11322
        %v11324 = vpop.f32.mrf.mxu0
        %v11325 = vadd.f32 %v11236, %v11324
        %11326 = vmatmul.bf16.gmra.mxu0 %v6197
        %v11327 = vpop.f32.mrf.mxu0
        %v11328 = vadd.f32 %v11239, %v11327
        %v11329 = vpop.f32.mrf.mxu0
        %v11330 = vadd.f32 %v11241, %v11329
        %11331 = vmatmul.bf16.gmra.mxu0 %v6209
        %v11332 = vpop.f32.mrf.mxu0
        %v11333 = vadd.f32 %v11244, %v11332
        %v11334 = vpop.f32.mrf.mxu0
        %v11335 = vadd.f32 %v11246, %v11334
        %11336 = vmatmul.bf16.gmra.mxu0 %v6221
        %v11337 = vpop.f32.mrf.mxu0
        %v11338 = vadd.f32 %v11249, %v11337
        %v11339 = vpop.f32.mrf.mxu0
        %v11340 = vadd.f32 %v11251, %v11339
        %11341 = vmatmul.bf16.gmra.mxu0 %v6233
        %v11342 = vpop.f32.mrf.mxu0
        %v11343 = vadd.f32 %v11254, %v11342
        %v11344 = vpop.f32.mrf.mxu0
        %v11345 = vadd.f32 %v11256, %v11344
        %11346 = vmatmul.bf16.gmra.mxu0 %v6245
        %v11347 = vpop.f32.mrf.mxu0
        %v11348 = vadd.f32 %v11259, %v11347
        %v11349 = vpop.f32.mrf.mxu0
        %v11350 = vadd.f32 %v11261, %v11349
        %11351 = vmatmul.bf16.gmra.mxu0 %v6257
        %v11352 = vpop.f32.mrf.mxu0
        %v11353 = vadd.f32 %v11264, %v11352
        %v11354 = vpop.f32.mrf.mxu0
        %v11355 = vadd.f32 %v11266, %v11354
        %11356 = vmatmul.bf16.gmra.mxu0 %v6269
        %v11357 = vpop.f32.mrf.mxu0
        %v11358 = vadd.f32 %v11269, %v11357
        %v11359 = vpop.f32.mrf.mxu0
        %v11360 = vadd.f32 %v11271, %v11359
        %11361 = vmatmul.bf16.gmra.mxu0 %v6281
        %v11362 = vpop.f32.mrf.mxu0
        %v11363 = vadd.f32 %v11274, %v11362
        %v11364 = vpop.f32.mrf.mxu0
        %v11365 = vadd.f32 %v11276, %v11364
        %11366 = vmatmul.bf16.gmra.mxu0 %v6293
        %v11367 = vpop.f32.mrf.mxu0
        %v11368 = vadd.f32 %v11279, %v11367
        %v11369 = vpop.f32.mrf.mxu0
        %v11370 = vadd.f32 %v11281, %v11369
        %11371 = vmatmul.bf16.gmra.mxu0 %v6305
        %v11372 = vpop.f32.mrf.mxu0
        %v11373 = vadd.f32 %v11284, %v11372
        %v11374 = vpop.f32.mrf.mxu0
        %v11375 = vadd.f32 %v11286, %v11374
        %11376 = vmatmul.bf16.gmra.mxu0 %v6317
        %v11377 = vpop.f32.mrf.mxu0
        %v11378 = vadd.f32 %v11289, %v11377
        %v11379 = vpop.f32.mrf.mxu0
        %v11380 = vadd.f32 %v11291, %v11379
        %11381 = vmatmul.bf16.gmra.mxu0 %v6329
        %v11382 = vpop.f32.mrf.mxu0
        %v11383 = vadd.f32 %v11294, %v11382
        %v11384 = vpop.f32.mrf.mxu0
        %v11385 = vadd.f32 %v11296, %v11384
        %11386 = vmatmul.bf16.gmra.mxu0 %v6341
        %v11387 = vpop.f32.mrf.mxu0
        %v11388 = vadd.f32 %v11299, %v11387
        %v11389 = vpop.f32.mrf.mxu0
        %v11390 = vadd.f32 %v11301, %v11389
        %11391 = vmatmul.bf16.gmra.mxu0 %v6353
        %v11392 = vpop.f32.mrf.mxu0
        %v11393 = vadd.f32 %v11304, %v11392
        %v11394 = vpop.f32.mrf.mxu0
        %v11395 = vadd.f32 %v11306, %v11394
        %11396 = vmatmul.bf16.gmra.mxu0 %v6365
        %v11397 = vpop.f32.mrf.mxu0
        %v11398 = vadd.f32 %v11309, %v11397
        %v11399 = vpop.f32.mrf.mxu0
        %v11400 = vadd.f32 %v11311, %v11399
        %11401 = vdwg.mxu0
        %11402 = vmatpush.bf16.msra.mxu0 %v7998
        %11403 = vmatpush.bf16.msra.mxu0 %v7995
        %11404 = vmatpush.bf16.msra.mxu0 %v7992
        %11405 = vmatpush.bf16.msra.mxu0 %v7989
        %11406 = vmatpush.bf16.msra.mxu0 %v7986
        %11407 = vmatpush.bf16.msra.mxu0 %v7983
        %11408 = vmatpush.bf16.msra.mxu0 %v7980
        %11409 = vmatpush.bf16.msra.mxu0 %v7977
        %11410 = vmatmul.bf16.gmra.mxu0 %v6186
        %v11411 = vpop.f32.mrf.mxu0
        %v11412 = vadd.f32 %v11323, %v11411
        %v11413 = vpop.f32.mrf.mxu0
        %v11414 = vadd.f32 %v11325, %v11413
        %11415 = vmatmul.bf16.gmra.mxu0 %v6198
        %v11416 = vpop.f32.mrf.mxu0
        %v11417 = vadd.f32 %v11328, %v11416
        %v11418 = vpop.f32.mrf.mxu0
        %v11419 = vadd.f32 %v11330, %v11418
        %11420 = vmatmul.bf16.gmra.mxu0 %v6210
        %v11421 = vpop.f32.mrf.mxu0
        %v11422 = vadd.f32 %v11333, %v11421
        %v11423 = vpop.f32.mrf.mxu0
        %v11424 = vadd.f32 %v11335, %v11423
        %11425 = vmatmul.bf16.gmra.mxu0 %v6222
        %v11426 = vpop.f32.mrf.mxu0
        %v11427 = vadd.f32 %v11338, %v11426
        %v11428 = vpop.f32.mrf.mxu0
        %v11429 = vadd.f32 %v11340, %v11428
        %11430 = vmatmul.bf16.gmra.mxu0 %v6234
        %v11431 = vpop.f32.mrf.mxu0
        %v11432 = vadd.f32 %v11343, %v11431
        %v11433 = vpop.f32.mrf.mxu0
        %v11434 = vadd.f32 %v11345, %v11433
        %11435 = vmatmul.bf16.gmra.mxu0 %v6246
        %v11436 = vpop.f32.mrf.mxu0
        %v11437 = vadd.f32 %v11348, %v11436
        %v11438 = vpop.f32.mrf.mxu0
        %v11439 = vadd.f32 %v11350, %v11438
        %11440 = vmatmul.bf16.gmra.mxu0 %v6258
        %v11441 = vpop.f32.mrf.mxu0
        %v11442 = vadd.f32 %v11353, %v11441
        %v11443 = vpop.f32.mrf.mxu0
        %v11444 = vadd.f32 %v11355, %v11443
        %11445 = vmatmul.bf16.gmra.mxu0 %v6270
        %v11446 = vpop.f32.mrf.mxu0
        %v11447 = vadd.f32 %v11358, %v11446
        %v11448 = vpop.f32.mrf.mxu0
        %v11449 = vadd.f32 %v11360, %v11448
        %11450 = vmatmul.bf16.gmra.mxu0 %v6282
        %v11451 = vpop.f32.mrf.mxu0
        %v11452 = vadd.f32 %v11363, %v11451
        %v11453 = vpop.f32.mrf.mxu0
        %v11454 = vadd.f32 %v11365, %v11453
        %11455 = vmatmul.bf16.gmra.mxu0 %v6294
        %v11456 = vpop.f32.mrf.mxu0
        %v11457 = vadd.f32 %v11368, %v11456
        %v11458 = vpop.f32.mrf.mxu0
        %v11459 = vadd.f32 %v11370, %v11458
        %11460 = vmatmul.bf16.gmra.mxu0 %v6306
        %v11461 = vpop.f32.mrf.mxu0
        %v11462 = vadd.f32 %v11373, %v11461
        %v11463 = vpop.f32.mrf.mxu0
        %v11464 = vadd.f32 %v11375, %v11463
        %11465 = vmatmul.bf16.gmra.mxu0 %v6318
        %v11466 = vpop.f32.mrf.mxu0
        %v11467 = vadd.f32 %v11378, %v11466
        %v11468 = vpop.f32.mrf.mxu0
        %v11469 = vadd.f32 %v11380, %v11468
        %11470 = vmatmul.bf16.gmra.mxu0 %v6330
        %v11471 = vpop.f32.mrf.mxu0
        %v11472 = vadd.f32 %v11383, %v11471
        %v11473 = vpop.f32.mrf.mxu0
        %v11474 = vadd.f32 %v11385, %v11473
        %11475 = vmatmul.bf16.gmra.mxu0 %v6342
        %v11476 = vpop.f32.mrf.mxu0
        %v11477 = vadd.f32 %v11388, %v11476
        %v11478 = vpop.f32.mrf.mxu0
        %v11479 = vadd.f32 %v11390, %v11478
        %11480 = vmatmul.bf16.gmra.mxu0 %v6354
        %v11481 = vpop.f32.mrf.mxu0
        %v11482 = vadd.f32 %v11393, %v11481
        %v11483 = vpop.f32.mrf.mxu0
        %v11484 = vadd.f32 %v11395, %v11483
        %11485 = vmatmul.bf16.gmra.mxu0 %v6366
        %v11486 = vpop.f32.mrf.mxu0
        %v11487 = vadd.f32 %v11398, %v11486
        %v11488 = vpop.f32.mrf.mxu0
        %v11489 = vadd.f32 %v11400, %v11488
        %11490 = vdwg.mxu0
        %v11491 = vadd.f32 %v6079, %v9276
        %v11492 = vadd.f32 %v6080, %v10344
        %v11493 = vadd.f32 %v6081, %v11412
        %v11494 = vadd.f32 %v6082, %v9278
        %v11495 = vadd.f32 %v6083, %v10346
        %v11496 = vadd.f32 %v6084, %v11414
        %v11497 = vadd.f32 %v6085, %v9281
        %v11498 = vadd.f32 %v6086, %v10349
        %v11499 = vadd.f32 %v6087, %v11417
        %v11500 = vadd.f32 %v6088, %v9283
        %v11501 = vadd.f32 %v6089, %v10351
        %v11502 = vadd.f32 %v6090, %v11419
        %v11503 = vadd.f32 %v6091, %v9286
        %v11504 = vadd.f32 %v6092, %v10354
        %v11505 = vadd.f32 %v6093, %v11422
        %v11506 = vadd.f32 %v6094, %v9288
        %v11507 = vadd.f32 %v6095, %v10356
        %v11508 = vadd.f32 %v6096, %v11424
        %v11509 = vadd.f32 %v6097, %v9291
        %v11510 = vadd.f32 %v6098, %v10359
        %v11511 = vadd.f32 %v6099, %v11427
        %v11512 = vadd.f32 %v6100, %v9293
        %v11513 = vadd.f32 %v6101, %v10361
        %v11514 = vadd.f32 %v6102, %v11429
        %v11515 = vadd.f32 %v6103, %v9296
        %v11516 = vadd.f32 %v6104, %v10364
        %v11517 = vadd.f32 %v6105, %v11432
        %v11518 = vadd.f32 %v6106, %v9298
        %v11519 = vadd.f32 %v6107, %v10366
        %v11520 = vadd.f32 %v6108, %v11434
        %v11521 = vadd.f32 %v6109, %v9301
        %v11522 = vadd.f32 %v6110, %v10369
        %v11523 = vadd.f32 %v6111, %v11437
        %v11524 = vadd.f32 %v6112, %v9303
        %v11525 = vadd.f32 %v6113, %v10371
        %v11526 = vadd.f32 %v6114, %v11439
        %v11527 = vadd.f32 %v6115, %v9306
        %v11528 = vadd.f32 %v6116, %v10374
        %v11529 = vadd.f32 %v6117, %v11442
        %v11530 = vadd.f32 %v6118, %v9308
        %v11531 = vadd.f32 %v6119, %v10376
        %v11532 = vadd.f32 %v6120, %v11444
        %v11533 = vadd.f32 %v6121, %v9311
        %v11534 = vadd.f32 %v6122, %v10379
        %v11535 = vadd.f32 %v6123, %v11447
        %v11536 = vadd.f32 %v6124, %v9313
        %v11537 = vadd.f32 %v6125, %v10381
        %v11538 = vadd.f32 %v6126, %v11449
        %v11539 = vadd.f32 %v6127, %v9316
        %v11540 = vadd.f32 %v6128, %v10384
        %v11541 = vadd.f32 %v6129, %v11452
        %v11542 = vadd.f32 %v6130, %v9318
        %v11543 = vadd.f32 %v6131, %v10386
        %v11544 = vadd.f32 %v6132, %v11454
        %v11545 = vadd.f32 %v6133, %v9321
        %v11546 = vadd.f32 %v6134, %v10389
        %v11547 = vadd.f32 %v6135, %v11457
        %v11548 = vadd.f32 %v6136, %v9323
        %v11549 = vadd.f32 %v6137, %v10391
        %v11550 = vadd.f32 %v6138, %v11459
        %v11551 = vadd.f32 %v6139, %v9326
        %v11552 = vadd.f32 %v6140, %v10394
        %v11553 = vadd.f32 %v6141, %v11462
        %v11554 = vadd.f32 %v6142, %v9328
        %v11555 = vadd.f32 %v6143, %v10396
        %v11556 = vadd.f32 %v6144, %v11464
        %v11557 = vadd.f32 %v6145, %v9331
        %v11558 = vadd.f32 %v6146, %v10399
        %v11559 = vadd.f32 %v6147, %v11467
        %v11560 = vadd.f32 %v6148, %v9333
        %v11561 = vadd.f32 %v6149, %v10401
        %v11562 = vadd.f32 %v6150, %v11469
        %v11563 = vadd.f32 %v6151, %v9336
        %v11564 = vadd.f32 %v6152, %v10404
        %v11565 = vadd.f32 %v6153, %v11472
        %v11566 = vadd.f32 %v6154, %v9338
        %v11567 = vadd.f32 %v6155, %v10406
        %v11568 = vadd.f32 %v6156, %v11474
        %v11569 = vadd.f32 %v6157, %v9341
        %v11570 = vadd.f32 %v6158, %v10409
        %v11571 = vadd.f32 %v6159, %v11477
        %v11572 = vadd.f32 %v6160, %v9343
        %v11573 = vadd.f32 %v6161, %v10411
        %v11574 = vadd.f32 %v6162, %v11479
        %v11575 = vadd.f32 %v6163, %v9346
        %v11576 = vadd.f32 %v6164, %v10414
        %v11577 = vadd.f32 %v6165, %v11482
        %v11578 = vadd.f32 %v6166, %v9348
        %v11579 = vadd.f32 %v6167, %v10416
        %v11580 = vadd.f32 %v6168, %v11484
        %v11581 = vadd.f32 %v6169, %v9351
        %v11582 = vadd.f32 %v6170, %v10419
        %v11583 = vadd.f32 %v6171, %v11487
        %v11584 = vadd.f32 %v6172, %v9353
        %v11585 = vadd.f32 %v6173, %v10421
        %v11586 = vadd.f32 %v6174, %v11489
        %11587 = vst [vmem:[#allocation2] sm:$0xff] %v11491
        %11588 = vst [vmem:[#allocation2 + $0x8] sm:$0xff] %v11492
        %11589 = vst [vmem:[#allocation2 + $0x10] sm:$0xff] %v11493
        %11590 = vst [vmem:[#allocation2 + $0x18] sm:$0xff] %v11494
        %11591 = vst [vmem:[#allocation2 + $0x20] sm:$0xff] %v11495
        %11592 = vst [vmem:[#allocation2 + $0x28] sm:$0xff] %v11496
        %11593 = vst [vmem:[#allocation2 + $0x30] sm:$0xff] %v11497
        %11594 = vst [vmem:[#allocation2 + $0x38] sm:$0xff] %v11498
        %11595 = vst [vmem:[#allocation2 + $0x40] sm:$0xff] %v11499
        %11596 = vst [vmem:[#allocation2 + $0x48] sm:$0xff] %v11500
        %11597 = vst [vmem:[#allocation2 + $0x50] sm:$0xff] %v11501
        %11598 = vst [vmem:[#allocation2 + $0x58] sm:$0xff] %v11502
        %11599 = vst [vmem:[#allocation2 + $0x60] sm:$0xff] %v11503
        %11600 = vst [vmem:[#allocation2 + $0x68] sm:$0xff] %v11504
        %11601 = vst [vmem:[#allocation2 + $0x70] sm:$0xff] %v11505
        %11602 = vst [vmem:[#allocation2 + $0x78] sm:$0xff] %v11506
        %11603 = vst [vmem:[#allocation2 + $0x80] sm:$0xff] %v11507
        %11604 = vst [vmem:[#allocation2 + $0x88] sm:$0xff] %v11508
        %11605 = vst [vmem:[#allocation2 + $0x90] sm:$0xff] %v11509
        %11606 = vst [vmem:[#allocation2 + $0x98] sm:$0xff] %v11510
        %11607 = vst [vmem:[#allocation2 + $0xa0] sm:$0xff] %v11511
        %11608 = vst [vmem:[#allocation2 + $0xa8] sm:$0xff] %v11512
        %11609 = vst [vmem:[#allocation2 + $0xb0] sm:$0xff] %v11513
        %11610 = vst [vmem:[#allocation2 + $0xb8] sm:$0xff] %v11514
        %11611 = vst [vmem:[#allocation2 + $0xc0] sm:$0xff] %v11515
        %11612 = vst [vmem:[#allocation2 + $0xc8] sm:$0xff] %v11516
        %11613 = vst [vmem:[#allocation2 + $0xd0] sm:$0xff] %v11517
        %11614 = vst [vmem:[#allocation2 + $0xd8] sm:$0xff] %v11518
        %11615 = vst [vmem:[#allocation2 + $0xe0] sm:$0xff] %v11519
        %11616 = vst [vmem:[#allocation2 + $0xe8] sm:$0xff] %v11520
        %11617 = vst [vmem:[#allocation2 + $0xf0] sm:$0xff] %v11521
        %11618 = vst [vmem:[#allocation2 + $0xf8] sm:$0xff] %v11522
        %11619 = vst [vmem:[#allocation2 + $0x100] sm:$0xff] %v11523
        %11620 = vst [vmem:[#allocation2 + $0x108] sm:$0xff] %v11524
        %11621 = vst [vmem:[#allocation2 + $0x110] sm:$0xff] %v11525
        %11622 = vst [vmem:[#allocation2 + $0x118] sm:$0xff] %v11526
        %11623 = vst [vmem:[#allocation2 + $0x120] sm:$0xff] %v11527
        %11624 = vst [vmem:[#allocation2 + $0x128] sm:$0xff] %v11528
        %11625 = vst [vmem:[#allocation2 + $0x130] sm:$0xff] %v11529
        %11626 = vst [vmem:[#allocation2 + $0x138] sm:$0xff] %v11530
        %11627 = vst [vmem:[#allocation2 + $0x140] sm:$0xff] %v11531
        %11628 = vst [vmem:[#allocation2 + $0x148] sm:$0xff] %v11532
        %11629 = vst [vmem:[#allocation2 + $0x150] sm:$0xff] %v11533
        %11630 = vst [vmem:[#allocation2 + $0x158] sm:$0xff] %v11534
        %11631 = vst [vmem:[#allocation2 + $0x160] sm:$0xff] %v11535
        %11632 = vst [vmem:[#allocation2 + $0x168] sm:$0xff] %v11536
        %11633 = vst [vmem:[#allocation2 + $0x170] sm:$0xff] %v11537
        %11634 = vst [vmem:[#allocation2 + $0x178] sm:$0xff] %v11538
        %11635 = vst [vmem:[#allocation2 + $0x180] sm:$0xff] %v11539
        %11636 = vst [vmem:[#allocation2 + $0x188] sm:$0xff] %v11540
        %11637 = vst [vmem:[#allocation2 + $0x190] sm:$0xff] %v11541
        %11638 = vst [vmem:[#allocation2 + $0x198] sm:$0xff] %v11542
        %11639 = vst [vmem:[#allocation2 + $0x1a0] sm:$0xff] %v11543
        %11640 = vst [vmem:[#allocation2 + $0x1a8] sm:$0xff] %v11544
        %11641 = vst [vmem:[#allocation2 + $0x1b0] sm:$0xff] %v11545
        %11642 = vst [vmem:[#allocation2 + $0x1b8] sm:$0xff] %v11546
        %11643 = vst [vmem:[#allocation2 + $0x1c0] sm:$0xff] %v11547
        %11644 = vst [vmem:[#allocation2 + $0x1c8] sm:$0xff] %v11548
        %11645 = vst [vmem:[#allocation2 + $0x1d0] sm:$0xff] %v11549
        %11646 = vst [vmem:[#allocation2 + $0x1d8] sm:$0xff] %v11550
        %11647 = vst [vmem:[#allocation2 + $0x1e0] sm:$0xff] %v11551
        %11648 = vst [vmem:[#allocation2 + $0x1e8] sm:$0xff] %v11552
        %11649 = vst [vmem:[#allocation2 + $0x1f0] sm:$0xff] %v11553
        %11650 = vst [vmem:[#allocation2 + $0x1f8] sm:$0xff] %v11554
        %11651 = vst [vmem:[#allocation2 + $0x200] sm:$0xff] %v11555
        %11652 = vst [vmem:[#allocation2 + $0x208] sm:$0xff] %v11556
        %11653 = vst [vmem:[#allocation2 + $0x210] sm:$0xff] %v11557
        %11654 = vst [vmem:[#allocation2 + $0x218] sm:$0xff] %v11558
        %11655 = vst [vmem:[#allocation2 + $0x220] sm:$0xff] %v11559
        %11656 = vst [vmem:[#allocation2 + $0x228] sm:$0xff] %v11560
        %11657 = vst [vmem:[#allocation2 + $0x230] sm:$0xff] %v11561
        %11658 = vst [vmem:[#allocation2 + $0x238] sm:$0xff] %v11562
        %11659 = vst [vmem:[#allocation2 + $0x240] sm:$0xff] %v11563
        %11660 = vst [vmem:[#allocation2 + $0x248] sm:$0xff] %v11564
        %11661 = vst [vmem:[#allocation2 + $0x250] sm:$0xff] %v11565
        %11662 = vst [vmem:[#allocation2 + $0x258] sm:$0xff] %v11566
        %11663 = vst [vmem:[#allocation2 + $0x260] sm:$0xff] %v11567
        %11664 = vst [vmem:[#allocation2 + $0x268] sm:$0xff] %v11568
        %11665 = vst [vmem:[#allocation2 + $0x270] sm:$0xff] %v11569
        %11666 = vst [vmem:[#allocation2 + $0x278] sm:$0xff] %v11570
        %11667 = vst [vmem:[#allocation2 + $0x280] sm:$0xff] %v11571
        %11668 = vst [vmem:[#allocation2 + $0x288] sm:$0xff] %v11572
        %11669 = vst [vmem:[#allocation2 + $0x290] sm:$0xff] %v11573
        %11670 = vst [vmem:[#allocation2 + $0x298] sm:$0xff] %v11574
        %11671 = vst [vmem:[#allocation2 + $0x2a0] sm:$0xff] %v11575
        %11672 = vst [vmem:[#allocation2 + $0x2a8] sm:$0xff] %v11576
        %11673 = vst [vmem:[#allocation2 + $0x2b0] sm:$0xff] %v11577
        %11674 = vst [vmem:[#allocation2 + $0x2b8] sm:$0xff] %v11578
        %11675 = vst [vmem:[#allocation2 + $0x2c0] sm:$0xff] %v11579
        %11676 = vst [vmem:[#allocation2 + $0x2c8] sm:$0xff] %v11580
        %11677 = vst [vmem:[#allocation2 + $0x2d0] sm:$0xff] %v11581
        %11678 = vst [vmem:[#allocation2 + $0x2d8] sm:$0xff] %v11582
        %11679 = vst [vmem:[#allocation2 + $0x2e0] sm:$0xff] %v11583
        %11680 = vst [vmem:[#allocation2 + $0x2e8] sm:$0xff] %v11584
        %11681 = vst [vmem:[#allocation2 + $0x2f0] sm:$0xff] %v11585
        %11682 = vst [vmem:[#allocation2 + $0x2f8] sm:$0xff] %v11586
        // Predicated region
        $region45: #{feed_forward.1} parent=39 // pred_check
          %p11683 = pneg %p307
        $region46: #{feed_forward.1} parent=39 // pred_check_branch
          %11685 = sbr.rel (%p11683) target = $region48
        $region47: #{feed_forward.1} parent=39 // pred_region
          %v11686 = vld [vmem:[#allocation2] sm:$0xff]
          %v11687 = vld [vmem:[#allocation2 + $0x8] sm:$0xff]
          %v11688 = vld [vmem:[#allocation2 + $0x10] sm:$0xff]
          %v11689 = vld [vmem:[#allocation2 + $0x18] sm:$0xff]
          %v11690 = vld [vmem:[#allocation2 + $0x20] sm:$0xff]
          %v11691 = vld [vmem:[#allocation2 + $0x28] sm:$0xff]
          %v11692 = vld [vmem:[#allocation2 + $0x30] sm:$0xff]
          %v11693 = vld [vmem:[#allocation2 + $0x38] sm:$0xff]
          %v11694 = vld [vmem:[#allocation2 + $0x40] sm:$0xff]
          %v11695 = vld [vmem:[#allocation2 + $0x48] sm:$0xff]
          %v11696 = vld [vmem:[#allocation2 + $0x50] sm:$0xff]
          %v11697 = vld [vmem:[#allocation2 + $0x58] sm:$0xff]
          %v11698 = vld [vmem:[#allocation2 + $0x60] sm:$0xff]
          %v11699 = vld [vmem:[#allocation2 + $0x68] sm:$0xff]
          %v11700 = vld [vmem:[#allocation2 + $0x70] sm:$0xff]
          %v11701 = vld [vmem:[#allocation2 + $0x78] sm:$0xff]
          %v11702 = vld [vmem:[#allocation2 + $0x80] sm:$0xff]
          %v11703 = vld [vmem:[#allocation2 + $0x88] sm:$0xff]
          %v11704 = vld [vmem:[#allocation2 + $0x90] sm:$0xff]
          %v11705 = vld [vmem:[#allocation2 + $0x98] sm:$0xff]
          %v11706 = vld [vmem:[#allocation2 + $0xa0] sm:$0xff]
          %v11707 = vld [vmem:[#allocation2 + $0xa8] sm:$0xff]
          %v11708 = vld [vmem:[#allocation2 + $0xb0] sm:$0xff]
          %v11709 = vld [vmem:[#allocation2 + $0xb8] sm:$0xff]
          %v11710 = vld [vmem:[#allocation2 + $0xc0] sm:$0xff]
          %v11711 = vld [vmem:[#allocation2 + $0xc8] sm:$0xff]
          %v11712 = vld [vmem:[#allocation2 + $0xd0] sm:$0xff]
          %v11713 = vld [vmem:[#allocation2 + $0xd8] sm:$0xff]
          %v11714 = vld [vmem:[#allocation2 + $0xe0] sm:$0xff]
          %v11715 = vld [vmem:[#allocation2 + $0xe8] sm:$0xff]
          %v11716 = vld [vmem:[#allocation2 + $0xf0] sm:$0xff]
          %v11717 = vld [vmem:[#allocation2 + $0xf8] sm:$0xff]
          %v11718 = vld [vmem:[#allocation2 + $0x100] sm:$0xff]
          %v11719 = vld [vmem:[#allocation2 + $0x108] sm:$0xff]
          %v11720 = vld [vmem:[#allocation2 + $0x110] sm:$0xff]
          %v11721 = vld [vmem:[#allocation2 + $0x118] sm:$0xff]
          %v11722 = vld [vmem:[#allocation2 + $0x120] sm:$0xff]
          %v11723 = vld [vmem:[#allocation2 + $0x128] sm:$0xff]
          %v11724 = vld [vmem:[#allocation2 + $0x130] sm:$0xff]
          %v11725 = vld [vmem:[#allocation2 + $0x138] sm:$0xff]
          %v11726 = vld [vmem:[#allocation2 + $0x140] sm:$0xff]
          %v11727 = vld [vmem:[#allocation2 + $0x148] sm:$0xff]
          %v11728 = vld [vmem:[#allocation2 + $0x150] sm:$0xff]
          %v11729 = vld [vmem:[#allocation2 + $0x158] sm:$0xff]
          %v11730 = vld [vmem:[#allocation2 + $0x160] sm:$0xff]
          %v11731 = vld [vmem:[#allocation2 + $0x168] sm:$0xff]
          %v11732 = vld [vmem:[#allocation2 + $0x170] sm:$0xff]
          %v11733 = vld [vmem:[#allocation2 + $0x178] sm:$0xff]
          %v11734 = vld [vmem:[#allocation2 + $0x180] sm:$0xff]
          %v11735 = vld [vmem:[#allocation2 + $0x188] sm:$0xff]
          %v11736 = vld [vmem:[#allocation2 + $0x190] sm:$0xff]
          %v11737 = vld [vmem:[#allocation2 + $0x198] sm:$0xff]
          %v11738 = vld [vmem:[#allocation2 + $0x1a0] sm:$0xff]
          %v11739 = vld [vmem:[#allocation2 + $0x1a8] sm:$0xff]
          %v11740 = vld [vmem:[#allocation2 + $0x1b0] sm:$0xff]
          %v11741 = vld [vmem:[#allocation2 + $0x1b8] sm:$0xff]
          %v11742 = vld [vmem:[#allocation2 + $0x1c0] sm:$0xff]
          %v11743 = vld [vmem:[#allocation2 + $0x1c8] sm:$0xff]
          %v11744 = vld [vmem:[#allocation2 + $0x1d0] sm:$0xff]
          %v11745 = vld [vmem:[#allocation2 + $0x1d8] sm:$0xff]
          %v11746 = vld [vmem:[#allocation2 + $0x1e0] sm:$0xff]
          %v11747 = vld [vmem:[#allocation2 + $0x1e8] sm:$0xff]
          %v11748 = vld [vmem:[#allocation2 + $0x1f0] sm:$0xff]
          %v11749 = vld [vmem:[#allocation2 + $0x1f8] sm:$0xff]
          %v11750 = vld [vmem:[#allocation2 + $0x200] sm:$0xff]
          %v11751 = vld [vmem:[#allocation2 + $0x208] sm:$0xff]
          %v11752 = vld [vmem:[#allocation2 + $0x210] sm:$0xff]
          %v11753 = vld [vmem:[#allocation2 + $0x218] sm:$0xff]
          %v11754 = vld [vmem:[#allocation2 + $0x220] sm:$0xff]
          %v11755 = vld [vmem:[#allocation2 + $0x228] sm:$0xff]
          %v11756 = vld [vmem:[#allocation2 + $0x230] sm:$0xff]
          %v11757 = vld [vmem:[#allocation2 + $0x238] sm:$0xff]
          %v11758 = vld [vmem:[#allocation2 + $0x240] sm:$0xff]
          %v11759 = vld [vmem:[#allocation2 + $0x248] sm:$0xff]
          %v11760 = vld [vmem:[#allocation2 + $0x250] sm:$0xff]
          %v11761 = vld [vmem:[#allocation2 + $0x258] sm:$0xff]
          %v11762 = vld [vmem:[#allocation2 + $0x260] sm:$0xff]
          %v11763 = vld [vmem:[#allocation2 + $0x268] sm:$0xff]
          %v11764 = vld [vmem:[#allocation2 + $0x270] sm:$0xff]
          %v11765 = vld [vmem:[#allocation2 + $0x278] sm:$0xff]
          %v11766 = vld [vmem:[#allocation2 + $0x280] sm:$0xff]
          %v11767 = vld [vmem:[#allocation2 + $0x288] sm:$0xff]
          %v11768 = vld [vmem:[#allocation2 + $0x290] sm:$0xff]
          %v11769 = vld [vmem:[#allocation2 + $0x298] sm:$0xff]
          %v11770 = vld [vmem:[#allocation2 + $0x2a0] sm:$0xff]
          %v11771 = vld [vmem:[#allocation2 + $0x2a8] sm:$0xff]
          %v11772 = vld [vmem:[#allocation2 + $0x2b0] sm:$0xff]
          %v11773 = vld [vmem:[#allocation2 + $0x2b8] sm:$0xff]
          %v11774 = vld [vmem:[#allocation2 + $0x2c0] sm:$0xff]
          %v11775 = vld [vmem:[#allocation2 + $0x2c8] sm:$0xff]
          %v11776 = vld [vmem:[#allocation2 + $0x2d0] sm:$0xff]
          %v11777 = vld [vmem:[#allocation2 + $0x2d8] sm:$0xff]
          %v11778 = vld [vmem:[#allocation2 + $0x2e0] sm:$0xff]
          %v11779 = vld [vmem:[#allocation2 + $0x2e8] sm:$0xff]
          %v11780 = vld [vmem:[#allocation2 + $0x2f0] sm:$0xff]
          %v11781 = vld [vmem:[#allocation2 + $0x2f8] sm:$0xff]
          %11782 = vst [vmem:[%s280] sm:$0xff] %v11686
          %11783 = vst [vmem:[%s280 + $0x8] sm:$0xff] %v11687
          %11784 = vst [vmem:[%s280 + $0x10] sm:$0xff] %v11688
          %11785 = vst [vmem:[%s280 + $0x18] sm:$0xff] %v11689
          %11786 = vst [vmem:[%s280 + $0x20] sm:$0xff] %v11690
          %11787 = vst [vmem:[%s280 + $0x28] sm:$0xff] %v11691
          %11788 = vst [vmem:[%s280 + $0x30] sm:$0xff] %v11692
          %11789 = vst [vmem:[%s280 + $0x38] sm:$0xff] %v11693
          %11790 = vst [vmem:[%s280 + $0x40] sm:$0xff] %v11694
          %11791 = vst [vmem:[%s280 + $0x48] sm:$0xff] %v11695
          %11792 = vst [vmem:[%s280 + $0x50] sm:$0xff] %v11696
          %11793 = vst [vmem:[%s280 + $0x58] sm:$0xff] %v11697
          %11794 = vst [vmem:[%s280 + $0x60] sm:$0xff] %v11698
          %11795 = vst [vmem:[%s280 + $0x68] sm:$0xff] %v11699
          %11796 = vst [vmem:[%s280 + $0x70] sm:$0xff] %v11700
          %11797 = vst [vmem:[%s280 + $0x78] sm:$0xff] %v11701
          %11798 = vst [vmem:[%s280 + $0x80] sm:$0xff] %v11702
          %11799 = vst [vmem:[%s280 + $0x88] sm:$0xff] %v11703
          %11800 = vst [vmem:[%s280 + $0x90] sm:$0xff] %v11704
          %11801 = vst [vmem:[%s280 + $0x98] sm:$0xff] %v11705
          %11802 = vst [vmem:[%s280 + $0xa0] sm:$0xff] %v11706
          %11803 = vst [vmem:[%s280 + $0xa8] sm:$0xff] %v11707
          %11804 = vst [vmem:[%s280 + $0xb0] sm:$0xff] %v11708
          %11805 = vst [vmem:[%s280 + $0xb8] sm:$0xff] %v11709
          %11806 = vst [vmem:[%s280 + $0xc0] sm:$0xff] %v11710
          %11807 = vst [vmem:[%s280 + $0xc8] sm:$0xff] %v11711
          %11808 = vst [vmem:[%s280 + $0xd0] sm:$0xff] %v11712
          %11809 = vst [vmem:[%s280 + $0xd8] sm:$0xff] %v11713
          %11810 = vst [vmem:[%s280 + $0xe0] sm:$0xff] %v11714
          %11811 = vst [vmem:[%s280 + $0xe8] sm:$0xff] %v11715
          %11812 = vst [vmem:[%s280 + $0xf0] sm:$0xff] %v11716
          %11813 = vst [vmem:[%s280 + $0xf8] sm:$0xff] %v11717
          %11814 = vst [vmem:[%s280 + $0x100] sm:$0xff] %v11718
          %11815 = vst [vmem:[%s280 + $0x108] sm:$0xff] %v11719
          %11816 = vst [vmem:[%s280 + $0x110] sm:$0xff] %v11720
          %11817 = vst [vmem:[%s280 + $0x118] sm:$0xff] %v11721
          %11818 = vst [vmem:[%s280 + $0x120] sm:$0xff] %v11722
          %11819 = vst [vmem:[%s280 + $0x128] sm:$0xff] %v11723
          %11820 = vst [vmem:[%s280 + $0x130] sm:$0xff] %v11724
          %11821 = vst [vmem:[%s280 + $0x138] sm:$0xff] %v11725
          %11822 = vst [vmem:[%s280 + $0x140] sm:$0xff] %v11726
          %11823 = vst [vmem:[%s280 + $0x148] sm:$0xff] %v11727
          %11824 = vst [vmem:[%s280 + $0x150] sm:$0xff] %v11728
          %11825 = vst [vmem:[%s280 + $0x158] sm:$0xff] %v11729
          %11826 = vst [vmem:[%s280 + $0x160] sm:$0xff] %v11730
          %11827 = vst [vmem:[%s280 + $0x168] sm:$0xff] %v11731
          %11828 = vst [vmem:[%s280 + $0x170] sm:$0xff] %v11732
          %11829 = vst [vmem:[%s280 + $0x178] sm:$0xff] %v11733
          %11830 = vst [vmem:[%s280 + $0x180] sm:$0xff] %v11734
          %11831 = vst [vmem:[%s280 + $0x188] sm:$0xff] %v11735
          %11832 = vst [vmem:[%s280 + $0x190] sm:$0xff] %v11736
          %11833 = vst [vmem:[%s280 + $0x198] sm:$0xff] %v11737
          %11834 = vst [vmem:[%s280 + $0x1a0] sm:$0xff] %v11738
          %11835 = vst [vmem:[%s280 + $0x1a8] sm:$0xff] %v11739
          %11836 = vst [vmem:[%s280 + $0x1b0] sm:$0xff] %v11740
          %11837 = vst [vmem:[%s280 + $0x1b8] sm:$0xff] %v11741
          %11838 = vst [vmem:[%s280 + $0x1c0] sm:$0xff] %v11742
          %11839 = vst [vmem:[%s280 + $0x1c8] sm:$0xff] %v11743
          %11840 = vst [vmem:[%s280 + $0x1d0] sm:$0xff] %v11744
          %11841 = vst [vmem:[%s280 + $0x1d8] sm:$0xff] %v11745
          %11842 = vst [vmem:[%s280 + $0x1e0] sm:$0xff] %v11746
          %11843 = vst [vmem:[%s280 + $0x1e8] sm:$0xff] %v11747
          %11844 = vst [vmem:[%s280 + $0x1f0] sm:$0xff] %v11748
          %11845 = vst [vmem:[%s280 + $0x1f8] sm:$0xff] %v11749
          %11846 = vst [vmem:[%s280 + $0x200] sm:$0xff] %v11750
          %11847 = vst [vmem:[%s280 + $0x208] sm:$0xff] %v11751
          %11848 = vst [vmem:[%s280 + $0x210] sm:$0xff] %v11752
          %11849 = vst [vmem:[%s280 + $0x218] sm:$0xff] %v11753
          %11850 = vst [vmem:[%s280 + $0x220] sm:$0xff] %v11754
          %11851 = vst [vmem:[%s280 + $0x228] sm:$0xff] %v11755
          %11852 = vst [vmem:[%s280 + $0x230] sm:$0xff] %v11756
          %11853 = vst [vmem:[%s280 + $0x238] sm:$0xff] %v11757
          %11854 = vst [vmem:[%s280 + $0x240] sm:$0xff] %v11758
          %11855 = vst [vmem:[%s280 + $0x248] sm:$0xff] %v11759
          %11856 = vst [vmem:[%s280 + $0x250] sm:$0xff] %v11760
          %11857 = vst [vmem:[%s280 + $0x258] sm:$0xff] %v11761
          %11858 = vst [vmem:[%s280 + $0x260] sm:$0xff] %v11762
          %11859 = vst [vmem:[%s280 + $0x268] sm:$0xff] %v11763
          %11860 = vst [vmem:[%s280 + $0x270] sm:$0xff] %v11764
          %11861 = vst [vmem:[%s280 + $0x278] sm:$0xff] %v11765
          %11862 = vst [vmem:[%s280 + $0x280] sm:$0xff] %v11766
          %11863 = vst [vmem:[%s280 + $0x288] sm:$0xff] %v11767
          %11864 = vst [vmem:[%s280 + $0x290] sm:$0xff] %v11768
          %11865 = vst [vmem:[%s280 + $0x298] sm:$0xff] %v11769
          %11866 = vst [vmem:[%s280 + $0x2a0] sm:$0xff] %v11770
          %11867 = vst [vmem:[%s280 + $0x2a8] sm:$0xff] %v11771
          %11868 = vst [vmem:[%s280 + $0x2b0] sm:$0xff] %v11772
          %11869 = vst [vmem:[%s280 + $0x2b8] sm:$0xff] %v11773
          %11870 = vst [vmem:[%s280 + $0x2c0] sm:$0xff] %v11774
          %11871 = vst [vmem:[%s280 + $0x2c8] sm:$0xff] %v11775
          %11872 = vst [vmem:[%s280 + $0x2d0] sm:$0xff] %v11776
          %11873 = vst [vmem:[%s280 + $0x2d8] sm:$0xff] %v11777
          %11874 = vst [vmem:[%s280 + $0x2e0] sm:$0xff] %v11778
          %11875 = vst [vmem:[%s280 + $0x2e8] sm:$0xff] %v11779
          %11876 = vst [vmem:[%s280 + $0x2f0] sm:$0xff] %v11780
          %11877 = vst [vmem:[%s280 + $0x2f8] sm:$0xff] %v11781
        $region48: #{feed_forward.1} parent=39 // pred_fallthru
          _
        %s11878 = sand.u32 %s164, 1
        %s11879 = scalar_lea.sflag [#allocation4], %s11878
        %s11880 = sand.u32 %s164, 1
        %s11881 = smul.addr %s11880, 768
        %s11882 = scalar_lea.vmem [#allocation3], %s11881
        // Predicated region
        $region49: #{feed_forward.1} parent=39 // pred_check
          %p11883 = pneg %p174
        $region50: #{feed_forward.1} parent=39 // pred_check_branch
          %11885 = sbr.rel (%p11883) target = $region52
        $region51: #{feed_forward.1} parent=39 // pred_region
          %s11886 = smul.u32 32, %s23
          %11888 = vsyncadd %s11879, 0
          %s11889 = smul.addr %s11886, 3
          %s11890 = smul.addr %s11889, 8
          %s11891 = scalar_lea.hbm %s5, %s11890
          %s11892 = sshll.u32 %s11882, 4
          %s11893 = int_to_ptr.vmem [resolvable:$true] %s11892
          %s11894 = sshll.u32 %s11891, 4
          %s11895 = int_to_ptr.hbm [resolvable:$true] %s11894
          %11900 = dma.vmem_to_hbm [thread:$0]  %s11893, 12288, %s11895, %s11879, 384, 384, 24
        $region52: #{feed_forward.1} parent=39 // pred_fallthru
          _
      $region40: #{feed_forward.1} parent=5 // pred_fallthru
        _
      %p11901 = scmp.le.s32.totalorder 2, %s14
      // Predicated region
      $region53: #{feed_forward.1} parent=5 // pred_check
        %p11902 = pneg %p11901
      $region54: #{feed_forward.1} parent=5 // pred_check_branch
        %11904 = sbr.rel (%p11902) target = $region56
      $region55: #{feed_forward.1} parent=5 // pred_region
        %s11905 = ssub.s32 %s14, 2
        // Predicated region
        $region57: #{feed_forward.1} parent=55 // pred_check
          %p11906 = pneg %p180
        $region58: #{feed_forward.1} parent=55 // pred_check_branch
          %11908 = sbr.rel (%p11906) target = $region60
        $region59: #{feed_forward.1} parent=55 // pred_region
          %s11909 = sand.u32 %s165, 1
          %s11910 = scalar_lea.sflag [#allocation4], %s11909
          %s11911 = sand.u32 %s165, 1
          %s11912 = smul.addr %s11911, 768
          %s11913 = scalar_lea.vmem [#allocation3], %s11912
          %11915 = dma.done %s11910, 12288
        $region60: #{feed_forward.1} parent=55 // pred_fallthru
          _
      $region56: #{feed_forward.1} parent=5 // pred_fallthru
        _
    $region6: #{feed_forward.1} parent=1 // loop_footer
      %s18 = sadd.s32 1, %s14
    $region7: #{feed_forward.1} parent=1 // loop_footer_branch
      %13 = sbr.rel target = $region3
    $region8: #{feed_forward.1} parent=1 // loop_exit
      _
    %11916 = vsyncpa [#allocation4], 1
    %s11917 = scalar_lea.sflag [#allocation4], 1
    %11918 = vsyncpa %s11917, 1

</llo_original>
